<compile_context>
chip_gen: v5e
topology: v5e:2x2
jax: 0.10.0
libtpu: 0.0.40
codegen_flags: <defaults>
</compile_context>

<pallas_src>
import functools
import math

import jax
import jax.numpy as jnp
from jax.experimental import pallas as pl
from jax.experimental.pallas import tpu as pltpu


# ----------------------------------------------------------------------------
# Helpers
# ----------------------------------------------------------------------------
def _pick_rows_tile(m, target):
    """Largest divisor of m that is <= target and a multiple of 8 (sublane
    friendly); falls back to a single full-M block.  Keeps activation blocks
    inside the VMEM budget without wrapper-side padding of M."""
    t = min(target, m)
    if t == m:
        return m
    for cand in range(t, 7, -1):
        if m % cand == 0 and cand % 8 == 0:
            return cand
    return m


def _im2col_3x3_same(x):
    # x: (N, H, W, C) bf16 -> (N*H*W, 9*C); rows ordered (ky, kx, cin), matching
    # the conv-weight layout baked in prepare_params().
    N, H, W, C = x.shape
    xp = jnp.pad(x, ((0, 0), (1, 1), (1, 1), (0, 0)))
    cols = [xp[:, ky:ky + H, kx:kx + W, :] for ky in range(3) for kx in range(3)]
    return jnp.concatenate(cols, axis=-1).reshape(N * H * W, 9 * C)


def _avg_pool_2x2(x):
    # AvgPool2d(2, 2) on NHWC; mean computed in f32.
    N, H, W, C = x.shape
    x = x.astype(jnp.float32).reshape(N, H // 2, 2, W // 2, 2, C)
    return x.mean(axis=(2, 4))


# ----------------------------------------------------------------------------
# Kernel 1: fused matmul + bias + ReLU (used for conv1's im2col matmul).
# A is the lane-dense "two pixels per row" view, B is the block-diagonal
# doubled weight, so the output is a 128-wide bf16 tile (unmasked stores).
# ----------------------------------------------------------------------------
def _mm_bias_relu_kernel(a_ref, b_ref, bias_ref, o_ref):
    acc = jnp.dot(a_ref[...], b_ref[...], preferred_element_type=jnp.float32)
    o_ref[...] = jnp.maximum(acc + bias_ref[...], 0.0).astype(o_ref.dtype)


def fused_matmul_bias_relu(a, b, bias, *, tm_target=512):
    M, K = a.shape
    Kb, Np = b.shape
    assert K == Kb
    tm = _pick_rows_tile(M, tm_target)
    flops = 2 * M * K * Np
    bytes_acc = (M * K + K * Np + M * Np) * 2 + Np * 4
    return pl.pallas_call(
        _mm_bias_relu_kernel,
        out_shape=jax.ShapeDtypeStruct((M, Np), jnp.bfloat16),
        grid=(M // tm,),
        in_specs=[pl.BlockSpec((tm, K), lambda i: (i, 0)),
                  pl.BlockSpec((K, Np), lambda i: (0, 0)),
                  pl.BlockSpec((1, Np), lambda i: (0, 0))],
        out_specs=pl.BlockSpec((tm, Np), lambda i: (i, 0)),
        compiler_params=pltpu.CompilerParams(
            dimension_semantics=("parallel",),
            vmem_limit_bytes=32 << 20),
        cost_estimate=pl.CostEstimate(flops=flops, transcendentals=0,
                                      bytes_accessed=bytes_acc),
    )(a, b, bias)


# ----------------------------------------------------------------------------
# Kernel 2: 3x3 conv + bias + ReLU with im2col fused in-kernel.
# The padded NHWC activation is flattened to (N*Hp*Wp, C); for a fixed tap
# (ky, kx) the needed input row for output row r is simply r + ky*Wp + kx,
# so each tap is a row-shifted slice of the current block (+ a small halo).
# Invalid rows (apron / cross-image) are computed but discarded by the
# wrapper's slice, costing ~27% extra MXU work instead of 9x HBM traffic.
# ----------------------------------------------------------------------------
def _conv3x3_flat_kernel(x_ref, halo_ref, w_ref, b_ref, o_ref, xs_ref,
                         *, tm, hb, wp, cin):
    # Stitch current block + halo into one f32 VMEM slab (f32 keeps the
    # row-offset slices on natively tiled data).
    xs_ref[0:tm, :] = x_ref[...].astype(jnp.float32)
    xs_ref[tm:tm + hb, :] = halo_ref[...].astype(jnp.float32)
    acc = None
    k = 0
    for ky in range(3):
        for kx in range(3):
            off = ky * wp + kx
            win = xs_ref[off:off + tm, :].astype(jnp.bfloat16)
            part = jnp.dot(win, w_ref[k * cin:(k + 1) * cin, :],
                           preferred_element_type=jnp.float32)
            acc = part if acc is None else acc + part
            k += 1
    o_ref[...] = jnp.maximum(acc + b_ref[...], 0.0).astype(o_ref.dtype)


def conv3x3_bias_relu(x_nhwc, w2d, bias, *, tm=512, hb=64):
    """3x3 'same' conv + bias + ReLU.  x_nhwc: (N,H,W,C) bf16, w2d: (9C, Cout)
    bf16 (rows ordered ky,kx,cin), bias: (1, Cout) f32.  Returns NHWC bf16."""
    N, H, W, C = x_nhwc.shape
    Cout = w2d.shape[1]
    Hp, Wp = H + 2, W + 2
    assert tm % hb == 0 and 2 * Wp + 2 <= hb, "halo block too small for width"
    xp = jnp.pad(x_nhwc, ((0, 0), (1, 1), (1, 1), (0, 0)))
    M = N * Hp * Wp
    steps = pl.cdiv(M, tm)
    Mp = steps * tm
    # Extra tm zero rows so the halo block of the last step and the taps that
    # run past the end read zeros instead of going out of bounds.
    xf = jnp.pad(xp.reshape(M, C), ((0, Mp + tm - M), (0, 0)))

    kernel = functools.partial(_conv3x3_flat_kernel, tm=tm, hb=hb, wp=Wp, cin=C)
    flops = 2 * Mp * 9 * C * Cout
    bytes_acc = (Mp * C + 9 * C * Cout + Mp * Cout) * 2 + Cout * 4
    yf = pl.pallas_call(
        kernel,
        out_shape=jax.ShapeDtypeStruct((Mp, Cout), jnp.bfloat16),
        grid=(steps,),
        in_specs=[pl.BlockSpec((tm, C), lambda i: (i, 0)),
                  pl.BlockSpec((hb, C), lambda i: ((i + 1) * (tm // hb), 0)),
                  pl.BlockSpec((9 * C, Cout), lambda i: (0, 0)),
                  pl.BlockSpec((1, Cout), lambda i: (0, 0))],
        out_specs=pl.BlockSpec((tm, Cout), lambda i: (i, 0)),
        scratch_shapes=[pltpu.VMEM((tm + hb, C), jnp.float32)],
        compiler_params=pltpu.CompilerParams(
            dimension_semantics=("parallel",),
            vmem_limit_bytes=32 << 20),
        cost_estimate=pl.CostEstimate(flops=flops, transcendentals=0,
                                      bytes_accessed=bytes_acc),
    )(xf, xf, w2d, bias)
    # Valid conv outputs live at padded-grid positions [0:H, 0:W] per image.
    return yf[:M].reshape(N, Hp, Wp, Cout)[:, :H, :W, :]


# ----------------------------------------------------------------------------
# Kernel 3: fused fc1 + ReLU + fc2 (z never leaves VMEM between the two dots).
# ----------------------------------------------------------------------------
def _mlp_kernel(x_ref, w1_ref, b1_ref, w2_ref, b2_ref, logits_ref, z_ref):
    z = jnp.dot(x_ref[...], w1_ref[...], preferred_element_type=jnp.float32)
    z = jnp.maximum(z + b1_ref[...], 0.0)
    z_ref[...] = z
    logits_ref[...] = jnp.dot(z.astype(jnp.bfloat16), w2_ref[...],
                              preferred_element_type=jnp.float32) + b2_ref[...]


def fused_mlp(x, w1, b1, w2, b2, *, tm_target=256):
    M, K = x.shape
    H1 = w1.shape[1]
    Np = w2.shape[1]
    tm = _pick_rows_tile(M, tm_target)
    flops = 2 * M * K * H1 + 2 * M * H1 * Np
    bytes_acc = (M * K + K * H1 + H1 * Np) * 2 + M * (Np + H1) * 4
    logits, z = pl.pallas_call(
        _mlp_kernel,
        out_shape=(jax.ShapeDtypeStruct((M, Np), jnp.float32),
                   jax.ShapeDtypeStruct((M, H1), jnp.float32)),
        grid=(M // tm,),
        in_specs=[pl.BlockSpec((tm, K), lambda i: (i, 0)),
                  pl.BlockSpec((K, H1), lambda i: (0, 0)),
                  pl.BlockSpec((1, H1), lambda i: (0, 0)),
                  pl.BlockSpec((H1, Np), lambda i: (0, 0)),
                  pl.BlockSpec((1, Np), lambda i: (0, 0))],
        out_specs=(pl.BlockSpec((tm, Np), lambda i: (i, 0)),
                   pl.BlockSpec((tm, H1), lambda i: (i, 0))),
        compiler_params=pltpu.CompilerParams(
            dimension_semantics=("parallel",),
            vmem_limit_bytes=32 << 20),
        cost_estimate=pl.CostEstimate(flops=flops, transcendentals=0,
                                      bytes_accessed=bytes_acc),
    )(x, w1, b1, w2, b2)
    return logits, z


# ----------------------------------------------------------------------------
# One-time parameter preparation (PyTorch layout -> kernel layout, bf16).
# ----------------------------------------------------------------------------
def prepare_params(raw):
    bf = jnp.bfloat16
    # conv1: (64,3,3,3) -> (27,64) rows ordered (ky,kx,cin), then block-diag
    # doubled to (54,128) so the kernel emits a lane-dense (M/2,128) output.
    c1 = jnp.transpose(raw['conv1_w'], (2, 3, 1, 0)).reshape(27, 64)
    c1d = jnp.zeros((54, 128), jnp.float32)
    c1d = c1d.at[:27, :64].set(c1).at[27:, 64:].set(c1)
    conv1_b = jnp.concatenate([raw['conv1_b'], raw['conv1_b']]).reshape(1, 128)

    # conv2: (128,64,3,3) -> (576,128) rows ordered (ky,kx,cin).
    c2 = jnp.transpose(raw['conv2_w'], (2, 3, 1, 0)).reshape(9 * 64, 128)
    conv2_b = raw['conv2_b'].reshape(1, 128)

    # fc1: permute input features from NCHW-flatten to NHWC-flatten order,
    # transpose to (in,out), zero-pad 200 -> 256 output columns.
    h1 = raw['fc1_b'].shape[0]                       # 200
    h1p = ((h1 + 127) // 128) * 128                  # 256
    d_flat = raw['fc1_w'].shape[1]                   # 8192
    s = int(round(math.sqrt(d_flat // 128)))         # 8
    f1 = raw['fc1_w'].reshape(h1, 128, s, s).transpose(0, 2, 3, 1)
    f1 = f1.reshape(h1, d_flat).T                    # (8192, 200), NHWC rows
    f1 = jnp.pad(f1, ((0, 0), (0, h1p - h1)))
    fc1_b = jnp.pad(raw['fc1_b'], (0, h1p - h1)).reshape(1, h1p)

    # fc2: (n_classes,200) -> (256, pad128(n_classes)); zero-padded rows/cols.
    n_cls = raw['fc2_w'].shape[0]
    n_pad = ((n_cls + 127) // 128) * 128
    f2 = jnp.pad(raw['fc2_w'].T, ((0, h1p - h1), (0, n_pad - n_cls)))
    fc2_b = jnp.pad(raw['fc2_b'], (0, n_pad - n_cls)).reshape(1, n_pad)

    return {
        'conv1_w': c1d.astype(bf), 'conv1_b': conv1_b.astype(jnp.float32),
        'conv2_w': c2.astype(bf),  'conv2_b': conv2_b.astype(jnp.float32),
        'fc1_w': f1.astype(bf),    'fc1_b': fc1_b.astype(jnp.float32),
        'fc2_w': f2.astype(bf),    'fc2_b': fc2_b.astype(jnp.float32),
    }


# ----------------------------------------------------------------------------
# Full forward pass (matches DLFConvNet3.forward; 3 Pallas calls total).
# ----------------------------------------------------------------------------
def dlf_convnet3_forward(prep, x_nchw, *, n_classes, return_z=False):
    x = jnp.transpose(x_nchw, (0, 2, 3, 1)).astype(jnp.bfloat16)   # NHWC bf16
    N, H, W, _ = x.shape

    # conv1 + bias + ReLU (lane-dense (M/2,128) bf16 output), then pool1.
    p1 = _im2col_3x3_same(x)                                # (N*H*W, 27)
    a1 = p1.reshape(N * H * W // 2, 2 * 27)                 # two pixels / row
    y1 = fused_matmul_bias_relu(a1, prep['conv1_w'], prep['conv1_b'],
                                tm_target=512)
    y1 = _avg_pool_2x2(y1.reshape(N, H, W, 64))             # (N,H/2,W/2,64) f32

    # conv2 + bias + ReLU with im2col fused in-kernel, then pool2.
    y2 = conv3x3_bias_relu(y1.astype(jnp.bfloat16),
                           prep['conv2_w'], prep['conv2_b'])  # bf16
    y2 = _avg_pool_2x2(y2)                                   # (N,H/4,W/4,128)

    # Flatten in NHWC order (fc1 weight rows were permuted to match).
    flat = y2.reshape(N, -1).astype(jnp.bfloat16)            # (N, 8192)

    # fc1 + ReLU + fc2 in one fused call; slice off the lane padding.
    logits_p, z_p = fused_mlp(flat, prep['fc1_w'], prep['fc1_b'],
                              prep['fc2_w'], prep['fc2_b'])
    logits = logits_p[:, :n_classes]
    if return_z:
        return logits, z_p[:, :200]
    return logits


# ----------------------------------------------------------------------------
# Deterministic parameter init (PyTorch default-init shapes / bounds).
# ----------------------------------------------------------------------------
def init_raw_params(key, n_classes=100, in_hw=32):
    ks = jax.random.split(key, 8)
    d_flat = 128 * (in_hw // 4) * (in_hw // 4)

    def u(k, shape, fan_in):
        b = 1.0 / math.sqrt(fan_in)
        return jax.random.uniform(k, shape, jnp.float32, -b, b)

    return {
        'conv1_w': u(ks[0], (64, 3, 3, 3), 3 * 9),
        'conv1_b': u(ks[1], (64,), 3 * 9),
        'conv2_w': u(ks[2], (128, 64, 3, 3), 64 * 9),
        'conv2_b': u(ks[3], (128,), 64 * 9),
        'fc1_w': u(ks[4], (200, d_flat), d_flat),
        'fc1_b': u(ks[5], (200,), d_flat),
        'fc2_w': u(ks[6], (n_classes, 200), 200),
        'fc2_b': u(ks[7], (n_classes,), 200),
    }


if __name__ == "__main__":
    key = jax.random.PRNGKey(0)
    pkey, xkey = jax.random.split(key)
    n_classes = 100                      # CIFAR-100 per the module docstring
    raw = init_raw_params(pkey, n_classes=n_classes, in_hw=32)
    prep = prepare_params(raw)           # one-time layout/dtype baking
    # 3x32x32 input is required so flatten matches Linear(128*8*8, 200).
    x = jax.random.normal(xkey, (2, 3, 32, 32), jnp.float32)
    fwd = jax.jit(functools.partial(dlf_convnet3_forward, n_classes=n_classes))
    out = fwd(prep, x)
    jax.block_until_ready(out)
    assert out.shape == (2, n_classes)
    print("KERNEL_OK")
</pallas_src>

<mosaic_0001>
module attributes {stable_mosaic.version = 11 : i64} {
  func.func @_mm_bias_relu_kernel(%arg0: i32, %arg1: memref<512x54xbf16, #tpu.memory_space<vmem>>, %arg2: memref<54x128xbf16, #tpu.memory_space<vmem>>, %arg3: memref<1x128xf32, #tpu.memory_space<vmem>>, %arg4: memref<512x128xbf16, #tpu.memory_space<vmem>>) attributes {dimension_semantics = [#tpu.dimension_semantics<parallel>], iteration_bounds = array<i64: 2>, scalar_prefetch = 0 : i64, scratch_operands = 0 : i64, tpu.core_type = #tpu.core_type<tc>, window_params = [{transform_indices = @transform_0, window_bounds = array<i64: 512, 54>}, {pipeline_mode = #tpu.pipeline_mode<synchronous>, transform_indices = @transform_1, window_bounds = array<i64: 54, 128>}, {pipeline_mode = #tpu.pipeline_mode<synchronous>, transform_indices = @transform_2, window_bounds = array<i64: 1, 128>}, {transform_indices = @transform_3, window_bounds = array<i64: 512, 128>}]} {
    %c0 = arith.constant 0 : index
    %c0_0 = arith.constant 0 : index
    %0 = vector.load %arg1[%c0, %c0_0] : memref<512x54xbf16, #tpu.memory_space<vmem>>, vector<512x54xbf16>
    %c0_1 = arith.constant 0 : index
    %c0_2 = arith.constant 0 : index
    %1 = vector.load %arg2[%c0_1, %c0_2] : memref<54x128xbf16, #tpu.memory_space<vmem>>, vector<54x128xbf16>
    %cst = arith.constant dense<0.000000e+00> : vector<512x128xf32>
    %2 = tpu.matmul %0, %1, %cst {dimension_numbers = #tpu.dot_dimension_numbers<[1], [0], [0], [1], [0, 0, 1, 1], [], []>} : vector<512x54xbf16>, vector<54x128xbf16>, vector<512x128xf32> -> vector<512x128xf32>
    %c0_3 = arith.constant 0 : index
    %c0_4 = arith.constant 0 : index
    %3 = vector.load %arg3[%c0_3, %c0_4] : memref<1x128xf32, #tpu.memory_space<vmem>>, vector<1x128xf32>
    %4 = vector.broadcast %3 : vector<1x128xf32> to vector<512x128xf32>
    %5 = arith.addf %2, %4 : vector<512x128xf32>
    %cst_5 = arith.constant 0.000000e+00 : f32
    %6 = vector.broadcast %cst_5 : f32 to vector<512x128xf32>
    %7 = arith.maximumf %5, %6 : vector<512x128xf32>
    %8 = arith.truncf %7 : vector<512x128xf32> to vector<512x128xbf16>
    %c0_6 = arith.constant 0 : index
    %c0_7 = arith.constant 0 : index
    %9 = vector.load %arg4[%c0_6, %c0_7] : memref<512x128xbf16, #tpu.memory_space<vmem>>, vector<512x128xbf16>
    tpu.vector_store %arg4[%c0_6, %c0_7], %8 {strides = array<i32>} : memref<512x128xbf16, #tpu.memory_space<vmem>>, vector<512x128xbf16>,
    return
  }
  func.func @transform_0(%arg0: i32) -> (i32, i32) {
    %c0_i32 = arith.constant 0 : i32
    %c0_i32_0 = arith.constant 0 : i32
    return %arg0, %c0_i32 : i32, i32
  }
  func.func @transform_1(%arg0: i32) -> (i32, i32) {
    %c0_i32 = arith.constant 0 : i32
    %c0_i32_0 = arith.constant 0 : i32
    %c0_i32_1 = arith.constant 0 : i32
    return %c0_i32, %c0_i32_0 : i32, i32
  }
  func.func @transform_2(%arg0: i32) -> (i32, i32) {
    %c0_i32 = arith.constant 0 : i32
    %c0_i32_0 = arith.constant 0 : i32
    %c0_i32_1 = arith.constant 0 : i32
    return %c0_i32, %c0_i32_0 : i32, i32
  }
  func.func @transform_3(%arg0: i32) -> (i32, i32) {
    %c0_i32 = arith.constant 0 : i32
    %c0_i32_0 = arith.constant 0 : i32
    return %arg0, %c0_i32 : i32, i32
  }
}

module attributes {stable_mosaic.version = 11 : i64} {
  func.func @_conv3x3_flat_kernel(%arg0: i32, %arg1: memref<512x64xbf16, #tpu.memory_space<vmem>>, %arg2: memref<64x64xbf16, #tpu.memory_space<vmem>>, %arg3: memref<576x128xbf16, #tpu.memory_space<vmem>>, %arg4: memref<1x128xf32, #tpu.memory_space<vmem>>, %arg5: memref<512x128xbf16, #tpu.memory_space<vmem>>, %arg6: memref<576x64xf32, #tpu.memory_space<vmem>>) attributes {dimension_semantics = [#tpu.dimension_semantics<parallel>], iteration_bounds = array<i64: 2>, scalar_prefetch = 0 : i64, scratch_operands = 1 : i64, tpu.core_type = #tpu.core_type<tc>, window_params = [{transform_indices = @transform_0, window_bounds = array<i64: 512, 64>}, {transform_indices = @transform_1, window_bounds = array<i64: 64, 64>}, {pipeline_mode = #tpu.pipeline_mode<synchronous>, transform_indices = @transform_2, window_bounds = array<i64: 576, 128>}, {pipeline_mode = #tpu.pipeline_mode<synchronous>, transform_indices = @transform_3, window_bounds = array<i64: 1, 128>}, {transform_indices = @transform_4, window_bounds = array<i64: 512, 128>}]} {
    %c0 = arith.constant 0 : index
    %c0_0 = arith.constant 0 : index
    %0 = vector.load %arg1[%c0, %c0_0] : memref<512x64xbf16, #tpu.memory_space<vmem>>, vector<512x64xbf16>
    %1 = arith.extf %0 : vector<512x64xbf16> to vector<512x64xf32>
    %c0_1 = arith.constant 0 : index
    %c0_2 = arith.constant 0 : index
    %2 = vector.load %arg6[%c0_1, %c0_2] : memref<576x64xf32, #tpu.memory_space<vmem>>, vector<512x64xf32>
    tpu.vector_store %arg6[%c0_1, %c0_2], %1 {strides = array<i32>} : memref<576x64xf32, #tpu.memory_space<vmem>>, vector<512x64xf32>,
    %c0_3 = arith.constant 0 : index
    %c0_4 = arith.constant 0 : index
    %3 = vector.load %arg2[%c0_3, %c0_4] : memref<64x64xbf16, #tpu.memory_space<vmem>>, vector<64x64xbf16>
    %4 = arith.extf %3 : vector<64x64xbf16> to vector<64x64xf32>
    %c512 = arith.constant 512 : index
    %c0_5 = arith.constant 0 : index
    %5 = vector.load %arg6[%c512, %c0_5] : memref<576x64xf32, #tpu.memory_space<vmem>>, vector<64x64xf32>
    tpu.vector_store %arg6[%c512, %c0_5], %4 {strides = array<i32>} : memref<576x64xf32, #tpu.memory_space<vmem>>, vector<64x64xf32>,
    %c0_6 = arith.constant 0 : index
    %c0_7 = arith.constant 0 : index
    %6 = vector.load %arg6[%c0_6, %c0_7] : memref<576x64xf32, #tpu.memory_space<vmem>>, vector<512x64xf32>
    %7 = arith.truncf %6 : vector<512x64xf32> to vector<512x64xbf16>
    %c0_8 = arith.constant 0 : index
    %c0_9 = arith.constant 0 : index
    %8 = vector.load %arg3[%c0_8, %c0_9] : memref<576x128xbf16, #tpu.memory_space<vmem>>, vector<64x128xbf16>
    %cst = arith.constant dense<0.000000e+00> : vector<512x128xf32>
    %9 = tpu.matmul %7, %8, %cst {dimension_numbers = #tpu.dot_dimension_numbers<[1], [0], [0], [1], [0, 0, 1, 1], [], []>} : vector<512x64xbf16>, vector<64x128xbf16>, vector<512x128xf32> -> vector<512x128xf32>
    %c1 = arith.constant 1 : index
    %c0_10 = arith.constant 0 : index
    %10 = vector.load %arg6[%c1, %c0_10] : memref<576x64xf32, #tpu.memory_space<vmem>>, vector<512x64xf32>
    %11 = arith.truncf %10 : vector<512x64xf32> to vector<512x64xbf16>
    %c64 = arith.constant 64 : index
    %c0_11 = arith.constant 0 : index
    %12 = vector.load %arg3[%c64, %c0_11] : memref<576x128xbf16, #tpu.memory_space<vmem>>, vector<64x128xbf16>
    %cst_12 = arith.constant dense<0.000000e+00> : vector<512x128xf32>
    %13 = tpu.matmul %11, %12, %cst_12 {dimension_numbers = #tpu.dot_dimension_numbers<[1], [0], [0], [1], [0, 0, 1, 1], [], []>} : vector<512x64xbf16>, vector<64x128xbf16>, vector<512x128xf32> -> vector<512x128xf32>
    %14 = arith.addf %9, %13 : vector<512x128xf32>
    %c2 = arith.constant 2 : index
    %c0_13 = arith.constant 0 : index
    %15 = vector.load %arg6[%c2, %c0_13] : memref<576x64xf32, #tpu.memory_space<vmem>>, vector<512x64xf32>
    %16 = arith.truncf %15 : vector<512x64xf32> to vector<512x64xbf16>
    %c128 = arith.constant 128 : index
    %c0_14 = arith.constant 0 : index
    %17 = vector.load %arg3[%c128, %c0_14] : memref<576x128xbf16, #tpu.memory_space<vmem>>, vector<64x128xbf16>
    %cst_15 = arith.constant dense<0.000000e+00> : vector<512x128xf32>
    %18 = tpu.matmul %16, %17, %cst_15 {dimension_numbers = #tpu.dot_dimension_numbers<[1], [0], [0], [1], [0, 0, 1, 1], [], []>} : vector<512x64xbf16>, vector<64x128xbf16>, vector<512x128xf32> -> vector<512x128xf32>
    %19 = arith.addf %14, %18 : vector<512x128xf32>
    %c18 = arith.constant 18 : index
    %c0_16 = arith.constant 0 : index
    %20 = vector.load %arg6[%c18, %c0_16] : memref<576x64xf32, #tpu.memory_space<vmem>>, vector<512x64xf32>
    %21 = arith.truncf %20 : vector<512x64xf32> to vector<512x64xbf16>
    %c192 = arith.constant 192 : index
    %c0_17 = arith.constant 0 : index
    %22 = vector.load %arg3[%c192, %c0_17] : memref<576x128xbf16, #tpu.memory_space<vmem>>, vector<64x128xbf16>
    %cst_18 = arith.constant dense<0.000000e+00> : vector<512x128xf32>
    %23 = tpu.matmul %21, %22, %cst_18 {dimension_numbers = #tpu.dot_dimension_numbers<[1], [0], [0], [1], [0, 0, 1, 1], [], []>} : vector<512x64xbf16>, vector<64x128xbf16>, vector<512x128xf32> -> vector<512x128xf32>
    %24 = arith.addf %19, %23 : vector<512x128xf32>
    %c19 = arith.constant 19 : index
    %c0_19 = arith.constant 0 : index
    %25 = vector.load %arg6[%c19, %c0_19] : memref<576x64xf32, #tpu.memory_space<vmem>>, vector<512x64xf32>
    %26 = arith.truncf %25 : vector<512x64xf32> to vector<512x64xbf16>
    %c256 = arith.constant 256 : index
    %c0_20 = arith.constant 0 : index
    %27 = vector.load %arg3[%c256, %c0_20] : memref<576x128xbf16, #tpu.memory_space<vmem>>, vector<64x128xbf16>
    %cst_21 = arith.constant dense<0.000000e+00> : vector<512x128xf32>
    %28 = tpu.matmul %26, %27, %cst_21 {dimension_numbers = #tpu.dot_dimension_numbers<[1], [0], [0], [1], [0, 0, 1, 1], [], []>} : vector<512x64xbf16>, vector<64x128xbf16>, vector<512x128xf32> -> vector<512x128xf32>
    %29 = arith.addf %24, %28 : vector<512x128xf32>
    %c20 = arith.constant 20 : index
    %c0_22 = arith.constant 0 : index
    %30 = vector.load %arg6[%c20, %c0_22] : memref<576x64xf32, #tpu.memory_space<vmem>>, vector<512x64xf32>
    %31 = arith.truncf %30 : vector<512x64xf32> to vector<512x64xbf16>
    %c320 = arith.constant 320 : index
    %c0_23 = arith.constant 0 : index
    %32 = vector.load %arg3[%c320, %c0_23] : memref<576x128xbf16, #tpu.memory_space<vmem>>, vector<64x128xbf16>
    %cst_24 = arith.constant dense<0.000000e+00> : vector<512x128xf32>
    %33 = tpu.matmul %31, %32, %cst_24 {dimension_numbers = #tpu.dot_dimension_numbers<[1], [0], [0], [1], [0, 0, 1, 1], [], []>} : vector<512x64xbf16>, vector<64x128xbf16>, vector<512x128xf32> -> vector<512x128xf32>
    %34 = arith.addf %29, %33 : vector<512x128xf32>
    %c36 = arith.constant 36 : index
    %c0_25 = arith.constant 0 : index
    %35 = vector.load %arg6[%c36, %c0_25] : memref<576x64xf32, #tpu.memory_space<vmem>>, vector<512x64xf32>
    %36 = arith.truncf %35 : vector<512x64xf32> to vector<512x64xbf16>
    %c384 = arith.constant 384 : index
    %c0_26 = arith.constant 0 : index
    %37 = vector.load %arg3[%c384, %c0_26] : memref<576x128xbf16, #tpu.memory_space<vmem>>, vector<64x128xbf16>
    %cst_27 = arith.constant dense<0.000000e+00> : vector<512x128xf32>
    %38 = tpu.matmul %36, %37, %cst_27 {dimension_numbers = #tpu.dot_dimension_numbers<[1], [0], [0], [1], [0, 0, 1, 1], [], []>} : vector<512x64xbf16>, vector<64x128xbf16>, vector<512x128xf32> -> vector<512x128xf32>
    %39 = arith.addf %34, %38 : vector<512x128xf32>
    %c37 = arith.constant 37 : index
    %c0_28 = arith.constant 0 : index
    %40 = vector.load %arg6[%c37, %c0_28] : memref<576x64xf32, #tpu.memory_space<vmem>>, vector<512x64xf32>
    %41 = arith.truncf %40 : vector<512x64xf32> to vector<512x64xbf16>
    %c448 = arith.constant 448 : index
    %c0_29 = arith.constant 0 : index
    %42 = vector.load %arg3[%c448, %c0_29] : memref<576x128xbf16, #tpu.memory_space<vmem>>, vector<64x128xbf16>
    %cst_30 = arith.constant dense<0.000000e+00> : vector<512x128xf32>
    %43 = tpu.matmul %41, %42, %cst_30 {dimension_numbers = #tpu.dot_dimension_numbers<[1], [0], [0], [1], [0, 0, 1, 1], [], []>} : vector<512x64xbf16>, vector<64x128xbf16>, vector<512x128xf32> -> vector<512x128xf32>
    %44 = arith.addf %39, %43 : vector<512x128xf32>
    %c38 = arith.constant 38 : index
    %c0_31 = arith.constant 0 : index
    %45 = vector.load %arg6[%c38, %c0_31] : memref<576x64xf32, #tpu.memory_space<vmem>>, vector<512x64xf32>
    %46 = arith.truncf %45 : vector<512x64xf32> to vector<512x64xbf16>
    %c512_32 = arith.constant 512 : index
    %c0_33 = arith.constant 0 : index
    %47 = vector.load %arg3[%c512_32, %c0_33] : memref<576x128xbf16, #tpu.memory_space<vmem>>, vector<64x128xbf16>
    %cst_34 = arith.constant dense<0.000000e+00> : vector<512x128xf32>
    %48 = tpu.matmul %46, %47, %cst_34 {dimension_numbers = #tpu.dot_dimension_numbers<[1], [0], [0], [1], [0, 0, 1, 1], [], []>} : vector<512x64xbf16>, vector<64x128xbf16>, vector<512x128xf32> -> vector<512x128xf32>
    %49 = arith.addf %44, %48 : vector<512x128xf32>
    %c0_35 = arith.constant 0 : index
    %c0_36 = arith.constant 0 : index
    %50 = vector.load %arg4[%c0_35, %c0_36] : memref<1x128xf32, #tpu.memory_space<vmem>>, vector<1x128xf32>
    %51 = vector.broadcast %50 : vector<1x128xf32> to vector<512x128xf32>
    %52 = arith.addf %49, %51 : vector<512x128xf32>
    %cst_37 = arith.constant 0.000000e+00 : f32
    %53 = vector.broadcast %cst_37 : f32 to vector<512x128xf32>
    %54 = arith.maximumf %52, %53 : vector<512x128xf32>
    %55 = arith.truncf %54 : vector<512x128xf32> to vector<512x128xbf16>
    %c0_38 = arith.constant 0 : index
    %c0_39 = arith.constant 0 : index
    %56 = vector.load %arg5[%c0_38, %c0_39] : memref<512x128xbf16, #tpu.memory_space<vmem>>, vector<512x128xbf16>
    tpu.vector_store %arg5[%c0_38, %c0_39], %55 {strides = array<i32>} : memref<512x128xbf16, #tpu.memory_space<vmem>>, vector<512x128xbf16>,
    return
  }
  func.func @transform_0(%arg0: i32) -> (i32, i32) {
    %c0_i32 = arith.constant 0 : i32
    %c0_i32_0 = arith.constant 0 : i32
    return %arg0, %c0_i32 : i32, i32
  }
  func.func @transform_1(%arg0: i32) -> (i32, i32) {
    %c1_i32 = arith.constant 1 : i32
    %0 = arith.addi %arg0, %c1_i32 : i32
    %c8_i32 = arith.constant 8 : i32
    %1 = arith.muli %0, %c8_i32 : i32
    %c0_i32 = arith.constant 0 : i32
    %c0_i32_0 = arith.constant 0 : i32
    return %1, %c0_i32 : i32, i32
  }
  func.func @transform_2(%arg0: i32) -> (i32, i32) {
    %c0_i32 = arith.constant 0 : i32
    %c0_i32_0 = arith.constant 0 : i32
    %c0_i32_1 = arith.constant 0 : i32
    return %c0_i32, %c0_i32_0 : i32, i32
  }
  func.func @transform_3(%arg0: i32) -> (i32, i32) {
    %c0_i32 = arith.constant 0 : i32
    %c0_i32_0 = arith.constant 0 : i32
    %c0_i32_1 = arith.constant 0 : i32
    return %c0_i32, %c0_i32_0 : i32, i32
  }
  func.func @transform_4(%arg0: i32) -> (i32, i32) {
    %c0_i32 = arith.constant 0 : i32
    %c0_i32_0 = arith.constant 0 : i32
    return %arg0, %c0_i32 : i32, i32
  }
}

module attributes {stable_mosaic.version = 11 : i64} {
  func.func @_mlp_kernel(%arg0: i32, %arg1: memref<2x8192xbf16, #tpu.memory_space<vmem>>, %arg2: memref<8192x256xbf16, #tpu.memory_space<vmem>>, %arg3: memref<1x256xf32, #tpu.memory_space<vmem>>, %arg4: memref<256x128xbf16, #tpu.memory_space<vmem>>, %arg5: memref<1x128xf32, #tpu.memory_space<vmem>>, %arg6: memref<2x128xf32, #tpu.memory_space<vmem>>, %arg7: memref<2x256xf32, #tpu.memory_space<vmem>>) attributes {dimension_semantics = [#tpu.dimension_semantics<parallel>], iteration_bounds = array<i64: 1>, scalar_prefetch = 0 : i64, scratch_operands = 0 : i64, tpu.core_type = #tpu.core_type<tc>, window_params = [{transform_indices = @transform_0, window_bounds = array<i64: 2, 8192>}, {pipeline_mode = #tpu.pipeline_mode<synchronous>, transform_indices = @transform_1, window_bounds = array<i64: 8192, 256>}, {pipeline_mode = #tpu.pipeline_mode<synchronous>, transform_indices = @transform_2, window_bounds = array<i64: 1, 256>}, {pipeline_mode = #tpu.pipeline_mode<synchronous>, transform_indices = @transform_3, window_bounds = array<i64: 256, 128>}, {pipeline_mode = #tpu.pipeline_mode<synchronous>, transform_indices = @transform_4, window_bounds = array<i64: 1, 128>}, {transform_indices = @transform_5, window_bounds = array<i64: 2, 128>}, {transform_indices = @transform_6, window_bounds = array<i64: 2, 256>}]} {
    %c0 = arith.constant 0 : index
    %c0_0 = arith.constant 0 : index
    %0 = vector.load %arg1[%c0, %c0_0] : memref<2x8192xbf16, #tpu.memory_space<vmem>>, vector<2x8192xbf16>
    %c0_1 = arith.constant 0 : index
    %c0_2 = arith.constant 0 : index
    %1 = vector.load %arg2[%c0_1, %c0_2] : memref<8192x256xbf16, #tpu.memory_space<vmem>>, vector<8192x256xbf16>
    %cst = arith.constant dense<0.000000e+00> : vector<2x256xf32>
    %2 = tpu.matmul %0, %1, %cst {dimension_numbers = #tpu.dot_dimension_numbers<[1], [0], [0], [1], [0, 0, 1, 1], [], []>} : vector<2x8192xbf16>, vector<8192x256xbf16>, vector<2x256xf32> -> vector<2x256xf32>
    %c0_3 = arith.constant 0 : index
    %c0_4 = arith.constant 0 : index
    %3 = vector.load %arg3[%c0_3, %c0_4] : memref<1x256xf32, #tpu.memory_space<vmem>>, vector<1x256xf32>
    %4 = vector.broadcast %3 : vector<1x256xf32> to vector<2x256xf32>
    %5 = arith.addf %2, %4 : vector<2x256xf32>
    %cst_5 = arith.constant 0.000000e+00 : f32
    %6 = vector.broadcast %cst_5 : f32 to vector<2x256xf32>
    %7 = arith.maximumf %5, %6 : vector<2x256xf32>
    %c0_6 = arith.constant 0 : index
    %c0_7 = arith.constant 0 : index
    %8 = vector.load %arg7[%c0_6, %c0_7] : memref<2x256xf32, #tpu.memory_space<vmem>>, vector<2x256xf32>
    tpu.vector_store %arg7[%c0_6, %c0_7], %7 {strides = array<i32>} : memref<2x256xf32, #tpu.memory_space<vmem>>, vector<2x256xf32>,
    %9 = arith.truncf %7 : vector<2x256xf32> to vector<2x256xbf16>
    %c0_8 = arith.constant 0 : index
    %c0_9 = arith.constant 0 : index
    %10 = vector.load %arg4[%c0_8, %c0_9] : memref<256x128xbf16, #tpu.memory_space<vmem>>, vector<256x128xbf16>
    %cst_10 = arith.constant dense<0.000000e+00> : vector<2x128xf32>
    %11 = tpu.matmul %9, %10, %cst_10 {dimension_numbers = #tpu.dot_dimension_numbers<[1], [0], [0], [1], [0, 0, 1, 1], [], []>} : vector<2x256xbf16>, vector<256x128xbf16>, vector<2x128xf32> -> vector<2x128xf32>
    %c0_11 = arith.constant 0 : index
    %c0_12 = arith.constant 0 : index
    %12 = vector.load %arg5[%c0_11, %c0_12] : memref<1x128xf32, #tpu.memory_space<vmem>>, vector<1x128xf32>
    %13 = vector.broadcast %12 : vector<1x128xf32> to vector<2x128xf32>
    %14 = arith.addf %11, %13 : vector<2x128xf32>
    %c0_13 = arith.constant 0 : index
    %c0_14 = arith.constant 0 : index
    %15 = vector.load %arg6[%c0_13, %c0_14] : memref<2x128xf32, #tpu.memory_space<vmem>>, vector<2x128xf32>
    tpu.vector_store %arg6[%c0_13, %c0_14], %14 {strides = array<i32>} : memref<2x128xf32, #tpu.memory_space<vmem>>, vector<2x128xf32>,
    return
  }
  func.func @transform_0(%arg0: i32) -> (i32, i32) {
    %c0_i32 = arith.constant 0 : i32
    %c0_i32_0 = arith.constant 0 : i32
    return %arg0, %c0_i32 : i32, i32
  }
  func.func @transform_1(%arg0: i32) -> (i32, i32) {
    %c0_i32 = arith.constant 0 : i32
    %c0_i32_0 = arith.constant 0 : i32
    %c0_i32_1 = arith.constant 0 : i32
    return %c0_i32, %c0_i32_0 : i32, i32
  }
  func.func @transform_2(%arg0: i32) -> (i32, i32) {
    %c0_i32 = arith.constant 0 : i32
    %c0_i32_0 = arith.constant 0 : i32
    %c0_i32_1 = arith.constant 0 : i32
    return %c0_i32, %c0_i32_0 : i32, i32
  }
  func.func @transform_3(%arg0: i32) -> (i32, i32) {
    %c0_i32 = arith.constant 0 : i32
    %c0_i32_0 = arith.constant 0 : i32
    %c0_i32_1 = arith.constant 0 : i32
    return %c0_i32, %c0_i32_0 : i32, i32
  }
  func.func @transform_4(%arg0: i32) -> (i32, i32) {
    %c0_i32 = arith.constant 0 : i32
    %c0_i32_0 = arith.constant 0 : i32
    %c0_i32_1 = arith.constant 0 : i32
    return %c0_i32, %c0_i32_0 : i32, i32
  }
  func.func @transform_5(%arg0: i32) -> (i32, i32) {
    %c0_i32 = arith.constant 0 : i32
    %c0_i32_0 = arith.constant 0 : i32
    return %arg0, %c0_i32 : i32, i32
  }
  func.func @transform_6(%arg0: i32) -> (i32, i32) {
    %c0_i32 = arith.constant 0 : i32
    %c0_i32_0 = arith.constant 0 : i32
    return %arg0, %c0_i32 : i32, i32
  }
}

</mosaic_0001>

<llo_original>
// kernel: dlf_convnet3_forward.3
$region0: #{dlf_convnet3_forward.3}
  #allocation0 [shape = 'u32[]', space=smem, size = 0x4, offset = 0x4, fixed_abs, tag = 'smem constant byte address 0x4 - core index']
  #allocation1 [shape = 'u32[72,128]{1,0:T(1,128)}', space=vmem, size = 0x9000, scoped, tag = 'internal scratch']
  %s0 = inlined_call_operand.vmem [shape: bf16[1024,54], index: 0, kind: input, shape index: {}]
  %s1 = inlined_call_operand.hbm [shape: bf16[54,128], index: 1, kind: input, shape index: {}]
  %s2 = inlined_call_operand.hbm [shape: f32[1,128], index: 2, kind: input, shape index: {}]
  %s3 = inlined_call_operand.vmem [shape: bf16[1024,128], index: 3, kind: output, shape index: {}]
  %s4 = sld [smem:[#allocation0]]
  $region53: #{dlf_convnet3_forward.3} parent=0
    _
  %s6 = ssub.s32 1, %s4
  %s7 = scalar_select 0, %s6, %s4
  $region1: #{dlf_convnet3_forward.3} parent=0
    #allocation2 [shape = 'u8[14336]{0}', space=vmem, size = 0x3800, scoped, tag = 'input window, operand 1, single buffered']
    #allocation3 [shape = 's32[2]{0}', space=sflag, size = 0x8, scoped, tag = 'scoped memory for dlf_convnet3_forward.3']
    #allocation4 [shape = 'u8[512]{0}', space=vmem, size = 0x400, scoped, tag = 'input window, operand 2, single buffered']
    #allocation5 [shape = 's32[1]{0}', space=sflag, size = 0x4, scoped, tag = 'scoped memory for dlf_convnet3_forward.3']
    %8 = vsyncpa [#allocation3], 0
    %9 = vsyncpa [#allocation5], 0
    loop: start=0, step=1, limit=4
    $region2: #{dlf_convnet3_forward.3} parent=1 // loop_pre_header
      _
    $region3: #{dlf_convnet3_forward.3} parent=1 // loop_header
      %s11 = sphi 0, %s15
      %p12 = scmp.ge.s32.totalorder %s11, 4
      %s21 = sphi 0, %s23
      %s24 = sphi 0, %s21
      %s25 = sphi 0, %s24
      %s41 = sphi 0, %s25
      %s45 = sphi 0, %s45
      %s47 = sphi 0, %s45
      %s48 = sphi 0, %s47
      %s62 = sphi 0, %s48
      %s66 = sphi 0, %s66
      %s68 = sphi 0, %s66
      %s69 = sphi 0, %s68
      %s83 = sphi 0, %s69
      %s89 = sphi 0, %s91
      %s92 = sphi 0, %s89
      %s93 = sphi 0, %s92
      %s109 = sphi 0, %s93
    $region4: #{dlf_convnet3_forward.3} parent=1 // loop_header_branch
      %14 = sbr.rel (%p12) target = $region8
    $region5: #{dlf_convnet3_forward.3} parent=1 // loop_body
      %s16 = ssub.s32 %s11, 1
      %s17 = ssub.s32 %s11, 2
      %s18 = sadd.s32 %s11, 1
      %s19 = ssub.s32 %s11, %s18
      %p20 = scmp.eq.s32.totalorder %s19, 0
      %s22 = sadd.s32 %s21, 1
      %s23 = scalar_select %p20, %s21, %s22
      %p26 = pneg %p20
      %p27 = scmp.eq.s32.totalorder %s11, 1
      %p28 = por %p26, %p27
      %p29 = scmp.ne.s32.totalorder %s21, %s24
      %p30 = scmp.eq.s32.totalorder %s11, 0
      %p31 = por %p29, %p30
      %p32 = scmp.ne.s32.totalorder %s21, %s24
      %p33 = scmp.eq.s32.totalorder %s16, 1
      %p34 = por %p32, %p33
      %p35 = scmp.ne.s32.totalorder %s24, %s25
      %p36 = scmp.eq.s32.totalorder %s16, 0
      %p37 = por %p35, %p36
      %p38 = scmp.ne.s32.totalorder %s24, %s25
      %p39 = scmp.eq.s32.totalorder %s17, 1
      %p40 = por %p38, %p39
      %p42 = scmp.ne.s32.totalorder %s25, %s41
      %p43 = scmp.eq.s32.totalorder %s17, 0
      %p44 = por %p42, %p43
      %s46 = sadd.s32 %s45, 1
      %p49 = scmp.eq.s32.totalorder %s11, 1
      %p50 = scmp.ne.s32.totalorder %s45, %s47
      %p51 = scmp.eq.s32.totalorder %s11, 0
      %p52 = por %p50, %p51
      %p53 = scmp.ne.s32.totalorder %s45, %s47
      %p54 = scmp.eq.s32.totalorder %s16, 1
      %p55 = por %p53, %p54
      %p56 = scmp.ne.s32.totalorder %s47, %s48
      %p57 = scmp.eq.s32.totalorder %s16, 0
      %p58 = por %p56, %p57
      %p59 = scmp.ne.s32.totalorder %s47, %s48
      %p60 = scmp.eq.s32.totalorder %s17, 1
      %p61 = por %p59, %p60
      %p63 = scmp.ne.s32.totalorder %s48, %s62
      %p64 = scmp.eq.s32.totalorder %s17, 0
      %p65 = por %p63, %p64
      %s67 = sadd.s32 %s66, 1
      %p70 = scmp.eq.s32.totalorder %s11, 1
      %p71 = scmp.ne.s32.totalorder %s66, %s68
      %p72 = scmp.eq.s32.totalorder %s11, 0
      %p73 = por %p71, %p72
      %p74 = scmp.ne.s32.totalorder %s66, %s68
      %p75 = scmp.eq.s32.totalorder %s16, 1
      %p76 = por %p74, %p75
      %p77 = scmp.ne.s32.totalorder %s68, %s69
      %p78 = scmp.eq.s32.totalorder %s16, 0
      %p79 = por %p77, %p78
      %p80 = scmp.ne.s32.totalorder %s68, %s69
      %p81 = scmp.eq.s32.totalorder %s17, 1
      %p82 = por %p80, %p81
      %p84 = scmp.ne.s32.totalorder %s69, %s83
      %p85 = scmp.eq.s32.totalorder %s17, 0
      %p86 = por %p84, %p85
      %s87 = ssub.s32 %s11, %s18
      %p88 = scmp.eq.s32.totalorder %s87, 0
      %s90 = sadd.s32 %s89, 1
      %s91 = scalar_select %p88, %s89, %s90
      %p94 = pneg %p88
      %p95 = scmp.eq.s32.totalorder %s11, 1
      %p96 = por %p94, %p95
      %p97 = scmp.ne.s32.totalorder %s89, %s92
      %p98 = scmp.eq.s32.totalorder %s11, 0
      %p99 = por %p97, %p98
      %p100 = scmp.ne.s32.totalorder %s89, %s92
      %p101 = scmp.eq.s32.totalorder %s16, 1
      %p102 = por %p100, %p101
      %p103 = scmp.ne.s32.totalorder %s92, %s93
      %p104 = scmp.eq.s32.totalorder %s16, 0
      %p105 = por %p103, %p104
      %p106 = scmp.ne.s32.totalorder %s92, %s93
      %p107 = scmp.eq.s32.totalorder %s17, 1
      %p108 = por %p106, %p107
      %p110 = scmp.ne.s32.totalorder %s93, %s109
      %p111 = scmp.eq.s32.totalorder %s17, 0
      %p112 = por %p110, %p111
      %p113 = scmp.le.s32.totalorder 1, %s11
      %p114 = scmp.lt.s32.totalorder %s11, 3
      %p115 = pnand %p113, %p114
      %p116 = pneg %p115
      // Predicated region
      $region9: #{dlf_convnet3_forward.3} parent=5 // pred_check
        _
      $region10: #{dlf_convnet3_forward.3} parent=5 // pred_check_branch
        %118 = sbr.rel (%p115) target = $region12
      $region11: #{dlf_convnet3_forward.3} parent=5 // pred_region
        %s119 = ssub.s32 %s11, 1
        // Predicated region
        $region13: #{dlf_convnet3_forward.3} parent=11 // pred_check
          %p120 = pneg %p58
        $region14: #{dlf_convnet3_forward.3} parent=11 // pred_check_branch
          %122 = sbr.rel (%p120) target = $region16
        $region15: #{dlf_convnet3_forward.3} parent=11 // pred_region
          %124 = vsyncadd [#allocation3], 0
          %s125 = sshll.u32 %s1, 4
          %s126 = int_to_ptr.hbm [resolvable:$true] %s125
          %s127 = sshll.u32 [#allocation2], 4
          %s128 = int_to_ptr.vmem [resolvable:$true] %s127
          %133 = dma.hbm_to_vmem [thread:$0]  %s126, 448, %s128, [#allocation3], 64, 64, 4
        $region16: #{dlf_convnet3_forward.3} parent=11 // pred_fallthru
          _
        // Predicated region
        $region17: #{dlf_convnet3_forward.3} parent=11 // pred_check
          %p134 = pneg %p79
        $region18: #{dlf_convnet3_forward.3} parent=11 // pred_check_branch
          %136 = sbr.rel (%p134) target = $region20
        $region19: #{dlf_convnet3_forward.3} parent=11 // pred_region
          %138 = vsyncadd [#allocation5], 0
          %s140 = sshll.u32 %s2, 4
          %s141 = int_to_ptr.hbm [resolvable:$true] %s140
          %s142 = sshll.u32 [#allocation4], 4
          %s143 = int_to_ptr.vmem [resolvable:$true] %s142
          %145 = dma.hbm_to_vmem [thread:$0]  %s141, 16, %s143, [#allocation5]
        $region20: #{dlf_convnet3_forward.3} parent=11 // pred_fallthru
          _
      $region12: #{dlf_convnet3_forward.3} parent=5 // pred_fallthru
        _
      %p146 = scmp.lt.s32.totalorder %s11, 2
      // Predicated region
      $region21: #{dlf_convnet3_forward.3} parent=5 // pred_check
        %p147 = pneg %p146
      $region22: #{dlf_convnet3_forward.3} parent=5 // pred_check_branch
        %149 = sbr.rel (%p147) target = $region24
      $region23: #{dlf_convnet3_forward.3} parent=5 // pred_region
        // Predicated region
        $region25: #{dlf_convnet3_forward.3} parent=23 // pred_check
          %p150 = pneg %p31
        $region26: #{dlf_convnet3_forward.3} parent=23 // pred_check_branch
          %152 = sbr.rel (%p150) target = $region28
        $region27: #{dlf_convnet3_forward.3} parent=23 // pred_region
          %s153 = smul.u32 64, %s11
          %p154 = scmp.lt.s32.totalorder %s153, 127
          %s155 = scalar_select %p154, %s153, 127
          %s156 = smul.addr %s155, 4
          %s157 = scalar_lea.vmem %s0, %s156
          %s158 = smul.u32 64, %s11
        $region28: #{dlf_convnet3_forward.3} parent=23 // pred_fallthru
          _
      $region24: #{dlf_convnet3_forward.3} parent=5 // pred_fallthru
        _
      %p159 = scmp.le.s32.totalorder 1, %s11
      %p160 = scmp.lt.s32.totalorder %s11, 3
      %p161 = pnand %p159, %p160
      %p162 = pneg %p161
      // Predicated region
      $region29: #{dlf_convnet3_forward.3} parent=5 // pred_check
        _
      $region30: #{dlf_convnet3_forward.3} parent=5 // pred_check_branch
        %164 = sbr.rel (%p161) target = $region32
      $region31: #{dlf_convnet3_forward.3} parent=5 // pred_region
        %s165 = ssub.s32 %s11, 1
        // Predicated region
        $region33: #{dlf_convnet3_forward.3} parent=31 // pred_check
          %p166 = pneg %p58
        $region34: #{dlf_convnet3_forward.3} parent=31 // pred_check_branch
          %168 = sbr.rel (%p166) target = $region36
        $region35: #{dlf_convnet3_forward.3} parent=31 // pred_region
          %170 = dma.done [#allocation3], 448
        $region36: #{dlf_convnet3_forward.3} parent=31 // pred_fallthru
          _
        // Predicated region
        $region37: #{dlf_convnet3_forward.3} parent=31 // pred_check
          %p171 = pneg %p79
        $region38: #{dlf_convnet3_forward.3} parent=31 // pred_check_branch
          %173 = sbr.rel (%p171) target = $region40
        $region39: #{dlf_convnet3_forward.3} parent=31 // pred_region
          %175 = dma.done [#allocation5], 16
        $region40: #{dlf_convnet3_forward.3} parent=31 // pred_fallthru
          _
        %s176 = smul.u32 64, %s16
        %p177 = scmp.lt.s32.totalorder %s176, 127
        %s178 = scalar_select %p177, %s176, 127
        %s179 = smul.addr %s178, 4
        %s180 = scalar_lea.vmem %s0, %s179
        %p181 = pneg %p37
        %p182 = pneg %p34
        %p183 = pneg %p58
        %p184 = pneg %p55
        %p185 = pneg %p79
        %p186 = pneg %p76
        %p187 = pneg %p105
        %p188 = pneg %p102
        %s189 = smul.u32 64, %s16
        %p190 = scmp.lt.s32.totalorder %s189, 127
        %s191 = scalar_select %p190, %s189, 127
        %s192 = smul.addr %s191, 4
        %s193 = scalar_lea.vmem %s3, %s192
        %s194 = smul.u32 64, %s16
        %p195 = scmp.lt.s32.totalorder %s194, 127
        %s196 = scalar_select %p195, %s194, 127
        %s197 = smul.addr %s196, 4
        %s198 = scalar_lea.vmem %s0, %s197
        %s199 = smul.u32 64, %s16
        %s200 = smul.u32 64, %s16
        %p201 = scmp.lt.s32.totalorder %s200, 127
        %s202 = scalar_select %p201, %s200, 127
        %s203 = smul.addr %s202, 4
        %s204 = scalar_lea.vmem %s3, %s203
        %s205 = smul.u32 64, %s16
        %v207 = vld [vmem:[%s198] sm:$0xf]
        %v208 = vld [vmem:[%s198 + $0x4] sm:$0xf]
        %v209 = vld [vmem:[%s198 + $0x8] sm:$0xf]
        %v210 = vld [vmem:[%s198 + $0xc] sm:$0xf]
        %v211 = vld [vmem:[%s198 + $0x10] sm:$0xf]
        %v212 = vld [vmem:[%s198 + $0x14] sm:$0xf]
        %v213 = vld [vmem:[%s198 + $0x18] sm:$0xf]
        %v214 = vld [vmem:[%s198 + $0x1c] sm:$0xf]
        %v215 = vld [vmem:[%s198 + $0x20] sm:$0xf]
        %v216 = vld [vmem:[%s198 + $0x24] sm:$0xf]
        %v217 = vld [vmem:[%s198 + $0x28] sm:$0xf]
        %v218 = vld [vmem:[%s198 + $0x2c] sm:$0xf]
        %v219 = vld [vmem:[%s198 + $0x30] sm:$0xf]
        %v220 = vld [vmem:[%s198 + $0x34] sm:$0xf]
        %v221 = vld [vmem:[%s198 + $0x38] sm:$0xf]
        %v222 = vld [vmem:[%s198 + $0x3c] sm:$0xf]
        %v223 = vld [vmem:[%s198 + $0x40] sm:$0xf]
        %v224 = vld [vmem:[%s198 + $0x44] sm:$0xf]
        %v225 = vld [vmem:[%s198 + $0x48] sm:$0xf]
        %v226 = vld [vmem:[%s198 + $0x4c] sm:$0xf]
        %v227 = vld [vmem:[%s198 + $0x50] sm:$0xf]
        %v228 = vld [vmem:[%s198 + $0x54] sm:$0xf]
        %v229 = vld [vmem:[%s198 + $0x58] sm:$0xf]
        %v230 = vld [vmem:[%s198 + $0x5c] sm:$0xf]
        %v231 = vld [vmem:[%s198 + $0x60] sm:$0xf]
        %v232 = vld [vmem:[%s198 + $0x64] sm:$0xf]
        %v233 = vld [vmem:[%s198 + $0x68] sm:$0xf]
        %v234 = vld [vmem:[%s198 + $0x6c] sm:$0xf]
        %v235 = vld [vmem:[%s198 + $0x70] sm:$0xf]
        %v236 = vld [vmem:[%s198 + $0x74] sm:$0xf]
        %v237 = vld [vmem:[%s198 + $0x78] sm:$0xf]
        %v238 = vld [vmem:[%s198 + $0x7c] sm:$0xf]
        %v239 = vld [vmem:[%s198 + $0x80] sm:$0xf]
        %v240 = vld [vmem:[%s198 + $0x84] sm:$0xf]
        %v241 = vld [vmem:[%s198 + $0x88] sm:$0xf]
        %v242 = vld [vmem:[%s198 + $0x8c] sm:$0xf]
        %v243 = vld [vmem:[%s198 + $0x90] sm:$0xf]
        %v244 = vld [vmem:[%s198 + $0x94] sm:$0xf]
        %v245 = vld [vmem:[%s198 + $0x98] sm:$0xf]
        %v246 = vld [vmem:[%s198 + $0x9c] sm:$0xf]
        %v247 = vld [vmem:[%s198 + $0xa0] sm:$0xf]
        %v248 = vld [vmem:[%s198 + $0xa4] sm:$0xf]
        %v249 = vld [vmem:[%s198 + $0xa8] sm:$0xf]
        %v250 = vld [vmem:[%s198 + $0xac] sm:$0xf]
        %v251 = vld [vmem:[%s198 + $0xb0] sm:$0xf]
        %v252 = vld [vmem:[%s198 + $0xb4] sm:$0xf]
        %v253 = vld [vmem:[%s198 + $0xb8] sm:$0xf]
        %v254 = vld [vmem:[%s198 + $0xbc] sm:$0xf]
        %v255 = vld [vmem:[%s198 + $0xc0] sm:$0xf]
        %v256 = vld [vmem:[%s198 + $0xc4] sm:$0xf]
        %v257 = vld [vmem:[%s198 + $0xc8] sm:$0xf]
        %v258 = vld [vmem:[%s198 + $0xcc] sm:$0xf]
        %v259 = vld [vmem:[%s198 + $0xd0] sm:$0xf]
        %v260 = vld [vmem:[%s198 + $0xd4] sm:$0xf]
        %v261 = vld [vmem:[%s198 + $0xd8] sm:$0xf]
        %v262 = vld [vmem:[%s198 + $0xdc] sm:$0xf]
        %v263 = vld [vmem:[%s198 + $0xe0] sm:$0xf]
        %v264 = vld [vmem:[%s198 + $0xe4] sm:$0xf]
        %v265 = vld [vmem:[%s198 + $0xe8] sm:$0xf]
        %v266 = vld [vmem:[%s198 + $0xec] sm:$0xf]
        %v267 = vld [vmem:[%s198 + $0xf0] sm:$0xf]
        %v268 = vld [vmem:[%s198 + $0xf4] sm:$0xf]
        %v269 = vld [vmem:[%s198 + $0xf8] sm:$0xf]
        %v270 = vld [vmem:[%s198 + $0xfc] sm:$0xf]
        %v271 = vld [vmem:[#allocation2] sm:$0xf]
        %v272 = vld [vmem:[#allocation2 + $0x4] sm:$0xf]
        %v273 = vld [vmem:[#allocation2 + $0x8] sm:$0xf]
        %v274 = vld [vmem:[#allocation2 + $0xc] sm:$0xf]
        %v275 = vld [vmem:[#allocation2 + $0x10] sm:$0xf]
        %v276 = vld [vmem:[#allocation2 + $0x14] sm:$0xf]
        %v277 = vld [vmem:[#allocation2 + $0x18] sm:$0x7]
        %v278 = vld [vmem:[#allocation4] sm:$0x1]
        %v280 = vperm.slane %v278, 0
        %v346 = vunpack.c.l.b16 %v207
        %v347 = vunpack.c.l.b16 %v208
        %v348 = vunpack.c.l.b16 %v209
        %v349 = vunpack.c.l.b16 %v210
        %v350 = vunpack.c.l.b16 %v211
        %v351 = vunpack.c.l.b16 %v212
        %v352 = vunpack.c.l.b16 %v213
        %v353 = vunpack.c.l.b16 %v214
        %v354 = vunpack.c.l.b16 %v215
        %v355 = vunpack.c.l.b16 %v216
        %v356 = vunpack.c.l.b16 %v217
        %v357 = vunpack.c.l.b16 %v218
        %v358 = vunpack.c.l.b16 %v219
        %v359 = vunpack.c.l.b16 %v220
        %v360 = vunpack.c.l.b16 %v221
        %v361 = vunpack.c.l.b16 %v222
        %v362 = vunpack.c.l.b16 %v223
        %v363 = vunpack.c.l.b16 %v224
        %v364 = vunpack.c.l.b16 %v225
        %v365 = vunpack.c.l.b16 %v226
        %v366 = vunpack.c.l.b16 %v227
        %v367 = vunpack.c.l.b16 %v228
        %v368 = vunpack.c.l.b16 %v229
        %v369 = vunpack.c.l.b16 %v230
        %v370 = vunpack.c.l.b16 %v231
        %v371 = vunpack.c.l.b16 %v232
        %v372 = vunpack.c.l.b16 %v233
        %v373 = vunpack.c.l.b16 %v234
        %v374 = vunpack.c.l.b16 %v235
        %v375 = vunpack.c.l.b16 %v236
        %v376 = vunpack.c.l.b16 %v237
        %v377 = vunpack.c.l.b16 %v238
        %v378 = vunpack.c.l.b16 %v239
        %v379 = vunpack.c.l.b16 %v240
        %v380 = vunpack.c.l.b16 %v241
        %v381 = vunpack.c.l.b16 %v242
        %v382 = vunpack.c.l.b16 %v243
        %v383 = vunpack.c.l.b16 %v244
        %v384 = vunpack.c.l.b16 %v245
        %v385 = vunpack.c.l.b16 %v246
        %v386 = vunpack.c.l.b16 %v247
        %v387 = vunpack.c.l.b16 %v248
        %v388 = vunpack.c.l.b16 %v249
        %v389 = vunpack.c.l.b16 %v250
        %v390 = vunpack.c.l.b16 %v251
        %v391 = vunpack.c.l.b16 %v252
        %v392 = vunpack.c.l.b16 %v253
        %v393 = vunpack.c.l.b16 %v254
        %v394 = vunpack.c.l.b16 %v255
        %v395 = vunpack.c.l.b16 %v256
        %v396 = vunpack.c.l.b16 %v257
        %v397 = vunpack.c.l.b16 %v258
        %v398 = vunpack.c.l.b16 %v259
        %v399 = vunpack.c.l.b16 %v260
        %v400 = vunpack.c.l.b16 %v261
        %v401 = vunpack.c.l.b16 %v262
        %v402 = vunpack.c.l.b16 %v263
        %v403 = vunpack.c.l.b16 %v264
        %v404 = vunpack.c.l.b16 %v265
        %v405 = vunpack.c.l.b16 %v266
        %v406 = vunpack.c.l.b16 %v267
        %v407 = vunpack.c.l.b16 %v268
        %v408 = vunpack.c.l.b16 %v269
        %v409 = vunpack.c.l.b16 %v270
        %v410 = vpack.c.b16 %v347, %v346
        %v411 = vpack.c.b16 %v349, %v348
        %v412 = vpack.c.b16 %v351, %v350
        %v413 = vpack.c.b16 %v353, %v352
        %v414 = vpack.c.b16 %v355, %v354
        %v415 = vpack.c.b16 %v357, %v356
        %v416 = vpack.c.b16 %v359, %v358
        %v417 = vpack.c.b16 %v361, %v360
        %v418 = vpack.c.b16 %v363, %v362
        %v419 = vpack.c.b16 %v365, %v364
        %v420 = vpack.c.b16 %v367, %v366
        %v421 = vpack.c.b16 %v369, %v368
        %v422 = vpack.c.b16 %v371, %v370
        %v423 = vpack.c.b16 %v373, %v372
        %v424 = vpack.c.b16 %v375, %v374
        %v425 = vpack.c.b16 %v377, %v376
        %v426 = vpack.c.b16 %v379, %v378
        %v427 = vpack.c.b16 %v381, %v380
        %v428 = vpack.c.b16 %v383, %v382
        %v429 = vpack.c.b16 %v385, %v384
        %v430 = vpack.c.b16 %v387, %v386
        %v431 = vpack.c.b16 %v389, %v388
        %v432 = vpack.c.b16 %v391, %v390
        %v433 = vpack.c.b16 %v393, %v392
        %v434 = vpack.c.b16 %v395, %v394
        %v435 = vpack.c.b16 %v397, %v396
        %v436 = vpack.c.b16 %v399, %v398
        %v437 = vpack.c.b16 %v401, %v400
        %v438 = vpack.c.b16 %v403, %v402
        %v439 = vpack.c.b16 %v405, %v404
        %v440 = vpack.c.b16 %v407, %v406
        %v441 = vpack.c.b16 %v409, %v408
        %v449 = vunpack.c.l.b16 %v271
        %v450 = vunpack.c.l.b16 %v272
        %v451 = vunpack.c.l.b16 %v273
        %v452 = vunpack.c.l.b16 %v274
        %v453 = vunpack.c.l.b16 %v275
        %v454 = vunpack.c.l.b16 %v276
        %v455 = vunpack.c.l.b16 %v277
        %v456 = vpack.c.b16 %v450, %v449
        %v457 = vpack.c.b16 %v452, %v451
        %v458 = vpack.c.b16 %v454, %v453
        %v459 = vpack.c.b16 %v455, %v455
        %vm463 = vcmask 441344
        %v465 = vsel %vm463, %v410, 0
        %v468 = vsel %vm463, %v411, 0
        %v471 = vsel %vm463, %v412, 0
        %v474 = vsel %vm463, %v413, 0
        %v477 = vsel %vm463, %v414, 0
        %v480 = vsel %vm463, %v415, 0
        %v483 = vsel %vm463, %v416, 0
        %v486 = vsel %vm463, %v417, 0
        %v489 = vsel %vm463, %v418, 0
        %v492 = vsel %vm463, %v419, 0
        %v495 = vsel %vm463, %v420, 0
        %v498 = vsel %vm463, %v421, 0
        %v501 = vsel %vm463, %v422, 0
        %v504 = vsel %vm463, %v423, 0
        %v507 = vsel %vm463, %v424, 0
        %v510 = vsel %vm463, %v425, 0
        %v513 = vsel %vm463, %v426, 0
        %v516 = vsel %vm463, %v427, 0
        %v519 = vsel %vm463, %v428, 0
        %v522 = vsel %vm463, %v429, 0
        %v525 = vsel %vm463, %v430, 0
        %v528 = vsel %vm463, %v431, 0
        %v531 = vsel %vm463, %v432, 0
        %v534 = vsel %vm463, %v433, 0
        %v537 = vsel %vm463, %v434, 0
        %v540 = vsel %vm463, %v435, 0
        %v543 = vsel %vm463, %v436, 0
        %v546 = vsel %vm463, %v437, 0
        %v549 = vsel %vm463, %v438, 0
        %v552 = vsel %vm463, %v439, 0
        %v555 = vsel %vm463, %v440, 0
        %v558 = vsel %vm463, %v441, 0
        %vm560 = vcmask 1042432
        %v562 = vsel %vm560, %v459, 0
        %564 = vmatpush.bf16.msra.mxu0 0
        %565 = vmatpush.bf16.msra.mxu0 0
        %566 = vmatpush.bf16.msra.mxu0 0
        %567 = vmatpush.bf16.msra.mxu0 0
        %568 = vmatpush.bf16.msra.mxu0 %v562
        %569 = vmatpush.bf16.msra.mxu0 %v458
        %570 = vmatpush.bf16.msra.mxu0 %v457
        %571 = vmatpush.bf16.msra.mxu0 %v456
        %572 = vmatmul.bf16.gmra.mxu0 %v465
        %v573 = vpop.f32.mrf.mxu0
        %v574 = vadd.f32 %v280, %v573
        %v575 = vpop.f32.mrf.mxu0
        %v576 = vadd.f32 %v280, %v575
        %577 = vmatmul.bf16.gmra.mxu0 %v468
        %v578 = vpop.f32.mrf.mxu0
        %v579 = vadd.f32 %v280, %v578
        %v580 = vpop.f32.mrf.mxu0
        %v581 = vadd.f32 %v280, %v580
        %582 = vmatmul.bf16.gmra.mxu0 %v471
        %v583 = vpop.f32.mrf.mxu0
        %v584 = vadd.f32 %v280, %v583
        %v585 = vpop.f32.mrf.mxu0
        %v586 = vadd.f32 %v280, %v585
        %587 = vmatmul.bf16.gmra.mxu0 %v474
        %v588 = vpop.f32.mrf.mxu0
        %v589 = vadd.f32 %v280, %v588
        %v590 = vpop.f32.mrf.mxu0
        %v591 = vadd.f32 %v280, %v590
        %592 = vmatmul.bf16.gmra.mxu0 %v477
        %v593 = vpop.f32.mrf.mxu0
        %v594 = vadd.f32 %v280, %v593
        %v595 = vpop.f32.mrf.mxu0
        %v596 = vadd.f32 %v280, %v595
        %597 = vmatmul.bf16.gmra.mxu0 %v480
        %v598 = vpop.f32.mrf.mxu0
        %v599 = vadd.f32 %v280, %v598
        %v600 = vpop.f32.mrf.mxu0
        %v601 = vadd.f32 %v280, %v600
        %602 = vmatmul.bf16.gmra.mxu0 %v483
        %v603 = vpop.f32.mrf.mxu0
        %v604 = vadd.f32 %v280, %v603
        %v605 = vpop.f32.mrf.mxu0
        %v606 = vadd.f32 %v280, %v605
        %607 = vmatmul.bf16.gmra.mxu0 %v486
        %v608 = vpop.f32.mrf.mxu0
        %v609 = vadd.f32 %v280, %v608
        %v610 = vpop.f32.mrf.mxu0
        %v611 = vadd.f32 %v280, %v610
        %612 = vmatmul.bf16.gmra.mxu0 %v489
        %v613 = vpop.f32.mrf.mxu0
        %v614 = vadd.f32 %v280, %v613
        %v615 = vpop.f32.mrf.mxu0
        %v616 = vadd.f32 %v280, %v615
        %617 = vmatmul.bf16.gmra.mxu0 %v492
        %v618 = vpop.f32.mrf.mxu0
        %v619 = vadd.f32 %v280, %v618
        %v620 = vpop.f32.mrf.mxu0
        %v621 = vadd.f32 %v280, %v620
        %622 = vmatmul.bf16.gmra.mxu0 %v495
        %v623 = vpop.f32.mrf.mxu0
        %v624 = vadd.f32 %v280, %v623
        %v625 = vpop.f32.mrf.mxu0
        %v626 = vadd.f32 %v280, %v625
        %627 = vmatmul.bf16.gmra.mxu0 %v498
        %v628 = vpop.f32.mrf.mxu0
        %v629 = vadd.f32 %v280, %v628
        %v630 = vpop.f32.mrf.mxu0
        %v631 = vadd.f32 %v280, %v630
        %632 = vmatmul.bf16.gmra.mxu0 %v501
        %v633 = vpop.f32.mrf.mxu0
        %v634 = vadd.f32 %v280, %v633
        %v635 = vpop.f32.mrf.mxu0
        %v636 = vadd.f32 %v280, %v635
        %637 = vmatmul.bf16.gmra.mxu0 %v504
        %v638 = vpop.f32.mrf.mxu0
        %v639 = vadd.f32 %v280, %v638
        %v640 = vpop.f32.mrf.mxu0
        %v641 = vadd.f32 %v280, %v640
        %642 = vmatmul.bf16.gmra.mxu0 %v507
        %v643 = vpop.f32.mrf.mxu0
        %v644 = vadd.f32 %v280, %v643
        %v645 = vpop.f32.mrf.mxu0
        %v646 = vadd.f32 %v280, %v645
        %647 = vmatmul.bf16.gmra.mxu0 %v510
        %v648 = vpop.f32.mrf.mxu0
        %v649 = vadd.f32 %v280, %v648
        %v650 = vpop.f32.mrf.mxu0
        %v651 = vadd.f32 %v280, %v650
        %652 = vmatmul.bf16.gmra.mxu0 %v513
        %v653 = vpop.f32.mrf.mxu0
        %v654 = vadd.f32 %v280, %v653
        %v655 = vpop.f32.mrf.mxu0
        %v656 = vadd.f32 %v280, %v655
        %657 = vmatmul.bf16.gmra.mxu0 %v516
        %v658 = vpop.f32.mrf.mxu0
        %v659 = vadd.f32 %v280, %v658
        %v660 = vpop.f32.mrf.mxu0
        %v661 = vadd.f32 %v280, %v660
        %662 = vmatmul.bf16.gmra.mxu0 %v519
        %v663 = vpop.f32.mrf.mxu0
        %v664 = vadd.f32 %v280, %v663
        %v665 = vpop.f32.mrf.mxu0
        %v666 = vadd.f32 %v280, %v665
        %667 = vmatmul.bf16.gmra.mxu0 %v522
        %v668 = vpop.f32.mrf.mxu0
        %v669 = vadd.f32 %v280, %v668
        %v670 = vpop.f32.mrf.mxu0
        %v671 = vadd.f32 %v280, %v670
        %672 = vmatmul.bf16.gmra.mxu0 %v525
        %v673 = vpop.f32.mrf.mxu0
        %v674 = vadd.f32 %v280, %v673
        %v675 = vpop.f32.mrf.mxu0
        %v676 = vadd.f32 %v280, %v675
        %677 = vmatmul.bf16.gmra.mxu0 %v528
        %v678 = vpop.f32.mrf.mxu0
        %v679 = vadd.f32 %v280, %v678
        %v680 = vpop.f32.mrf.mxu0
        %v681 = vadd.f32 %v280, %v680
        %682 = vmatmul.bf16.gmra.mxu0 %v531
        %v683 = vpop.f32.mrf.mxu0
        %v684 = vadd.f32 %v280, %v683
        %v685 = vpop.f32.mrf.mxu0
        %v686 = vadd.f32 %v280, %v685
        %687 = vmatmul.bf16.gmra.mxu0 %v534
        %v688 = vpop.f32.mrf.mxu0
        %v689 = vadd.f32 %v280, %v688
        %v690 = vpop.f32.mrf.mxu0
        %v691 = vadd.f32 %v280, %v690
        %692 = vmatmul.bf16.gmra.mxu0 %v537
        %v693 = vpop.f32.mrf.mxu0
        %v694 = vadd.f32 %v280, %v693
        %v695 = vpop.f32.mrf.mxu0
        %v696 = vadd.f32 %v280, %v695
        %697 = vmatmul.bf16.gmra.mxu0 %v540
        %v698 = vpop.f32.mrf.mxu0
        %v699 = vadd.f32 %v280, %v698
        %v700 = vpop.f32.mrf.mxu0
        %v701 = vadd.f32 %v280, %v700
        %702 = vmatmul.bf16.gmra.mxu0 %v543
        %v703 = vpop.f32.mrf.mxu0
        %v704 = vadd.f32 %v280, %v703
        %v705 = vpop.f32.mrf.mxu0
        %v706 = vadd.f32 %v280, %v705
        %707 = vmatmul.bf16.gmra.mxu0 %v546
        %v708 = vpop.f32.mrf.mxu0
        %v709 = vadd.f32 %v280, %v708
        %v710 = vpop.f32.mrf.mxu0
        %v711 = vadd.f32 %v280, %v710
        %712 = vmatmul.bf16.gmra.mxu0 %v549
        %v713 = vpop.f32.mrf.mxu0
        %v714 = vadd.f32 %v280, %v713
        %v715 = vpop.f32.mrf.mxu0
        %v716 = vadd.f32 %v280, %v715
        %717 = vmatmul.bf16.gmra.mxu0 %v552
        %v718 = vpop.f32.mrf.mxu0
        %v719 = vadd.f32 %v280, %v718
        %v720 = vpop.f32.mrf.mxu0
        %v721 = vadd.f32 %v280, %v720
        %722 = vmatmul.bf16.gmra.mxu0 %v555
        %v723 = vpop.f32.mrf.mxu0
        %v724 = vadd.f32 %v280, %v723
        %v725 = vpop.f32.mrf.mxu0
        %v726 = vadd.f32 %v280, %v725
        %727 = vmatmul.bf16.gmra.mxu0 %v558
        %v728 = vpop.f32.mrf.mxu0
        %v729 = vadd.f32 %v280, %v728
        %v730 = vpop.f32.mrf.mxu0
        %v731 = vadd.f32 %v280, %v730
        %732 = vdwg.mxu0
        %v733 = vmax.f32 %v574, 0.0
        %v734 = vmax.f32 %v576, 0.0
        %v735 = vmax.f32 %v579, 0.0
        %v736 = vmax.f32 %v581, 0.0
        %v737 = vmax.f32 %v584, 0.0
        %v738 = vmax.f32 %v586, 0.0
        %v739 = vmax.f32 %v589, 0.0
        %v740 = vmax.f32 %v591, 0.0
        %v741 = vmax.f32 %v594, 0.0
        %v742 = vmax.f32 %v596, 0.0
        %v743 = vmax.f32 %v599, 0.0
        %v744 = vmax.f32 %v601, 0.0
        %v745 = vmax.f32 %v604, 0.0
        %v746 = vmax.f32 %v606, 0.0
        %v747 = vmax.f32 %v609, 0.0
        %v748 = vmax.f32 %v611, 0.0
        %v749 = vmax.f32 %v614, 0.0
        %v750 = vmax.f32 %v616, 0.0
        %v751 = vmax.f32 %v619, 0.0
        %v752 = vmax.f32 %v621, 0.0
        %v753 = vmax.f32 %v624, 0.0
        %v754 = vmax.f32 %v626, 0.0
        %v755 = vmax.f32 %v629, 0.0
        %v756 = vmax.f32 %v631, 0.0
        %v757 = vmax.f32 %v634, 0.0
        %v758 = vmax.f32 %v636, 0.0
        %v759 = vmax.f32 %v639, 0.0
        %v760 = vmax.f32 %v641, 0.0
        %v761 = vmax.f32 %v644, 0.0
        %v762 = vmax.f32 %v646, 0.0
        %v763 = vmax.f32 %v649, 0.0
        %v764 = vmax.f32 %v651, 0.0
        %v765 = vmax.f32 %v654, 0.0
        %v766 = vmax.f32 %v656, 0.0
        %v767 = vmax.f32 %v659, 0.0
        %v768 = vmax.f32 %v661, 0.0
        %v769 = vmax.f32 %v664, 0.0
        %v770 = vmax.f32 %v666, 0.0
        %v771 = vmax.f32 %v669, 0.0
        %v772 = vmax.f32 %v671, 0.0
        %v773 = vmax.f32 %v674, 0.0
        %v774 = vmax.f32 %v676, 0.0
        %v775 = vmax.f32 %v679, 0.0
        %v776 = vmax.f32 %v681, 0.0
        %v777 = vmax.f32 %v684, 0.0
        %v778 = vmax.f32 %v686, 0.0
        %v779 = vmax.f32 %v689, 0.0
        %v780 = vmax.f32 %v691, 0.0
        %v781 = vmax.f32 %v694, 0.0
        %v782 = vmax.f32 %v696, 0.0
        %v783 = vmax.f32 %v699, 0.0
        %v784 = vmax.f32 %v701, 0.0
        %v785 = vmax.f32 %v704, 0.0
        %v786 = vmax.f32 %v706, 0.0
        %v787 = vmax.f32 %v709, 0.0
        %v788 = vmax.f32 %v711, 0.0
        %v789 = vmax.f32 %v714, 0.0
        %v790 = vmax.f32 %v716, 0.0
        %v791 = vmax.f32 %v719, 0.0
        %v792 = vmax.f32 %v721, 0.0
        %v793 = vmax.f32 %v724, 0.0
        %v794 = vmax.f32 %v726, 0.0
        %v795 = vmax.f32 %v729, 0.0
        %v796 = vmax.f32 %v731, 0.0
        %v797 = vpack.c.bf16 %v733, %v733
        %v798 = vpack.c.bf16 %v734, %v734
        %v799 = vpack.c.bf16 %v735, %v735
        %v800 = vpack.c.bf16 %v736, %v736
        %v801 = vpack.c.bf16 %v737, %v737
        %v802 = vpack.c.bf16 %v738, %v738
        %v803 = vpack.c.bf16 %v739, %v739
        %v804 = vpack.c.bf16 %v740, %v740
        %v805 = vpack.c.bf16 %v741, %v741
        %v806 = vpack.c.bf16 %v742, %v742
        %v807 = vpack.c.bf16 %v743, %v743
        %v808 = vpack.c.bf16 %v744, %v744
        %v809 = vpack.c.bf16 %v745, %v745
        %v810 = vpack.c.bf16 %v746, %v746
        %v811 = vpack.c.bf16 %v747, %v747
        %v812 = vpack.c.bf16 %v748, %v748
        %v813 = vpack.c.bf16 %v749, %v749
        %v814 = vpack.c.bf16 %v750, %v750
        %v815 = vpack.c.bf16 %v751, %v751
        %v816 = vpack.c.bf16 %v752, %v752
        %v817 = vpack.c.bf16 %v753, %v753
        %v818 = vpack.c.bf16 %v754, %v754
        %v819 = vpack.c.bf16 %v755, %v755
        %v820 = vpack.c.bf16 %v756, %v756
        %v821 = vpack.c.bf16 %v757, %v757
        %v822 = vpack.c.bf16 %v758, %v758
        %v823 = vpack.c.bf16 %v759, %v759
        %v824 = vpack.c.bf16 %v760, %v760
        %v825 = vpack.c.bf16 %v761, %v761
        %v826 = vpack.c.bf16 %v762, %v762
        %v827 = vpack.c.bf16 %v763, %v763
        %v828 = vpack.c.bf16 %v764, %v764
        %v829 = vpack.c.bf16 %v765, %v765
        %v830 = vpack.c.bf16 %v766, %v766
        %v831 = vpack.c.bf16 %v767, %v767
        %v832 = vpack.c.bf16 %v768, %v768
        %v833 = vpack.c.bf16 %v769, %v769
        %v834 = vpack.c.bf16 %v770, %v770
        %v835 = vpack.c.bf16 %v771, %v771
        %v836 = vpack.c.bf16 %v772, %v772
        %v837 = vpack.c.bf16 %v773, %v773
        %v838 = vpack.c.bf16 %v774, %v774
        %v839 = vpack.c.bf16 %v775, %v775
        %v840 = vpack.c.bf16 %v776, %v776
        %v841 = vpack.c.bf16 %v777, %v777
        %v842 = vpack.c.bf16 %v778, %v778
        %v843 = vpack.c.bf16 %v779, %v779
        %v844 = vpack.c.bf16 %v780, %v780
        %v845 = vpack.c.bf16 %v781, %v781
        %v846 = vpack.c.bf16 %v782, %v782
        %v847 = vpack.c.bf16 %v783, %v783
        %v848 = vpack.c.bf16 %v784, %v784
        %v849 = vpack.c.bf16 %v785, %v785
        %v850 = vpack.c.bf16 %v786, %v786
        %v851 = vpack.c.bf16 %v787, %v787
        %v852 = vpack.c.bf16 %v788, %v788
        %v853 = vpack.c.bf16 %v789, %v789
        %v854 = vpack.c.bf16 %v790, %v790
        %v855 = vpack.c.bf16 %v791, %v791
        %v856 = vpack.c.bf16 %v792, %v792
        %v857 = vpack.c.bf16 %v793, %v793
        %v858 = vpack.c.bf16 %v794, %v794
        %v859 = vpack.c.bf16 %v795, %v795
        %v860 = vpack.c.bf16 %v796, %v796
        %861 = vst [vmem:[%s204] sm:$0xf] %v797
        %862 = vst [vmem:[%s204 + $0x4] sm:$0xf] %v798
        %863 = vst [vmem:[%s204 + $0x8] sm:$0xf] %v799
        %864 = vst [vmem:[%s204 + $0xc] sm:$0xf] %v800
        %865 = vst [vmem:[%s204 + $0x10] sm:$0xf] %v801
        %866 = vst [vmem:[%s204 + $0x14] sm:$0xf] %v802
        %867 = vst [vmem:[%s204 + $0x18] sm:$0xf] %v803
        %868 = vst [vmem:[%s204 + $0x1c] sm:$0xf] %v804
        %869 = vst [vmem:[%s204 + $0x20] sm:$0xf] %v805
        %870 = vst [vmem:[%s204 + $0x24] sm:$0xf] %v806
        %871 = vst [vmem:[%s204 + $0x28] sm:$0xf] %v807
        %872 = vst [vmem:[%s204 + $0x2c] sm:$0xf] %v808
        %873 = vst [vmem:[%s204 + $0x30] sm:$0xf] %v809
        %874 = vst [vmem:[%s204 + $0x34] sm:$0xf] %v810
        %875 = vst [vmem:[%s204 + $0x38] sm:$0xf] %v811
        %876 = vst [vmem:[%s204 + $0x3c] sm:$0xf] %v812
        %877 = vst [vmem:[%s204 + $0x40] sm:$0xf] %v813
        %878 = vst [vmem:[%s204 + $0x44] sm:$0xf] %v814
        %879 = vst [vmem:[%s204 + $0x48] sm:$0xf] %v815
        %880 = vst [vmem:[%s204 + $0x4c] sm:$0xf] %v816
        %881 = vst [vmem:[%s204 + $0x50] sm:$0xf] %v817
        %882 = vst [vmem:[%s204 + $0x54] sm:$0xf] %v818
        %883 = vst [vmem:[%s204 + $0x58] sm:$0xf] %v819
        %884 = vst [vmem:[%s204 + $0x5c] sm:$0xf] %v820
        %885 = vst [vmem:[%s204 + $0x60] sm:$0xf] %v821
        %886 = vst [vmem:[%s204 + $0x64] sm:$0xf] %v822
        %887 = vst [vmem:[%s204 + $0x68] sm:$0xf] %v823
        %888 = vst [vmem:[%s204 + $0x6c] sm:$0xf] %v824
        %889 = vst [vmem:[%s204 + $0x70] sm:$0xf] %v825
        %890 = vst [vmem:[%s204 + $0x74] sm:$0xf] %v826
        %891 = vst [vmem:[%s204 + $0x78] sm:$0xf] %v827
        %892 = vst [vmem:[%s204 + $0x7c] sm:$0xf] %v828
        %893 = vst [vmem:[%s204 + $0x80] sm:$0xf] %v829
        %894 = vst [vmem:[%s204 + $0x84] sm:$0xf] %v830
        %895 = vst [vmem:[%s204 + $0x88] sm:$0xf] %v831
        %896 = vst [vmem:[%s204 + $0x8c] sm:$0xf] %v832
        %897 = vst [vmem:[%s204 + $0x90] sm:$0xf] %v833
        %898 = vst [vmem:[%s204 + $0x94] sm:$0xf] %v834
        %899 = vst [vmem:[%s204 + $0x98] sm:$0xf] %v835
        %900 = vst [vmem:[%s204 + $0x9c] sm:$0xf] %v836
        %901 = vst [vmem:[%s204 + $0xa0] sm:$0xf] %v837
        %902 = vst [vmem:[%s204 + $0xa4] sm:$0xf] %v838
        %903 = vst [vmem:[%s204 + $0xa8] sm:$0xf] %v839
        %904 = vst [vmem:[%s204 + $0xac] sm:$0xf] %v840
        %905 = vst [vmem:[%s204 + $0xb0] sm:$0xf] %v841
        %906 = vst [vmem:[%s204 + $0xb4] sm:$0xf] %v842
        %907 = vst [vmem:[%s204 + $0xb8] sm:$0xf] %v843
        %908 = vst [vmem:[%s204 + $0xbc] sm:$0xf] %v844
        %909 = vst [vmem:[%s204 + $0xc0] sm:$0xf] %v845
        %910 = vst [vmem:[%s204 + $0xc4] sm:$0xf] %v846
        %911 = vst [vmem:[%s204 + $0xc8] sm:$0xf] %v847
        %912 = vst [vmem:[%s204 + $0xcc] sm:$0xf] %v848
        %913 = vst [vmem:[%s204 + $0xd0] sm:$0xf] %v849
        %914 = vst [vmem:[%s204 + $0xd4] sm:$0xf] %v850
        %915 = vst [vmem:[%s204 + $0xd8] sm:$0xf] %v851
        %916 = vst [vmem:[%s204 + $0xdc] sm:$0xf] %v852
        %917 = vst [vmem:[%s204 + $0xe0] sm:$0xf] %v853
        %918 = vst [vmem:[%s204 + $0xe4] sm:$0xf] %v854
        %919 = vst [vmem:[%s204 + $0xe8] sm:$0xf] %v855
        %920 = vst [vmem:[%s204 + $0xec] sm:$0xf] %v856
        %921 = vst [vmem:[%s204 + $0xf0] sm:$0xf] %v857
        %922 = vst [vmem:[%s204 + $0xf4] sm:$0xf] %v858
        %923 = vst [vmem:[%s204 + $0xf8] sm:$0xf] %v859
        %924 = vst [vmem:[%s204 + $0xfc] sm:$0xf] %v860
        %s925 = smul.u32 64, %s16
        %p926 = scmp.lt.s32.totalorder %s925, 127
        %s927 = scalar_select %p926, %s925, 127
        %s928 = smul.addr %s927, 4
        %s929 = scalar_lea.vmem %s3, %s928
        // Predicated region
        $region41: #{dlf_convnet3_forward.3} parent=31 // pred_check
          %p930 = pneg %p102
        $region42: #{dlf_convnet3_forward.3} parent=31 // pred_check_branch
          %932 = sbr.rel (%p930) target = $region44
        $region43: #{dlf_convnet3_forward.3} parent=31 // pred_region
          %s933 = smul.u32 64, %s16
        $region44: #{dlf_convnet3_forward.3} parent=31 // pred_fallthru
          _
      $region32: #{dlf_convnet3_forward.3} parent=5 // pred_fallthru
        _
      %p934 = scmp.le.s32.totalorder 2, %s11
      // Predicated region
      $region45: #{dlf_convnet3_forward.3} parent=5 // pred_check
        %p935 = pneg %p934
      $region46: #{dlf_convnet3_forward.3} parent=5 // pred_check_branch
        %937 = sbr.rel (%p935) target = $region48
      $region47: #{dlf_convnet3_forward.3} parent=5 // pred_region
        %s938 = ssub.s32 %s11, 2
        // Predicated region
        $region49: #{dlf_convnet3_forward.3} parent=47 // pred_check
          %p939 = pneg %p108
        $region50: #{dlf_convnet3_forward.3} parent=47 // pred_check_branch
          %941 = sbr.rel (%p939) target = $region52
        $region51: #{dlf_convnet3_forward.3} parent=47 // pred_region
          %s942 = smul.u32 64, %s17
          %p943 = scmp.lt.s32.totalorder %s942, 127
          %s944 = scalar_select %p943, %s942, 127
          %s945 = smul.addr %s944, 4
          %s946 = scalar_lea.vmem %s3, %s945
        $region52: #{dlf_convnet3_forward.3} parent=47 // pred_fallthru
          _
      $region48: #{dlf_convnet3_forward.3} parent=5 // pred_fallthru
        _
    $region6: #{dlf_convnet3_forward.3} parent=1 // loop_footer
      %s15 = sadd.s32 1, %s11
    $region7: #{dlf_convnet3_forward.3} parent=1 // loop_footer_branch
      %10 = sbr.rel target = $region3
    $region8: #{dlf_convnet3_forward.3} parent=1 // loop_exit
      _
    %947 = vsyncpa [#allocation3], 1
    %s948 = scalar_lea.sflag [#allocation3], 1
    %949 = vsyncpa %s948, 1
    %950 = vsyncpa [#allocation5], 1

// kernel: dlf_convnet3_forward.4
$region0: #{dlf_convnet3_forward.4}
  #allocation0 [shape = 'u32[]', space=smem, size = 0x4, offset = 0x4, fixed_abs, tag = 'smem constant byte address 0x4 - core index']
  #allocation1 [shape = 'u32[72,128]{1,0:T(1,128)}', space=vmem, size = 0x9000, scoped, tag = 'internal scratch']
  #allocation2 [shape = 'f32[576,64]{1,0:T(8,128)}', space=vmem, size = 0x48000, scoped, tag = 'scratch operand']
  %s0 = inlined_call_operand.vmem [shape: bf16[1536,64], index: 0, kind: input, shape index: {}, may-alias: {0,1}]
  %s1 = inlined_call_operand.vmem [shape: bf16[1536,64], index: 1, kind: input, shape index: {}, may-alias: {0,1}]
  %s2 = inlined_call_operand.vmem [shape: bf16[576,128], index: 2, kind: input, shape index: {}]
  %s3 = inlined_call_operand.vmem [shape: f32[1,128], index: 3, kind: input, shape index: {}]
  %s4 = inlined_call_operand.vmem [shape: bf16[1024,128], index: 4, kind: output, shape index: {}]
  %s5 = sld [smem:[#allocation0]]
  $region49: #{dlf_convnet3_forward.4} parent=0
    _
  %s7 = ssub.s32 1, %s5
  %s8 = scalar_select 0, %s7, %s5
  loop: start=0, step=1, limit=4
  $region2: #{dlf_convnet3_forward.4} parent=0 // loop_pre_header
    _
  $region3: #{dlf_convnet3_forward.4} parent=0 // loop_header
    %s10 = sphi 0, %s14
    %p11 = scmp.ge.s32.totalorder %s10, 4
    %s20 = sphi 0, %s22
    %s23 = sphi 0, %s20
    %s24 = sphi 0, %s23
    %s40 = sphi 0, %s24
    %s50 = sphi 0, %s52
    %s53 = sphi 0, %s50
    %s54 = sphi 0, %s53
    %s70 = sphi 0, %s54
    %s74 = sphi 0, %s74
    %s76 = sphi 0, %s74
    %s77 = sphi 0, %s76
    %s91 = sphi 0, %s77
    %s95 = sphi 0, %s95
    %s97 = sphi 0, %s95
    %s98 = sphi 0, %s97
    %s112 = sphi 0, %s98
    %s118 = sphi 0, %s120
    %s121 = sphi 0, %s118
    %s122 = sphi 0, %s121
    %s138 = sphi 0, %s122
  $region4: #{dlf_convnet3_forward.4} parent=0 // loop_header_branch
    %13 = sbr.rel (%p11) target = $region8
  $region5: #{dlf_convnet3_forward.4} parent=0 // loop_body
    %s15 = ssub.s32 %s10, 1
    %s16 = ssub.s32 %s10, 2
    %s17 = sadd.s32 %s10, 1
    %s18 = ssub.s32 %s10, %s17
    %p19 = scmp.eq.s32.totalorder %s18, 0
    %s21 = sadd.s32 %s20, 1
    %s22 = scalar_select %p19, %s20, %s21
    %p25 = pneg %p19
    %p26 = scmp.eq.s32.totalorder %s10, 1
    %p27 = por %p25, %p26
    %p28 = scmp.ne.s32.totalorder %s20, %s23
    %p29 = scmp.eq.s32.totalorder %s10, 0
    %p30 = por %p28, %p29
    %p31 = scmp.ne.s32.totalorder %s20, %s23
    %p32 = scmp.eq.s32.totalorder %s15, 1
    %p33 = por %p31, %p32
    %p34 = scmp.ne.s32.totalorder %s23, %s24
    %p35 = scmp.eq.s32.totalorder %s15, 0
    %p36 = por %p34, %p35
    %p37 = scmp.ne.s32.totalorder %s23, %s24
    %p38 = scmp.eq.s32.totalorder %s16, 1
    %p39 = por %p37, %p38
    %p41 = scmp.ne.s32.totalorder %s24, %s40
    %p42 = scmp.eq.s32.totalorder %s16, 0
    %p43 = por %p41, %p42
    %s44 = sadd.s32 %s10, 1
    %s45 = smul.u32 %s44, 8
    %s46 = sadd.s32 %s17, 1
    %s47 = smul.u32 %s46, 8
    %s48 = ssub.s32 %s45, %s47
    %p49 = scmp.eq.s32.totalorder %s48, 0
    %s51 = sadd.s32 %s50, 1
    %s52 = scalar_select %p49, %s50, %s51
    %p55 = pneg %p49
    %p56 = scmp.eq.s32.totalorder %s10, 1
    %p57 = por %p55, %p56
    %p58 = scmp.ne.s32.totalorder %s50, %s53
    %p59 = scmp.eq.s32.totalorder %s10, 0
    %p60 = por %p58, %p59
    %p61 = scmp.ne.s32.totalorder %s50, %s53
    %p62 = scmp.eq.s32.totalorder %s15, 1
    %p63 = por %p61, %p62
    %p64 = scmp.ne.s32.totalorder %s53, %s54
    %p65 = scmp.eq.s32.totalorder %s15, 0
    %p66 = por %p64, %p65
    %p67 = scmp.ne.s32.totalorder %s53, %s54
    %p68 = scmp.eq.s32.totalorder %s16, 1
    %p69 = por %p67, %p68
    %p71 = scmp.ne.s32.totalorder %s54, %s70
    %p72 = scmp.eq.s32.totalorder %s16, 0
    %p73 = por %p71, %p72
    %s75 = sadd.s32 %s74, 1
    %p78 = scmp.eq.s32.totalorder %s10, 1
    %p79 = scmp.ne.s32.totalorder %s74, %s76
    %p80 = scmp.eq.s32.totalorder %s10, 0
    %p81 = por %p79, %p80
    %p82 = scmp.ne.s32.totalorder %s74, %s76
    %p83 = scmp.eq.s32.totalorder %s15, 1
    %p84 = por %p82, %p83
    %p85 = scmp.ne.s32.totalorder %s76, %s77
    %p86 = scmp.eq.s32.totalorder %s15, 0
    %p87 = por %p85, %p86
    %p88 = scmp.ne.s32.totalorder %s76, %s77
    %p89 = scmp.eq.s32.totalorder %s16, 1
    %p90 = por %p88, %p89
    %p92 = scmp.ne.s32.totalorder %s77, %s91
    %p93 = scmp.eq.s32.totalorder %s16, 0
    %p94 = por %p92, %p93
    %s96 = sadd.s32 %s95, 1
    %p99 = scmp.eq.s32.totalorder %s10, 1
    %p100 = scmp.ne.s32.totalorder %s95, %s97
    %p101 = scmp.eq.s32.totalorder %s10, 0
    %p102 = por %p100, %p101
    %p103 = scmp.ne.s32.totalorder %s95, %s97
    %p104 = scmp.eq.s32.totalorder %s15, 1
    %p105 = por %p103, %p104
    %p106 = scmp.ne.s32.totalorder %s97, %s98
    %p107 = scmp.eq.s32.totalorder %s15, 0
    %p108 = por %p106, %p107
    %p109 = scmp.ne.s32.totalorder %s97, %s98
    %p110 = scmp.eq.s32.totalorder %s16, 1
    %p111 = por %p109, %p110
    %p113 = scmp.ne.s32.totalorder %s98, %s112
    %p114 = scmp.eq.s32.totalorder %s16, 0
    %p115 = por %p113, %p114
    %s116 = ssub.s32 %s10, %s17
    %p117 = scmp.eq.s32.totalorder %s116, 0
    %s119 = sadd.s32 %s118, 1
    %s120 = scalar_select %p117, %s118, %s119
    %p123 = pneg %p117
    %p124 = scmp.eq.s32.totalorder %s10, 1
    %p125 = por %p123, %p124
    %p126 = scmp.ne.s32.totalorder %s118, %s121
    %p127 = scmp.eq.s32.totalorder %s10, 0
    %p128 = por %p126, %p127
    %p129 = scmp.ne.s32.totalorder %s118, %s121
    %p130 = scmp.eq.s32.totalorder %s15, 1
    %p131 = por %p129, %p130
    %p132 = scmp.ne.s32.totalorder %s121, %s122
    %p133 = scmp.eq.s32.totalorder %s15, 0
    %p134 = por %p132, %p133
    %p135 = scmp.ne.s32.totalorder %s121, %s122
    %p136 = scmp.eq.s32.totalorder %s16, 1
    %p137 = por %p135, %p136
    %p139 = scmp.ne.s32.totalorder %s122, %s138
    %p140 = scmp.eq.s32.totalorder %s16, 0
    %p141 = por %p139, %p140
    %p142 = scmp.le.s32.totalorder 1, %s10
    %p143 = scmp.lt.s32.totalorder %s10, 3
    %p144 = pnand %p142, %p143
    %p145 = pneg %p144
    // Predicated region
    $region9: #{dlf_convnet3_forward.4} parent=5 // pred_check
      _
    $region10: #{dlf_convnet3_forward.4} parent=5 // pred_check_branch
      %147 = sbr.rel (%p144) target = $region12
    $region11: #{dlf_convnet3_forward.4} parent=5 // pred_region
      %s148 = ssub.s32 %s10, 1
      // Predicated region
      $region13: #{dlf_convnet3_forward.4} parent=11 // pred_check
        %p149 = pneg %p87
      $region14: #{dlf_convnet3_forward.4} parent=11 // pred_check_branch
        %151 = sbr.rel (%p149) target = $region16
      $region15: #{dlf_convnet3_forward.4} parent=11 // pred_region
        _
      $region16: #{dlf_convnet3_forward.4} parent=11 // pred_fallthru
        _
      // Predicated region
      $region17: #{dlf_convnet3_forward.4} parent=11 // pred_check
        %p152 = pneg %p108
      $region18: #{dlf_convnet3_forward.4} parent=11 // pred_check_branch
        %154 = sbr.rel (%p152) target = $region20
      $region19: #{dlf_convnet3_forward.4} parent=11 // pred_region
        _
      $region20: #{dlf_convnet3_forward.4} parent=11 // pred_fallthru
        _
    $region12: #{dlf_convnet3_forward.4} parent=5 // pred_fallthru
      _
    %p155 = scmp.lt.s32.totalorder %s10, 2
    // Predicated region
    $region21: #{dlf_convnet3_forward.4} parent=5 // pred_check
      %p156 = pneg %p155
    $region22: #{dlf_convnet3_forward.4} parent=5 // pred_check_branch
      %158 = sbr.rel (%p156) target = $region24
    $region23: #{dlf_convnet3_forward.4} parent=5 // pred_region
      // Predicated region
      $region25: #{dlf_convnet3_forward.4} parent=23 // pred_check
        %p159 = pneg %p30
      $region26: #{dlf_convnet3_forward.4} parent=23 // pred_check_branch
        %161 = sbr.rel (%p159) target = $region28
      $region27: #{dlf_convnet3_forward.4} parent=23 // pred_region
        %s162 = smul.u32 64, %s10
        %p163 = scmp.lt.s32.totalorder %s162, 191
        %s164 = scalar_select %p163, %s162, 191
        %s165 = smul.addr %s164, 4
        %s166 = scalar_lea.vmem %s0, %s165
        %s167 = smul.u32 64, %s10
      $region28: #{dlf_convnet3_forward.4} parent=23 // pred_fallthru
        _
      // Predicated region
      $region29: #{dlf_convnet3_forward.4} parent=23 // pred_check
        %p168 = pneg %p60
      $region30: #{dlf_convnet3_forward.4} parent=23 // pred_check_branch
        %170 = sbr.rel (%p168) target = $region32
      $region31: #{dlf_convnet3_forward.4} parent=23 // pred_region
        %s171 = sadd.s32 %s10, 1
        %s172 = smul.u32 %s171, 8
        %s173 = smul.u32 8, %s172
        %p174 = scmp.lt.s32.totalorder %s173, 191
        %s175 = scalar_select %p174, %s173, 191
        %s176 = smul.addr %s175, 4
        %s177 = scalar_lea.vmem %s1, %s176
        %s178 = sadd.s32 %s10, 1
        %s179 = smul.u32 %s178, 8
        %s180 = smul.u32 8, %s179
      $region32: #{dlf_convnet3_forward.4} parent=23 // pred_fallthru
        _
    $region24: #{dlf_convnet3_forward.4} parent=5 // pred_fallthru
      _
    %p181 = scmp.le.s32.totalorder 1, %s10
    %p182 = scmp.lt.s32.totalorder %s10, 3
    %p183 = pnand %p181, %p182
    %p184 = pneg %p183
    // Predicated region
    $region33: #{dlf_convnet3_forward.4} parent=5 // pred_check
      _
    $region34: #{dlf_convnet3_forward.4} parent=5 // pred_check_branch
      %186 = sbr.rel (%p183) target = $region36
    $region35: #{dlf_convnet3_forward.4} parent=5 // pred_region
      %s187 = ssub.s32 %s10, 1
      %s188 = smul.u32 64, %s15
      %p189 = scmp.lt.s32.totalorder %s188, 191
      %s190 = scalar_select %p189, %s188, 191
      %s191 = smul.addr %s190, 4
      %s192 = scalar_lea.vmem %s0, %s191
      %p193 = pneg %p36
      %p194 = pneg %p33
      %s195 = sadd.s32 %s15, 1
      %s196 = smul.u32 %s195, 8
      %s197 = smul.u32 8, %s196
      %p198 = scmp.lt.s32.totalorder %s197, 191
      %s199 = scalar_select %p198, %s197, 191
      %s200 = smul.addr %s199, 4
      %s201 = scalar_lea.vmem %s1, %s200
      %p202 = pneg %p66
      %p203 = pneg %p63
      %p204 = pneg %p87
      %p205 = pneg %p84
      %p206 = pneg %p108
      %p207 = pneg %p105
      %p208 = pneg %p134
      %p209 = pneg %p131
      %s210 = smul.u32 64, %s15
      %p211 = scmp.lt.s32.totalorder %s210, 127
      %s212 = scalar_select %p211, %s210, 127
      %s213 = smul.addr %s212, 4
      %s214 = scalar_lea.vmem %s4, %s213
      %s215 = smul.u32 64, %s15
      %p216 = scmp.lt.s32.totalorder %s215, 191
      %s217 = scalar_select %p216, %s215, 191
      %s218 = smul.addr %s217, 4
      %s219 = scalar_lea.vmem %s0, %s218
      %s220 = smul.u32 64, %s15
      %s221 = sadd.s32 %s15, 1
      %s222 = smul.u32 %s221, 8
      %s223 = smul.u32 8, %s222
      %p224 = scmp.lt.s32.totalorder %s223, 191
      %s225 = scalar_select %p224, %s223, 191
      %s226 = smul.addr %s225, 4
      %s227 = scalar_lea.vmem %s1, %s226
      %s228 = sadd.s32 %s15, 1
      %s229 = smul.u32 %s228, 8
      %s230 = smul.u32 8, %s229
      %s231 = smul.u32 64, %s15
      %p232 = scmp.lt.s32.totalorder %s231, 127
      %s233 = scalar_select %p232, %s231, 127
      %s234 = smul.addr %s233, 4
      %s235 = scalar_lea.vmem %s4, %s234
      %s236 = smul.u32 64, %s15
      %v238 = vld [vmem:[%s219] sm:$0xf]
      %v239 = vld [vmem:[%s219 + $0x4] sm:$0xf]
      %v240 = vld [vmem:[%s219 + $0x8] sm:$0xf]
      %v241 = vld [vmem:[%s219 + $0xc] sm:$0xf]
      %v242 = vld [vmem:[%s219 + $0x10] sm:$0xf]
      %v243 = vld [vmem:[%s219 + $0x14] sm:$0xf]
      %v244 = vld [vmem:[%s219 + $0x18] sm:$0xf]
      %v245 = vld [vmem:[%s219 + $0x1c] sm:$0xf]
      %v246 = vld [vmem:[%s219 + $0x20] sm:$0xf]
      %v247 = vld [vmem:[%s219 + $0x24] sm:$0xf]
      %v248 = vld [vmem:[%s219 + $0x28] sm:$0xf]
      %v249 = vld [vmem:[%s219 + $0x2c] sm:$0xf]
      %v250 = vld [vmem:[%s219 + $0x30] sm:$0xf]
      %v251 = vld [vmem:[%s219 + $0x34] sm:$0xf]
      %v252 = vld [vmem:[%s219 + $0x38] sm:$0xf]
      %v253 = vld [vmem:[%s219 + $0x3c] sm:$0xf]
      %v254 = vld [vmem:[%s219 + $0x40] sm:$0xf]
      %v255 = vld [vmem:[%s219 + $0x44] sm:$0xf]
      %v256 = vld [vmem:[%s219 + $0x48] sm:$0xf]
      %v257 = vld [vmem:[%s219 + $0x4c] sm:$0xf]
      %v258 = vld [vmem:[%s219 + $0x50] sm:$0xf]
      %v259 = vld [vmem:[%s219 + $0x54] sm:$0xf]
      %v260 = vld [vmem:[%s219 + $0x58] sm:$0xf]
      %v261 = vld [vmem:[%s219 + $0x5c] sm:$0xf]
      %v262 = vld [vmem:[%s219 + $0x60] sm:$0xf]
      %v263 = vld [vmem:[%s219 + $0x64] sm:$0xf]
      %v264 = vld [vmem:[%s219 + $0x68] sm:$0xf]
      %v265 = vld [vmem:[%s219 + $0x6c] sm:$0xf]
      %v266 = vld [vmem:[%s219 + $0x70] sm:$0xf]
      %v267 = vld [vmem:[%s219 + $0x74] sm:$0xf]
      %v268 = vld [vmem:[%s219 + $0x78] sm:$0xf]
      %v269 = vld [vmem:[%s219 + $0x7c] sm:$0xf]
      %v270 = vld [vmem:[%s219 + $0x80] sm:$0xf]
      %v271 = vld [vmem:[%s219 + $0x84] sm:$0xf]
      %v272 = vld [vmem:[%s219 + $0x88] sm:$0xf]
      %v273 = vld [vmem:[%s219 + $0x8c] sm:$0xf]
      %v274 = vld [vmem:[%s219 + $0x90] sm:$0xf]
      %v275 = vld [vmem:[%s219 + $0x94] sm:$0xf]
      %v276 = vld [vmem:[%s219 + $0x98] sm:$0xf]
      %v277 = vld [vmem:[%s219 + $0x9c] sm:$0xf]
      %v278 = vld [vmem:[%s219 + $0xa0] sm:$0xf]
      %v279 = vld [vmem:[%s219 + $0xa4] sm:$0xf]
      %v280 = vld [vmem:[%s219 + $0xa8] sm:$0xf]
      %v281 = vld [vmem:[%s219 + $0xac] sm:$0xf]
      %v282 = vld [vmem:[%s219 + $0xb0] sm:$0xf]
      %v283 = vld [vmem:[%s219 + $0xb4] sm:$0xf]
      %v284 = vld [vmem:[%s219 + $0xb8] sm:$0xf]
      %v285 = vld [vmem:[%s219 + $0xbc] sm:$0xf]
      %v286 = vld [vmem:[%s219 + $0xc0] sm:$0xf]
      %v287 = vld [vmem:[%s219 + $0xc4] sm:$0xf]
      %v288 = vld [vmem:[%s219 + $0xc8] sm:$0xf]
      %v289 = vld [vmem:[%s219 + $0xcc] sm:$0xf]
      %v290 = vld [vmem:[%s219 + $0xd0] sm:$0xf]
      %v291 = vld [vmem:[%s219 + $0xd4] sm:$0xf]
      %v292 = vld [vmem:[%s219 + $0xd8] sm:$0xf]
      %v293 = vld [vmem:[%s219 + $0xdc] sm:$0xf]
      %v294 = vld [vmem:[%s219 + $0xe0] sm:$0xf]
      %v295 = vld [vmem:[%s219 + $0xe4] sm:$0xf]
      %v296 = vld [vmem:[%s219 + $0xe8] sm:$0xf]
      %v297 = vld [vmem:[%s219 + $0xec] sm:$0xf]
      %v298 = vld [vmem:[%s219 + $0xf0] sm:$0xf]
      %v299 = vld [vmem:[%s219 + $0xf4] sm:$0xf]
      %v300 = vld [vmem:[%s219 + $0xf8] sm:$0xf]
      %v301 = vld [vmem:[%s219 + $0xfc] sm:$0xf]
      %v302 = vunpack.c.l.bf16 %v238
      %v303 = vunpack.c.l.bf16 %v239
      %v304 = vunpack.c.l.bf16 %v240
      %v305 = vunpack.c.l.bf16 %v241
      %v306 = vunpack.c.l.bf16 %v242
      %v307 = vunpack.c.l.bf16 %v243
      %v308 = vunpack.c.l.bf16 %v244
      %v309 = vunpack.c.l.bf16 %v245
      %v310 = vunpack.c.l.bf16 %v246
      %v311 = vunpack.c.l.bf16 %v247
      %v312 = vunpack.c.l.bf16 %v248
      %v313 = vunpack.c.l.bf16 %v249
      %v314 = vunpack.c.l.bf16 %v250
      %v315 = vunpack.c.l.bf16 %v251
      %v316 = vunpack.c.l.bf16 %v252
      %v317 = vunpack.c.l.bf16 %v253
      %v318 = vunpack.c.l.bf16 %v254
      %v319 = vunpack.c.l.bf16 %v255
      %v320 = vunpack.c.l.bf16 %v256
      %v321 = vunpack.c.l.bf16 %v257
      %v322 = vunpack.c.l.bf16 %v258
      %v323 = vunpack.c.l.bf16 %v259
      %v324 = vunpack.c.l.bf16 %v260
      %v325 = vunpack.c.l.bf16 %v261
      %v326 = vunpack.c.l.bf16 %v262
      %v327 = vunpack.c.l.bf16 %v263
      %v328 = vunpack.c.l.bf16 %v264
      %v329 = vunpack.c.l.bf16 %v265
      %v330 = vunpack.c.l.bf16 %v266
      %v331 = vunpack.c.l.bf16 %v267
      %v332 = vunpack.c.l.bf16 %v268
      %v333 = vunpack.c.l.bf16 %v269
      %v334 = vunpack.c.l.bf16 %v270
      %v335 = vunpack.c.l.bf16 %v271
      %v336 = vunpack.c.l.bf16 %v272
      %v337 = vunpack.c.l.bf16 %v273
      %v338 = vunpack.c.l.bf16 %v274
      %v339 = vunpack.c.l.bf16 %v275
      %v340 = vunpack.c.l.bf16 %v276
      %v341 = vunpack.c.l.bf16 %v277
      %v342 = vunpack.c.l.bf16 %v278
      %v343 = vunpack.c.l.bf16 %v279
      %v344 = vunpack.c.l.bf16 %v280
      %v345 = vunpack.c.l.bf16 %v281
      %v346 = vunpack.c.l.bf16 %v282
      %v347 = vunpack.c.l.bf16 %v283
      %v348 = vunpack.c.l.bf16 %v284
      %v349 = vunpack.c.l.bf16 %v285
      %v350 = vunpack.c.l.bf16 %v286
      %v351 = vunpack.c.l.bf16 %v287
      %v352 = vunpack.c.l.bf16 %v288
      %v353 = vunpack.c.l.bf16 %v289
      %v354 = vunpack.c.l.bf16 %v290
      %v355 = vunpack.c.l.bf16 %v291
      %v356 = vunpack.c.l.bf16 %v292
      %v357 = vunpack.c.l.bf16 %v293
      %v358 = vunpack.c.l.bf16 %v294
      %v359 = vunpack.c.l.bf16 %v295
      %v360 = vunpack.c.l.bf16 %v296
      %v361 = vunpack.c.l.bf16 %v297
      %v362 = vunpack.c.l.bf16 %v298
      %v363 = vunpack.c.l.bf16 %v299
      %v364 = vunpack.c.l.bf16 %v300
      %v365 = vunpack.c.l.bf16 %v301
      %vm366 = vcmask 523264
      %367 = vst.msk [vmem:[#allocation2] sm:$0xff] %vm366, %v302
      %368 = vst.msk [vmem:[#allocation2 + $0x8] sm:$0xff] %vm366, %v303
      %369 = vst.msk [vmem:[#allocation2 + $0x10] sm:$0xff] %vm366, %v304
      %370 = vst.msk [vmem:[#allocation2 + $0x18] sm:$0xff] %vm366, %v305
      %371 = vst.msk [vmem:[#allocation2 + $0x20] sm:$0xff] %vm366, %v306
      %372 = vst.msk [vmem:[#allocation2 + $0x28] sm:$0xff] %vm366, %v307
      %373 = vst.msk [vmem:[#allocation2 + $0x30] sm:$0xff] %vm366, %v308
      %374 = vst.msk [vmem:[#allocation2 + $0x38] sm:$0xff] %vm366, %v309
      %375 = vst.msk [vmem:[#allocation2 + $0x40] sm:$0xff] %vm366, %v310
      %376 = vst.msk [vmem:[#allocation2 + $0x48] sm:$0xff] %vm366, %v311
      %377 = vst.msk [vmem:[#allocation2 + $0x50] sm:$0xff] %vm366, %v312
      %378 = vst.msk [vmem:[#allocation2 + $0x58] sm:$0xff] %vm366, %v313
      %379 = vst.msk [vmem:[#allocation2 + $0x60] sm:$0xff] %vm366, %v314
      %380 = vst.msk [vmem:[#allocation2 + $0x68] sm:$0xff] %vm366, %v315
      %381 = vst.msk [vmem:[#allocation2 + $0x70] sm:$0xff] %vm366, %v316
      %382 = vst.msk [vmem:[#allocation2 + $0x78] sm:$0xff] %vm366, %v317
      %383 = vst.msk [vmem:[#allocation2 + $0x80] sm:$0xff] %vm366, %v318
      %384 = vst.msk [vmem:[#allocation2 + $0x88] sm:$0xff] %vm366, %v319
      %385 = vst.msk [vmem:[#allocation2 + $0x90] sm:$0xff] %vm366, %v320
      %386 = vst.msk [vmem:[#allocation2 + $0x98] sm:$0xff] %vm366, %v321
      %387 = vst.msk [vmem:[#allocation2 + $0xa0] sm:$0xff] %vm366, %v322
      %388 = vst.msk [vmem:[#allocation2 + $0xa8] sm:$0xff] %vm366, %v323
      %389 = vst.msk [vmem:[#allocation2 + $0xb0] sm:$0xff] %vm366, %v324
      %390 = vst.msk [vmem:[#allocation2 + $0xb8] sm:$0xff] %vm366, %v325
      %391 = vst.msk [vmem:[#allocation2 + $0xc0] sm:$0xff] %vm366, %v326
      %392 = vst.msk [vmem:[#allocation2 + $0xc8] sm:$0xff] %vm366, %v327
      %393 = vst.msk [vmem:[#allocation2 + $0xd0] sm:$0xff] %vm366, %v328
      %394 = vst.msk [vmem:[#allocation2 + $0xd8] sm:$0xff] %vm366, %v329
      %395 = vst.msk [vmem:[#allocation2 + $0xe0] sm:$0xff] %vm366, %v330
      %396 = vst.msk [vmem:[#allocation2 + $0xe8] sm:$0xff] %vm366, %v331
      %397 = vst.msk [vmem:[#allocation2 + $0xf0] sm:$0xff] %vm366, %v332
      %398 = vst.msk [vmem:[#allocation2 + $0xf8] sm:$0xff] %vm366, %v333
      %399 = vst.msk [vmem:[#allocation2 + $0x100] sm:$0xff] %vm366, %v334
      %400 = vst.msk [vmem:[#allocation2 + $0x108] sm:$0xff] %vm366, %v335
      %401 = vst.msk [vmem:[#allocation2 + $0x110] sm:$0xff] %vm366, %v336
      %402 = vst.msk [vmem:[#allocation2 + $0x118] sm:$0xff] %vm366, %v337
      %403 = vst.msk [vmem:[#allocation2 + $0x120] sm:$0xff] %vm366, %v338
      %404 = vst.msk [vmem:[#allocation2 + $0x128] sm:$0xff] %vm366, %v339
      %405 = vst.msk [vmem:[#allocation2 + $0x130] sm:$0xff] %vm366, %v340
      %406 = vst.msk [vmem:[#allocation2 + $0x138] sm:$0xff] %vm366, %v341
      %407 = vst.msk [vmem:[#allocation2 + $0x140] sm:$0xff] %vm366, %v342
      %408 = vst.msk [vmem:[#allocation2 + $0x148] sm:$0xff] %vm366, %v343
      %409 = vst.msk [vmem:[#allocation2 + $0x150] sm:$0xff] %vm366, %v344
      %410 = vst.msk [vmem:[#allocation2 + $0x158] sm:$0xff] %vm366, %v345
      %411 = vst.msk [vmem:[#allocation2 + $0x160] sm:$0xff] %vm366, %v346
      %412 = vst.msk [vmem:[#allocation2 + $0x168] sm:$0xff] %vm366, %v347
      %413 = vst.msk [vmem:[#allocation2 + $0x170] sm:$0xff] %vm366, %v348
      %414 = vst.msk [vmem:[#allocation2 + $0x178] sm:$0xff] %vm366, %v349
      %415 = vst.msk [vmem:[#allocation2 + $0x180] sm:$0xff] %vm366, %v350
      %416 = vst.msk [vmem:[#allocation2 + $0x188] sm:$0xff] %vm366, %v351
      %417 = vst.msk [vmem:[#allocation2 + $0x190] sm:$0xff] %vm366, %v352
      %418 = vst.msk [vmem:[#allocation2 + $0x198] sm:$0xff] %vm366, %v353
      %419 = vst.msk [vmem:[#allocation2 + $0x1a0] sm:$0xff] %vm366, %v354
      %420 = vst.msk [vmem:[#allocation2 + $0x1a8] sm:$0xff] %vm366, %v355
      %421 = vst.msk [vmem:[#allocation2 + $0x1b0] sm:$0xff] %vm366, %v356
      %422 = vst.msk [vmem:[#allocation2 + $0x1b8] sm:$0xff] %vm366, %v357
      %423 = vst.msk [vmem:[#allocation2 + $0x1c0] sm:$0xff] %vm366, %v358
      %424 = vst.msk [vmem:[#allocation2 + $0x1c8] sm:$0xff] %vm366, %v359
      %425 = vst.msk [vmem:[#allocation2 + $0x1d0] sm:$0xff] %vm366, %v360
      %426 = vst.msk [vmem:[#allocation2 + $0x1d8] sm:$0xff] %vm366, %v361
      %427 = vst.msk [vmem:[#allocation2 + $0x1e0] sm:$0xff] %vm366, %v362
      %428 = vst.msk [vmem:[#allocation2 + $0x1e8] sm:$0xff] %vm366, %v363
      %429 = vst.msk [vmem:[#allocation2 + $0x1f0] sm:$0xff] %vm366, %v364
      %430 = vst.msk [vmem:[#allocation2 + $0x1f8] sm:$0xff] %vm366, %v365
      %v431 = vld [vmem:[%s227] sm:$0xf]
      %v432 = vld [vmem:[%s227 + $0x4] sm:$0xf]
      %v433 = vld [vmem:[%s227 + $0x8] sm:$0xf]
      %v434 = vld [vmem:[%s227 + $0xc] sm:$0xf]
      %v435 = vld [vmem:[%s227 + $0x10] sm:$0xf]
      %v436 = vld [vmem:[%s227 + $0x14] sm:$0xf]
      %v437 = vld [vmem:[%s227 + $0x18] sm:$0xf]
      %v438 = vld [vmem:[%s227 + $0x1c] sm:$0xf]
      %v439 = vunpack.c.l.bf16 %v431
      %v440 = vunpack.c.l.bf16 %v432
      %v441 = vunpack.c.l.bf16 %v433
      %v442 = vunpack.c.l.bf16 %v434
      %v443 = vunpack.c.l.bf16 %v435
      %v444 = vunpack.c.l.bf16 %v436
      %v445 = vunpack.c.l.bf16 %v437
      %v446 = vunpack.c.l.bf16 %v438
      %447 = vst.msk [vmem:[#allocation2 + $0x200] sm:$0xff] %vm366, %v439
      %448 = vst.msk [vmem:[#allocation2 + $0x208] sm:$0xff] %vm366, %v440
      %449 = vst.msk [vmem:[#allocation2 + $0x210] sm:$0xff] %vm366, %v441
      %450 = vst.msk [vmem:[#allocation2 + $0x218] sm:$0xff] %vm366, %v442
      %451 = vst.msk [vmem:[#allocation2 + $0x220] sm:$0xff] %vm366, %v443
      %452 = vst.msk [vmem:[#allocation2 + $0x228] sm:$0xff] %vm366, %v444
      %453 = vst.msk [vmem:[#allocation2 + $0x230] sm:$0xff] %vm366, %v445
      %454 = vst.msk [vmem:[#allocation2 + $0x238] sm:$0xff] %vm366, %v446
      %v455 = vld [vmem:[#allocation2] sm:$0xff]
      %v456 = vld [vmem:[#allocation2 + $0x8] sm:$0xff]
      %v457 = vld [vmem:[#allocation2 + $0x10] sm:$0xff]
      %v458 = vld [vmem:[#allocation2 + $0x18] sm:$0xff]
      %v459 = vld [vmem:[#allocation2 + $0x20] sm:$0xff]
      %v460 = vld [vmem:[#allocation2 + $0x28] sm:$0xff]
      %v461 = vld [vmem:[#allocation2 + $0x30] sm:$0xff]
      %v462 = vld [vmem:[#allocation2 + $0x38] sm:$0xff]
      %v463 = vld [vmem:[#allocation2 + $0x40] sm:$0xff]
      %v464 = vld [vmem:[#allocation2 + $0x48] sm:$0xff]
      %v465 = vld [vmem:[#allocation2 + $0x50] sm:$0xff]
      %v466 = vld [vmem:[#allocation2 + $0x58] sm:$0xff]
      %v467 = vld [vmem:[#allocation2 + $0x60] sm:$0xff]
      %v468 = vld [vmem:[#allocation2 + $0x68] sm:$0xff]
      %v469 = vld [vmem:[#allocation2 + $0x70] sm:$0xff]
      %v470 = vld [vmem:[#allocation2 + $0x78] sm:$0xff]
      %v471 = vld [vmem:[#allocation2 + $0x80] sm:$0xff]
      %v472 = vld [vmem:[#allocation2 + $0x88] sm:$0xff]
      %v473 = vld [vmem:[#allocation2 + $0x90] sm:$0xff]
      %v474 = vld [vmem:[#allocation2 + $0x98] sm:$0xff]
      %v475 = vld [vmem:[#allocation2 + $0xa0] sm:$0xff]
      %v476 = vld [vmem:[#allocation2 + $0xa8] sm:$0xff]
      %v477 = vld [vmem:[#allocation2 + $0xb0] sm:$0xff]
      %v478 = vld [vmem:[#allocation2 + $0xb8] sm:$0xff]
      %v479 = vld [vmem:[#allocation2 + $0xc0] sm:$0xff]
      %v480 = vld [vmem:[#allocation2 + $0xc8] sm:$0xff]
      %v481 = vld [vmem:[#allocation2 + $0xd0] sm:$0xff]
      %v482 = vld [vmem:[#allocation2 + $0xd8] sm:$0xff]
      %v483 = vld [vmem:[#allocation2 + $0xe0] sm:$0xff]
      %v484 = vld [vmem:[#allocation2 + $0xe8] sm:$0xff]
      %v485 = vld [vmem:[#allocation2 + $0xf0] sm:$0xff]
      %v486 = vld [vmem:[#allocation2 + $0xf8] sm:$0xff]
      %v487 = vld [vmem:[#allocation2 + $0x100] sm:$0xff]
      %v488 = vld [vmem:[#allocation2 + $0x108] sm:$0xff]
      %v489 = vld [vmem:[#allocation2 + $0x110] sm:$0xff]
      %v490 = vld [vmem:[#allocation2 + $0x118] sm:$0xff]
      %v491 = vld [vmem:[#allocation2 + $0x120] sm:$0xff]
      %v492 = vld [vmem:[#allocation2 + $0x128] sm:$0xff]
      %v493 = vld [vmem:[#allocation2 + $0x130] sm:$0xff]
      %v494 = vld [vmem:[#allocation2 + $0x138] sm:$0xff]
      %v495 = vld [vmem:[#allocation2 + $0x140] sm:$0xff]
      %v496 = vld [vmem:[#allocation2 + $0x148] sm:$0xff]
      %v497 = vld [vmem:[#allocation2 + $0x150] sm:$0xff]
      %v498 = vld [vmem:[#allocation2 + $0x158] sm:$0xff]
      %v499 = vld [vmem:[#allocation2 + $0x160] sm:$0xff]
      %v500 = vld [vmem:[#allocation2 + $0x168] sm:$0xff]
      %v501 = vld [vmem:[#allocation2 + $0x170] sm:$0xff]
      %v502 = vld [vmem:[#allocation2 + $0x178] sm:$0xff]
      %v503 = vld [vmem:[#allocation2 + $0x180] sm:$0xff]
      %v504 = vld [vmem:[#allocation2 + $0x188] sm:$0xff]
      %v505 = vld [vmem:[#allocation2 + $0x190] sm:$0xff]
      %v506 = vld [vmem:[#allocation2 + $0x198] sm:$0xff]
      %v507 = vld [vmem:[#allocation2 + $0x1a0] sm:$0xff]
      %v508 = vld [vmem:[#allocation2 + $0x1a8] sm:$0xff]
      %v509 = vld [vmem:[#allocation2 + $0x1b0] sm:$0xff]
      %v510 = vld [vmem:[#allocation2 + $0x1b8] sm:$0xff]
      %v511 = vld [vmem:[#allocation2 + $0x1c0] sm:$0xff]
      %v512 = vld [vmem:[#allocation2 + $0x1c8] sm:$0xff]
      %v513 = vld [vmem:[#allocation2 + $0x1d0] sm:$0xff]
      %v514 = vld [vmem:[#allocation2 + $0x1d8] sm:$0xff]
      %v515 = vld [vmem:[#allocation2 + $0x1e0] sm:$0xff]
      %v516 = vld [vmem:[#allocation2 + $0x1e8] sm:$0xff]
      %v517 = vld [vmem:[#allocation2 + $0x1f0] sm:$0xff]
      %v518 = vld [vmem:[#allocation2 + $0x1f8] sm:$0xff]
      %v519 = vpack.c.bf16 %v456, %v455
      %v520 = vpack.c.bf16 %v458, %v457
      %v521 = vpack.c.bf16 %v460, %v459
      %v522 = vpack.c.bf16 %v462, %v461
      %v523 = vpack.c.bf16 %v464, %v463
      %v524 = vpack.c.bf16 %v466, %v465
      %v525 = vpack.c.bf16 %v468, %v467
      %v526 = vpack.c.bf16 %v470, %v469
      %v527 = vpack.c.bf16 %v472, %v471
      %v528 = vpack.c.bf16 %v474, %v473
      %v529 = vpack.c.bf16 %v476, %v475
      %v530 = vpack.c.bf16 %v478, %v477
      %v531 = vpack.c.bf16 %v480, %v479
      %v532 = vpack.c.bf16 %v482, %v481
      %v533 = vpack.c.bf16 %v484, %v483
      %v534 = vpack.c.bf16 %v486, %v485
      %v535 = vpack.c.bf16 %v488, %v487
      %v536 = vpack.c.bf16 %v490, %v489
      %v537 = vpack.c.bf16 %v492, %v491
      %v538 = vpack.c.bf16 %v494, %v493
      %v539 = vpack.c.bf16 %v496, %v495
      %v540 = vpack.c.bf16 %v498, %v497
      %v541 = vpack.c.bf16 %v500, %v499
      %v542 = vpack.c.bf16 %v502, %v501
      %v543 = vpack.c.bf16 %v504, %v503
      %v544 = vpack.c.bf16 %v506, %v505
      %v545 = vpack.c.bf16 %v508, %v507
      %v546 = vpack.c.bf16 %v510, %v509
      %v547 = vpack.c.bf16 %v512, %v511
      %v548 = vpack.c.bf16 %v514, %v513
      %v549 = vpack.c.bf16 %v516, %v515
      %v550 = vpack.c.bf16 %v518, %v517
      %v551 = vld [vmem:[%s2] sm:$0xf]
      %v552 = vld [vmem:[%s2 + $0x4] sm:$0xf]
      %v553 = vld [vmem:[%s2 + $0x8] sm:$0xf]
      %v554 = vld [vmem:[%s2 + $0xc] sm:$0xf]
      %v555 = vld [vmem:[%s2 + $0x10] sm:$0xf]
      %v556 = vld [vmem:[%s2 + $0x14] sm:$0xf]
      %v557 = vld [vmem:[%s2 + $0x18] sm:$0xf]
      %v558 = vld [vmem:[%s2 + $0x1c] sm:$0xf]
      %v559 = vld [vmem:[#allocation2 + $0x1] sm:$0xff]
      %v560 = vld [vmem:[#allocation2 + $0x9] sm:$0xff]
      %v561 = vld [vmem:[#allocation2 + $0x11] sm:$0xff]
      %v562 = vld [vmem:[#allocation2 + $0x19] sm:$0xff]
      %v563 = vld [vmem:[#allocation2 + $0x21] sm:$0xff]
      %v564 = vld [vmem:[#allocation2 + $0x29] sm:$0xff]
      %v565 = vld [vmem:[#allocation2 + $0x31] sm:$0xff]
      %v566 = vld [vmem:[#allocation2 + $0x39] sm:$0xff]
      %v567 = vld [vmem:[#allocation2 + $0x41] sm:$0xff]
      %v568 = vld [vmem:[#allocation2 + $0x49] sm:$0xff]
      %v569 = vld [vmem:[#allocation2 + $0x51] sm:$0xff]
      %v570 = vld [vmem:[#allocation2 + $0x59] sm:$0xff]
      %v571 = vld [vmem:[#allocation2 + $0x61] sm:$0xff]
      %v572 = vld [vmem:[#allocation2 + $0x69] sm:$0xff]
      %v573 = vld [vmem:[#allocation2 + $0x71] sm:$0xff]
      %v574 = vld [vmem:[#allocation2 + $0x79] sm:$0xff]
      %v575 = vld [vmem:[#allocation2 + $0x81] sm:$0xff]
      %v576 = vld [vmem:[#allocation2 + $0x89] sm:$0xff]
      %v577 = vld [vmem:[#allocation2 + $0x91] sm:$0xff]
      %v578 = vld [vmem:[#allocation2 + $0x99] sm:$0xff]
      %v579 = vld [vmem:[#allocation2 + $0xa1] sm:$0xff]
      %v580 = vld [vmem:[#allocation2 + $0xa9] sm:$0xff]
      %v581 = vld [vmem:[#allocation2 + $0xb1] sm:$0xff]
      %v582 = vld [vmem:[#allocation2 + $0xb9] sm:$0xff]
      %v583 = vld [vmem:[#allocation2 + $0xc1] sm:$0xff]
      %v584 = vld [vmem:[#allocation2 + $0xc9] sm:$0xff]
      %v585 = vld [vmem:[#allocation2 + $0xd1] sm:$0xff]
      %v586 = vld [vmem:[#allocation2 + $0xd9] sm:$0xff]
      %v587 = vld [vmem:[#allocation2 + $0xe1] sm:$0xff]
      %v588 = vld [vmem:[#allocation2 + $0xe9] sm:$0xff]
      %v589 = vld [vmem:[#allocation2 + $0xf1] sm:$0xff]
      %v590 = vld [vmem:[#allocation2 + $0xf9] sm:$0xff]
      %v591 = vld [vmem:[#allocation2 + $0x101] sm:$0xff]
      %v592 = vld [vmem:[#allocation2 + $0x109] sm:$0xff]
      %v593 = vld [vmem:[#allocation2 + $0x111] sm:$0xff]
      %v594 = vld [vmem:[#allocation2 + $0x119] sm:$0xff]
      %v595 = vld [vmem:[#allocation2 + $0x121] sm:$0xff]
      %v596 = vld [vmem:[#allocation2 + $0x129] sm:$0xff]
      %v597 = vld [vmem:[#allocation2 + $0x131] sm:$0xff]
      %v598 = vld [vmem:[#allocation2 + $0x139] sm:$0xff]
      %v599 = vld [vmem:[#allocation2 + $0x141] sm:$0xff]
      %v600 = vld [vmem:[#allocation2 + $0x149] sm:$0xff]
      %v601 = vld [vmem:[#allocation2 + $0x151] sm:$0xff]
      %v602 = vld [vmem:[#allocation2 + $0x159] sm:$0xff]
      %v603 = vld [vmem:[#allocation2 + $0x161] sm:$0xff]
      %v604 = vld [vmem:[#allocation2 + $0x169] sm:$0xff]
      %v605 = vld [vmem:[#allocation2 + $0x171] sm:$0xff]
      %v606 = vld [vmem:[#allocation2 + $0x179] sm:$0xff]
      %v607 = vld [vmem:[#allocation2 + $0x181] sm:$0xff]
      %v608 = vld [vmem:[#allocation2 + $0x189] sm:$0xff]
      %v609 = vld [vmem:[#allocation2 + $0x191] sm:$0xff]
      %v610 = vld [vmem:[#allocation2 + $0x199] sm:$0xff]
      %v611 = vld [vmem:[#allocation2 + $0x1a1] sm:$0xff]
      %v612 = vld [vmem:[#allocation2 + $0x1a9] sm:$0xff]
      %v613 = vld [vmem:[#allocation2 + $0x1b1] sm:$0xff]
      %v614 = vld [vmem:[#allocation2 + $0x1b9] sm:$0xff]
      %v615 = vld [vmem:[#allocation2 + $0x1c1] sm:$0xff]
      %v616 = vld [vmem:[#allocation2 + $0x1c9] sm:$0xff]
      %v617 = vld [vmem:[#allocation2 + $0x1d1] sm:$0xff]
      %v618 = vld [vmem:[#allocation2 + $0x1d9] sm:$0xff]
      %v619 = vld [vmem:[#allocation2 + $0x1e1] sm:$0xff]
      %v620 = vld [vmem:[#allocation2 + $0x1e9] sm:$0xff]
      %v621 = vld [vmem:[#allocation2 + $0x1f1] sm:$0xff]
      %v622 = vld [vmem:[#allocation2 + $0x1f9] sm:$0xff]
      %v623 = vpack.c.bf16 %v560, %v559
      %v624 = vpack.c.bf16 %v562, %v561
      %v625 = vpack.c.bf16 %v564, %v563
      %v626 = vpack.c.bf16 %v566, %v565
      %v627 = vpack.c.bf16 %v568, %v567
      %v628 = vpack.c.bf16 %v570, %v569
      %v629 = vpack.c.bf16 %v572, %v571
      %v630 = vpack.c.bf16 %v574, %v573
      %v631 = vpack.c.bf16 %v576, %v575
      %v632 = vpack.c.bf16 %v578, %v577
      %v633 = vpack.c.bf16 %v580, %v579
      %v634 = vpack.c.bf16 %v582, %v581
      %v635 = vpack.c.bf16 %v584, %v583
      %v636 = vpack.c.bf16 %v586, %v585
      %v637 = vpack.c.bf16 %v588, %v587
      %v638 = vpack.c.bf16 %v590, %v589
      %v639 = vpack.c.bf16 %v592, %v591
      %v640 = vpack.c.bf16 %v594, %v593
      %v641 = vpack.c.bf16 %v596, %v595
      %v642 = vpack.c.bf16 %v598, %v597
      %v643 = vpack.c.bf16 %v600, %v599
      %v644 = vpack.c.bf16 %v602, %v601
      %v645 = vpack.c.bf16 %v604, %v603
      %v646 = vpack.c.bf16 %v606, %v605
      %v647 = vpack.c.bf16 %v608, %v607
      %v648 = vpack.c.bf16 %v610, %v609
      %v649 = vpack.c.bf16 %v612, %v611
      %v650 = vpack.c.bf16 %v614, %v613
      %v651 = vpack.c.bf16 %v616, %v615
      %v652 = vpack.c.bf16 %v618, %v617
      %v653 = vpack.c.bf16 %v620, %v619
      %v654 = vpack.c.bf16 %v622, %v621
      %v655 = vld [vmem:[%s2 + $0x20] sm:$0xf]
      %v656 = vld [vmem:[%s2 + $0x24] sm:$0xf]
      %v657 = vld [vmem:[%s2 + $0x28] sm:$0xf]
      %v658 = vld [vmem:[%s2 + $0x2c] sm:$0xf]
      %v659 = vld [vmem:[%s2 + $0x30] sm:$0xf]
      %v660 = vld [vmem:[%s2 + $0x34] sm:$0xf]
      %v661 = vld [vmem:[%s2 + $0x38] sm:$0xf]
      %v662 = vld [vmem:[%s2 + $0x3c] sm:$0xf]
      %v671 = vunpack.c.l.b16 %v655
      %v672 = vunpack.c.l.b16 %v656
      %v673 = vunpack.c.l.b16 %v657
      %v674 = vunpack.c.l.b16 %v658
      %v675 = vunpack.c.l.b16 %v659
      %v676 = vunpack.c.l.b16 %v660
      %v677 = vunpack.c.l.b16 %v661
      %v678 = vunpack.c.l.b16 %v662
      %v679 = vpack.c.b16 %v672, %v671
      %v680 = vpack.c.b16 %v674, %v673
      %v681 = vpack.c.b16 %v676, %v675
      %v682 = vpack.c.b16 %v678, %v677
      %v688 = vsel %vm366, %v623, 0
      %v691 = vsel %vm366, %v624, 0
      %v694 = vsel %vm366, %v625, 0
      %v697 = vsel %vm366, %v626, 0
      %v700 = vsel %vm366, %v627, 0
      %v703 = vsel %vm366, %v628, 0
      %v706 = vsel %vm366, %v629, 0
      %v709 = vsel %vm366, %v630, 0
      %v712 = vsel %vm366, %v631, 0
      %v715 = vsel %vm366, %v632, 0
      %v718 = vsel %vm366, %v633, 0
      %v721 = vsel %vm366, %v634, 0
      %v724 = vsel %vm366, %v635, 0
      %v727 = vsel %vm366, %v636, 0
      %v730 = vsel %vm366, %v637, 0
      %v733 = vsel %vm366, %v638, 0
      %v736 = vsel %vm366, %v639, 0
      %v739 = vsel %vm366, %v640, 0
      %v742 = vsel %vm366, %v641, 0
      %v745 = vsel %vm366, %v642, 0
      %v748 = vsel %vm366, %v643, 0
      %v751 = vsel %vm366, %v644, 0
      %v754 = vsel %vm366, %v645, 0
      %v757 = vsel %vm366, %v646, 0
      %v760 = vsel %vm366, %v647, 0
      %v763 = vsel %vm366, %v648, 0
      %v766 = vsel %vm366, %v649, 0
      %v769 = vsel %vm366, %v650, 0
      %v772 = vsel %vm366, %v651, 0
      %v775 = vsel %vm366, %v652, 0
      %v778 = vsel %vm366, %v653, 0
      %v781 = vsel %vm366, %v654, 0
      %783 = vmatpush.bf16.msra.mxu0 0
      %784 = vmatpush.bf16.msra.mxu0 0
      %785 = vmatpush.bf16.msra.mxu0 0
      %786 = vmatpush.bf16.msra.mxu0 0
      %787 = vmatpush.bf16.msra.mxu0 %v682
      %788 = vmatpush.bf16.msra.mxu0 %v681
      %789 = vmatpush.bf16.msra.mxu0 %v680
      %790 = vmatpush.bf16.msra.mxu0 %v679
      %791 = vmatmul.bf16.gmra.mxu0 %v688
      %v792 = vpop.f32.mrf.mxu0
      %v793 = vadd.f32 0.0, %v792
      %v794 = vpop.f32.mrf.mxu0
      %v795 = vadd.f32 0.0, %v794
      %796 = vmatmul.bf16.gmra.mxu0 %v691
      %v797 = vpop.f32.mrf.mxu0
      %v798 = vadd.f32 0.0, %v797
      %v799 = vpop.f32.mrf.mxu0
      %v800 = vadd.f32 0.0, %v799
      %801 = vmatmul.bf16.gmra.mxu0 %v694
      %v802 = vpop.f32.mrf.mxu0
      %v803 = vadd.f32 0.0, %v802
      %v804 = vpop.f32.mrf.mxu0
      %v805 = vadd.f32 0.0, %v804
      %806 = vmatmul.bf16.gmra.mxu0 %v697
      %v807 = vpop.f32.mrf.mxu0
      %v808 = vadd.f32 0.0, %v807
      %v809 = vpop.f32.mrf.mxu0
      %v810 = vadd.f32 0.0, %v809
      %811 = vmatmul.bf16.gmra.mxu0 %v700
      %v812 = vpop.f32.mrf.mxu0
      %v813 = vadd.f32 0.0, %v812
      %v814 = vpop.f32.mrf.mxu0
      %v815 = vadd.f32 0.0, %v814
      %816 = vmatmul.bf16.gmra.mxu0 %v703
      %v817 = vpop.f32.mrf.mxu0
      %v818 = vadd.f32 0.0, %v817
      %v819 = vpop.f32.mrf.mxu0
      %v820 = vadd.f32 0.0, %v819
      %821 = vmatmul.bf16.gmra.mxu0 %v706
      %v822 = vpop.f32.mrf.mxu0
      %v823 = vadd.f32 0.0, %v822
      %v824 = vpop.f32.mrf.mxu0
      %v825 = vadd.f32 0.0, %v824
      %826 = vmatmul.bf16.gmra.mxu0 %v709
      %v827 = vpop.f32.mrf.mxu0
      %v828 = vadd.f32 0.0, %v827
      %v829 = vpop.f32.mrf.mxu0
      %v830 = vadd.f32 0.0, %v829
      %831 = vmatmul.bf16.gmra.mxu0 %v712
      %v832 = vpop.f32.mrf.mxu0
      %v833 = vadd.f32 0.0, %v832
      %v834 = vpop.f32.mrf.mxu0
      %v835 = vadd.f32 0.0, %v834
      %836 = vmatmul.bf16.gmra.mxu0 %v715
      %v837 = vpop.f32.mrf.mxu0
      %v838 = vadd.f32 0.0, %v837
      %v839 = vpop.f32.mrf.mxu0
      %v840 = vadd.f32 0.0, %v839
      %841 = vmatmul.bf16.gmra.mxu0 %v718
      %v842 = vpop.f32.mrf.mxu0
      %v843 = vadd.f32 0.0, %v842
      %v844 = vpop.f32.mrf.mxu0
      %v845 = vadd.f32 0.0, %v844
      %846 = vmatmul.bf16.gmra.mxu0 %v721
      %v847 = vpop.f32.mrf.mxu0
      %v848 = vadd.f32 0.0, %v847
      %v849 = vpop.f32.mrf.mxu0
      %v850 = vadd.f32 0.0, %v849
      %851 = vmatmul.bf16.gmra.mxu0 %v724
      %v852 = vpop.f32.mrf.mxu0
      %v853 = vadd.f32 0.0, %v852
      %v854 = vpop.f32.mrf.mxu0
      %v855 = vadd.f32 0.0, %v854
      %856 = vmatmul.bf16.gmra.mxu0 %v727
      %v857 = vpop.f32.mrf.mxu0
      %v858 = vadd.f32 0.0, %v857
      %v859 = vpop.f32.mrf.mxu0
      %v860 = vadd.f32 0.0, %v859
      %861 = vmatmul.bf16.gmra.mxu0 %v730
      %v862 = vpop.f32.mrf.mxu0
      %v863 = vadd.f32 0.0, %v862
      %v864 = vpop.f32.mrf.mxu0
      %v865 = vadd.f32 0.0, %v864
      %866 = vmatmul.bf16.gmra.mxu0 %v733
      %v867 = vpop.f32.mrf.mxu0
      %v868 = vadd.f32 0.0, %v867
      %v869 = vpop.f32.mrf.mxu0
      %v870 = vadd.f32 0.0, %v869
      %871 = vmatmul.bf16.gmra.mxu0 %v736
      %v872 = vpop.f32.mrf.mxu0
      %v873 = vadd.f32 0.0, %v872
      %v874 = vpop.f32.mrf.mxu0
      %v875 = vadd.f32 0.0, %v874
      %876 = vmatmul.bf16.gmra.mxu0 %v739
      %v877 = vpop.f32.mrf.mxu0
      %v878 = vadd.f32 0.0, %v877
      %v879 = vpop.f32.mrf.mxu0
      %v880 = vadd.f32 0.0, %v879
      %881 = vmatmul.bf16.gmra.mxu0 %v742
      %v882 = vpop.f32.mrf.mxu0
      %v883 = vadd.f32 0.0, %v882
      %v884 = vpop.f32.mrf.mxu0
      %v885 = vadd.f32 0.0, %v884
      %886 = vmatmul.bf16.gmra.mxu0 %v745
      %v887 = vpop.f32.mrf.mxu0
      %v888 = vadd.f32 0.0, %v887
      %v889 = vpop.f32.mrf.mxu0
      %v890 = vadd.f32 0.0, %v889
      %891 = vmatmul.bf16.gmra.mxu0 %v748
      %v892 = vpop.f32.mrf.mxu0
      %v893 = vadd.f32 0.0, %v892
      %v894 = vpop.f32.mrf.mxu0
      %v895 = vadd.f32 0.0, %v894
      %896 = vmatmul.bf16.gmra.mxu0 %v751
      %v897 = vpop.f32.mrf.mxu0
      %v898 = vadd.f32 0.0, %v897
      %v899 = vpop.f32.mrf.mxu0
      %v900 = vadd.f32 0.0, %v899
      %901 = vmatmul.bf16.gmra.mxu0 %v754
      %v902 = vpop.f32.mrf.mxu0
      %v903 = vadd.f32 0.0, %v902
      %v904 = vpop.f32.mrf.mxu0
      %v905 = vadd.f32 0.0, %v904
      %906 = vmatmul.bf16.gmra.mxu0 %v757
      %v907 = vpop.f32.mrf.mxu0
      %v908 = vadd.f32 0.0, %v907
      %v909 = vpop.f32.mrf.mxu0
      %v910 = vadd.f32 0.0, %v909
      %911 = vmatmul.bf16.gmra.mxu0 %v760
      %v912 = vpop.f32.mrf.mxu0
      %v913 = vadd.f32 0.0, %v912
      %v914 = vpop.f32.mrf.mxu0
      %v915 = vadd.f32 0.0, %v914
      %916 = vmatmul.bf16.gmra.mxu0 %v763
      %v917 = vpop.f32.mrf.mxu0
      %v918 = vadd.f32 0.0, %v917
      %v919 = vpop.f32.mrf.mxu0
      %v920 = vadd.f32 0.0, %v919
      %921 = vmatmul.bf16.gmra.mxu0 %v766
      %v922 = vpop.f32.mrf.mxu0
      %v923 = vadd.f32 0.0, %v922
      %v924 = vpop.f32.mrf.mxu0
      %v925 = vadd.f32 0.0, %v924
      %926 = vmatmul.bf16.gmra.mxu0 %v769
      %v927 = vpop.f32.mrf.mxu0
      %v928 = vadd.f32 0.0, %v927
      %v929 = vpop.f32.mrf.mxu0
      %v930 = vadd.f32 0.0, %v929
      %931 = vmatmul.bf16.gmra.mxu0 %v772
      %v932 = vpop.f32.mrf.mxu0
      %v933 = vadd.f32 0.0, %v932
      %v934 = vpop.f32.mrf.mxu0
      %v935 = vadd.f32 0.0, %v934
      %936 = vmatmul.bf16.gmra.mxu0 %v775
      %v937 = vpop.f32.mrf.mxu0
      %v938 = vadd.f32 0.0, %v937
      %v939 = vpop.f32.mrf.mxu0
      %v940 = vadd.f32 0.0, %v939
      %941 = vmatmul.bf16.gmra.mxu0 %v778
      %v942 = vpop.f32.mrf.mxu0
      %v943 = vadd.f32 0.0, %v942
      %v944 = vpop.f32.mrf.mxu0
      %v945 = vadd.f32 0.0, %v944
      %946 = vmatmul.bf16.gmra.mxu0 %v781
      %v947 = vpop.f32.mrf.mxu0
      %v948 = vadd.f32 0.0, %v947
      %v949 = vpop.f32.mrf.mxu0
      %v950 = vadd.f32 0.0, %v949
      %951 = vdwg.mxu0
      %v960 = vunpack.c.l.b16 %v551
      %v961 = vunpack.c.l.b16 %v552
      %v962 = vunpack.c.l.b16 %v553
      %v963 = vunpack.c.l.b16 %v554
      %v964 = vunpack.c.l.b16 %v555
      %v965 = vunpack.c.l.b16 %v556
      %v966 = vunpack.c.l.b16 %v557
      %v967 = vunpack.c.l.b16 %v558
      %v968 = vpack.c.b16 %v961, %v960
      %v969 = vpack.c.b16 %v963, %v962
      %v970 = vpack.c.b16 %v965, %v964
      %v971 = vpack.c.b16 %v967, %v966
      %v977 = vsel %vm366, %v519, 0
      %v980 = vsel %vm366, %v520, 0
      %v983 = vsel %vm366, %v521, 0
      %v986 = vsel %vm366, %v522, 0
      %v989 = vsel %vm366, %v523, 0
      %v992 = vsel %vm366, %v524, 0
      %v995 = vsel %vm366, %v525, 0
      %v998 = vsel %vm366, %v526, 0
      %v1001 = vsel %vm366, %v527, 0
      %v1004 = vsel %vm366, %v528, 0
      %v1007 = vsel %vm366, %v529, 0
      %v1010 = vsel %vm366, %v530, 0
      %v1013 = vsel %vm366, %v531, 0
      %v1016 = vsel %vm366, %v532, 0
      %v1019 = vsel %vm366, %v533, 0
      %v1022 = vsel %vm366, %v534, 0
      %v1025 = vsel %vm366, %v535, 0
      %v1028 = vsel %vm366, %v536, 0
      %v1031 = vsel %vm366, %v537, 0
      %v1034 = vsel %vm366, %v538, 0
      %v1037 = vsel %vm366, %v539, 0
      %v1040 = vsel %vm366, %v540, 0
      %v1043 = vsel %vm366, %v541, 0
      %v1046 = vsel %vm366, %v542, 0
      %v1049 = vsel %vm366, %v543, 0
      %v1052 = vsel %vm366, %v544, 0
      %v1055 = vsel %vm366, %v545, 0
      %v1058 = vsel %vm366, %v546, 0
      %v1061 = vsel %vm366, %v547, 0
      %v1064 = vsel %vm366, %v548, 0
      %v1067 = vsel %vm366, %v549, 0
      %v1070 = vsel %vm366, %v550, 0
      %1072 = vmatpush.bf16.msra.mxu0 0
      %1073 = vmatpush.bf16.msra.mxu0 0
      %1074 = vmatpush.bf16.msra.mxu0 0
      %1075 = vmatpush.bf16.msra.mxu0 0
      %1076 = vmatpush.bf16.msra.mxu0 %v971
      %1077 = vmatpush.bf16.msra.mxu0 %v970
      %1078 = vmatpush.bf16.msra.mxu0 %v969
      %1079 = vmatpush.bf16.msra.mxu0 %v968
      %1080 = vmatmul.bf16.gmra.mxu0 %v977
      %v1081 = vpop.f32.mrf.mxu0
      %v1082 = vadd.f32 %v793, %v1081
      %v1083 = vpop.f32.mrf.mxu0
      %v1084 = vadd.f32 %v795, %v1083
      %1085 = vmatmul.bf16.gmra.mxu0 %v980
      %v1086 = vpop.f32.mrf.mxu0
      %v1087 = vadd.f32 %v798, %v1086
      %v1088 = vpop.f32.mrf.mxu0
      %v1089 = vadd.f32 %v800, %v1088
      %1090 = vmatmul.bf16.gmra.mxu0 %v983
      %v1091 = vpop.f32.mrf.mxu0
      %v1092 = vadd.f32 %v803, %v1091
      %v1093 = vpop.f32.mrf.mxu0
      %v1094 = vadd.f32 %v805, %v1093
      %1095 = vmatmul.bf16.gmra.mxu0 %v986
      %v1096 = vpop.f32.mrf.mxu0
      %v1097 = vadd.f32 %v808, %v1096
      %v1098 = vpop.f32.mrf.mxu0
      %v1099 = vadd.f32 %v810, %v1098
      %1100 = vmatmul.bf16.gmra.mxu0 %v989
      %v1101 = vpop.f32.mrf.mxu0
      %v1102 = vadd.f32 %v813, %v1101
      %v1103 = vpop.f32.mrf.mxu0
      %v1104 = vadd.f32 %v815, %v1103
      %1105 = vmatmul.bf16.gmra.mxu0 %v992
      %v1106 = vpop.f32.mrf.mxu0
      %v1107 = vadd.f32 %v818, %v1106
      %v1108 = vpop.f32.mrf.mxu0
      %v1109 = vadd.f32 %v820, %v1108
      %1110 = vmatmul.bf16.gmra.mxu0 %v995
      %v1111 = vpop.f32.mrf.mxu0
      %v1112 = vadd.f32 %v823, %v1111
      %v1113 = vpop.f32.mrf.mxu0
      %v1114 = vadd.f32 %v825, %v1113
      %1115 = vmatmul.bf16.gmra.mxu0 %v998
      %v1116 = vpop.f32.mrf.mxu0
      %v1117 = vadd.f32 %v828, %v1116
      %v1118 = vpop.f32.mrf.mxu0
      %v1119 = vadd.f32 %v830, %v1118
      %1120 = vmatmul.bf16.gmra.mxu0 %v1001
      %v1121 = vpop.f32.mrf.mxu0
      %v1122 = vadd.f32 %v833, %v1121
      %v1123 = vpop.f32.mrf.mxu0
      %v1124 = vadd.f32 %v835, %v1123
      %1125 = vmatmul.bf16.gmra.mxu0 %v1004
      %v1126 = vpop.f32.mrf.mxu0
      %v1127 = vadd.f32 %v838, %v1126
      %v1128 = vpop.f32.mrf.mxu0
      %v1129 = vadd.f32 %v840, %v1128
      %1130 = vmatmul.bf16.gmra.mxu0 %v1007
      %v1131 = vpop.f32.mrf.mxu0
      %v1132 = vadd.f32 %v843, %v1131
      %v1133 = vpop.f32.mrf.mxu0
      %v1134 = vadd.f32 %v845, %v1133
      %1135 = vmatmul.bf16.gmra.mxu0 %v1010
      %v1136 = vpop.f32.mrf.mxu0
      %v1137 = vadd.f32 %v848, %v1136
      %v1138 = vpop.f32.mrf.mxu0
      %v1139 = vadd.f32 %v850, %v1138
      %1140 = vmatmul.bf16.gmra.mxu0 %v1013
      %v1141 = vpop.f32.mrf.mxu0
      %v1142 = vadd.f32 %v853, %v1141
      %v1143 = vpop.f32.mrf.mxu0
      %v1144 = vadd.f32 %v855, %v1143
      %1145 = vmatmul.bf16.gmra.mxu0 %v1016
      %v1146 = vpop.f32.mrf.mxu0
      %v1147 = vadd.f32 %v858, %v1146
      %v1148 = vpop.f32.mrf.mxu0
      %v1149 = vadd.f32 %v860, %v1148
      %1150 = vmatmul.bf16.gmra.mxu0 %v1019
      %v1151 = vpop.f32.mrf.mxu0
      %v1152 = vadd.f32 %v863, %v1151
      %v1153 = vpop.f32.mrf.mxu0
      %v1154 = vadd.f32 %v865, %v1153
      %1155 = vmatmul.bf16.gmra.mxu0 %v1022
      %v1156 = vpop.f32.mrf.mxu0
      %v1157 = vadd.f32 %v868, %v1156
      %v1158 = vpop.f32.mrf.mxu0
      %v1159 = vadd.f32 %v870, %v1158
      %1160 = vmatmul.bf16.gmra.mxu0 %v1025
      %v1161 = vpop.f32.mrf.mxu0
      %v1162 = vadd.f32 %v873, %v1161
      %v1163 = vpop.f32.mrf.mxu0
      %v1164 = vadd.f32 %v875, %v1163
      %1165 = vmatmul.bf16.gmra.mxu0 %v1028
      %v1166 = vpop.f32.mrf.mxu0
      %v1167 = vadd.f32 %v878, %v1166
      %v1168 = vpop.f32.mrf.mxu0
      %v1169 = vadd.f32 %v880, %v1168
      %1170 = vmatmul.bf16.gmra.mxu0 %v1031
      %v1171 = vpop.f32.mrf.mxu0
      %v1172 = vadd.f32 %v883, %v1171
      %v1173 = vpop.f32.mrf.mxu0
      %v1174 = vadd.f32 %v885, %v1173
      %1175 = vmatmul.bf16.gmra.mxu0 %v1034
      %v1176 = vpop.f32.mrf.mxu0
      %v1177 = vadd.f32 %v888, %v1176
      %v1178 = vpop.f32.mrf.mxu0
      %v1179 = vadd.f32 %v890, %v1178
      %1180 = vmatmul.bf16.gmra.mxu0 %v1037
      %v1181 = vpop.f32.mrf.mxu0
      %v1182 = vadd.f32 %v893, %v1181
      %v1183 = vpop.f32.mrf.mxu0
      %v1184 = vadd.f32 %v895, %v1183
      %1185 = vmatmul.bf16.gmra.mxu0 %v1040
      %v1186 = vpop.f32.mrf.mxu0
      %v1187 = vadd.f32 %v898, %v1186
      %v1188 = vpop.f32.mrf.mxu0
      %v1189 = vadd.f32 %v900, %v1188
      %1190 = vmatmul.bf16.gmra.mxu0 %v1043
      %v1191 = vpop.f32.mrf.mxu0
      %v1192 = vadd.f32 %v903, %v1191
      %v1193 = vpop.f32.mrf.mxu0
      %v1194 = vadd.f32 %v905, %v1193
      %1195 = vmatmul.bf16.gmra.mxu0 %v1046
      %v1196 = vpop.f32.mrf.mxu0
      %v1197 = vadd.f32 %v908, %v1196
      %v1198 = vpop.f32.mrf.mxu0
      %v1199 = vadd.f32 %v910, %v1198
      %1200 = vmatmul.bf16.gmra.mxu0 %v1049
      %v1201 = vpop.f32.mrf.mxu0
      %v1202 = vadd.f32 %v913, %v1201
      %v1203 = vpop.f32.mrf.mxu0
      %v1204 = vadd.f32 %v915, %v1203
      %1205 = vmatmul.bf16.gmra.mxu0 %v1052
      %v1206 = vpop.f32.mrf.mxu0
      %v1207 = vadd.f32 %v918, %v1206
      %v1208 = vpop.f32.mrf.mxu0
      %v1209 = vadd.f32 %v920, %v1208
      %1210 = vmatmul.bf16.gmra.mxu0 %v1055
      %v1211 = vpop.f32.mrf.mxu0
      %v1212 = vadd.f32 %v923, %v1211
      %v1213 = vpop.f32.mrf.mxu0
      %v1214 = vadd.f32 %v925, %v1213
      %1215 = vmatmul.bf16.gmra.mxu0 %v1058
      %v1216 = vpop.f32.mrf.mxu0
      %v1217 = vadd.f32 %v928, %v1216
      %v1218 = vpop.f32.mrf.mxu0
      %v1219 = vadd.f32 %v930, %v1218
      %1220 = vmatmul.bf16.gmra.mxu0 %v1061
      %v1221 = vpop.f32.mrf.mxu0
      %v1222 = vadd.f32 %v933, %v1221
      %v1223 = vpop.f32.mrf.mxu0
      %v1224 = vadd.f32 %v935, %v1223
      %1225 = vmatmul.bf16.gmra.mxu0 %v1064
      %v1226 = vpop.f32.mrf.mxu0
      %v1227 = vadd.f32 %v938, %v1226
      %v1228 = vpop.f32.mrf.mxu0
      %v1229 = vadd.f32 %v940, %v1228
      %1230 = vmatmul.bf16.gmra.mxu0 %v1067
      %v1231 = vpop.f32.mrf.mxu0
      %v1232 = vadd.f32 %v943, %v1231
      %v1233 = vpop.f32.mrf.mxu0
      %v1234 = vadd.f32 %v945, %v1233
      %1235 = vmatmul.bf16.gmra.mxu0 %v1070
      %v1236 = vpop.f32.mrf.mxu0
      %v1237 = vadd.f32 %v948, %v1236
      %v1238 = vpop.f32.mrf.mxu0
      %v1239 = vadd.f32 %v950, %v1238
      %1240 = vdwg.mxu0
      %v1241 = vld [vmem:[#allocation2 + $0x2] sm:$0xff]
      %v1242 = vld [vmem:[#allocation2 + $0xa] sm:$0xff]
      %v1243 = vld [vmem:[#allocation2 + $0x12] sm:$0xff]
      %v1244 = vld [vmem:[#allocation2 + $0x1a] sm:$0xff]
      %v1245 = vld [vmem:[#allocation2 + $0x22] sm:$0xff]
      %v1246 = vld [vmem:[#allocation2 + $0x2a] sm:$0xff]
      %v1247 = vld [vmem:[#allocation2 + $0x32] sm:$0xff]
      %v1248 = vld [vmem:[#allocation2 + $0x3a] sm:$0xff]
      %v1249 = vld [vmem:[#allocation2 + $0x42] sm:$0xff]
      %v1250 = vld [vmem:[#allocation2 + $0x4a] sm:$0xff]
      %v1251 = vld [vmem:[#allocation2 + $0x52] sm:$0xff]
      %v1252 = vld [vmem:[#allocation2 + $0x5a] sm:$0xff]
      %v1253 = vld [vmem:[#allocation2 + $0x62] sm:$0xff]
      %v1254 = vld [vmem:[#allocation2 + $0x6a] sm:$0xff]
      %v1255 = vld [vmem:[#allocation2 + $0x72] sm:$0xff]
      %v1256 = vld [vmem:[#allocation2 + $0x7a] sm:$0xff]
      %v1257 = vld [vmem:[#allocation2 + $0x82] sm:$0xff]
      %v1258 = vld [vmem:[#allocation2 + $0x8a] sm:$0xff]
      %v1259 = vld [vmem:[#allocation2 + $0x92] sm:$0xff]
      %v1260 = vld [vmem:[#allocation2 + $0x9a] sm:$0xff]
      %v1261 = vld [vmem:[#allocation2 + $0xa2] sm:$0xff]
      %v1262 = vld [vmem:[#allocation2 + $0xaa] sm:$0xff]
      %v1263 = vld [vmem:[#allocation2 + $0xb2] sm:$0xff]
      %v1264 = vld [vmem:[#allocation2 + $0xba] sm:$0xff]
      %v1265 = vld [vmem:[#allocation2 + $0xc2] sm:$0xff]
      %v1266 = vld [vmem:[#allocation2 + $0xca] sm:$0xff]
      %v1267 = vld [vmem:[#allocation2 + $0xd2] sm:$0xff]
      %v1268 = vld [vmem:[#allocation2 + $0xda] sm:$0xff]
      %v1269 = vld [vmem:[#allocation2 + $0xe2] sm:$0xff]
      %v1270 = vld [vmem:[#allocation2 + $0xea] sm:$0xff]
      %v1271 = vld [vmem:[#allocation2 + $0xf2] sm:$0xff]
      %v1272 = vld [vmem:[#allocation2 + $0xfa] sm:$0xff]
      %v1273 = vld [vmem:[#allocation2 + $0x102] sm:$0xff]
      %v1274 = vld [vmem:[#allocation2 + $0x10a] sm:$0xff]
      %v1275 = vld [vmem:[#allocation2 + $0x112] sm:$0xff]
      %v1276 = vld [vmem:[#allocation2 + $0x11a] sm:$0xff]
      %v1277 = vld [vmem:[#allocation2 + $0x122] sm:$0xff]
      %v1278 = vld [vmem:[#allocation2 + $0x12a] sm:$0xff]
      %v1279 = vld [vmem:[#allocation2 + $0x132] sm:$0xff]
      %v1280 = vld [vmem:[#allocation2 + $0x13a] sm:$0xff]
      %v1281 = vld [vmem:[#allocation2 + $0x142] sm:$0xff]
      %v1282 = vld [vmem:[#allocation2 + $0x14a] sm:$0xff]
      %v1283 = vld [vmem:[#allocation2 + $0x152] sm:$0xff]
      %v1284 = vld [vmem:[#allocation2 + $0x15a] sm:$0xff]
      %v1285 = vld [vmem:[#allocation2 + $0x162] sm:$0xff]
      %v1286 = vld [vmem:[#allocation2 + $0x16a] sm:$0xff]
      %v1287 = vld [vmem:[#allocation2 + $0x172] sm:$0xff]
      %v1288 = vld [vmem:[#allocation2 + $0x17a] sm:$0xff]
      %v1289 = vld [vmem:[#allocation2 + $0x182] sm:$0xff]
      %v1290 = vld [vmem:[#allocation2 + $0x18a] sm:$0xff]
      %v1291 = vld [vmem:[#allocation2 + $0x192] sm:$0xff]
      %v1292 = vld [vmem:[#allocation2 + $0x19a] sm:$0xff]
      %v1293 = vld [vmem:[#allocation2 + $0x1a2] sm:$0xff]
      %v1294 = vld [vmem:[#allocation2 + $0x1aa] sm:$0xff]
      %v1295 = vld [vmem:[#allocation2 + $0x1b2] sm:$0xff]
      %v1296 = vld [vmem:[#allocation2 + $0x1ba] sm:$0xff]
      %v1297 = vld [vmem:[#allocation2 + $0x1c2] sm:$0xff]
      %v1298 = vld [vmem:[#allocation2 + $0x1ca] sm:$0xff]
      %v1299 = vld [vmem:[#allocation2 + $0x1d2] sm:$0xff]
      %v1300 = vld [vmem:[#allocation2 + $0x1da] sm:$0xff]
      %v1301 = vld [vmem:[#allocation2 + $0x1e2] sm:$0xff]
      %v1302 = vld [vmem:[#allocation2 + $0x1ea] sm:$0xff]
      %v1303 = vld [vmem:[#allocation2 + $0x1f2] sm:$0xff]
      %v1304 = vld [vmem:[#allocation2 + $0x1fa] sm:$0xff]
      %v1305 = vpack.c.bf16 %v1242, %v1241
      %v1306 = vpack.c.bf16 %v1244, %v1243
      %v1307 = vpack.c.bf16 %v1246, %v1245
      %v1308 = vpack.c.bf16 %v1248, %v1247
      %v1309 = vpack.c.bf16 %v1250, %v1249
      %v1310 = vpack.c.bf16 %v1252, %v1251
      %v1311 = vpack.c.bf16 %v1254, %v1253
      %v1312 = vpack.c.bf16 %v1256, %v1255
      %v1313 = vpack.c.bf16 %v1258, %v1257
      %v1314 = vpack.c.bf16 %v1260, %v1259
      %v1315 = vpack.c.bf16 %v1262, %v1261
      %v1316 = vpack.c.bf16 %v1264, %v1263
      %v1317 = vpack.c.bf16 %v1266, %v1265
      %v1318 = vpack.c.bf16 %v1268, %v1267
      %v1319 = vpack.c.bf16 %v1270, %v1269
      %v1320 = vpack.c.bf16 %v1272, %v1271
      %v1321 = vpack.c.bf16 %v1274, %v1273
      %v1322 = vpack.c.bf16 %v1276, %v1275
      %v1323 = vpack.c.bf16 %v1278, %v1277
      %v1324 = vpack.c.bf16 %v1280, %v1279
      %v1325 = vpack.c.bf16 %v1282, %v1281
      %v1326 = vpack.c.bf16 %v1284, %v1283
      %v1327 = vpack.c.bf16 %v1286, %v1285
      %v1328 = vpack.c.bf16 %v1288, %v1287
      %v1329 = vpack.c.bf16 %v1290, %v1289
      %v1330 = vpack.c.bf16 %v1292, %v1291
      %v1331 = vpack.c.bf16 %v1294, %v1293
      %v1332 = vpack.c.bf16 %v1296, %v1295
      %v1333 = vpack.c.bf16 %v1298, %v1297
      %v1334 = vpack.c.bf16 %v1300, %v1299
      %v1335 = vpack.c.bf16 %v1302, %v1301
      %v1336 = vpack.c.bf16 %v1304, %v1303
      %v1337 = vld [vmem:[%s2 + $0x40] sm:$0xf]
      %v1338 = vld [vmem:[%s2 + $0x44] sm:$0xf]
      %v1339 = vld [vmem:[%s2 + $0x48] sm:$0xf]
      %v1340 = vld [vmem:[%s2 + $0x4c] sm:$0xf]
      %v1341 = vld [vmem:[%s2 + $0x50] sm:$0xf]
      %v1342 = vld [vmem:[%s2 + $0x54] sm:$0xf]
      %v1343 = vld [vmem:[%s2 + $0x58] sm:$0xf]
      %v1344 = vld [vmem:[%s2 + $0x5c] sm:$0xf]
      %v1353 = vunpack.c.l.b16 %v1337
      %v1354 = vunpack.c.l.b16 %v1338
      %v1355 = vunpack.c.l.b16 %v1339
      %v1356 = vunpack.c.l.b16 %v1340
      %v1357 = vunpack.c.l.b16 %v1341
      %v1358 = vunpack.c.l.b16 %v1342
      %v1359 = vunpack.c.l.b16 %v1343
      %v1360 = vunpack.c.l.b16 %v1344
      %v1361 = vpack.c.b16 %v1354, %v1353
      %v1362 = vpack.c.b16 %v1356, %v1355
      %v1363 = vpack.c.b16 %v1358, %v1357
      %v1364 = vpack.c.b16 %v1360, %v1359
      %v1370 = vsel %vm366, %v1305, 0
      %v1373 = vsel %vm366, %v1306, 0
      %v1376 = vsel %vm366, %v1307, 0
      %v1379 = vsel %vm366, %v1308, 0
      %v1382 = vsel %vm366, %v1309, 0
      %v1385 = vsel %vm366, %v1310, 0
      %v1388 = vsel %vm366, %v1311, 0
      %v1391 = vsel %vm366, %v1312, 0
      %v1394 = vsel %vm366, %v1313, 0
      %v1397 = vsel %vm366, %v1314, 0
      %v1400 = vsel %vm366, %v1315, 0
      %v1403 = vsel %vm366, %v1316, 0
      %v1406 = vsel %vm366, %v1317, 0
      %v1409 = vsel %vm366, %v1318, 0
      %v1412 = vsel %vm366, %v1319, 0
      %v1415 = vsel %vm366, %v1320, 0
      %v1418 = vsel %vm366, %v1321, 0
      %v1421 = vsel %vm366, %v1322, 0
      %v1424 = vsel %vm366, %v1323, 0
      %v1427 = vsel %vm366, %v1324, 0
      %v1430 = vsel %vm366, %v1325, 0
      %v1433 = vsel %vm366, %v1326, 0
      %v1436 = vsel %vm366, %v1327, 0
      %v1439 = vsel %vm366, %v1328, 0
      %v1442 = vsel %vm366, %v1329, 0
      %v1445 = vsel %vm366, %v1330, 0
      %v1448 = vsel %vm366, %v1331, 0
      %v1451 = vsel %vm366, %v1332, 0
      %v1454 = vsel %vm366, %v1333, 0
      %v1457 = vsel %vm366, %v1334, 0
      %v1460 = vsel %vm366, %v1335, 0
      %v1463 = vsel %vm366, %v1336, 0
      %1465 = vmatpush.bf16.msra.mxu0 0
      %1466 = vmatpush.bf16.msra.mxu0 0
      %1467 = vmatpush.bf16.msra.mxu0 0
      %1468 = vmatpush.bf16.msra.mxu0 0
      %1469 = vmatpush.bf16.msra.mxu0 %v1364
      %1470 = vmatpush.bf16.msra.mxu0 %v1363
      %1471 = vmatpush.bf16.msra.mxu0 %v1362
      %1472 = vmatpush.bf16.msra.mxu0 %v1361
      %1473 = vmatmul.bf16.gmra.mxu0 %v1370
      %v1474 = vpop.f32.mrf.mxu0
      %v1475 = vadd.f32 0.0, %v1474
      %v1476 = vpop.f32.mrf.mxu0
      %v1477 = vadd.f32 0.0, %v1476
      %1478 = vmatmul.bf16.gmra.mxu0 %v1373
      %v1479 = vpop.f32.mrf.mxu0
      %v1480 = vadd.f32 0.0, %v1479
      %v1481 = vpop.f32.mrf.mxu0
      %v1482 = vadd.f32 0.0, %v1481
      %1483 = vmatmul.bf16.gmra.mxu0 %v1376
      %v1484 = vpop.f32.mrf.mxu0
      %v1485 = vadd.f32 0.0, %v1484
      %v1486 = vpop.f32.mrf.mxu0
      %v1487 = vadd.f32 0.0, %v1486
      %1488 = vmatmul.bf16.gmra.mxu0 %v1379
      %v1489 = vpop.f32.mrf.mxu0
      %v1490 = vadd.f32 0.0, %v1489
      %v1491 = vpop.f32.mrf.mxu0
      %v1492 = vadd.f32 0.0, %v1491
      %1493 = vmatmul.bf16.gmra.mxu0 %v1382
      %v1494 = vpop.f32.mrf.mxu0
      %v1495 = vadd.f32 0.0, %v1494
      %v1496 = vpop.f32.mrf.mxu0
      %v1497 = vadd.f32 0.0, %v1496
      %1498 = vmatmul.bf16.gmra.mxu0 %v1385
      %v1499 = vpop.f32.mrf.mxu0
      %v1500 = vadd.f32 0.0, %v1499
      %v1501 = vpop.f32.mrf.mxu0
      %v1502 = vadd.f32 0.0, %v1501
      %1503 = vmatmul.bf16.gmra.mxu0 %v1388
      %v1504 = vpop.f32.mrf.mxu0
      %v1505 = vadd.f32 0.0, %v1504
      %v1506 = vpop.f32.mrf.mxu0
      %v1507 = vadd.f32 0.0, %v1506
      %1508 = vmatmul.bf16.gmra.mxu0 %v1391
      %v1509 = vpop.f32.mrf.mxu0
      %v1510 = vadd.f32 0.0, %v1509
      %v1511 = vpop.f32.mrf.mxu0
      %v1512 = vadd.f32 0.0, %v1511
      %1513 = vmatmul.bf16.gmra.mxu0 %v1394
      %v1514 = vpop.f32.mrf.mxu0
      %v1515 = vadd.f32 0.0, %v1514
      %v1516 = vpop.f32.mrf.mxu0
      %v1517 = vadd.f32 0.0, %v1516
      %1518 = vmatmul.bf16.gmra.mxu0 %v1397
      %v1519 = vpop.f32.mrf.mxu0
      %v1520 = vadd.f32 0.0, %v1519
      %v1521 = vpop.f32.mrf.mxu0
      %v1522 = vadd.f32 0.0, %v1521
      %1523 = vmatmul.bf16.gmra.mxu0 %v1400
      %v1524 = vpop.f32.mrf.mxu0
      %v1525 = vadd.f32 0.0, %v1524
      %v1526 = vpop.f32.mrf.mxu0
      %v1527 = vadd.f32 0.0, %v1526
      %1528 = vmatmul.bf16.gmra.mxu0 %v1403
      %v1529 = vpop.f32.mrf.mxu0
      %v1530 = vadd.f32 0.0, %v1529
      %v1531 = vpop.f32.mrf.mxu0
      %v1532 = vadd.f32 0.0, %v1531
      %1533 = vmatmul.bf16.gmra.mxu0 %v1406
      %v1534 = vpop.f32.mrf.mxu0
      %v1535 = vadd.f32 0.0, %v1534
      %v1536 = vpop.f32.mrf.mxu0
      %v1537 = vadd.f32 0.0, %v1536
      %1538 = vmatmul.bf16.gmra.mxu0 %v1409
      %v1539 = vpop.f32.mrf.mxu0
      %v1540 = vadd.f32 0.0, %v1539
      %v1541 = vpop.f32.mrf.mxu0
      %v1542 = vadd.f32 0.0, %v1541
      %1543 = vmatmul.bf16.gmra.mxu0 %v1412
      %v1544 = vpop.f32.mrf.mxu0
      %v1545 = vadd.f32 0.0, %v1544
      %v1546 = vpop.f32.mrf.mxu0
      %v1547 = vadd.f32 0.0, %v1546
      %1548 = vmatmul.bf16.gmra.mxu0 %v1415
      %v1549 = vpop.f32.mrf.mxu0
      %v1550 = vadd.f32 0.0, %v1549
      %v1551 = vpop.f32.mrf.mxu0
      %v1552 = vadd.f32 0.0, %v1551
      %1553 = vmatmul.bf16.gmra.mxu0 %v1418
      %v1554 = vpop.f32.mrf.mxu0
      %v1555 = vadd.f32 0.0, %v1554
      %v1556 = vpop.f32.mrf.mxu0
      %v1557 = vadd.f32 0.0, %v1556
      %1558 = vmatmul.bf16.gmra.mxu0 %v1421
      %v1559 = vpop.f32.mrf.mxu0
      %v1560 = vadd.f32 0.0, %v1559
      %v1561 = vpop.f32.mrf.mxu0
      %v1562 = vadd.f32 0.0, %v1561
      %1563 = vmatmul.bf16.gmra.mxu0 %v1424
      %v1564 = vpop.f32.mrf.mxu0
      %v1565 = vadd.f32 0.0, %v1564
      %v1566 = vpop.f32.mrf.mxu0
      %v1567 = vadd.f32 0.0, %v1566
      %1568 = vmatmul.bf16.gmra.mxu0 %v1427
      %v1569 = vpop.f32.mrf.mxu0
      %v1570 = vadd.f32 0.0, %v1569
      %v1571 = vpop.f32.mrf.mxu0
      %v1572 = vadd.f32 0.0, %v1571
      %1573 = vmatmul.bf16.gmra.mxu0 %v1430
      %v1574 = vpop.f32.mrf.mxu0
      %v1575 = vadd.f32 0.0, %v1574
      %v1576 = vpop.f32.mrf.mxu0
      %v1577 = vadd.f32 0.0, %v1576
      %1578 = vmatmul.bf16.gmra.mxu0 %v1433
      %v1579 = vpop.f32.mrf.mxu0
      %v1580 = vadd.f32 0.0, %v1579
      %v1581 = vpop.f32.mrf.mxu0
      %v1582 = vadd.f32 0.0, %v1581
      %1583 = vmatmul.bf16.gmra.mxu0 %v1436
      %v1584 = vpop.f32.mrf.mxu0
      %v1585 = vadd.f32 0.0, %v1584
      %v1586 = vpop.f32.mrf.mxu0
      %v1587 = vadd.f32 0.0, %v1586
      %1588 = vmatmul.bf16.gmra.mxu0 %v1439
      %v1589 = vpop.f32.mrf.mxu0
      %v1590 = vadd.f32 0.0, %v1589
      %v1591 = vpop.f32.mrf.mxu0
      %v1592 = vadd.f32 0.0, %v1591
      %1593 = vmatmul.bf16.gmra.mxu0 %v1442
      %v1594 = vpop.f32.mrf.mxu0
      %v1595 = vadd.f32 0.0, %v1594
      %v1596 = vpop.f32.mrf.mxu0
      %v1597 = vadd.f32 0.0, %v1596
      %1598 = vmatmul.bf16.gmra.mxu0 %v1445
      %v1599 = vpop.f32.mrf.mxu0
      %v1600 = vadd.f32 0.0, %v1599
      %v1601 = vpop.f32.mrf.mxu0
      %v1602 = vadd.f32 0.0, %v1601
      %1603 = vmatmul.bf16.gmra.mxu0 %v1448
      %v1604 = vpop.f32.mrf.mxu0
      %v1605 = vadd.f32 0.0, %v1604
      %v1606 = vpop.f32.mrf.mxu0
      %v1607 = vadd.f32 0.0, %v1606
      %1608 = vmatmul.bf16.gmra.mxu0 %v1451
      %v1609 = vpop.f32.mrf.mxu0
      %v1610 = vadd.f32 0.0, %v1609
      %v1611 = vpop.f32.mrf.mxu0
      %v1612 = vadd.f32 0.0, %v1611
      %1613 = vmatmul.bf16.gmra.mxu0 %v1454
      %v1614 = vpop.f32.mrf.mxu0
      %v1615 = vadd.f32 0.0, %v1614
      %v1616 = vpop.f32.mrf.mxu0
      %v1617 = vadd.f32 0.0, %v1616
      %1618 = vmatmul.bf16.gmra.mxu0 %v1457
      %v1619 = vpop.f32.mrf.mxu0
      %v1620 = vadd.f32 0.0, %v1619
      %v1621 = vpop.f32.mrf.mxu0
      %v1622 = vadd.f32 0.0, %v1621
      %1623 = vmatmul.bf16.gmra.mxu0 %v1460
      %v1624 = vpop.f32.mrf.mxu0
      %v1625 = vadd.f32 0.0, %v1624
      %v1626 = vpop.f32.mrf.mxu0
      %v1627 = vadd.f32 0.0, %v1626
      %1628 = vmatmul.bf16.gmra.mxu0 %v1463
      %v1629 = vpop.f32.mrf.mxu0
      %v1630 = vadd.f32 0.0, %v1629
      %v1631 = vpop.f32.mrf.mxu0
      %v1632 = vadd.f32 0.0, %v1631
      %1633 = vdwg.mxu0
      %v1634 = vadd.f32 %v1082, %v1475
      %v1635 = vadd.f32 %v1084, %v1477
      %v1636 = vadd.f32 %v1087, %v1480
      %v1637 = vadd.f32 %v1089, %v1482
      %v1638 = vadd.f32 %v1092, %v1485
      %v1639 = vadd.f32 %v1094, %v1487
      %v1640 = vadd.f32 %v1097, %v1490
      %v1641 = vadd.f32 %v1099, %v1492
      %v1642 = vadd.f32 %v1102, %v1495
      %v1643 = vadd.f32 %v1104, %v1497
      %v1644 = vadd.f32 %v1107, %v1500
      %v1645 = vadd.f32 %v1109, %v1502
      %v1646 = vadd.f32 %v1112, %v1505
      %v1647 = vadd.f32 %v1114, %v1507
      %v1648 = vadd.f32 %v1117, %v1510
      %v1649 = vadd.f32 %v1119, %v1512
      %v1650 = vadd.f32 %v1122, %v1515
      %v1651 = vadd.f32 %v1124, %v1517
      %v1652 = vadd.f32 %v1127, %v1520
      %v1653 = vadd.f32 %v1129, %v1522
      %v1654 = vadd.f32 %v1132, %v1525
      %v1655 = vadd.f32 %v1134, %v1527
      %v1656 = vadd.f32 %v1137, %v1530
      %v1657 = vadd.f32 %v1139, %v1532
      %v1658 = vadd.f32 %v1142, %v1535
      %v1659 = vadd.f32 %v1144, %v1537
      %v1660 = vadd.f32 %v1147, %v1540
      %v1661 = vadd.f32 %v1149, %v1542
      %v1662 = vadd.f32 %v1152, %v1545
      %v1663 = vadd.f32 %v1154, %v1547
      %v1664 = vadd.f32 %v1157, %v1550
      %v1665 = vadd.f32 %v1159, %v1552
      %v1666 = vadd.f32 %v1162, %v1555
      %v1667 = vadd.f32 %v1164, %v1557
      %v1668 = vadd.f32 %v1167, %v1560
      %v1669 = vadd.f32 %v1169, %v1562
      %v1670 = vadd.f32 %v1172, %v1565
      %v1671 = vadd.f32 %v1174, %v1567
      %v1672 = vadd.f32 %v1177, %v1570
      %v1673 = vadd.f32 %v1179, %v1572
      %v1674 = vadd.f32 %v1182, %v1575
      %v1675 = vadd.f32 %v1184, %v1577
      %v1676 = vadd.f32 %v1187, %v1580
      %v1677 = vadd.f32 %v1189, %v1582
      %v1678 = vadd.f32 %v1192, %v1585
      %v1679 = vadd.f32 %v1194, %v1587
      %v1680 = vadd.f32 %v1197, %v1590
      %v1681 = vadd.f32 %v1199, %v1592
      %v1682 = vadd.f32 %v1202, %v1595
      %v1683 = vadd.f32 %v1204, %v1597
      %v1684 = vadd.f32 %v1207, %v1600
      %v1685 = vadd.f32 %v1209, %v1602
      %v1686 = vadd.f32 %v1212, %v1605
      %v1687 = vadd.f32 %v1214, %v1607
      %v1688 = vadd.f32 %v1217, %v1610
      %v1689 = vadd.f32 %v1219, %v1612
      %v1690 = vadd.f32 %v1222, %v1615
      %v1691 = vadd.f32 %v1224, %v1617
      %v1692 = vadd.f32 %v1227, %v1620
      %v1693 = vadd.f32 %v1229, %v1622
      %v1694 = vadd.f32 %v1232, %v1625
      %v1695 = vadd.f32 %v1234, %v1627
      %v1696 = vadd.f32 %v1237, %v1630
      %v1697 = vadd.f32 %v1239, %v1632
      %v1698 = vld [vmem:[#allocation2 + $0x12] sm:$0xff]
      %v1699 = vld [vmem:[#allocation2 + $0x1a] sm:$0xff]
      %v1700 = vld [vmem:[#allocation2 + $0x22] sm:$0xff]
      %v1701 = vld [vmem:[#allocation2 + $0x2a] sm:$0xff]
      %v1702 = vld [vmem:[#allocation2 + $0x32] sm:$0xff]
      %v1703 = vld [vmem:[#allocation2 + $0x3a] sm:$0xff]
      %v1704 = vld [vmem:[#allocation2 + $0x42] sm:$0xff]
      %v1705 = vld [vmem:[#allocation2 + $0x4a] sm:$0xff]
      %v1706 = vld [vmem:[#allocation2 + $0x52] sm:$0xff]
      %v1707 = vld [vmem:[#allocation2 + $0x5a] sm:$0xff]
      %v1708 = vld [vmem:[#allocation2 + $0x62] sm:$0xff]
      %v1709 = vld [vmem:[#allocation2 + $0x6a] sm:$0xff]
      %v1710 = vld [vmem:[#allocation2 + $0x72] sm:$0xff]
      %v1711 = vld [vmem:[#allocation2 + $0x7a] sm:$0xff]
      %v1712 = vld [vmem:[#allocation2 + $0x82] sm:$0xff]
      %v1713 = vld [vmem:[#allocation2 + $0x8a] sm:$0xff]
      %v1714 = vld [vmem:[#allocation2 + $0x92] sm:$0xff]
      %v1715 = vld [vmem:[#allocation2 + $0x9a] sm:$0xff]
      %v1716 = vld [vmem:[#allocation2 + $0xa2] sm:$0xff]
      %v1717 = vld [vmem:[#allocation2 + $0xaa] sm:$0xff]
      %v1718 = vld [vmem:[#allocation2 + $0xb2] sm:$0xff]
      %v1719 = vld [vmem:[#allocation2 + $0xba] sm:$0xff]
      %v1720 = vld [vmem:[#allocation2 + $0xc2] sm:$0xff]
      %v1721 = vld [vmem:[#allocation2 + $0xca] sm:$0xff]
      %v1722 = vld [vmem:[#allocation2 + $0xd2] sm:$0xff]
      %v1723 = vld [vmem:[#allocation2 + $0xda] sm:$0xff]
      %v1724 = vld [vmem:[#allocation2 + $0xe2] sm:$0xff]
      %v1725 = vld [vmem:[#allocation2 + $0xea] sm:$0xff]
      %v1726 = vld [vmem:[#allocation2 + $0xf2] sm:$0xff]
      %v1727 = vld [vmem:[#allocation2 + $0xfa] sm:$0xff]
      %v1728 = vld [vmem:[#allocation2 + $0x102] sm:$0xff]
      %v1729 = vld [vmem:[#allocation2 + $0x10a] sm:$0xff]
      %v1730 = vld [vmem:[#allocation2 + $0x112] sm:$0xff]
      %v1731 = vld [vmem:[#allocation2 + $0x11a] sm:$0xff]
      %v1732 = vld [vmem:[#allocation2 + $0x122] sm:$0xff]
      %v1733 = vld [vmem:[#allocation2 + $0x12a] sm:$0xff]
      %v1734 = vld [vmem:[#allocation2 + $0x132] sm:$0xff]
      %v1735 = vld [vmem:[#allocation2 + $0x13a] sm:$0xff]
      %v1736 = vld [vmem:[#allocation2 + $0x142] sm:$0xff]
      %v1737 = vld [vmem:[#allocation2 + $0x14a] sm:$0xff]
      %v1738 = vld [vmem:[#allocation2 + $0x152] sm:$0xff]
      %v1739 = vld [vmem:[#allocation2 + $0x15a] sm:$0xff]
      %v1740 = vld [vmem:[#allocation2 + $0x162] sm:$0xff]
      %v1741 = vld [vmem:[#allocation2 + $0x16a] sm:$0xff]
      %v1742 = vld [vmem:[#allocation2 + $0x172] sm:$0xff]
      %v1743 = vld [vmem:[#allocation2 + $0x17a] sm:$0xff]
      %v1744 = vld [vmem:[#allocation2 + $0x182] sm:$0xff]
      %v1745 = vld [vmem:[#allocation2 + $0x18a] sm:$0xff]
      %v1746 = vld [vmem:[#allocation2 + $0x192] sm:$0xff]
      %v1747 = vld [vmem:[#allocation2 + $0x19a] sm:$0xff]
      %v1748 = vld [vmem:[#allocation2 + $0x1a2] sm:$0xff]
      %v1749 = vld [vmem:[#allocation2 + $0x1aa] sm:$0xff]
      %v1750 = vld [vmem:[#allocation2 + $0x1b2] sm:$0xff]
      %v1751 = vld [vmem:[#allocation2 + $0x1ba] sm:$0xff]
      %v1752 = vld [vmem:[#allocation2 + $0x1c2] sm:$0xff]
      %v1753 = vld [vmem:[#allocation2 + $0x1ca] sm:$0xff]
      %v1754 = vld [vmem:[#allocation2 + $0x1d2] sm:$0xff]
      %v1755 = vld [vmem:[#allocation2 + $0x1da] sm:$0xff]
      %v1756 = vld [vmem:[#allocation2 + $0x1e2] sm:$0xff]
      %v1757 = vld [vmem:[#allocation2 + $0x1ea] sm:$0xff]
      %v1758 = vld [vmem:[#allocation2 + $0x1f2] sm:$0xff]
      %v1759 = vld [vmem:[#allocation2 + $0x1fa] sm:$0xff]
      %v1760 = vld [vmem:[#allocation2 + $0x202] sm:$0xff]
      %v1761 = vld [vmem:[#allocation2 + $0x20a] sm:$0xff]
      %v1762 = vpack.c.bf16 %v1699, %v1698
      %v1763 = vpack.c.bf16 %v1701, %v1700
      %v1764 = vpack.c.bf16 %v1703, %v1702
      %v1765 = vpack.c.bf16 %v1705, %v1704
      %v1766 = vpack.c.bf16 %v1707, %v1706
      %v1767 = vpack.c.bf16 %v1709, %v1708
      %v1768 = vpack.c.bf16 %v1711, %v1710
      %v1769 = vpack.c.bf16 %v1713, %v1712
      %v1770 = vpack.c.bf16 %v1715, %v1714
      %v1771 = vpack.c.bf16 %v1717, %v1716
      %v1772 = vpack.c.bf16 %v1719, %v1718
      %v1773 = vpack.c.bf16 %v1721, %v1720
      %v1774 = vpack.c.bf16 %v1723, %v1722
      %v1775 = vpack.c.bf16 %v1725, %v1724
      %v1776 = vpack.c.bf16 %v1727, %v1726
      %v1777 = vpack.c.bf16 %v1729, %v1728
      %v1778 = vpack.c.bf16 %v1731, %v1730
      %v1779 = vpack.c.bf16 %v1733, %v1732
      %v1780 = vpack.c.bf16 %v1735, %v1734
      %v1781 = vpack.c.bf16 %v1737, %v1736
      %v1782 = vpack.c.bf16 %v1739, %v1738
      %v1783 = vpack.c.bf16 %v1741, %v1740
      %v1784 = vpack.c.bf16 %v1743, %v1742
      %v1785 = vpack.c.bf16 %v1745, %v1744
      %v1786 = vpack.c.bf16 %v1747, %v1746
      %v1787 = vpack.c.bf16 %v1749, %v1748
      %v1788 = vpack.c.bf16 %v1751, %v1750
      %v1789 = vpack.c.bf16 %v1753, %v1752
      %v1790 = vpack.c.bf16 %v1755, %v1754
      %v1791 = vpack.c.bf16 %v1757, %v1756
      %v1792 = vpack.c.bf16 %v1759, %v1758
      %v1793 = vpack.c.bf16 %v1761, %v1760
      %v1794 = vld [vmem:[%s2 + $0x60] sm:$0xf]
      %v1795 = vld [vmem:[%s2 + $0x64] sm:$0xf]
      %v1796 = vld [vmem:[%s2 + $0x68] sm:$0xf]
      %v1797 = vld [vmem:[%s2 + $0x6c] sm:$0xf]
      %v1798 = vld [vmem:[%s2 + $0x70] sm:$0xf]
      %v1799 = vld [vmem:[%s2 + $0x74] sm:$0xf]
      %v1800 = vld [vmem:[%s2 + $0x78] sm:$0xf]
      %v1801 = vld [vmem:[%s2 + $0x7c] sm:$0xf]
      %v1810 = vunpack.c.l.b16 %v1794
      %v1811 = vunpack.c.l.b16 %v1795
      %v1812 = vunpack.c.l.b16 %v1796
      %v1813 = vunpack.c.l.b16 %v1797
      %v1814 = vunpack.c.l.b16 %v1798
      %v1815 = vunpack.c.l.b16 %v1799
      %v1816 = vunpack.c.l.b16 %v1800
      %v1817 = vunpack.c.l.b16 %v1801
      %v1818 = vpack.c.b16 %v1811, %v1810
      %v1819 = vpack.c.b16 %v1813, %v1812
      %v1820 = vpack.c.b16 %v1815, %v1814
      %v1821 = vpack.c.b16 %v1817, %v1816
      %v1827 = vsel %vm366, %v1762, 0
      %v1830 = vsel %vm366, %v1763, 0
      %v1833 = vsel %vm366, %v1764, 0
      %v1836 = vsel %vm366, %v1765, 0
      %v1839 = vsel %vm366, %v1766, 0
      %v1842 = vsel %vm366, %v1767, 0
      %v1845 = vsel %vm366, %v1768, 0
      %v1848 = vsel %vm366, %v1769, 0
      %v1851 = vsel %vm366, %v1770, 0
      %v1854 = vsel %vm366, %v1771, 0
      %v1857 = vsel %vm366, %v1772, 0
      %v1860 = vsel %vm366, %v1773, 0
      %v1863 = vsel %vm366, %v1774, 0
      %v1866 = vsel %vm366, %v1775, 0
      %v1869 = vsel %vm366, %v1776, 0
      %v1872 = vsel %vm366, %v1777, 0
      %v1875 = vsel %vm366, %v1778, 0
      %v1878 = vsel %vm366, %v1779, 0
      %v1881 = vsel %vm366, %v1780, 0
      %v1884 = vsel %vm366, %v1781, 0
      %v1887 = vsel %vm366, %v1782, 0
      %v1890 = vsel %vm366, %v1783, 0
      %v1893 = vsel %vm366, %v1784, 0
      %v1896 = vsel %vm366, %v1785, 0
      %v1899 = vsel %vm366, %v1786, 0
      %v1902 = vsel %vm366, %v1787, 0
      %v1905 = vsel %vm366, %v1788, 0
      %v1908 = vsel %vm366, %v1789, 0
      %v1911 = vsel %vm366, %v1790, 0
      %v1914 = vsel %vm366, %v1791, 0
      %v1917 = vsel %vm366, %v1792, 0
      %v1920 = vsel %vm366, %v1793, 0
      %1922 = vmatpush.bf16.msra.mxu0 0
      %1923 = vmatpush.bf16.msra.mxu0 0
      %1924 = vmatpush.bf16.msra.mxu0 0
      %1925 = vmatpush.bf16.msra.mxu0 0
      %1926 = vmatpush.bf16.msra.mxu0 %v1821
      %1927 = vmatpush.bf16.msra.mxu0 %v1820
      %1928 = vmatpush.bf16.msra.mxu0 %v1819
      %1929 = vmatpush.bf16.msra.mxu0 %v1818
      %1930 = vmatmul.bf16.gmra.mxu0 %v1827
      %v1931 = vpop.f32.mrf.mxu0
      %v1932 = vadd.f32 0.0, %v1931
      %v1933 = vpop.f32.mrf.mxu0
      %v1934 = vadd.f32 0.0, %v1933
      %1935 = vmatmul.bf16.gmra.mxu0 %v1830
      %v1936 = vpop.f32.mrf.mxu0
      %v1937 = vadd.f32 0.0, %v1936
      %v1938 = vpop.f32.mrf.mxu0
      %v1939 = vadd.f32 0.0, %v1938
      %1940 = vmatmul.bf16.gmra.mxu0 %v1833
      %v1941 = vpop.f32.mrf.mxu0
      %v1942 = vadd.f32 0.0, %v1941
      %v1943 = vpop.f32.mrf.mxu0
      %v1944 = vadd.f32 0.0, %v1943
      %1945 = vmatmul.bf16.gmra.mxu0 %v1836
      %v1946 = vpop.f32.mrf.mxu0
      %v1947 = vadd.f32 0.0, %v1946
      %v1948 = vpop.f32.mrf.mxu0
      %v1949 = vadd.f32 0.0, %v1948
      %1950 = vmatmul.bf16.gmra.mxu0 %v1839
      %v1951 = vpop.f32.mrf.mxu0
      %v1952 = vadd.f32 0.0, %v1951
      %v1953 = vpop.f32.mrf.mxu0
      %v1954 = vadd.f32 0.0, %v1953
      %1955 = vmatmul.bf16.gmra.mxu0 %v1842
      %v1956 = vpop.f32.mrf.mxu0
      %v1957 = vadd.f32 0.0, %v1956
      %v1958 = vpop.f32.mrf.mxu0
      %v1959 = vadd.f32 0.0, %v1958
      %1960 = vmatmul.bf16.gmra.mxu0 %v1845
      %v1961 = vpop.f32.mrf.mxu0
      %v1962 = vadd.f32 0.0, %v1961
      %v1963 = vpop.f32.mrf.mxu0
      %v1964 = vadd.f32 0.0, %v1963
      %1965 = vmatmul.bf16.gmra.mxu0 %v1848
      %v1966 = vpop.f32.mrf.mxu0
      %v1967 = vadd.f32 0.0, %v1966
      %v1968 = vpop.f32.mrf.mxu0
      %v1969 = vadd.f32 0.0, %v1968
      %1970 = vmatmul.bf16.gmra.mxu0 %v1851
      %v1971 = vpop.f32.mrf.mxu0
      %v1972 = vadd.f32 0.0, %v1971
      %v1973 = vpop.f32.mrf.mxu0
      %v1974 = vadd.f32 0.0, %v1973
      %1975 = vmatmul.bf16.gmra.mxu0 %v1854
      %v1976 = vpop.f32.mrf.mxu0
      %v1977 = vadd.f32 0.0, %v1976
      %v1978 = vpop.f32.mrf.mxu0
      %v1979 = vadd.f32 0.0, %v1978
      %1980 = vmatmul.bf16.gmra.mxu0 %v1857
      %v1981 = vpop.f32.mrf.mxu0
      %v1982 = vadd.f32 0.0, %v1981
      %v1983 = vpop.f32.mrf.mxu0
      %v1984 = vadd.f32 0.0, %v1983
      %1985 = vmatmul.bf16.gmra.mxu0 %v1860
      %v1986 = vpop.f32.mrf.mxu0
      %v1987 = vadd.f32 0.0, %v1986
      %v1988 = vpop.f32.mrf.mxu0
      %v1989 = vadd.f32 0.0, %v1988
      %1990 = vmatmul.bf16.gmra.mxu0 %v1863
      %v1991 = vpop.f32.mrf.mxu0
      %v1992 = vadd.f32 0.0, %v1991
      %v1993 = vpop.f32.mrf.mxu0
      %v1994 = vadd.f32 0.0, %v1993
      %1995 = vmatmul.bf16.gmra.mxu0 %v1866
      %v1996 = vpop.f32.mrf.mxu0
      %v1997 = vadd.f32 0.0, %v1996
      %v1998 = vpop.f32.mrf.mxu0
      %v1999 = vadd.f32 0.0, %v1998
      %2000 = vmatmul.bf16.gmra.mxu0 %v1869
      %v2001 = vpop.f32.mrf.mxu0
      %v2002 = vadd.f32 0.0, %v2001
      %v2003 = vpop.f32.mrf.mxu0
      %v2004 = vadd.f32 0.0, %v2003
      %2005 = vmatmul.bf16.gmra.mxu0 %v1872
      %v2006 = vpop.f32.mrf.mxu0
      %v2007 = vadd.f32 0.0, %v2006
      %v2008 = vpop.f32.mrf.mxu0
      %v2009 = vadd.f32 0.0, %v2008
      %2010 = vmatmul.bf16.gmra.mxu0 %v1875
      %v2011 = vpop.f32.mrf.mxu0
      %v2012 = vadd.f32 0.0, %v2011
      %v2013 = vpop.f32.mrf.mxu0
      %v2014 = vadd.f32 0.0, %v2013
      %2015 = vmatmul.bf16.gmra.mxu0 %v1878
      %v2016 = vpop.f32.mrf.mxu0
      %v2017 = vadd.f32 0.0, %v2016
      %v2018 = vpop.f32.mrf.mxu0
      %v2019 = vadd.f32 0.0, %v2018
      %2020 = vmatmul.bf16.gmra.mxu0 %v1881
      %v2021 = vpop.f32.mrf.mxu0
      %v2022 = vadd.f32 0.0, %v2021
      %v2023 = vpop.f32.mrf.mxu0
      %v2024 = vadd.f32 0.0, %v2023
      %2025 = vmatmul.bf16.gmra.mxu0 %v1884
      %v2026 = vpop.f32.mrf.mxu0
      %v2027 = vadd.f32 0.0, %v2026
      %v2028 = vpop.f32.mrf.mxu0
      %v2029 = vadd.f32 0.0, %v2028
      %2030 = vmatmul.bf16.gmra.mxu0 %v1887
      %v2031 = vpop.f32.mrf.mxu0
      %v2032 = vadd.f32 0.0, %v2031
      %v2033 = vpop.f32.mrf.mxu0
      %v2034 = vadd.f32 0.0, %v2033
      %2035 = vmatmul.bf16.gmra.mxu0 %v1890
      %v2036 = vpop.f32.mrf.mxu0
      %v2037 = vadd.f32 0.0, %v2036
      %v2038 = vpop.f32.mrf.mxu0
      %v2039 = vadd.f32 0.0, %v2038
      %2040 = vmatmul.bf16.gmra.mxu0 %v1893
      %v2041 = vpop.f32.mrf.mxu0
      %v2042 = vadd.f32 0.0, %v2041
      %v2043 = vpop.f32.mrf.mxu0
      %v2044 = vadd.f32 0.0, %v2043
      %2045 = vmatmul.bf16.gmra.mxu0 %v1896
      %v2046 = vpop.f32.mrf.mxu0
      %v2047 = vadd.f32 0.0, %v2046
      %v2048 = vpop.f32.mrf.mxu0
      %v2049 = vadd.f32 0.0, %v2048
      %2050 = vmatmul.bf16.gmra.mxu0 %v1899
      %v2051 = vpop.f32.mrf.mxu0
      %v2052 = vadd.f32 0.0, %v2051
      %v2053 = vpop.f32.mrf.mxu0
      %v2054 = vadd.f32 0.0, %v2053
      %2055 = vmatmul.bf16.gmra.mxu0 %v1902
      %v2056 = vpop.f32.mrf.mxu0
      %v2057 = vadd.f32 0.0, %v2056
      %v2058 = vpop.f32.mrf.mxu0
      %v2059 = vadd.f32 0.0, %v2058
      %2060 = vmatmul.bf16.gmra.mxu0 %v1905
      %v2061 = vpop.f32.mrf.mxu0
      %v2062 = vadd.f32 0.0, %v2061
      %v2063 = vpop.f32.mrf.mxu0
      %v2064 = vadd.f32 0.0, %v2063
      %2065 = vmatmul.bf16.gmra.mxu0 %v1908
      %v2066 = vpop.f32.mrf.mxu0
      %v2067 = vadd.f32 0.0, %v2066
      %v2068 = vpop.f32.mrf.mxu0
      %v2069 = vadd.f32 0.0, %v2068
      %2070 = vmatmul.bf16.gmra.mxu0 %v1911
      %v2071 = vpop.f32.mrf.mxu0
      %v2072 = vadd.f32 0.0, %v2071
      %v2073 = vpop.f32.mrf.mxu0
      %v2074 = vadd.f32 0.0, %v2073
      %2075 = vmatmul.bf16.gmra.mxu0 %v1914
      %v2076 = vpop.f32.mrf.mxu0
      %v2077 = vadd.f32 0.0, %v2076
      %v2078 = vpop.f32.mrf.mxu0
      %v2079 = vadd.f32 0.0, %v2078
      %2080 = vmatmul.bf16.gmra.mxu0 %v1917
      %v2081 = vpop.f32.mrf.mxu0
      %v2082 = vadd.f32 0.0, %v2081
      %v2083 = vpop.f32.mrf.mxu0
      %v2084 = vadd.f32 0.0, %v2083
      %2085 = vmatmul.bf16.gmra.mxu0 %v1920
      %v2086 = vpop.f32.mrf.mxu0
      %v2087 = vadd.f32 0.0, %v2086
      %v2088 = vpop.f32.mrf.mxu0
      %v2089 = vadd.f32 0.0, %v2088
      %2090 = vdwg.mxu0
      %v2091 = vadd.f32 %v1634, %v1932
      %v2092 = vadd.f32 %v1635, %v1934
      %v2093 = vadd.f32 %v1636, %v1937
      %v2094 = vadd.f32 %v1637, %v1939
      %v2095 = vadd.f32 %v1638, %v1942
      %v2096 = vadd.f32 %v1639, %v1944
      %v2097 = vadd.f32 %v1640, %v1947
      %v2098 = vadd.f32 %v1641, %v1949
      %v2099 = vadd.f32 %v1642, %v1952
      %v2100 = vadd.f32 %v1643, %v1954
      %v2101 = vadd.f32 %v1644, %v1957
      %v2102 = vadd.f32 %v1645, %v1959
      %v2103 = vadd.f32 %v1646, %v1962
      %v2104 = vadd.f32 %v1647, %v1964
      %v2105 = vadd.f32 %v1648, %v1967
      %v2106 = vadd.f32 %v1649, %v1969
      %v2107 = vadd.f32 %v1650, %v1972
      %v2108 = vadd.f32 %v1651, %v1974
      %v2109 = vadd.f32 %v1652, %v1977
      %v2110 = vadd.f32 %v1653, %v1979
      %v2111 = vadd.f32 %v1654, %v1982
      %v2112 = vadd.f32 %v1655, %v1984
      %v2113 = vadd.f32 %v1656, %v1987
      %v2114 = vadd.f32 %v1657, %v1989
      %v2115 = vadd.f32 %v1658, %v1992
      %v2116 = vadd.f32 %v1659, %v1994
      %v2117 = vadd.f32 %v1660, %v1997
      %v2118 = vadd.f32 %v1661, %v1999
      %v2119 = vadd.f32 %v1662, %v2002
      %v2120 = vadd.f32 %v1663, %v2004
      %v2121 = vadd.f32 %v1664, %v2007
      %v2122 = vadd.f32 %v1665, %v2009
      %v2123 = vadd.f32 %v1666, %v2012
      %v2124 = vadd.f32 %v1667, %v2014
      %v2125 = vadd.f32 %v1668, %v2017
      %v2126 = vadd.f32 %v1669, %v2019
      %v2127 = vadd.f32 %v1670, %v2022
      %v2128 = vadd.f32 %v1671, %v2024
      %v2129 = vadd.f32 %v1672, %v2027
      %v2130 = vadd.f32 %v1673, %v2029
      %v2131 = vadd.f32 %v1674, %v2032
      %v2132 = vadd.f32 %v1675, %v2034
      %v2133 = vadd.f32 %v1676, %v2037
      %v2134 = vadd.f32 %v1677, %v2039
      %v2135 = vadd.f32 %v1678, %v2042
      %v2136 = vadd.f32 %v1679, %v2044
      %v2137 = vadd.f32 %v1680, %v2047
      %v2138 = vadd.f32 %v1681, %v2049
      %v2139 = vadd.f32 %v1682, %v2052
      %v2140 = vadd.f32 %v1683, %v2054
      %v2141 = vadd.f32 %v1684, %v2057
      %v2142 = vadd.f32 %v1685, %v2059
      %v2143 = vadd.f32 %v1686, %v2062
      %v2144 = vadd.f32 %v1687, %v2064
      %v2145 = vadd.f32 %v1688, %v2067
      %v2146 = vadd.f32 %v1689, %v2069
      %v2147 = vadd.f32 %v1690, %v2072
      %v2148 = vadd.f32 %v1691, %v2074
      %v2149 = vadd.f32 %v1692, %v2077
      %v2150 = vadd.f32 %v1693, %v2079
      %v2151 = vadd.f32 %v1694, %v2082
      %v2152 = vadd.f32 %v1695, %v2084
      %v2153 = vadd.f32 %v1696, %v2087
      %v2154 = vadd.f32 %v1697, %v2089
      %v2155 = vld [vmem:[#allocation2 + $0x13] sm:$0xff]
      %v2156 = vld [vmem:[#allocation2 + $0x1b] sm:$0xff]
      %v2157 = vld [vmem:[#allocation2 + $0x23] sm:$0xff]
      %v2158 = vld [vmem:[#allocation2 + $0x2b] sm:$0xff]
      %v2159 = vld [vmem:[#allocation2 + $0x33] sm:$0xff]
      %v2160 = vld [vmem:[#allocation2 + $0x3b] sm:$0xff]
      %v2161 = vld [vmem:[#allocation2 + $0x43] sm:$0xff]
      %v2162 = vld [vmem:[#allocation2 + $0x4b] sm:$0xff]
      %v2163 = vld [vmem:[#allocation2 + $0x53] sm:$0xff]
      %v2164 = vld [vmem:[#allocation2 + $0x5b] sm:$0xff]
      %v2165 = vld [vmem:[#allocation2 + $0x63] sm:$0xff]
      %v2166 = vld [vmem:[#allocation2 + $0x6b] sm:$0xff]
      %v2167 = vld [vmem:[#allocation2 + $0x73] sm:$0xff]
      %v2168 = vld [vmem:[#allocation2 + $0x7b] sm:$0xff]
      %v2169 = vld [vmem:[#allocation2 + $0x83] sm:$0xff]
      %v2170 = vld [vmem:[#allocation2 + $0x8b] sm:$0xff]
      %v2171 = vld [vmem:[#allocation2 + $0x93] sm:$0xff]
      %v2172 = vld [vmem:[#allocation2 + $0x9b] sm:$0xff]
      %v2173 = vld [vmem:[#allocation2 + $0xa3] sm:$0xff]
      %v2174 = vld [vmem:[#allocation2 + $0xab] sm:$0xff]
      %v2175 = vld [vmem:[#allocation2 + $0xb3] sm:$0xff]
      %v2176 = vld [vmem:[#allocation2 + $0xbb] sm:$0xff]
      %v2177 = vld [vmem:[#allocation2 + $0xc3] sm:$0xff]
      %v2178 = vld [vmem:[#allocation2 + $0xcb] sm:$0xff]
      %v2179 = vld [vmem:[#allocation2 + $0xd3] sm:$0xff]
      %v2180 = vld [vmem:[#allocation2 + $0xdb] sm:$0xff]
      %v2181 = vld [vmem:[#allocation2 + $0xe3] sm:$0xff]
      %v2182 = vld [vmem:[#allocation2 + $0xeb] sm:$0xff]
      %v2183 = vld [vmem:[#allocation2 + $0xf3] sm:$0xff]
      %v2184 = vld [vmem:[#allocation2 + $0xfb] sm:$0xff]
      %v2185 = vld [vmem:[#allocation2 + $0x103] sm:$0xff]
      %v2186 = vld [vmem:[#allocation2 + $0x10b] sm:$0xff]
      %v2187 = vld [vmem:[#allocation2 + $0x113] sm:$0xff]
      %v2188 = vld [vmem:[#allocation2 + $0x11b] sm:$0xff]
      %v2189 = vld [vmem:[#allocation2 + $0x123] sm:$0xff]
      %v2190 = vld [vmem:[#allocation2 + $0x12b] sm:$0xff]
      %v2191 = vld [vmem:[#allocation2 + $0x133] sm:$0xff]
      %v2192 = vld [vmem:[#allocation2 + $0x13b] sm:$0xff]
      %v2193 = vld [vmem:[#allocation2 + $0x143] sm:$0xff]
      %v2194 = vld [vmem:[#allocation2 + $0x14b] sm:$0xff]
      %v2195 = vld [vmem:[#allocation2 + $0x153] sm:$0xff]
      %v2196 = vld [vmem:[#allocation2 + $0x15b] sm:$0xff]
      %v2197 = vld [vmem:[#allocation2 + $0x163] sm:$0xff]
      %v2198 = vld [vmem:[#allocation2 + $0x16b] sm:$0xff]
      %v2199 = vld [vmem:[#allocation2 + $0x173] sm:$0xff]
      %v2200 = vld [vmem:[#allocation2 + $0x17b] sm:$0xff]
      %v2201 = vld [vmem:[#allocation2 + $0x183] sm:$0xff]
      %v2202 = vld [vmem:[#allocation2 + $0x18b] sm:$0xff]
      %v2203 = vld [vmem:[#allocation2 + $0x193] sm:$0xff]
      %v2204 = vld [vmem:[#allocation2 + $0x19b] sm:$0xff]
      %v2205 = vld [vmem:[#allocation2 + $0x1a3] sm:$0xff]
      %v2206 = vld [vmem:[#allocation2 + $0x1ab] sm:$0xff]
      %v2207 = vld [vmem:[#allocation2 + $0x1b3] sm:$0xff]
      %v2208 = vld [vmem:[#allocation2 + $0x1bb] sm:$0xff]
      %v2209 = vld [vmem:[#allocation2 + $0x1c3] sm:$0xff]
      %v2210 = vld [vmem:[#allocation2 + $0x1cb] sm:$0xff]
      %v2211 = vld [vmem:[#allocation2 + $0x1d3] sm:$0xff]
      %v2212 = vld [vmem:[#allocation2 + $0x1db] sm:$0xff]
      %v2213 = vld [vmem:[#allocation2 + $0x1e3] sm:$0xff]
      %v2214 = vld [vmem:[#allocation2 + $0x1eb] sm:$0xff]
      %v2215 = vld [vmem:[#allocation2 + $0x1f3] sm:$0xff]
      %v2216 = vld [vmem:[#allocation2 + $0x1fb] sm:$0xff]
      %v2217 = vld [vmem:[#allocation2 + $0x203] sm:$0xff]
      %v2218 = vld [vmem:[#allocation2 + $0x20b] sm:$0xff]
      %v2219 = vpack.c.bf16 %v2156, %v2155
      %v2220 = vpack.c.bf16 %v2158, %v2157
      %v2221 = vpack.c.bf16 %v2160, %v2159
      %v2222 = vpack.c.bf16 %v2162, %v2161
      %v2223 = vpack.c.bf16 %v2164, %v2163
      %v2224 = vpack.c.bf16 %v2166, %v2165
      %v2225 = vpack.c.bf16 %v2168, %v2167
      %v2226 = vpack.c.bf16 %v2170, %v2169
      %v2227 = vpack.c.bf16 %v2172, %v2171
      %v2228 = vpack.c.bf16 %v2174, %v2173
      %v2229 = vpack.c.bf16 %v2176, %v2175
      %v2230 = vpack.c.bf16 %v2178, %v2177
      %v2231 = vpack.c.bf16 %v2180, %v2179
      %v2232 = vpack.c.bf16 %v2182, %v2181
      %v2233 = vpack.c.bf16 %v2184, %v2183
      %v2234 = vpack.c.bf16 %v2186, %v2185
      %v2235 = vpack.c.bf16 %v2188, %v2187
      %v2236 = vpack.c.bf16 %v2190, %v2189
      %v2237 = vpack.c.bf16 %v2192, %v2191
      %v2238 = vpack.c.bf16 %v2194, %v2193
      %v2239 = vpack.c.bf16 %v2196, %v2195
      %v2240 = vpack.c.bf16 %v2198, %v2197
      %v2241 = vpack.c.bf16 %v2200, %v2199
      %v2242 = vpack.c.bf16 %v2202, %v2201
      %v2243 = vpack.c.bf16 %v2204, %v2203
      %v2244 = vpack.c.bf16 %v2206, %v2205
      %v2245 = vpack.c.bf16 %v2208, %v2207
      %v2246 = vpack.c.bf16 %v2210, %v2209
      %v2247 = vpack.c.bf16 %v2212, %v2211
      %v2248 = vpack.c.bf16 %v2214, %v2213
      %v2249 = vpack.c.bf16 %v2216, %v2215
      %v2250 = vpack.c.bf16 %v2218, %v2217
      %v2251 = vld [vmem:[%s2 + $0x80] sm:$0xf]
      %v2252 = vld [vmem:[%s2 + $0x84] sm:$0xf]
      %v2253 = vld [vmem:[%s2 + $0x88] sm:$0xf]
      %v2254 = vld [vmem:[%s2 + $0x8c] sm:$0xf]
      %v2255 = vld [vmem:[%s2 + $0x90] sm:$0xf]
      %v2256 = vld [vmem:[%s2 + $0x94] sm:$0xf]
      %v2257 = vld [vmem:[%s2 + $0x98] sm:$0xf]
      %v2258 = vld [vmem:[%s2 + $0x9c] sm:$0xf]
      %v2267 = vunpack.c.l.b16 %v2251
      %v2268 = vunpack.c.l.b16 %v2252
      %v2269 = vunpack.c.l.b16 %v2253
      %v2270 = vunpack.c.l.b16 %v2254
      %v2271 = vunpack.c.l.b16 %v2255
      %v2272 = vunpack.c.l.b16 %v2256
      %v2273 = vunpack.c.l.b16 %v2257
      %v2274 = vunpack.c.l.b16 %v2258
      %v2275 = vpack.c.b16 %v2268, %v2267
      %v2276 = vpack.c.b16 %v2270, %v2269
      %v2277 = vpack.c.b16 %v2272, %v2271
      %v2278 = vpack.c.b16 %v2274, %v2273
      %v2284 = vsel %vm366, %v2219, 0
      %v2287 = vsel %vm366, %v2220, 0
      %v2290 = vsel %vm366, %v2221, 0
      %v2293 = vsel %vm366, %v2222, 0
      %v2296 = vsel %vm366, %v2223, 0
      %v2299 = vsel %vm366, %v2224, 0
      %v2302 = vsel %vm366, %v2225, 0
      %v2305 = vsel %vm366, %v2226, 0
      %v2308 = vsel %vm366, %v2227, 0
      %v2311 = vsel %vm366, %v2228, 0
      %v2314 = vsel %vm366, %v2229, 0
      %v2317 = vsel %vm366, %v2230, 0
      %v2320 = vsel %vm366, %v2231, 0
      %v2323 = vsel %vm366, %v2232, 0
      %v2326 = vsel %vm366, %v2233, 0
      %v2329 = vsel %vm366, %v2234, 0
      %v2332 = vsel %vm366, %v2235, 0
      %v2335 = vsel %vm366, %v2236, 0
      %v2338 = vsel %vm366, %v2237, 0
      %v2341 = vsel %vm366, %v2238, 0
      %v2344 = vsel %vm366, %v2239, 0
      %v2347 = vsel %vm366, %v2240, 0
      %v2350 = vsel %vm366, %v2241, 0
      %v2353 = vsel %vm366, %v2242, 0
      %v2356 = vsel %vm366, %v2243, 0
      %v2359 = vsel %vm366, %v2244, 0
      %v2362 = vsel %vm366, %v2245, 0
      %v2365 = vsel %vm366, %v2246, 0
      %v2368 = vsel %vm366, %v2247, 0
      %v2371 = vsel %vm366, %v2248, 0
      %v2374 = vsel %vm366, %v2249, 0
      %v2377 = vsel %vm366, %v2250, 0
      %2379 = vmatpush.bf16.msra.mxu0 0
      %2380 = vmatpush.bf16.msra.mxu0 0
      %2381 = vmatpush.bf16.msra.mxu0 0
      %2382 = vmatpush.bf16.msra.mxu0 0
      %2383 = vmatpush.bf16.msra.mxu0 %v2278
      %2384 = vmatpush.bf16.msra.mxu0 %v2277
      %2385 = vmatpush.bf16.msra.mxu0 %v2276
      %2386 = vmatpush.bf16.msra.mxu0 %v2275
      %2387 = vmatmul.bf16.gmra.mxu0 %v2284
      %v2388 = vpop.f32.mrf.mxu0
      %v2389 = vadd.f32 0.0, %v2388
      %v2390 = vpop.f32.mrf.mxu0
      %v2391 = vadd.f32 0.0, %v2390
      %2392 = vmatmul.bf16.gmra.mxu0 %v2287
      %v2393 = vpop.f32.mrf.mxu0
      %v2394 = vadd.f32 0.0, %v2393
      %v2395 = vpop.f32.mrf.mxu0
      %v2396 = vadd.f32 0.0, %v2395
      %2397 = vmatmul.bf16.gmra.mxu0 %v2290
      %v2398 = vpop.f32.mrf.mxu0
      %v2399 = vadd.f32 0.0, %v2398
      %v2400 = vpop.f32.mrf.mxu0
      %v2401 = vadd.f32 0.0, %v2400
      %2402 = vmatmul.bf16.gmra.mxu0 %v2293
      %v2403 = vpop.f32.mrf.mxu0
      %v2404 = vadd.f32 0.0, %v2403
      %v2405 = vpop.f32.mrf.mxu0
      %v2406 = vadd.f32 0.0, %v2405
      %2407 = vmatmul.bf16.gmra.mxu0 %v2296
      %v2408 = vpop.f32.mrf.mxu0
      %v2409 = vadd.f32 0.0, %v2408
      %v2410 = vpop.f32.mrf.mxu0
      %v2411 = vadd.f32 0.0, %v2410
      %2412 = vmatmul.bf16.gmra.mxu0 %v2299
      %v2413 = vpop.f32.mrf.mxu0
      %v2414 = vadd.f32 0.0, %v2413
      %v2415 = vpop.f32.mrf.mxu0
      %v2416 = vadd.f32 0.0, %v2415
      %2417 = vmatmul.bf16.gmra.mxu0 %v2302
      %v2418 = vpop.f32.mrf.mxu0
      %v2419 = vadd.f32 0.0, %v2418
      %v2420 = vpop.f32.mrf.mxu0
      %v2421 = vadd.f32 0.0, %v2420
      %2422 = vmatmul.bf16.gmra.mxu0 %v2305
      %v2423 = vpop.f32.mrf.mxu0
      %v2424 = vadd.f32 0.0, %v2423
      %v2425 = vpop.f32.mrf.mxu0
      %v2426 = vadd.f32 0.0, %v2425
      %2427 = vmatmul.bf16.gmra.mxu0 %v2308
      %v2428 = vpop.f32.mrf.mxu0
      %v2429 = vadd.f32 0.0, %v2428
      %v2430 = vpop.f32.mrf.mxu0
      %v2431 = vadd.f32 0.0, %v2430
      %2432 = vmatmul.bf16.gmra.mxu0 %v2311
      %v2433 = vpop.f32.mrf.mxu0
      %v2434 = vadd.f32 0.0, %v2433
      %v2435 = vpop.f32.mrf.mxu0
      %v2436 = vadd.f32 0.0, %v2435
      %2437 = vmatmul.bf16.gmra.mxu0 %v2314
      %v2438 = vpop.f32.mrf.mxu0
      %v2439 = vadd.f32 0.0, %v2438
      %v2440 = vpop.f32.mrf.mxu0
      %v2441 = vadd.f32 0.0, %v2440
      %2442 = vmatmul.bf16.gmra.mxu0 %v2317
      %v2443 = vpop.f32.mrf.mxu0
      %v2444 = vadd.f32 0.0, %v2443
      %v2445 = vpop.f32.mrf.mxu0
      %v2446 = vadd.f32 0.0, %v2445
      %2447 = vmatmul.bf16.gmra.mxu0 %v2320
      %v2448 = vpop.f32.mrf.mxu0
      %v2449 = vadd.f32 0.0, %v2448
      %v2450 = vpop.f32.mrf.mxu0
      %v2451 = vadd.f32 0.0, %v2450
      %2452 = vmatmul.bf16.gmra.mxu0 %v2323
      %v2453 = vpop.f32.mrf.mxu0
      %v2454 = vadd.f32 0.0, %v2453
      %v2455 = vpop.f32.mrf.mxu0
      %v2456 = vadd.f32 0.0, %v2455
      %2457 = vmatmul.bf16.gmra.mxu0 %v2326
      %v2458 = vpop.f32.mrf.mxu0
      %v2459 = vadd.f32 0.0, %v2458
      %v2460 = vpop.f32.mrf.mxu0
      %v2461 = vadd.f32 0.0, %v2460
      %2462 = vmatmul.bf16.gmra.mxu0 %v2329
      %v2463 = vpop.f32.mrf.mxu0
      %v2464 = vadd.f32 0.0, %v2463
      %v2465 = vpop.f32.mrf.mxu0
      %v2466 = vadd.f32 0.0, %v2465
      %2467 = vmatmul.bf16.gmra.mxu0 %v2332
      %v2468 = vpop.f32.mrf.mxu0
      %v2469 = vadd.f32 0.0, %v2468
      %v2470 = vpop.f32.mrf.mxu0
      %v2471 = vadd.f32 0.0, %v2470
      %2472 = vmatmul.bf16.gmra.mxu0 %v2335
      %v2473 = vpop.f32.mrf.mxu0
      %v2474 = vadd.f32 0.0, %v2473
      %v2475 = vpop.f32.mrf.mxu0
      %v2476 = vadd.f32 0.0, %v2475
      %2477 = vmatmul.bf16.gmra.mxu0 %v2338
      %v2478 = vpop.f32.mrf.mxu0
      %v2479 = vadd.f32 0.0, %v2478
      %v2480 = vpop.f32.mrf.mxu0
      %v2481 = vadd.f32 0.0, %v2480
      %2482 = vmatmul.bf16.gmra.mxu0 %v2341
      %v2483 = vpop.f32.mrf.mxu0
      %v2484 = vadd.f32 0.0, %v2483
      %v2485 = vpop.f32.mrf.mxu0
      %v2486 = vadd.f32 0.0, %v2485
      %2487 = vmatmul.bf16.gmra.mxu0 %v2344
      %v2488 = vpop.f32.mrf.mxu0
      %v2489 = vadd.f32 0.0, %v2488
      %v2490 = vpop.f32.mrf.mxu0
      %v2491 = vadd.f32 0.0, %v2490
      %2492 = vmatmul.bf16.gmra.mxu0 %v2347
      %v2493 = vpop.f32.mrf.mxu0
      %v2494 = vadd.f32 0.0, %v2493
      %v2495 = vpop.f32.mrf.mxu0
      %v2496 = vadd.f32 0.0, %v2495
      %2497 = vmatmul.bf16.gmra.mxu0 %v2350
      %v2498 = vpop.f32.mrf.mxu0
      %v2499 = vadd.f32 0.0, %v2498
      %v2500 = vpop.f32.mrf.mxu0
      %v2501 = vadd.f32 0.0, %v2500
      %2502 = vmatmul.bf16.gmra.mxu0 %v2353
      %v2503 = vpop.f32.mrf.mxu0
      %v2504 = vadd.f32 0.0, %v2503
      %v2505 = vpop.f32.mrf.mxu0
      %v2506 = vadd.f32 0.0, %v2505
      %2507 = vmatmul.bf16.gmra.mxu0 %v2356
      %v2508 = vpop.f32.mrf.mxu0
      %v2509 = vadd.f32 0.0, %v2508
      %v2510 = vpop.f32.mrf.mxu0
      %v2511 = vadd.f32 0.0, %v2510
      %2512 = vmatmul.bf16.gmra.mxu0 %v2359
      %v2513 = vpop.f32.mrf.mxu0
      %v2514 = vadd.f32 0.0, %v2513
      %v2515 = vpop.f32.mrf.mxu0
      %v2516 = vadd.f32 0.0, %v2515
      %2517 = vmatmul.bf16.gmra.mxu0 %v2362
      %v2518 = vpop.f32.mrf.mxu0
      %v2519 = vadd.f32 0.0, %v2518
      %v2520 = vpop.f32.mrf.mxu0
      %v2521 = vadd.f32 0.0, %v2520
      %2522 = vmatmul.bf16.gmra.mxu0 %v2365
      %v2523 = vpop.f32.mrf.mxu0
      %v2524 = vadd.f32 0.0, %v2523
      %v2525 = vpop.f32.mrf.mxu0
      %v2526 = vadd.f32 0.0, %v2525
      %2527 = vmatmul.bf16.gmra.mxu0 %v2368
      %v2528 = vpop.f32.mrf.mxu0
      %v2529 = vadd.f32 0.0, %v2528
      %v2530 = vpop.f32.mrf.mxu0
      %v2531 = vadd.f32 0.0, %v2530
      %2532 = vmatmul.bf16.gmra.mxu0 %v2371
      %v2533 = vpop.f32.mrf.mxu0
      %v2534 = vadd.f32 0.0, %v2533
      %v2535 = vpop.f32.mrf.mxu0
      %v2536 = vadd.f32 0.0, %v2535
      %2537 = vmatmul.bf16.gmra.mxu0 %v2374
      %v2538 = vpop.f32.mrf.mxu0
      %v2539 = vadd.f32 0.0, %v2538
      %v2540 = vpop.f32.mrf.mxu0
      %v2541 = vadd.f32 0.0, %v2540
      %2542 = vmatmul.bf16.gmra.mxu0 %v2377
      %v2543 = vpop.f32.mrf.mxu0
      %v2544 = vadd.f32 0.0, %v2543
      %v2545 = vpop.f32.mrf.mxu0
      %v2546 = vadd.f32 0.0, %v2545
      %2547 = vdwg.mxu0
      %v2548 = vadd.f32 %v2091, %v2389
      %v2549 = vadd.f32 %v2092, %v2391
      %v2550 = vadd.f32 %v2093, %v2394
      %v2551 = vadd.f32 %v2094, %v2396
      %v2552 = vadd.f32 %v2095, %v2399
      %v2553 = vadd.f32 %v2096, %v2401
      %v2554 = vadd.f32 %v2097, %v2404
      %v2555 = vadd.f32 %v2098, %v2406
      %v2556 = vadd.f32 %v2099, %v2409
      %v2557 = vadd.f32 %v2100, %v2411
      %v2558 = vadd.f32 %v2101, %v2414
      %v2559 = vadd.f32 %v2102, %v2416
      %v2560 = vadd.f32 %v2103, %v2419
      %v2561 = vadd.f32 %v2104, %v2421
      %v2562 = vadd.f32 %v2105, %v2424
      %v2563 = vadd.f32 %v2106, %v2426
      %v2564 = vadd.f32 %v2107, %v2429
      %v2565 = vadd.f32 %v2108, %v2431
      %v2566 = vadd.f32 %v2109, %v2434
      %v2567 = vadd.f32 %v2110, %v2436
      %v2568 = vadd.f32 %v2111, %v2439
      %v2569 = vadd.f32 %v2112, %v2441
      %v2570 = vadd.f32 %v2113, %v2444
      %v2571 = vadd.f32 %v2114, %v2446
      %v2572 = vadd.f32 %v2115, %v2449
      %v2573 = vadd.f32 %v2116, %v2451
      %v2574 = vadd.f32 %v2117, %v2454
      %v2575 = vadd.f32 %v2118, %v2456
      %v2576 = vadd.f32 %v2119, %v2459
      %v2577 = vadd.f32 %v2120, %v2461
      %v2578 = vadd.f32 %v2121, %v2464
      %v2579 = vadd.f32 %v2122, %v2466
      %v2580 = vadd.f32 %v2123, %v2469
      %v2581 = vadd.f32 %v2124, %v2471
      %v2582 = vadd.f32 %v2125, %v2474
      %v2583 = vadd.f32 %v2126, %v2476
      %v2584 = vadd.f32 %v2127, %v2479
      %v2585 = vadd.f32 %v2128, %v2481
      %v2586 = vadd.f32 %v2129, %v2484
      %v2587 = vadd.f32 %v2130, %v2486
      %v2588 = vadd.f32 %v2131, %v2489
      %v2589 = vadd.f32 %v2132, %v2491
      %v2590 = vadd.f32 %v2133, %v2494
      %v2591 = vadd.f32 %v2134, %v2496
      %v2592 = vadd.f32 %v2135, %v2499
      %v2593 = vadd.f32 %v2136, %v2501
      %v2594 = vadd.f32 %v2137, %v2504
      %v2595 = vadd.f32 %v2138, %v2506
      %v2596 = vadd.f32 %v2139, %v2509
      %v2597 = vadd.f32 %v2140, %v2511
      %v2598 = vadd.f32 %v2141, %v2514
      %v2599 = vadd.f32 %v2142, %v2516
      %v2600 = vadd.f32 %v2143, %v2519
      %v2601 = vadd.f32 %v2144, %v2521
      %v2602 = vadd.f32 %v2145, %v2524
      %v2603 = vadd.f32 %v2146, %v2526
      %v2604 = vadd.f32 %v2147, %v2529
      %v2605 = vadd.f32 %v2148, %v2531
      %v2606 = vadd.f32 %v2149, %v2534
      %v2607 = vadd.f32 %v2150, %v2536
      %v2608 = vadd.f32 %v2151, %v2539
      %v2609 = vadd.f32 %v2152, %v2541
      %v2610 = vadd.f32 %v2153, %v2544
      %v2611 = vadd.f32 %v2154, %v2546
      %v2612 = vld [vmem:[#allocation2 + $0x14] sm:$0xff]
      %v2613 = vld [vmem:[#allocation2 + $0x1c] sm:$0xff]
      %v2614 = vld [vmem:[#allocation2 + $0x24] sm:$0xff]
      %v2615 = vld [vmem:[#allocation2 + $0x2c] sm:$0xff]
      %v2616 = vld [vmem:[#allocation2 + $0x34] sm:$0xff]
      %v2617 = vld [vmem:[#allocation2 + $0x3c] sm:$0xff]
      %v2618 = vld [vmem:[#allocation2 + $0x44] sm:$0xff]
      %v2619 = vld [vmem:[#allocation2 + $0x4c] sm:$0xff]
      %v2620 = vld [vmem:[#allocation2 + $0x54] sm:$0xff]
      %v2621 = vld [vmem:[#allocation2 + $0x5c] sm:$0xff]
      %v2622 = vld [vmem:[#allocation2 + $0x64] sm:$0xff]
      %v2623 = vld [vmem:[#allocation2 + $0x6c] sm:$0xff]
      %v2624 = vld [vmem:[#allocation2 + $0x74] sm:$0xff]
      %v2625 = vld [vmem:[#allocation2 + $0x7c] sm:$0xff]
      %v2626 = vld [vmem:[#allocation2 + $0x84] sm:$0xff]
      %v2627 = vld [vmem:[#allocation2 + $0x8c] sm:$0xff]
      %v2628 = vld [vmem:[#allocation2 + $0x94] sm:$0xff]
      %v2629 = vld [vmem:[#allocation2 + $0x9c] sm:$0xff]
      %v2630 = vld [vmem:[#allocation2 + $0xa4] sm:$0xff]
      %v2631 = vld [vmem:[#allocation2 + $0xac] sm:$0xff]
      %v2632 = vld [vmem:[#allocation2 + $0xb4] sm:$0xff]
      %v2633 = vld [vmem:[#allocation2 + $0xbc] sm:$0xff]
      %v2634 = vld [vmem:[#allocation2 + $0xc4] sm:$0xff]
      %v2635 = vld [vmem:[#allocation2 + $0xcc] sm:$0xff]
      %v2636 = vld [vmem:[#allocation2 + $0xd4] sm:$0xff]
      %v2637 = vld [vmem:[#allocation2 + $0xdc] sm:$0xff]
      %v2638 = vld [vmem:[#allocation2 + $0xe4] sm:$0xff]
      %v2639 = vld [vmem:[#allocation2 + $0xec] sm:$0xff]
      %v2640 = vld [vmem:[#allocation2 + $0xf4] sm:$0xff]
      %v2641 = vld [vmem:[#allocation2 + $0xfc] sm:$0xff]
      %v2642 = vld [vmem:[#allocation2 + $0x104] sm:$0xff]
      %v2643 = vld [vmem:[#allocation2 + $0x10c] sm:$0xff]
      %v2644 = vld [vmem:[#allocation2 + $0x114] sm:$0xff]
      %v2645 = vld [vmem:[#allocation2 + $0x11c] sm:$0xff]
      %v2646 = vld [vmem:[#allocation2 + $0x124] sm:$0xff]
      %v2647 = vld [vmem:[#allocation2 + $0x12c] sm:$0xff]
      %v2648 = vld [vmem:[#allocation2 + $0x134] sm:$0xff]
      %v2649 = vld [vmem:[#allocation2 + $0x13c] sm:$0xff]
      %v2650 = vld [vmem:[#allocation2 + $0x144] sm:$0xff]
      %v2651 = vld [vmem:[#allocation2 + $0x14c] sm:$0xff]
      %v2652 = vld [vmem:[#allocation2 + $0x154] sm:$0xff]
      %v2653 = vld [vmem:[#allocation2 + $0x15c] sm:$0xff]
      %v2654 = vld [vmem:[#allocation2 + $0x164] sm:$0xff]
      %v2655 = vld [vmem:[#allocation2 + $0x16c] sm:$0xff]
      %v2656 = vld [vmem:[#allocation2 + $0x174] sm:$0xff]
      %v2657 = vld [vmem:[#allocation2 + $0x17c] sm:$0xff]
      %v2658 = vld [vmem:[#allocation2 + $0x184] sm:$0xff]
      %v2659 = vld [vmem:[#allocation2 + $0x18c] sm:$0xff]
      %v2660 = vld [vmem:[#allocation2 + $0x194] sm:$0xff]
      %v2661 = vld [vmem:[#allocation2 + $0x19c] sm:$0xff]
      %v2662 = vld [vmem:[#allocation2 + $0x1a4] sm:$0xff]
      %v2663 = vld [vmem:[#allocation2 + $0x1ac] sm:$0xff]
      %v2664 = vld [vmem:[#allocation2 + $0x1b4] sm:$0xff]
      %v2665 = vld [vmem:[#allocation2 + $0x1bc] sm:$0xff]
      %v2666 = vld [vmem:[#allocation2 + $0x1c4] sm:$0xff]
      %v2667 = vld [vmem:[#allocation2 + $0x1cc] sm:$0xff]
      %v2668 = vld [vmem:[#allocation2 + $0x1d4] sm:$0xff]
      %v2669 = vld [vmem:[#allocation2 + $0x1dc] sm:$0xff]
      %v2670 = vld [vmem:[#allocation2 + $0x1e4] sm:$0xff]
      %v2671 = vld [vmem:[#allocation2 + $0x1ec] sm:$0xff]
      %v2672 = vld [vmem:[#allocation2 + $0x1f4] sm:$0xff]
      %v2673 = vld [vmem:[#allocation2 + $0x1fc] sm:$0xff]
      %v2674 = vld [vmem:[#allocation2 + $0x204] sm:$0xff]
      %v2675 = vld [vmem:[#allocation2 + $0x20c] sm:$0xff]
      %v2676 = vpack.c.bf16 %v2613, %v2612
      %v2677 = vpack.c.bf16 %v2615, %v2614
      %v2678 = vpack.c.bf16 %v2617, %v2616
      %v2679 = vpack.c.bf16 %v2619, %v2618
      %v2680 = vpack.c.bf16 %v2621, %v2620
      %v2681 = vpack.c.bf16 %v2623, %v2622
      %v2682 = vpack.c.bf16 %v2625, %v2624
      %v2683 = vpack.c.bf16 %v2627, %v2626
      %v2684 = vpack.c.bf16 %v2629, %v2628
      %v2685 = vpack.c.bf16 %v2631, %v2630
      %v2686 = vpack.c.bf16 %v2633, %v2632
      %v2687 = vpack.c.bf16 %v2635, %v2634
      %v2688 = vpack.c.bf16 %v2637, %v2636
      %v2689 = vpack.c.bf16 %v2639, %v2638
      %v2690 = vpack.c.bf16 %v2641, %v2640
      %v2691 = vpack.c.bf16 %v2643, %v2642
      %v2692 = vpack.c.bf16 %v2645, %v2644
      %v2693 = vpack.c.bf16 %v2647, %v2646
      %v2694 = vpack.c.bf16 %v2649, %v2648
      %v2695 = vpack.c.bf16 %v2651, %v2650
      %v2696 = vpack.c.bf16 %v2653, %v2652
      %v2697 = vpack.c.bf16 %v2655, %v2654
      %v2698 = vpack.c.bf16 %v2657, %v2656
      %v2699 = vpack.c.bf16 %v2659, %v2658
      %v2700 = vpack.c.bf16 %v2661, %v2660
      %v2701 = vpack.c.bf16 %v2663, %v2662
      %v2702 = vpack.c.bf16 %v2665, %v2664
      %v2703 = vpack.c.bf16 %v2667, %v2666
      %v2704 = vpack.c.bf16 %v2669, %v2668
      %v2705 = vpack.c.bf16 %v2671, %v2670
      %v2706 = vpack.c.bf16 %v2673, %v2672
      %v2707 = vpack.c.bf16 %v2675, %v2674
      %v2708 = vld [vmem:[%s2 + $0xa0] sm:$0xf]
      %v2709 = vld [vmem:[%s2 + $0xa4] sm:$0xf]
      %v2710 = vld [vmem:[%s2 + $0xa8] sm:$0xf]
      %v2711 = vld [vmem:[%s2 + $0xac] sm:$0xf]
      %v2712 = vld [vmem:[%s2 + $0xb0] sm:$0xf]
      %v2713 = vld [vmem:[%s2 + $0xb4] sm:$0xf]
      %v2714 = vld [vmem:[%s2 + $0xb8] sm:$0xf]
      %v2715 = vld [vmem:[%s2 + $0xbc] sm:$0xf]
      %v2724 = vunpack.c.l.b16 %v2708
      %v2725 = vunpack.c.l.b16 %v2709
      %v2726 = vunpack.c.l.b16 %v2710
      %v2727 = vunpack.c.l.b16 %v2711
      %v2728 = vunpack.c.l.b16 %v2712
      %v2729 = vunpack.c.l.b16 %v2713
      %v2730 = vunpack.c.l.b16 %v2714
      %v2731 = vunpack.c.l.b16 %v2715
      %v2732 = vpack.c.b16 %v2725, %v2724
      %v2733 = vpack.c.b16 %v2727, %v2726
      %v2734 = vpack.c.b16 %v2729, %v2728
      %v2735 = vpack.c.b16 %v2731, %v2730
      %v2741 = vsel %vm366, %v2676, 0
      %v2744 = vsel %vm366, %v2677, 0
      %v2747 = vsel %vm366, %v2678, 0
      %v2750 = vsel %vm366, %v2679, 0
      %v2753 = vsel %vm366, %v2680, 0
      %v2756 = vsel %vm366, %v2681, 0
      %v2759 = vsel %vm366, %v2682, 0
      %v2762 = vsel %vm366, %v2683, 0
      %v2765 = vsel %vm366, %v2684, 0
      %v2768 = vsel %vm366, %v2685, 0
      %v2771 = vsel %vm366, %v2686, 0
      %v2774 = vsel %vm366, %v2687, 0
      %v2777 = vsel %vm366, %v2688, 0
      %v2780 = vsel %vm366, %v2689, 0
      %v2783 = vsel %vm366, %v2690, 0
      %v2786 = vsel %vm366, %v2691, 0
      %v2789 = vsel %vm366, %v2692, 0
      %v2792 = vsel %vm366, %v2693, 0
      %v2795 = vsel %vm366, %v2694, 0
      %v2798 = vsel %vm366, %v2695, 0
      %v2801 = vsel %vm366, %v2696, 0
      %v2804 = vsel %vm366, %v2697, 0
      %v2807 = vsel %vm366, %v2698, 0
      %v2810 = vsel %vm366, %v2699, 0
      %v2813 = vsel %vm366, %v2700, 0
      %v2816 = vsel %vm366, %v2701, 0
      %v2819 = vsel %vm366, %v2702, 0
      %v2822 = vsel %vm366, %v2703, 0
      %v2825 = vsel %vm366, %v2704, 0
      %v2828 = vsel %vm366, %v2705, 0
      %v2831 = vsel %vm366, %v2706, 0
      %v2834 = vsel %vm366, %v2707, 0
      %2836 = vmatpush.bf16.msra.mxu0 0
      %2837 = vmatpush.bf16.msra.mxu0 0
      %2838 = vmatpush.bf16.msra.mxu0 0
      %2839 = vmatpush.bf16.msra.mxu0 0
      %2840 = vmatpush.bf16.msra.mxu0 %v2735
      %2841 = vmatpush.bf16.msra.mxu0 %v2734
      %2842 = vmatpush.bf16.msra.mxu0 %v2733
      %2843 = vmatpush.bf16.msra.mxu0 %v2732
      %2844 = vmatmul.bf16.gmra.mxu0 %v2741
      %v2845 = vpop.f32.mrf.mxu0
      %v2846 = vadd.f32 0.0, %v2845
      %v2847 = vpop.f32.mrf.mxu0
      %v2848 = vadd.f32 0.0, %v2847
      %2849 = vmatmul.bf16.gmra.mxu0 %v2744
      %v2850 = vpop.f32.mrf.mxu0
      %v2851 = vadd.f32 0.0, %v2850
      %v2852 = vpop.f32.mrf.mxu0
      %v2853 = vadd.f32 0.0, %v2852
      %2854 = vmatmul.bf16.gmra.mxu0 %v2747
      %v2855 = vpop.f32.mrf.mxu0
      %v2856 = vadd.f32 0.0, %v2855
      %v2857 = vpop.f32.mrf.mxu0
      %v2858 = vadd.f32 0.0, %v2857
      %2859 = vmatmul.bf16.gmra.mxu0 %v2750
      %v2860 = vpop.f32.mrf.mxu0
      %v2861 = vadd.f32 0.0, %v2860
      %v2862 = vpop.f32.mrf.mxu0
      %v2863 = vadd.f32 0.0, %v2862
      %2864 = vmatmul.bf16.gmra.mxu0 %v2753
      %v2865 = vpop.f32.mrf.mxu0
      %v2866 = vadd.f32 0.0, %v2865
      %v2867 = vpop.f32.mrf.mxu0
      %v2868 = vadd.f32 0.0, %v2867
      %2869 = vmatmul.bf16.gmra.mxu0 %v2756
      %v2870 = vpop.f32.mrf.mxu0
      %v2871 = vadd.f32 0.0, %v2870
      %v2872 = vpop.f32.mrf.mxu0
      %v2873 = vadd.f32 0.0, %v2872
      %2874 = vmatmul.bf16.gmra.mxu0 %v2759
      %v2875 = vpop.f32.mrf.mxu0
      %v2876 = vadd.f32 0.0, %v2875
      %v2877 = vpop.f32.mrf.mxu0
      %v2878 = vadd.f32 0.0, %v2877
      %2879 = vmatmul.bf16.gmra.mxu0 %v2762
      %v2880 = vpop.f32.mrf.mxu0
      %v2881 = vadd.f32 0.0, %v2880
      %v2882 = vpop.f32.mrf.mxu0
      %v2883 = vadd.f32 0.0, %v2882
      %2884 = vmatmul.bf16.gmra.mxu0 %v2765
      %v2885 = vpop.f32.mrf.mxu0
      %v2886 = vadd.f32 0.0, %v2885
      %v2887 = vpop.f32.mrf.mxu0
      %v2888 = vadd.f32 0.0, %v2887
      %2889 = vmatmul.bf16.gmra.mxu0 %v2768
      %v2890 = vpop.f32.mrf.mxu0
      %v2891 = vadd.f32 0.0, %v2890
      %v2892 = vpop.f32.mrf.mxu0
      %v2893 = vadd.f32 0.0, %v2892
      %2894 = vmatmul.bf16.gmra.mxu0 %v2771
      %v2895 = vpop.f32.mrf.mxu0
      %v2896 = vadd.f32 0.0, %v2895
      %v2897 = vpop.f32.mrf.mxu0
      %v2898 = vadd.f32 0.0, %v2897
      %2899 = vmatmul.bf16.gmra.mxu0 %v2774
      %v2900 = vpop.f32.mrf.mxu0
      %v2901 = vadd.f32 0.0, %v2900
      %v2902 = vpop.f32.mrf.mxu0
      %v2903 = vadd.f32 0.0, %v2902
      %2904 = vmatmul.bf16.gmra.mxu0 %v2777
      %v2905 = vpop.f32.mrf.mxu0
      %v2906 = vadd.f32 0.0, %v2905
      %v2907 = vpop.f32.mrf.mxu0
      %v2908 = vadd.f32 0.0, %v2907
      %2909 = vmatmul.bf16.gmra.mxu0 %v2780
      %v2910 = vpop.f32.mrf.mxu0
      %v2911 = vadd.f32 0.0, %v2910
      %v2912 = vpop.f32.mrf.mxu0
      %v2913 = vadd.f32 0.0, %v2912
      %2914 = vmatmul.bf16.gmra.mxu0 %v2783
      %v2915 = vpop.f32.mrf.mxu0
      %v2916 = vadd.f32 0.0, %v2915
      %v2917 = vpop.f32.mrf.mxu0
      %v2918 = vadd.f32 0.0, %v2917
      %2919 = vmatmul.bf16.gmra.mxu0 %v2786
      %v2920 = vpop.f32.mrf.mxu0
      %v2921 = vadd.f32 0.0, %v2920
      %v2922 = vpop.f32.mrf.mxu0
      %v2923 = vadd.f32 0.0, %v2922
      %2924 = vmatmul.bf16.gmra.mxu0 %v2789
      %v2925 = vpop.f32.mrf.mxu0
      %v2926 = vadd.f32 0.0, %v2925
      %v2927 = vpop.f32.mrf.mxu0
      %v2928 = vadd.f32 0.0, %v2927
      %2929 = vmatmul.bf16.gmra.mxu0 %v2792
      %v2930 = vpop.f32.mrf.mxu0
      %v2931 = vadd.f32 0.0, %v2930
      %v2932 = vpop.f32.mrf.mxu0
      %v2933 = vadd.f32 0.0, %v2932
      %2934 = vmatmul.bf16.gmra.mxu0 %v2795
      %v2935 = vpop.f32.mrf.mxu0
      %v2936 = vadd.f32 0.0, %v2935
      %v2937 = vpop.f32.mrf.mxu0
      %v2938 = vadd.f32 0.0, %v2937
      %2939 = vmatmul.bf16.gmra.mxu0 %v2798
      %v2940 = vpop.f32.mrf.mxu0
      %v2941 = vadd.f32 0.0, %v2940
      %v2942 = vpop.f32.mrf.mxu0
      %v2943 = vadd.f32 0.0, %v2942
      %2944 = vmatmul.bf16.gmra.mxu0 %v2801
      %v2945 = vpop.f32.mrf.mxu0
      %v2946 = vadd.f32 0.0, %v2945
      %v2947 = vpop.f32.mrf.mxu0
      %v2948 = vadd.f32 0.0, %v2947
      %2949 = vmatmul.bf16.gmra.mxu0 %v2804
      %v2950 = vpop.f32.mrf.mxu0
      %v2951 = vadd.f32 0.0, %v2950
      %v2952 = vpop.f32.mrf.mxu0
      %v2953 = vadd.f32 0.0, %v2952
      %2954 = vmatmul.bf16.gmra.mxu0 %v2807
      %v2955 = vpop.f32.mrf.mxu0
      %v2956 = vadd.f32 0.0, %v2955
      %v2957 = vpop.f32.mrf.mxu0
      %v2958 = vadd.f32 0.0, %v2957
      %2959 = vmatmul.bf16.gmra.mxu0 %v2810
      %v2960 = vpop.f32.mrf.mxu0
      %v2961 = vadd.f32 0.0, %v2960
      %v2962 = vpop.f32.mrf.mxu0
      %v2963 = vadd.f32 0.0, %v2962
      %2964 = vmatmul.bf16.gmra.mxu0 %v2813
      %v2965 = vpop.f32.mrf.mxu0
      %v2966 = vadd.f32 0.0, %v2965
      %v2967 = vpop.f32.mrf.mxu0
      %v2968 = vadd.f32 0.0, %v2967
      %2969 = vmatmul.bf16.gmra.mxu0 %v2816
      %v2970 = vpop.f32.mrf.mxu0
      %v2971 = vadd.f32 0.0, %v2970
      %v2972 = vpop.f32.mrf.mxu0
      %v2973 = vadd.f32 0.0, %v2972
      %2974 = vmatmul.bf16.gmra.mxu0 %v2819
      %v2975 = vpop.f32.mrf.mxu0
      %v2976 = vadd.f32 0.0, %v2975
      %v2977 = vpop.f32.mrf.mxu0
      %v2978 = vadd.f32 0.0, %v2977
      %2979 = vmatmul.bf16.gmra.mxu0 %v2822
      %v2980 = vpop.f32.mrf.mxu0
      %v2981 = vadd.f32 0.0, %v2980
      %v2982 = vpop.f32.mrf.mxu0
      %v2983 = vadd.f32 0.0, %v2982
      %2984 = vmatmul.bf16.gmra.mxu0 %v2825
      %v2985 = vpop.f32.mrf.mxu0
      %v2986 = vadd.f32 0.0, %v2985
      %v2987 = vpop.f32.mrf.mxu0
      %v2988 = vadd.f32 0.0, %v2987
      %2989 = vmatmul.bf16.gmra.mxu0 %v2828
      %v2990 = vpop.f32.mrf.mxu0
      %v2991 = vadd.f32 0.0, %v2990
      %v2992 = vpop.f32.mrf.mxu0
      %v2993 = vadd.f32 0.0, %v2992
      %2994 = vmatmul.bf16.gmra.mxu0 %v2831
      %v2995 = vpop.f32.mrf.mxu0
      %v2996 = vadd.f32 0.0, %v2995
      %v2997 = vpop.f32.mrf.mxu0
      %v2998 = vadd.f32 0.0, %v2997
      %2999 = vmatmul.bf16.gmra.mxu0 %v2834
      %v3000 = vpop.f32.mrf.mxu0
      %v3001 = vadd.f32 0.0, %v3000
      %v3002 = vpop.f32.mrf.mxu0
      %v3003 = vadd.f32 0.0, %v3002
      %3004 = vdwg.mxu0
      %v3005 = vadd.f32 %v2548, %v2846
      %v3006 = vadd.f32 %v2549, %v2848
      %v3007 = vadd.f32 %v2550, %v2851
      %v3008 = vadd.f32 %v2551, %v2853
      %v3009 = vadd.f32 %v2552, %v2856
      %v3010 = vadd.f32 %v2553, %v2858
      %v3011 = vadd.f32 %v2554, %v2861
      %v3012 = vadd.f32 %v2555, %v2863
      %v3013 = vadd.f32 %v2556, %v2866
      %v3014 = vadd.f32 %v2557, %v2868
      %v3015 = vadd.f32 %v2558, %v2871
      %v3016 = vadd.f32 %v2559, %v2873
      %v3017 = vadd.f32 %v2560, %v2876
      %v3018 = vadd.f32 %v2561, %v2878
      %v3019 = vadd.f32 %v2562, %v2881
      %v3020 = vadd.f32 %v2563, %v2883
      %v3021 = vadd.f32 %v2564, %v2886
      %v3022 = vadd.f32 %v2565, %v2888
      %v3023 = vadd.f32 %v2566, %v2891
      %v3024 = vadd.f32 %v2567, %v2893
      %v3025 = vadd.f32 %v2568, %v2896
      %v3026 = vadd.f32 %v2569, %v2898
      %v3027 = vadd.f32 %v2570, %v2901
      %v3028 = vadd.f32 %v2571, %v2903
      %v3029 = vadd.f32 %v2572, %v2906
      %v3030 = vadd.f32 %v2573, %v2908
      %v3031 = vadd.f32 %v2574, %v2911
      %v3032 = vadd.f32 %v2575, %v2913
      %v3033 = vadd.f32 %v2576, %v2916
      %v3034 = vadd.f32 %v2577, %v2918
      %v3035 = vadd.f32 %v2578, %v2921
      %v3036 = vadd.f32 %v2579, %v2923
      %v3037 = vadd.f32 %v2580, %v2926
      %v3038 = vadd.f32 %v2581, %v2928
      %v3039 = vadd.f32 %v2582, %v2931
      %v3040 = vadd.f32 %v2583, %v2933
      %v3041 = vadd.f32 %v2584, %v2936
      %v3042 = vadd.f32 %v2585, %v2938
      %v3043 = vadd.f32 %v2586, %v2941
      %v3044 = vadd.f32 %v2587, %v2943
      %v3045 = vadd.f32 %v2588, %v2946
      %v3046 = vadd.f32 %v2589, %v2948
      %v3047 = vadd.f32 %v2590, %v2951
      %v3048 = vadd.f32 %v2591, %v2953
      %v3049 = vadd.f32 %v2592, %v2956
      %v3050 = vadd.f32 %v2593, %v2958
      %v3051 = vadd.f32 %v2594, %v2961
      %v3052 = vadd.f32 %v2595, %v2963
      %v3053 = vadd.f32 %v2596, %v2966
      %v3054 = vadd.f32 %v2597, %v2968
      %v3055 = vadd.f32 %v2598, %v2971
      %v3056 = vadd.f32 %v2599, %v2973
      %v3057 = vadd.f32 %v2600, %v2976
      %v3058 = vadd.f32 %v2601, %v2978
      %v3059 = vadd.f32 %v2602, %v2981
      %v3060 = vadd.f32 %v2603, %v2983
      %v3061 = vadd.f32 %v2604, %v2986
      %v3062 = vadd.f32 %v2605, %v2988
      %v3063 = vadd.f32 %v2606, %v2991
      %v3064 = vadd.f32 %v2607, %v2993
      %v3065 = vadd.f32 %v2608, %v2996
      %v3066 = vadd.f32 %v2609, %v2998
      %v3067 = vadd.f32 %v2610, %v3001
      %v3068 = vadd.f32 %v2611, %v3003
      %v3069 = vld [vmem:[#allocation2 + $0x24] sm:$0xff]
      %v3070 = vld [vmem:[#allocation2 + $0x2c] sm:$0xff]
      %v3071 = vld [vmem:[#allocation2 + $0x34] sm:$0xff]
      %v3072 = vld [vmem:[#allocation2 + $0x3c] sm:$0xff]
      %v3073 = vld [vmem:[#allocation2 + $0x44] sm:$0xff]
      %v3074 = vld [vmem:[#allocation2 + $0x4c] sm:$0xff]
      %v3075 = vld [vmem:[#allocation2 + $0x54] sm:$0xff]
      %v3076 = vld [vmem:[#allocation2 + $0x5c] sm:$0xff]
      %v3077 = vld [vmem:[#allocation2 + $0x64] sm:$0xff]
      %v3078 = vld [vmem:[#allocation2 + $0x6c] sm:$0xff]
      %v3079 = vld [vmem:[#allocation2 + $0x74] sm:$0xff]
      %v3080 = vld [vmem:[#allocation2 + $0x7c] sm:$0xff]
      %v3081 = vld [vmem:[#allocation2 + $0x84] sm:$0xff]
      %v3082 = vld [vmem:[#allocation2 + $0x8c] sm:$0xff]
      %v3083 = vld [vmem:[#allocation2 + $0x94] sm:$0xff]
      %v3084 = vld [vmem:[#allocation2 + $0x9c] sm:$0xff]
      %v3085 = vld [vmem:[#allocation2 + $0xa4] sm:$0xff]
      %v3086 = vld [vmem:[#allocation2 + $0xac] sm:$0xff]
      %v3087 = vld [vmem:[#allocation2 + $0xb4] sm:$0xff]
      %v3088 = vld [vmem:[#allocation2 + $0xbc] sm:$0xff]
      %v3089 = vld [vmem:[#allocation2 + $0xc4] sm:$0xff]
      %v3090 = vld [vmem:[#allocation2 + $0xcc] sm:$0xff]
      %v3091 = vld [vmem:[#allocation2 + $0xd4] sm:$0xff]
      %v3092 = vld [vmem:[#allocation2 + $0xdc] sm:$0xff]
      %v3093 = vld [vmem:[#allocation2 + $0xe4] sm:$0xff]
      %v3094 = vld [vmem:[#allocation2 + $0xec] sm:$0xff]
      %v3095 = vld [vmem:[#allocation2 + $0xf4] sm:$0xff]
      %v3096 = vld [vmem:[#allocation2 + $0xfc] sm:$0xff]
      %v3097 = vld [vmem:[#allocation2 + $0x104] sm:$0xff]
      %v3098 = vld [vmem:[#allocation2 + $0x10c] sm:$0xff]
      %v3099 = vld [vmem:[#allocation2 + $0x114] sm:$0xff]
      %v3100 = vld [vmem:[#allocation2 + $0x11c] sm:$0xff]
      %v3101 = vld [vmem:[#allocation2 + $0x124] sm:$0xff]
      %v3102 = vld [vmem:[#allocation2 + $0x12c] sm:$0xff]
      %v3103 = vld [vmem:[#allocation2 + $0x134] sm:$0xff]
      %v3104 = vld [vmem:[#allocation2 + $0x13c] sm:$0xff]
      %v3105 = vld [vmem:[#allocation2 + $0x144] sm:$0xff]
      %v3106 = vld [vmem:[#allocation2 + $0x14c] sm:$0xff]
      %v3107 = vld [vmem:[#allocation2 + $0x154] sm:$0xff]
      %v3108 = vld [vmem:[#allocation2 + $0x15c] sm:$0xff]
      %v3109 = vld [vmem:[#allocation2 + $0x164] sm:$0xff]
      %v3110 = vld [vmem:[#allocation2 + $0x16c] sm:$0xff]
      %v3111 = vld [vmem:[#allocation2 + $0x174] sm:$0xff]
      %v3112 = vld [vmem:[#allocation2 + $0x17c] sm:$0xff]
      %v3113 = vld [vmem:[#allocation2 + $0x184] sm:$0xff]
      %v3114 = vld [vmem:[#allocation2 + $0x18c] sm:$0xff]
      %v3115 = vld [vmem:[#allocation2 + $0x194] sm:$0xff]
      %v3116 = vld [vmem:[#allocation2 + $0x19c] sm:$0xff]
      %v3117 = vld [vmem:[#allocation2 + $0x1a4] sm:$0xff]
      %v3118 = vld [vmem:[#allocation2 + $0x1ac] sm:$0xff]
      %v3119 = vld [vmem:[#allocation2 + $0x1b4] sm:$0xff]
      %v3120 = vld [vmem:[#allocation2 + $0x1bc] sm:$0xff]
      %v3121 = vld [vmem:[#allocation2 + $0x1c4] sm:$0xff]
      %v3122 = vld [vmem:[#allocation2 + $0x1cc] sm:$0xff]
      %v3123 = vld [vmem:[#allocation2 + $0x1d4] sm:$0xff]
      %v3124 = vld [vmem:[#allocation2 + $0x1dc] sm:$0xff]
      %v3125 = vld [vmem:[#allocation2 + $0x1e4] sm:$0xff]
      %v3126 = vld [vmem:[#allocation2 + $0x1ec] sm:$0xff]
      %v3127 = vld [vmem:[#allocation2 + $0x1f4] sm:$0xff]
      %v3128 = vld [vmem:[#allocation2 + $0x1fc] sm:$0xff]
      %v3129 = vld [vmem:[#allocation2 + $0x204] sm:$0xff]
      %v3130 = vld [vmem:[#allocation2 + $0x20c] sm:$0xff]
      %v3131 = vld [vmem:[#allocation2 + $0x214] sm:$0xff]
      %v3132 = vld [vmem:[#allocation2 + $0x21c] sm:$0xff]
      %v3133 = vpack.c.bf16 %v3070, %v3069
      %v3134 = vpack.c.bf16 %v3072, %v3071
      %v3135 = vpack.c.bf16 %v3074, %v3073
      %v3136 = vpack.c.bf16 %v3076, %v3075
      %v3137 = vpack.c.bf16 %v3078, %v3077
      %v3138 = vpack.c.bf16 %v3080, %v3079
      %v3139 = vpack.c.bf16 %v3082, %v3081
      %v3140 = vpack.c.bf16 %v3084, %v3083
      %v3141 = vpack.c.bf16 %v3086, %v3085
      %v3142 = vpack.c.bf16 %v3088, %v3087
      %v3143 = vpack.c.bf16 %v3090, %v3089
      %v3144 = vpack.c.bf16 %v3092, %v3091
      %v3145 = vpack.c.bf16 %v3094, %v3093
      %v3146 = vpack.c.bf16 %v3096, %v3095
      %v3147 = vpack.c.bf16 %v3098, %v3097
      %v3148 = vpack.c.bf16 %v3100, %v3099
      %v3149 = vpack.c.bf16 %v3102, %v3101
      %v3150 = vpack.c.bf16 %v3104, %v3103
      %v3151 = vpack.c.bf16 %v3106, %v3105
      %v3152 = vpack.c.bf16 %v3108, %v3107
      %v3153 = vpack.c.bf16 %v3110, %v3109
      %v3154 = vpack.c.bf16 %v3112, %v3111
      %v3155 = vpack.c.bf16 %v3114, %v3113
      %v3156 = vpack.c.bf16 %v3116, %v3115
      %v3157 = vpack.c.bf16 %v3118, %v3117
      %v3158 = vpack.c.bf16 %v3120, %v3119
      %v3159 = vpack.c.bf16 %v3122, %v3121
      %v3160 = vpack.c.bf16 %v3124, %v3123
      %v3161 = vpack.c.bf16 %v3126, %v3125
      %v3162 = vpack.c.bf16 %v3128, %v3127
      %v3163 = vpack.c.bf16 %v3130, %v3129
      %v3164 = vpack.c.bf16 %v3132, %v3131
      %v3165 = vld [vmem:[%s2 + $0xc0] sm:$0xf]
      %v3166 = vld [vmem:[%s2 + $0xc4] sm:$0xf]
      %v3167 = vld [vmem:[%s2 + $0xc8] sm:$0xf]
      %v3168 = vld [vmem:[%s2 + $0xcc] sm:$0xf]
      %v3169 = vld [vmem:[%s2 + $0xd0] sm:$0xf]
      %v3170 = vld [vmem:[%s2 + $0xd4] sm:$0xf]
      %v3171 = vld [vmem:[%s2 + $0xd8] sm:$0xf]
      %v3172 = vld [vmem:[%s2 + $0xdc] sm:$0xf]
      %v3181 = vunpack.c.l.b16 %v3165
      %v3182 = vunpack.c.l.b16 %v3166
      %v3183 = vunpack.c.l.b16 %v3167
      %v3184 = vunpack.c.l.b16 %v3168
      %v3185 = vunpack.c.l.b16 %v3169
      %v3186 = vunpack.c.l.b16 %v3170
      %v3187 = vunpack.c.l.b16 %v3171
      %v3188 = vunpack.c.l.b16 %v3172
      %v3189 = vpack.c.b16 %v3182, %v3181
      %v3190 = vpack.c.b16 %v3184, %v3183
      %v3191 = vpack.c.b16 %v3186, %v3185
      %v3192 = vpack.c.b16 %v3188, %v3187
      %v3198 = vsel %vm366, %v3133, 0
      %v3201 = vsel %vm366, %v3134, 0
      %v3204 = vsel %vm366, %v3135, 0
      %v3207 = vsel %vm366, %v3136, 0
      %v3210 = vsel %vm366, %v3137, 0
      %v3213 = vsel %vm366, %v3138, 0
      %v3216 = vsel %vm366, %v3139, 0
      %v3219 = vsel %vm366, %v3140, 0
      %v3222 = vsel %vm366, %v3141, 0
      %v3225 = vsel %vm366, %v3142, 0
      %v3228 = vsel %vm366, %v3143, 0
      %v3231 = vsel %vm366, %v3144, 0
      %v3234 = vsel %vm366, %v3145, 0
      %v3237 = vsel %vm366, %v3146, 0
      %v3240 = vsel %vm366, %v3147, 0
      %v3243 = vsel %vm366, %v3148, 0
      %v3246 = vsel %vm366, %v3149, 0
      %v3249 = vsel %vm366, %v3150, 0
      %v3252 = vsel %vm366, %v3151, 0
      %v3255 = vsel %vm366, %v3152, 0
      %v3258 = vsel %vm366, %v3153, 0
      %v3261 = vsel %vm366, %v3154, 0
      %v3264 = vsel %vm366, %v3155, 0
      %v3267 = vsel %vm366, %v3156, 0
      %v3270 = vsel %vm366, %v3157, 0
      %v3273 = vsel %vm366, %v3158, 0
      %v3276 = vsel %vm366, %v3159, 0
      %v3279 = vsel %vm366, %v3160, 0
      %v3282 = vsel %vm366, %v3161, 0
      %v3285 = vsel %vm366, %v3162, 0
      %v3288 = vsel %vm366, %v3163, 0
      %v3291 = vsel %vm366, %v3164, 0
      %3293 = vmatpush.bf16.msra.mxu0 0
      %3294 = vmatpush.bf16.msra.mxu0 0
      %3295 = vmatpush.bf16.msra.mxu0 0
      %3296 = vmatpush.bf16.msra.mxu0 0
      %3297 = vmatpush.bf16.msra.mxu0 %v3192
      %3298 = vmatpush.bf16.msra.mxu0 %v3191
      %3299 = vmatpush.bf16.msra.mxu0 %v3190
      %3300 = vmatpush.bf16.msra.mxu0 %v3189
      %3301 = vmatmul.bf16.gmra.mxu0 %v3198
      %v3302 = vpop.f32.mrf.mxu0
      %v3303 = vadd.f32 0.0, %v3302
      %v3304 = vpop.f32.mrf.mxu0
      %v3305 = vadd.f32 0.0, %v3304
      %3306 = vmatmul.bf16.gmra.mxu0 %v3201
      %v3307 = vpop.f32.mrf.mxu0
      %v3308 = vadd.f32 0.0, %v3307
      %v3309 = vpop.f32.mrf.mxu0
      %v3310 = vadd.f32 0.0, %v3309
      %3311 = vmatmul.bf16.gmra.mxu0 %v3204
      %v3312 = vpop.f32.mrf.mxu0
      %v3313 = vadd.f32 0.0, %v3312
      %v3314 = vpop.f32.mrf.mxu0
      %v3315 = vadd.f32 0.0, %v3314
      %3316 = vmatmul.bf16.gmra.mxu0 %v3207
      %v3317 = vpop.f32.mrf.mxu0
      %v3318 = vadd.f32 0.0, %v3317
      %v3319 = vpop.f32.mrf.mxu0
      %v3320 = vadd.f32 0.0, %v3319
      %3321 = vmatmul.bf16.gmra.mxu0 %v3210
      %v3322 = vpop.f32.mrf.mxu0
      %v3323 = vadd.f32 0.0, %v3322
      %v3324 = vpop.f32.mrf.mxu0
      %v3325 = vadd.f32 0.0, %v3324
      %3326 = vmatmul.bf16.gmra.mxu0 %v3213
      %v3327 = vpop.f32.mrf.mxu0
      %v3328 = vadd.f32 0.0, %v3327
      %v3329 = vpop.f32.mrf.mxu0
      %v3330 = vadd.f32 0.0, %v3329
      %3331 = vmatmul.bf16.gmra.mxu0 %v3216
      %v3332 = vpop.f32.mrf.mxu0
      %v3333 = vadd.f32 0.0, %v3332
      %v3334 = vpop.f32.mrf.mxu0
      %v3335 = vadd.f32 0.0, %v3334
      %3336 = vmatmul.bf16.gmra.mxu0 %v3219
      %v3337 = vpop.f32.mrf.mxu0
      %v3338 = vadd.f32 0.0, %v3337
      %v3339 = vpop.f32.mrf.mxu0
      %v3340 = vadd.f32 0.0, %v3339
      %3341 = vmatmul.bf16.gmra.mxu0 %v3222
      %v3342 = vpop.f32.mrf.mxu0
      %v3343 = vadd.f32 0.0, %v3342
      %v3344 = vpop.f32.mrf.mxu0
      %v3345 = vadd.f32 0.0, %v3344
      %3346 = vmatmul.bf16.gmra.mxu0 %v3225
      %v3347 = vpop.f32.mrf.mxu0
      %v3348 = vadd.f32 0.0, %v3347
      %v3349 = vpop.f32.mrf.mxu0
      %v3350 = vadd.f32 0.0, %v3349
      %3351 = vmatmul.bf16.gmra.mxu0 %v3228
      %v3352 = vpop.f32.mrf.mxu0
      %v3353 = vadd.f32 0.0, %v3352
      %v3354 = vpop.f32.mrf.mxu0
      %v3355 = vadd.f32 0.0, %v3354
      %3356 = vmatmul.bf16.gmra.mxu0 %v3231
      %v3357 = vpop.f32.mrf.mxu0
      %v3358 = vadd.f32 0.0, %v3357
      %v3359 = vpop.f32.mrf.mxu0
      %v3360 = vadd.f32 0.0, %v3359
      %3361 = vmatmul.bf16.gmra.mxu0 %v3234
      %v3362 = vpop.f32.mrf.mxu0
      %v3363 = vadd.f32 0.0, %v3362
      %v3364 = vpop.f32.mrf.mxu0
      %v3365 = vadd.f32 0.0, %v3364
      %3366 = vmatmul.bf16.gmra.mxu0 %v3237
      %v3367 = vpop.f32.mrf.mxu0
      %v3368 = vadd.f32 0.0, %v3367
      %v3369 = vpop.f32.mrf.mxu0
      %v3370 = vadd.f32 0.0, %v3369
      %3371 = vmatmul.bf16.gmra.mxu0 %v3240
      %v3372 = vpop.f32.mrf.mxu0
      %v3373 = vadd.f32 0.0, %v3372
      %v3374 = vpop.f32.mrf.mxu0
      %v3375 = vadd.f32 0.0, %v3374
      %3376 = vmatmul.bf16.gmra.mxu0 %v3243
      %v3377 = vpop.f32.mrf.mxu0
      %v3378 = vadd.f32 0.0, %v3377
      %v3379 = vpop.f32.mrf.mxu0
      %v3380 = vadd.f32 0.0, %v3379
      %3381 = vmatmul.bf16.gmra.mxu0 %v3246
      %v3382 = vpop.f32.mrf.mxu0
      %v3383 = vadd.f32 0.0, %v3382
      %v3384 = vpop.f32.mrf.mxu0
      %v3385 = vadd.f32 0.0, %v3384
      %3386 = vmatmul.bf16.gmra.mxu0 %v3249
      %v3387 = vpop.f32.mrf.mxu0
      %v3388 = vadd.f32 0.0, %v3387
      %v3389 = vpop.f32.mrf.mxu0
      %v3390 = vadd.f32 0.0, %v3389
      %3391 = vmatmul.bf16.gmra.mxu0 %v3252
      %v3392 = vpop.f32.mrf.mxu0
      %v3393 = vadd.f32 0.0, %v3392
      %v3394 = vpop.f32.mrf.mxu0
      %v3395 = vadd.f32 0.0, %v3394
      %3396 = vmatmul.bf16.gmra.mxu0 %v3255
      %v3397 = vpop.f32.mrf.mxu0
      %v3398 = vadd.f32 0.0, %v3397
      %v3399 = vpop.f32.mrf.mxu0
      %v3400 = vadd.f32 0.0, %v3399
      %3401 = vmatmul.bf16.gmra.mxu0 %v3258
      %v3402 = vpop.f32.mrf.mxu0
      %v3403 = vadd.f32 0.0, %v3402
      %v3404 = vpop.f32.mrf.mxu0
      %v3405 = vadd.f32 0.0, %v3404
      %3406 = vmatmul.bf16.gmra.mxu0 %v3261
      %v3407 = vpop.f32.mrf.mxu0
      %v3408 = vadd.f32 0.0, %v3407
      %v3409 = vpop.f32.mrf.mxu0
      %v3410 = vadd.f32 0.0, %v3409
      %3411 = vmatmul.bf16.gmra.mxu0 %v3264
      %v3412 = vpop.f32.mrf.mxu0
      %v3413 = vadd.f32 0.0, %v3412
      %v3414 = vpop.f32.mrf.mxu0
      %v3415 = vadd.f32 0.0, %v3414
      %3416 = vmatmul.bf16.gmra.mxu0 %v3267
      %v3417 = vpop.f32.mrf.mxu0
      %v3418 = vadd.f32 0.0, %v3417
      %v3419 = vpop.f32.mrf.mxu0
      %v3420 = vadd.f32 0.0, %v3419
      %3421 = vmatmul.bf16.gmra.mxu0 %v3270
      %v3422 = vpop.f32.mrf.mxu0
      %v3423 = vadd.f32 0.0, %v3422
      %v3424 = vpop.f32.mrf.mxu0
      %v3425 = vadd.f32 0.0, %v3424
      %3426 = vmatmul.bf16.gmra.mxu0 %v3273
      %v3427 = vpop.f32.mrf.mxu0
      %v3428 = vadd.f32 0.0, %v3427
      %v3429 = vpop.f32.mrf.mxu0
      %v3430 = vadd.f32 0.0, %v3429
      %3431 = vmatmul.bf16.gmra.mxu0 %v3276
      %v3432 = vpop.f32.mrf.mxu0
      %v3433 = vadd.f32 0.0, %v3432
      %v3434 = vpop.f32.mrf.mxu0
      %v3435 = vadd.f32 0.0, %v3434
      %3436 = vmatmul.bf16.gmra.mxu0 %v3279
      %v3437 = vpop.f32.mrf.mxu0
      %v3438 = vadd.f32 0.0, %v3437
      %v3439 = vpop.f32.mrf.mxu0
      %v3440 = vadd.f32 0.0, %v3439
      %3441 = vmatmul.bf16.gmra.mxu0 %v3282
      %v3442 = vpop.f32.mrf.mxu0
      %v3443 = vadd.f32 0.0, %v3442
      %v3444 = vpop.f32.mrf.mxu0
      %v3445 = vadd.f32 0.0, %v3444
      %3446 = vmatmul.bf16.gmra.mxu0 %v3285
      %v3447 = vpop.f32.mrf.mxu0
      %v3448 = vadd.f32 0.0, %v3447
      %v3449 = vpop.f32.mrf.mxu0
      %v3450 = vadd.f32 0.0, %v3449
      %3451 = vmatmul.bf16.gmra.mxu0 %v3288
      %v3452 = vpop.f32.mrf.mxu0
      %v3453 = vadd.f32 0.0, %v3452
      %v3454 = vpop.f32.mrf.mxu0
      %v3455 = vadd.f32 0.0, %v3454
      %3456 = vmatmul.bf16.gmra.mxu0 %v3291
      %v3457 = vpop.f32.mrf.mxu0
      %v3458 = vadd.f32 0.0, %v3457
      %v3459 = vpop.f32.mrf.mxu0
      %v3460 = vadd.f32 0.0, %v3459
      %3461 = vdwg.mxu0
      %v3462 = vadd.f32 %v3005, %v3303
      %v3463 = vadd.f32 %v3006, %v3305
      %v3464 = vadd.f32 %v3007, %v3308
      %v3465 = vadd.f32 %v3008, %v3310
      %v3466 = vadd.f32 %v3009, %v3313
      %v3467 = vadd.f32 %v3010, %v3315
      %v3468 = vadd.f32 %v3011, %v3318
      %v3469 = vadd.f32 %v3012, %v3320
      %v3470 = vadd.f32 %v3013, %v3323
      %v3471 = vadd.f32 %v3014, %v3325
      %v3472 = vadd.f32 %v3015, %v3328
      %v3473 = vadd.f32 %v3016, %v3330
      %v3474 = vadd.f32 %v3017, %v3333
      %v3475 = vadd.f32 %v3018, %v3335
      %v3476 = vadd.f32 %v3019, %v3338
      %v3477 = vadd.f32 %v3020, %v3340
      %v3478 = vadd.f32 %v3021, %v3343
      %v3479 = vadd.f32 %v3022, %v3345
      %v3480 = vadd.f32 %v3023, %v3348
      %v3481 = vadd.f32 %v3024, %v3350
      %v3482 = vadd.f32 %v3025, %v3353
      %v3483 = vadd.f32 %v3026, %v3355
      %v3484 = vadd.f32 %v3027, %v3358
      %v3485 = vadd.f32 %v3028, %v3360
      %v3486 = vadd.f32 %v3029, %v3363
      %v3487 = vadd.f32 %v3030, %v3365
      %v3488 = vadd.f32 %v3031, %v3368
      %v3489 = vadd.f32 %v3032, %v3370
      %v3490 = vadd.f32 %v3033, %v3373
      %v3491 = vadd.f32 %v3034, %v3375
      %v3492 = vadd.f32 %v3035, %v3378
      %v3493 = vadd.f32 %v3036, %v3380
      %v3494 = vadd.f32 %v3037, %v3383
      %v3495 = vadd.f32 %v3038, %v3385
      %v3496 = vadd.f32 %v3039, %v3388
      %v3497 = vadd.f32 %v3040, %v3390
      %v3498 = vadd.f32 %v3041, %v3393
      %v3499 = vadd.f32 %v3042, %v3395
      %v3500 = vadd.f32 %v3043, %v3398
      %v3501 = vadd.f32 %v3044, %v3400
      %v3502 = vadd.f32 %v3045, %v3403
      %v3503 = vadd.f32 %v3046, %v3405
      %v3504 = vadd.f32 %v3047, %v3408
      %v3505 = vadd.f32 %v3048, %v3410
      %v3506 = vadd.f32 %v3049, %v3413
      %v3507 = vadd.f32 %v3050, %v3415
      %v3508 = vadd.f32 %v3051, %v3418
      %v3509 = vadd.f32 %v3052, %v3420
      %v3510 = vadd.f32 %v3053, %v3423
      %v3511 = vadd.f32 %v3054, %v3425
      %v3512 = vadd.f32 %v3055, %v3428
      %v3513 = vadd.f32 %v3056, %v3430
      %v3514 = vadd.f32 %v3057, %v3433
      %v3515 = vadd.f32 %v3058, %v3435
      %v3516 = vadd.f32 %v3059, %v3438
      %v3517 = vadd.f32 %v3060, %v3440
      %v3518 = vadd.f32 %v3061, %v3443
      %v3519 = vadd.f32 %v3062, %v3445
      %v3520 = vadd.f32 %v3063, %v3448
      %v3521 = vadd.f32 %v3064, %v3450
      %v3522 = vadd.f32 %v3065, %v3453
      %v3523 = vadd.f32 %v3066, %v3455
      %v3524 = vadd.f32 %v3067, %v3458
      %v3525 = vadd.f32 %v3068, %v3460
      %v3526 = vld [vmem:[#allocation2 + $0x25] sm:$0xff]
      %v3527 = vld [vmem:[#allocation2 + $0x2d] sm:$0xff]
      %v3528 = vld [vmem:[#allocation2 + $0x35] sm:$0xff]
      %v3529 = vld [vmem:[#allocation2 + $0x3d] sm:$0xff]
      %v3530 = vld [vmem:[#allocation2 + $0x45] sm:$0xff]
      %v3531 = vld [vmem:[#allocation2 + $0x4d] sm:$0xff]
      %v3532 = vld [vmem:[#allocation2 + $0x55] sm:$0xff]
      %v3533 = vld [vmem:[#allocation2 + $0x5d] sm:$0xff]
      %v3534 = vld [vmem:[#allocation2 + $0x65] sm:$0xff]
      %v3535 = vld [vmem:[#allocation2 + $0x6d] sm:$0xff]
      %v3536 = vld [vmem:[#allocation2 + $0x75] sm:$0xff]
      %v3537 = vld [vmem:[#allocation2 + $0x7d] sm:$0xff]
      %v3538 = vld [vmem:[#allocation2 + $0x85] sm:$0xff]
      %v3539 = vld [vmem:[#allocation2 + $0x8d] sm:$0xff]
      %v3540 = vld [vmem:[#allocation2 + $0x95] sm:$0xff]
      %v3541 = vld [vmem:[#allocation2 + $0x9d] sm:$0xff]
      %v3542 = vld [vmem:[#allocation2 + $0xa5] sm:$0xff]
      %v3543 = vld [vmem:[#allocation2 + $0xad] sm:$0xff]
      %v3544 = vld [vmem:[#allocation2 + $0xb5] sm:$0xff]
      %v3545 = vld [vmem:[#allocation2 + $0xbd] sm:$0xff]
      %v3546 = vld [vmem:[#allocation2 + $0xc5] sm:$0xff]
      %v3547 = vld [vmem:[#allocation2 + $0xcd] sm:$0xff]
      %v3548 = vld [vmem:[#allocation2 + $0xd5] sm:$0xff]
      %v3549 = vld [vmem:[#allocation2 + $0xdd] sm:$0xff]
      %v3550 = vld [vmem:[#allocation2 + $0xe5] sm:$0xff]
      %v3551 = vld [vmem:[#allocation2 + $0xed] sm:$0xff]
      %v3552 = vld [vmem:[#allocation2 + $0xf5] sm:$0xff]
      %v3553 = vld [vmem:[#allocation2 + $0xfd] sm:$0xff]
      %v3554 = vld [vmem:[#allocation2 + $0x105] sm:$0xff]
      %v3555 = vld [vmem:[#allocation2 + $0x10d] sm:$0xff]
      %v3556 = vld [vmem:[#allocation2 + $0x115] sm:$0xff]
      %v3557 = vld [vmem:[#allocation2 + $0x11d] sm:$0xff]
      %v3558 = vld [vmem:[#allocation2 + $0x125] sm:$0xff]
      %v3559 = vld [vmem:[#allocation2 + $0x12d] sm:$0xff]
      %v3560 = vld [vmem:[#allocation2 + $0x135] sm:$0xff]
      %v3561 = vld [vmem:[#allocation2 + $0x13d] sm:$0xff]
      %v3562 = vld [vmem:[#allocation2 + $0x145] sm:$0xff]
      %v3563 = vld [vmem:[#allocation2 + $0x14d] sm:$0xff]
      %v3564 = vld [vmem:[#allocation2 + $0x155] sm:$0xff]
      %v3565 = vld [vmem:[#allocation2 + $0x15d] sm:$0xff]
      %v3566 = vld [vmem:[#allocation2 + $0x165] sm:$0xff]
      %v3567 = vld [vmem:[#allocation2 + $0x16d] sm:$0xff]
      %v3568 = vld [vmem:[#allocation2 + $0x175] sm:$0xff]
      %v3569 = vld [vmem:[#allocation2 + $0x17d] sm:$0xff]
      %v3570 = vld [vmem:[#allocation2 + $0x185] sm:$0xff]
      %v3571 = vld [vmem:[#allocation2 + $0x18d] sm:$0xff]
      %v3572 = vld [vmem:[#allocation2 + $0x195] sm:$0xff]
      %v3573 = vld [vmem:[#allocation2 + $0x19d] sm:$0xff]
      %v3574 = vld [vmem:[#allocation2 + $0x1a5] sm:$0xff]
      %v3575 = vld [vmem:[#allocation2 + $0x1ad] sm:$0xff]
      %v3576 = vld [vmem:[#allocation2 + $0x1b5] sm:$0xff]
      %v3577 = vld [vmem:[#allocation2 + $0x1bd] sm:$0xff]
      %v3578 = vld [vmem:[#allocation2 + $0x1c5] sm:$0xff]
      %v3579 = vld [vmem:[#allocation2 + $0x1cd] sm:$0xff]
      %v3580 = vld [vmem:[#allocation2 + $0x1d5] sm:$0xff]
      %v3581 = vld [vmem:[#allocation2 + $0x1dd] sm:$0xff]
      %v3582 = vld [vmem:[#allocation2 + $0x1e5] sm:$0xff]
      %v3583 = vld [vmem:[#allocation2 + $0x1ed] sm:$0xff]
      %v3584 = vld [vmem:[#allocation2 + $0x1f5] sm:$0xff]
      %v3585 = vld [vmem:[#allocation2 + $0x1fd] sm:$0xff]
      %v3586 = vld [vmem:[#allocation2 + $0x205] sm:$0xff]
      %v3587 = vld [vmem:[#allocation2 + $0x20d] sm:$0xff]
      %v3588 = vld [vmem:[#allocation2 + $0x215] sm:$0xff]
      %v3589 = vld [vmem:[#allocation2 + $0x21d] sm:$0xff]
      %v3590 = vpack.c.bf16 %v3527, %v3526
      %v3591 = vpack.c.bf16 %v3529, %v3528
      %v3592 = vpack.c.bf16 %v3531, %v3530
      %v3593 = vpack.c.bf16 %v3533, %v3532
      %v3594 = vpack.c.bf16 %v3535, %v3534
      %v3595 = vpack.c.bf16 %v3537, %v3536
      %v3596 = vpack.c.bf16 %v3539, %v3538
      %v3597 = vpack.c.bf16 %v3541, %v3540
      %v3598 = vpack.c.bf16 %v3543, %v3542
      %v3599 = vpack.c.bf16 %v3545, %v3544
      %v3600 = vpack.c.bf16 %v3547, %v3546
      %v3601 = vpack.c.bf16 %v3549, %v3548
      %v3602 = vpack.c.bf16 %v3551, %v3550
      %v3603 = vpack.c.bf16 %v3553, %v3552
      %v3604 = vpack.c.bf16 %v3555, %v3554
      %v3605 = vpack.c.bf16 %v3557, %v3556
      %v3606 = vpack.c.bf16 %v3559, %v3558
      %v3607 = vpack.c.bf16 %v3561, %v3560
      %v3608 = vpack.c.bf16 %v3563, %v3562
      %v3609 = vpack.c.bf16 %v3565, %v3564
      %v3610 = vpack.c.bf16 %v3567, %v3566
      %v3611 = vpack.c.bf16 %v3569, %v3568
      %v3612 = vpack.c.bf16 %v3571, %v3570
      %v3613 = vpack.c.bf16 %v3573, %v3572
      %v3614 = vpack.c.bf16 %v3575, %v3574
      %v3615 = vpack.c.bf16 %v3577, %v3576
      %v3616 = vpack.c.bf16 %v3579, %v3578
      %v3617 = vpack.c.bf16 %v3581, %v3580
      %v3618 = vpack.c.bf16 %v3583, %v3582
      %v3619 = vpack.c.bf16 %v3585, %v3584
      %v3620 = vpack.c.bf16 %v3587, %v3586
      %v3621 = vpack.c.bf16 %v3589, %v3588
      %v3622 = vld [vmem:[%s2 + $0xe0] sm:$0xf]
      %v3623 = vld [vmem:[%s2 + $0xe4] sm:$0xf]
      %v3624 = vld [vmem:[%s2 + $0xe8] sm:$0xf]
      %v3625 = vld [vmem:[%s2 + $0xec] sm:$0xf]
      %v3626 = vld [vmem:[%s2 + $0xf0] sm:$0xf]
      %v3627 = vld [vmem:[%s2 + $0xf4] sm:$0xf]
      %v3628 = vld [vmem:[%s2 + $0xf8] sm:$0xf]
      %v3629 = vld [vmem:[%s2 + $0xfc] sm:$0xf]
      %v3638 = vunpack.c.l.b16 %v3622
      %v3639 = vunpack.c.l.b16 %v3623
      %v3640 = vunpack.c.l.b16 %v3624
      %v3641 = vunpack.c.l.b16 %v3625
      %v3642 = vunpack.c.l.b16 %v3626
      %v3643 = vunpack.c.l.b16 %v3627
      %v3644 = vunpack.c.l.b16 %v3628
      %v3645 = vunpack.c.l.b16 %v3629
      %v3646 = vpack.c.b16 %v3639, %v3638
      %v3647 = vpack.c.b16 %v3641, %v3640
      %v3648 = vpack.c.b16 %v3643, %v3642
      %v3649 = vpack.c.b16 %v3645, %v3644
      %v3655 = vsel %vm366, %v3590, 0
      %v3658 = vsel %vm366, %v3591, 0
      %v3661 = vsel %vm366, %v3592, 0
      %v3664 = vsel %vm366, %v3593, 0
      %v3667 = vsel %vm366, %v3594, 0
      %v3670 = vsel %vm366, %v3595, 0
      %v3673 = vsel %vm366, %v3596, 0
      %v3676 = vsel %vm366, %v3597, 0
      %v3679 = vsel %vm366, %v3598, 0
      %v3682 = vsel %vm366, %v3599, 0
      %v3685 = vsel %vm366, %v3600, 0
      %v3688 = vsel %vm366, %v3601, 0
      %v3691 = vsel %vm366, %v3602, 0
      %v3694 = vsel %vm366, %v3603, 0
      %v3697 = vsel %vm366, %v3604, 0
      %v3700 = vsel %vm366, %v3605, 0
      %v3703 = vsel %vm366, %v3606, 0
      %v3706 = vsel %vm366, %v3607, 0
      %v3709 = vsel %vm366, %v3608, 0
      %v3712 = vsel %vm366, %v3609, 0
      %v3715 = vsel %vm366, %v3610, 0
      %v3718 = vsel %vm366, %v3611, 0
      %v3721 = vsel %vm366, %v3612, 0
      %v3724 = vsel %vm366, %v3613, 0
      %v3727 = vsel %vm366, %v3614, 0
      %v3730 = vsel %vm366, %v3615, 0
      %v3733 = vsel %vm366, %v3616, 0
      %v3736 = vsel %vm366, %v3617, 0
      %v3739 = vsel %vm366, %v3618, 0
      %v3742 = vsel %vm366, %v3619, 0
      %v3745 = vsel %vm366, %v3620, 0
      %v3748 = vsel %vm366, %v3621, 0
      %3750 = vmatpush.bf16.msra.mxu0 0
      %3751 = vmatpush.bf16.msra.mxu0 0
      %3752 = vmatpush.bf16.msra.mxu0 0
      %3753 = vmatpush.bf16.msra.mxu0 0
      %3754 = vmatpush.bf16.msra.mxu0 %v3649
      %3755 = vmatpush.bf16.msra.mxu0 %v3648
      %3756 = vmatpush.bf16.msra.mxu0 %v3647
      %3757 = vmatpush.bf16.msra.mxu0 %v3646
      %3758 = vmatmul.bf16.gmra.mxu0 %v3655
      %v3759 = vpop.f32.mrf.mxu0
      %v3760 = vadd.f32 0.0, %v3759
      %v3761 = vpop.f32.mrf.mxu0
      %v3762 = vadd.f32 0.0, %v3761
      %3763 = vmatmul.bf16.gmra.mxu0 %v3658
      %v3764 = vpop.f32.mrf.mxu0
      %v3765 = vadd.f32 0.0, %v3764
      %v3766 = vpop.f32.mrf.mxu0
      %v3767 = vadd.f32 0.0, %v3766
      %3768 = vmatmul.bf16.gmra.mxu0 %v3661
      %v3769 = vpop.f32.mrf.mxu0
      %v3770 = vadd.f32 0.0, %v3769
      %v3771 = vpop.f32.mrf.mxu0
      %v3772 = vadd.f32 0.0, %v3771
      %3773 = vmatmul.bf16.gmra.mxu0 %v3664
      %v3774 = vpop.f32.mrf.mxu0
      %v3775 = vadd.f32 0.0, %v3774
      %v3776 = vpop.f32.mrf.mxu0
      %v3777 = vadd.f32 0.0, %v3776
      %3778 = vmatmul.bf16.gmra.mxu0 %v3667
      %v3779 = vpop.f32.mrf.mxu0
      %v3780 = vadd.f32 0.0, %v3779
      %v3781 = vpop.f32.mrf.mxu0
      %v3782 = vadd.f32 0.0, %v3781
      %3783 = vmatmul.bf16.gmra.mxu0 %v3670
      %v3784 = vpop.f32.mrf.mxu0
      %v3785 = vadd.f32 0.0, %v3784
      %v3786 = vpop.f32.mrf.mxu0
      %v3787 = vadd.f32 0.0, %v3786
      %3788 = vmatmul.bf16.gmra.mxu0 %v3673
      %v3789 = vpop.f32.mrf.mxu0
      %v3790 = vadd.f32 0.0, %v3789
      %v3791 = vpop.f32.mrf.mxu0
      %v3792 = vadd.f32 0.0, %v3791
      %3793 = vmatmul.bf16.gmra.mxu0 %v3676
      %v3794 = vpop.f32.mrf.mxu0
      %v3795 = vadd.f32 0.0, %v3794
      %v3796 = vpop.f32.mrf.mxu0
      %v3797 = vadd.f32 0.0, %v3796
      %3798 = vmatmul.bf16.gmra.mxu0 %v3679
      %v3799 = vpop.f32.mrf.mxu0
      %v3800 = vadd.f32 0.0, %v3799
      %v3801 = vpop.f32.mrf.mxu0
      %v3802 = vadd.f32 0.0, %v3801
      %3803 = vmatmul.bf16.gmra.mxu0 %v3682
      %v3804 = vpop.f32.mrf.mxu0
      %v3805 = vadd.f32 0.0, %v3804
      %v3806 = vpop.f32.mrf.mxu0
      %v3807 = vadd.f32 0.0, %v3806
      %3808 = vmatmul.bf16.gmra.mxu0 %v3685
      %v3809 = vpop.f32.mrf.mxu0
      %v3810 = vadd.f32 0.0, %v3809
      %v3811 = vpop.f32.mrf.mxu0
      %v3812 = vadd.f32 0.0, %v3811
      %3813 = vmatmul.bf16.gmra.mxu0 %v3688
      %v3814 = vpop.f32.mrf.mxu0
      %v3815 = vadd.f32 0.0, %v3814
      %v3816 = vpop.f32.mrf.mxu0
      %v3817 = vadd.f32 0.0, %v3816
      %3818 = vmatmul.bf16.gmra.mxu0 %v3691
      %v3819 = vpop.f32.mrf.mxu0
      %v3820 = vadd.f32 0.0, %v3819
      %v3821 = vpop.f32.mrf.mxu0
      %v3822 = vadd.f32 0.0, %v3821
      %3823 = vmatmul.bf16.gmra.mxu0 %v3694
      %v3824 = vpop.f32.mrf.mxu0
      %v3825 = vadd.f32 0.0, %v3824
      %v3826 = vpop.f32.mrf.mxu0
      %v3827 = vadd.f32 0.0, %v3826
      %3828 = vmatmul.bf16.gmra.mxu0 %v3697
      %v3829 = vpop.f32.mrf.mxu0
      %v3830 = vadd.f32 0.0, %v3829
      %v3831 = vpop.f32.mrf.mxu0
      %v3832 = vadd.f32 0.0, %v3831
      %3833 = vmatmul.bf16.gmra.mxu0 %v3700
      %v3834 = vpop.f32.mrf.mxu0
      %v3835 = vadd.f32 0.0, %v3834
      %v3836 = vpop.f32.mrf.mxu0
      %v3837 = vadd.f32 0.0, %v3836
      %3838 = vmatmul.bf16.gmra.mxu0 %v3703
      %v3839 = vpop.f32.mrf.mxu0
      %v3840 = vadd.f32 0.0, %v3839
      %v3841 = vpop.f32.mrf.mxu0
      %v3842 = vadd.f32 0.0, %v3841
      %3843 = vmatmul.bf16.gmra.mxu0 %v3706
      %v3844 = vpop.f32.mrf.mxu0
      %v3845 = vadd.f32 0.0, %v3844
      %v3846 = vpop.f32.mrf.mxu0
      %v3847 = vadd.f32 0.0, %v3846
      %3848 = vmatmul.bf16.gmra.mxu0 %v3709
      %v3849 = vpop.f32.mrf.mxu0
      %v3850 = vadd.f32 0.0, %v3849
      %v3851 = vpop.f32.mrf.mxu0
      %v3852 = vadd.f32 0.0, %v3851
      %3853 = vmatmul.bf16.gmra.mxu0 %v3712
      %v3854 = vpop.f32.mrf.mxu0
      %v3855 = vadd.f32 0.0, %v3854
      %v3856 = vpop.f32.mrf.mxu0
      %v3857 = vadd.f32 0.0, %v3856
      %3858 = vmatmul.bf16.gmra.mxu0 %v3715
      %v3859 = vpop.f32.mrf.mxu0
      %v3860 = vadd.f32 0.0, %v3859
      %v3861 = vpop.f32.mrf.mxu0
      %v3862 = vadd.f32 0.0, %v3861
      %3863 = vmatmul.bf16.gmra.mxu0 %v3718
      %v3864 = vpop.f32.mrf.mxu0
      %v3865 = vadd.f32 0.0, %v3864
      %v3866 = vpop.f32.mrf.mxu0
      %v3867 = vadd.f32 0.0, %v3866
      %3868 = vmatmul.bf16.gmra.mxu0 %v3721
      %v3869 = vpop.f32.mrf.mxu0
      %v3870 = vadd.f32 0.0, %v3869
      %v3871 = vpop.f32.mrf.mxu0
      %v3872 = vadd.f32 0.0, %v3871
      %3873 = vmatmul.bf16.gmra.mxu0 %v3724
      %v3874 = vpop.f32.mrf.mxu0
      %v3875 = vadd.f32 0.0, %v3874
      %v3876 = vpop.f32.mrf.mxu0
      %v3877 = vadd.f32 0.0, %v3876
      %3878 = vmatmul.bf16.gmra.mxu0 %v3727
      %v3879 = vpop.f32.mrf.mxu0
      %v3880 = vadd.f32 0.0, %v3879
      %v3881 = vpop.f32.mrf.mxu0
      %v3882 = vadd.f32 0.0, %v3881
      %3883 = vmatmul.bf16.gmra.mxu0 %v3730
      %v3884 = vpop.f32.mrf.mxu0
      %v3885 = vadd.f32 0.0, %v3884
      %v3886 = vpop.f32.mrf.mxu0
      %v3887 = vadd.f32 0.0, %v3886
      %3888 = vmatmul.bf16.gmra.mxu0 %v3733
      %v3889 = vpop.f32.mrf.mxu0
      %v3890 = vadd.f32 0.0, %v3889
      %v3891 = vpop.f32.mrf.mxu0
      %v3892 = vadd.f32 0.0, %v3891
      %3893 = vmatmul.bf16.gmra.mxu0 %v3736
      %v3894 = vpop.f32.mrf.mxu0
      %v3895 = vadd.f32 0.0, %v3894
      %v3896 = vpop.f32.mrf.mxu0
      %v3897 = vadd.f32 0.0, %v3896
      %3898 = vmatmul.bf16.gmra.mxu0 %v3739
      %v3899 = vpop.f32.mrf.mxu0
      %v3900 = vadd.f32 0.0, %v3899
      %v3901 = vpop.f32.mrf.mxu0
      %v3902 = vadd.f32 0.0, %v3901
      %3903 = vmatmul.bf16.gmra.mxu0 %v3742
      %v3904 = vpop.f32.mrf.mxu0
      %v3905 = vadd.f32 0.0, %v3904
      %v3906 = vpop.f32.mrf.mxu0
      %v3907 = vadd.f32 0.0, %v3906
      %3908 = vmatmul.bf16.gmra.mxu0 %v3745
      %v3909 = vpop.f32.mrf.mxu0
      %v3910 = vadd.f32 0.0, %v3909
      %v3911 = vpop.f32.mrf.mxu0
      %v3912 = vadd.f32 0.0, %v3911
      %3913 = vmatmul.bf16.gmra.mxu0 %v3748
      %v3914 = vpop.f32.mrf.mxu0
      %v3915 = vadd.f32 0.0, %v3914
      %v3916 = vpop.f32.mrf.mxu0
      %v3917 = vadd.f32 0.0, %v3916
      %3918 = vdwg.mxu0
      %v3919 = vadd.f32 %v3462, %v3760
      %v3920 = vadd.f32 %v3463, %v3762
      %v3921 = vadd.f32 %v3464, %v3765
      %v3922 = vadd.f32 %v3465, %v3767
      %v3923 = vadd.f32 %v3466, %v3770
      %v3924 = vadd.f32 %v3467, %v3772
      %v3925 = vadd.f32 %v3468, %v3775
      %v3926 = vadd.f32 %v3469, %v3777
      %v3927 = vadd.f32 %v3470, %v3780
      %v3928 = vadd.f32 %v3471, %v3782
      %v3929 = vadd.f32 %v3472, %v3785
      %v3930 = vadd.f32 %v3473, %v3787
      %v3931 = vadd.f32 %v3474, %v3790
      %v3932 = vadd.f32 %v3475, %v3792
      %v3933 = vadd.f32 %v3476, %v3795
      %v3934 = vadd.f32 %v3477, %v3797
      %v3935 = vadd.f32 %v3478, %v3800
      %v3936 = vadd.f32 %v3479, %v3802
      %v3937 = vadd.f32 %v3480, %v3805
      %v3938 = vadd.f32 %v3481, %v3807
      %v3939 = vadd.f32 %v3482, %v3810
      %v3940 = vadd.f32 %v3483, %v3812
      %v3941 = vadd.f32 %v3484, %v3815
      %v3942 = vadd.f32 %v3485, %v3817
      %v3943 = vadd.f32 %v3486, %v3820
      %v3944 = vadd.f32 %v3487, %v3822
      %v3945 = vadd.f32 %v3488, %v3825
      %v3946 = vadd.f32 %v3489, %v3827
      %v3947 = vadd.f32 %v3490, %v3830
      %v3948 = vadd.f32 %v3491, %v3832
      %v3949 = vadd.f32 %v3492, %v3835
      %v3950 = vadd.f32 %v3493, %v3837
      %v3951 = vadd.f32 %v3494, %v3840
      %v3952 = vadd.f32 %v3495, %v3842
      %v3953 = vadd.f32 %v3496, %v3845
      %v3954 = vadd.f32 %v3497, %v3847
      %v3955 = vadd.f32 %v3498, %v3850
      %v3956 = vadd.f32 %v3499, %v3852
      %v3957 = vadd.f32 %v3500, %v3855
      %v3958 = vadd.f32 %v3501, %v3857
      %v3959 = vadd.f32 %v3502, %v3860
      %v3960 = vadd.f32 %v3503, %v3862
      %v3961 = vadd.f32 %v3504, %v3865
      %v3962 = vadd.f32 %v3505, %v3867
      %v3963 = vadd.f32 %v3506, %v3870
      %v3964 = vadd.f32 %v3507, %v3872
      %v3965 = vadd.f32 %v3508, %v3875
      %v3966 = vadd.f32 %v3509, %v3877
      %v3967 = vadd.f32 %v3510, %v3880
      %v3968 = vadd.f32 %v3511, %v3882
      %v3969 = vadd.f32 %v3512, %v3885
      %v3970 = vadd.f32 %v3513, %v3887
      %v3971 = vadd.f32 %v3514, %v3890
      %v3972 = vadd.f32 %v3515, %v3892
      %v3973 = vadd.f32 %v3516, %v3895
      %v3974 = vadd.f32 %v3517, %v3897
      %v3975 = vadd.f32 %v3518, %v3900
      %v3976 = vadd.f32 %v3519, %v3902
      %v3977 = vadd.f32 %v3520, %v3905
      %v3978 = vadd.f32 %v3521, %v3907
      %v3979 = vadd.f32 %v3522, %v3910
      %v3980 = vadd.f32 %v3523, %v3912
      %v3981 = vadd.f32 %v3524, %v3915
      %v3982 = vadd.f32 %v3525, %v3917
      %v3983 = vld [vmem:[#allocation2 + $0x26] sm:$0xff]
      %v3984 = vld [vmem:[#allocation2 + $0x2e] sm:$0xff]
      %v3985 = vld [vmem:[#allocation2 + $0x36] sm:$0xff]
      %v3986 = vld [vmem:[#allocation2 + $0x3e] sm:$0xff]
      %v3987 = vld [vmem:[#allocation2 + $0x46] sm:$0xff]
      %v3988 = vld [vmem:[#allocation2 + $0x4e] sm:$0xff]
      %v3989 = vld [vmem:[#allocation2 + $0x56] sm:$0xff]
      %v3990 = vld [vmem:[#allocation2 + $0x5e] sm:$0xff]
      %v3991 = vld [vmem:[#allocation2 + $0x66] sm:$0xff]
      %v3992 = vld [vmem:[#allocation2 + $0x6e] sm:$0xff]
      %v3993 = vld [vmem:[#allocation2 + $0x76] sm:$0xff]
      %v3994 = vld [vmem:[#allocation2 + $0x7e] sm:$0xff]
      %v3995 = vld [vmem:[#allocation2 + $0x86] sm:$0xff]
      %v3996 = vld [vmem:[#allocation2 + $0x8e] sm:$0xff]
      %v3997 = vld [vmem:[#allocation2 + $0x96] sm:$0xff]
      %v3998 = vld [vmem:[#allocation2 + $0x9e] sm:$0xff]
      %v3999 = vld [vmem:[#allocation2 + $0xa6] sm:$0xff]
      %v4000 = vld [vmem:[#allocation2 + $0xae] sm:$0xff]
      %v4001 = vld [vmem:[#allocation2 + $0xb6] sm:$0xff]
      %v4002 = vld [vmem:[#allocation2 + $0xbe] sm:$0xff]
      %v4003 = vld [vmem:[#allocation2 + $0xc6] sm:$0xff]
      %v4004 = vld [vmem:[#allocation2 + $0xce] sm:$0xff]
      %v4005 = vld [vmem:[#allocation2 + $0xd6] sm:$0xff]
      %v4006 = vld [vmem:[#allocation2 + $0xde] sm:$0xff]
      %v4007 = vld [vmem:[#allocation2 + $0xe6] sm:$0xff]
      %v4008 = vld [vmem:[#allocation2 + $0xee] sm:$0xff]
      %v4009 = vld [vmem:[#allocation2 + $0xf6] sm:$0xff]
      %v4010 = vld [vmem:[#allocation2 + $0xfe] sm:$0xff]
      %v4011 = vld [vmem:[#allocation2 + $0x106] sm:$0xff]
      %v4012 = vld [vmem:[#allocation2 + $0x10e] sm:$0xff]
      %v4013 = vld [vmem:[#allocation2 + $0x116] sm:$0xff]
      %v4014 = vld [vmem:[#allocation2 + $0x11e] sm:$0xff]
      %v4015 = vld [vmem:[#allocation2 + $0x126] sm:$0xff]
      %v4016 = vld [vmem:[#allocation2 + $0x12e] sm:$0xff]
      %v4017 = vld [vmem:[#allocation2 + $0x136] sm:$0xff]
      %v4018 = vld [vmem:[#allocation2 + $0x13e] sm:$0xff]
      %v4019 = vld [vmem:[#allocation2 + $0x146] sm:$0xff]
      %v4020 = vld [vmem:[#allocation2 + $0x14e] sm:$0xff]
      %v4021 = vld [vmem:[#allocation2 + $0x156] sm:$0xff]
      %v4022 = vld [vmem:[#allocation2 + $0x15e] sm:$0xff]
      %v4023 = vld [vmem:[#allocation2 + $0x166] sm:$0xff]
      %v4024 = vld [vmem:[#allocation2 + $0x16e] sm:$0xff]
      %v4025 = vld [vmem:[#allocation2 + $0x176] sm:$0xff]
      %v4026 = vld [vmem:[#allocation2 + $0x17e] sm:$0xff]
      %v4027 = vld [vmem:[#allocation2 + $0x186] sm:$0xff]
      %v4028 = vld [vmem:[#allocation2 + $0x18e] sm:$0xff]
      %v4029 = vld [vmem:[#allocation2 + $0x196] sm:$0xff]
      %v4030 = vld [vmem:[#allocation2 + $0x19e] sm:$0xff]
      %v4031 = vld [vmem:[#allocation2 + $0x1a6] sm:$0xff]
      %v4032 = vld [vmem:[#allocation2 + $0x1ae] sm:$0xff]
      %v4033 = vld [vmem:[#allocation2 + $0x1b6] sm:$0xff]
      %v4034 = vld [vmem:[#allocation2 + $0x1be] sm:$0xff]
      %v4035 = vld [vmem:[#allocation2 + $0x1c6] sm:$0xff]
      %v4036 = vld [vmem:[#allocation2 + $0x1ce] sm:$0xff]
      %v4037 = vld [vmem:[#allocation2 + $0x1d6] sm:$0xff]
      %v4038 = vld [vmem:[#allocation2 + $0x1de] sm:$0xff]
      %v4039 = vld [vmem:[#allocation2 + $0x1e6] sm:$0xff]
      %v4040 = vld [vmem:[#allocation2 + $0x1ee] sm:$0xff]
      %v4041 = vld [vmem:[#allocation2 + $0x1f6] sm:$0xff]
      %v4042 = vld [vmem:[#allocation2 + $0x1fe] sm:$0xff]
      %v4043 = vld [vmem:[#allocation2 + $0x206] sm:$0xff]
      %v4044 = vld [vmem:[#allocation2 + $0x20e] sm:$0xff]
      %v4045 = vld [vmem:[#allocation2 + $0x216] sm:$0xff]
      %v4046 = vld [vmem:[#allocation2 + $0x21e] sm:$0xff]
      %v4047 = vpack.c.bf16 %v3984, %v3983
      %v4048 = vpack.c.bf16 %v3986, %v3985
      %v4049 = vpack.c.bf16 %v3988, %v3987
      %v4050 = vpack.c.bf16 %v3990, %v3989
      %v4051 = vpack.c.bf16 %v3992, %v3991
      %v4052 = vpack.c.bf16 %v3994, %v3993
      %v4053 = vpack.c.bf16 %v3996, %v3995
      %v4054 = vpack.c.bf16 %v3998, %v3997
      %v4055 = vpack.c.bf16 %v4000, %v3999
      %v4056 = vpack.c.bf16 %v4002, %v4001
      %v4057 = vpack.c.bf16 %v4004, %v4003
      %v4058 = vpack.c.bf16 %v4006, %v4005
      %v4059 = vpack.c.bf16 %v4008, %v4007
      %v4060 = vpack.c.bf16 %v4010, %v4009
      %v4061 = vpack.c.bf16 %v4012, %v4011
      %v4062 = vpack.c.bf16 %v4014, %v4013
      %v4063 = vpack.c.bf16 %v4016, %v4015
      %v4064 = vpack.c.bf16 %v4018, %v4017
      %v4065 = vpack.c.bf16 %v4020, %v4019
      %v4066 = vpack.c.bf16 %v4022, %v4021
      %v4067 = vpack.c.bf16 %v4024, %v4023
      %v4068 = vpack.c.bf16 %v4026, %v4025
      %v4069 = vpack.c.bf16 %v4028, %v4027
      %v4070 = vpack.c.bf16 %v4030, %v4029
      %v4071 = vpack.c.bf16 %v4032, %v4031
      %v4072 = vpack.c.bf16 %v4034, %v4033
      %v4073 = vpack.c.bf16 %v4036, %v4035
      %v4074 = vpack.c.bf16 %v4038, %v4037
      %v4075 = vpack.c.bf16 %v4040, %v4039
      %v4076 = vpack.c.bf16 %v4042, %v4041
      %v4077 = vpack.c.bf16 %v4044, %v4043
      %v4078 = vpack.c.bf16 %v4046, %v4045
      %v4079 = vld [vmem:[%s2 + $0x100] sm:$0xf]
      %v4080 = vld [vmem:[%s2 + $0x104] sm:$0xf]
      %v4081 = vld [vmem:[%s2 + $0x108] sm:$0xf]
      %v4082 = vld [vmem:[%s2 + $0x10c] sm:$0xf]
      %v4083 = vld [vmem:[%s2 + $0x110] sm:$0xf]
      %v4084 = vld [vmem:[%s2 + $0x114] sm:$0xf]
      %v4085 = vld [vmem:[%s2 + $0x118] sm:$0xf]
      %v4086 = vld [vmem:[%s2 + $0x11c] sm:$0xf]
      %v4095 = vunpack.c.l.b16 %v4079
      %v4096 = vunpack.c.l.b16 %v4080
      %v4097 = vunpack.c.l.b16 %v4081
      %v4098 = vunpack.c.l.b16 %v4082
      %v4099 = vunpack.c.l.b16 %v4083
      %v4100 = vunpack.c.l.b16 %v4084
      %v4101 = vunpack.c.l.b16 %v4085
      %v4102 = vunpack.c.l.b16 %v4086
      %v4103 = vpack.c.b16 %v4096, %v4095
      %v4104 = vpack.c.b16 %v4098, %v4097
      %v4105 = vpack.c.b16 %v4100, %v4099
      %v4106 = vpack.c.b16 %v4102, %v4101
      %v4112 = vsel %vm366, %v4047, 0
      %v4115 = vsel %vm366, %v4048, 0
      %v4118 = vsel %vm366, %v4049, 0
      %v4121 = vsel %vm366, %v4050, 0
      %v4124 = vsel %vm366, %v4051, 0
      %v4127 = vsel %vm366, %v4052, 0
      %v4130 = vsel %vm366, %v4053, 0
      %v4133 = vsel %vm366, %v4054, 0
      %v4136 = vsel %vm366, %v4055, 0
      %v4139 = vsel %vm366, %v4056, 0
      %v4142 = vsel %vm366, %v4057, 0
      %v4145 = vsel %vm366, %v4058, 0
      %v4148 = vsel %vm366, %v4059, 0
      %v4151 = vsel %vm366, %v4060, 0
      %v4154 = vsel %vm366, %v4061, 0
      %v4157 = vsel %vm366, %v4062, 0
      %v4160 = vsel %vm366, %v4063, 0
      %v4163 = vsel %vm366, %v4064, 0
      %v4166 = vsel %vm366, %v4065, 0
      %v4169 = vsel %vm366, %v4066, 0
      %v4172 = vsel %vm366, %v4067, 0
      %v4175 = vsel %vm366, %v4068, 0
      %v4178 = vsel %vm366, %v4069, 0
      %v4181 = vsel %vm366, %v4070, 0
      %v4184 = vsel %vm366, %v4071, 0
      %v4187 = vsel %vm366, %v4072, 0
      %v4190 = vsel %vm366, %v4073, 0
      %v4193 = vsel %vm366, %v4074, 0
      %v4196 = vsel %vm366, %v4075, 0
      %v4199 = vsel %vm366, %v4076, 0
      %v4202 = vsel %vm366, %v4077, 0
      %v4205 = vsel %vm366, %v4078, 0
      %4207 = vmatpush.bf16.msra.mxu0 0
      %4208 = vmatpush.bf16.msra.mxu0 0
      %4209 = vmatpush.bf16.msra.mxu0 0
      %4210 = vmatpush.bf16.msra.mxu0 0
      %4211 = vmatpush.bf16.msra.mxu0 %v4106
      %4212 = vmatpush.bf16.msra.mxu0 %v4105
      %4213 = vmatpush.bf16.msra.mxu0 %v4104
      %4214 = vmatpush.bf16.msra.mxu0 %v4103
      %4215 = vmatmul.bf16.gmra.mxu0 %v4112
      %v4216 = vpop.f32.mrf.mxu0
      %v4217 = vadd.f32 0.0, %v4216
      %v4218 = vpop.f32.mrf.mxu0
      %v4219 = vadd.f32 0.0, %v4218
      %4220 = vmatmul.bf16.gmra.mxu0 %v4115
      %v4221 = vpop.f32.mrf.mxu0
      %v4222 = vadd.f32 0.0, %v4221
      %v4223 = vpop.f32.mrf.mxu0
      %v4224 = vadd.f32 0.0, %v4223
      %4225 = vmatmul.bf16.gmra.mxu0 %v4118
      %v4226 = vpop.f32.mrf.mxu0
      %v4227 = vadd.f32 0.0, %v4226
      %v4228 = vpop.f32.mrf.mxu0
      %v4229 = vadd.f32 0.0, %v4228
      %4230 = vmatmul.bf16.gmra.mxu0 %v4121
      %v4231 = vpop.f32.mrf.mxu0
      %v4232 = vadd.f32 0.0, %v4231
      %v4233 = vpop.f32.mrf.mxu0
      %v4234 = vadd.f32 0.0, %v4233
      %4235 = vmatmul.bf16.gmra.mxu0 %v4124
      %v4236 = vpop.f32.mrf.mxu0
      %v4237 = vadd.f32 0.0, %v4236
      %v4238 = vpop.f32.mrf.mxu0
      %v4239 = vadd.f32 0.0, %v4238
      %4240 = vmatmul.bf16.gmra.mxu0 %v4127
      %v4241 = vpop.f32.mrf.mxu0
      %v4242 = vadd.f32 0.0, %v4241
      %v4243 = vpop.f32.mrf.mxu0
      %v4244 = vadd.f32 0.0, %v4243
      %4245 = vmatmul.bf16.gmra.mxu0 %v4130
      %v4246 = vpop.f32.mrf.mxu0
      %v4247 = vadd.f32 0.0, %v4246
      %v4248 = vpop.f32.mrf.mxu0
      %v4249 = vadd.f32 0.0, %v4248
      %4250 = vmatmul.bf16.gmra.mxu0 %v4133
      %v4251 = vpop.f32.mrf.mxu0
      %v4252 = vadd.f32 0.0, %v4251
      %v4253 = vpop.f32.mrf.mxu0
      %v4254 = vadd.f32 0.0, %v4253
      %4255 = vmatmul.bf16.gmra.mxu0 %v4136
      %v4256 = vpop.f32.mrf.mxu0
      %v4257 = vadd.f32 0.0, %v4256
      %v4258 = vpop.f32.mrf.mxu0
      %v4259 = vadd.f32 0.0, %v4258
      %4260 = vmatmul.bf16.gmra.mxu0 %v4139
      %v4261 = vpop.f32.mrf.mxu0
      %v4262 = vadd.f32 0.0, %v4261
      %v4263 = vpop.f32.mrf.mxu0
      %v4264 = vadd.f32 0.0, %v4263
      %4265 = vmatmul.bf16.gmra.mxu0 %v4142
      %v4266 = vpop.f32.mrf.mxu0
      %v4267 = vadd.f32 0.0, %v4266
      %v4268 = vpop.f32.mrf.mxu0
      %v4269 = vadd.f32 0.0, %v4268
      %4270 = vmatmul.bf16.gmra.mxu0 %v4145
      %v4271 = vpop.f32.mrf.mxu0
      %v4272 = vadd.f32 0.0, %v4271
      %v4273 = vpop.f32.mrf.mxu0
      %v4274 = vadd.f32 0.0, %v4273
      %4275 = vmatmul.bf16.gmra.mxu0 %v4148
      %v4276 = vpop.f32.mrf.mxu0
      %v4277 = vadd.f32 0.0, %v4276
      %v4278 = vpop.f32.mrf.mxu0
      %v4279 = vadd.f32 0.0, %v4278
      %4280 = vmatmul.bf16.gmra.mxu0 %v4151
      %v4281 = vpop.f32.mrf.mxu0
      %v4282 = vadd.f32 0.0, %v4281
      %v4283 = vpop.f32.mrf.mxu0
      %v4284 = vadd.f32 0.0, %v4283
      %4285 = vmatmul.bf16.gmra.mxu0 %v4154
      %v4286 = vpop.f32.mrf.mxu0
      %v4287 = vadd.f32 0.0, %v4286
      %v4288 = vpop.f32.mrf.mxu0
      %v4289 = vadd.f32 0.0, %v4288
      %4290 = vmatmul.bf16.gmra.mxu0 %v4157
      %v4291 = vpop.f32.mrf.mxu0
      %v4292 = vadd.f32 0.0, %v4291
      %v4293 = vpop.f32.mrf.mxu0
      %v4294 = vadd.f32 0.0, %v4293
      %4295 = vmatmul.bf16.gmra.mxu0 %v4160
      %v4296 = vpop.f32.mrf.mxu0
      %v4297 = vadd.f32 0.0, %v4296
      %v4298 = vpop.f32.mrf.mxu0
      %v4299 = vadd.f32 0.0, %v4298
      %4300 = vmatmul.bf16.gmra.mxu0 %v4163
      %v4301 = vpop.f32.mrf.mxu0
      %v4302 = vadd.f32 0.0, %v4301
      %v4303 = vpop.f32.mrf.mxu0
      %v4304 = vadd.f32 0.0, %v4303
      %4305 = vmatmul.bf16.gmra.mxu0 %v4166
      %v4306 = vpop.f32.mrf.mxu0
      %v4307 = vadd.f32 0.0, %v4306
      %v4308 = vpop.f32.mrf.mxu0
      %v4309 = vadd.f32 0.0, %v4308
      %4310 = vmatmul.bf16.gmra.mxu0 %v4169
      %v4311 = vpop.f32.mrf.mxu0
      %v4312 = vadd.f32 0.0, %v4311
      %v4313 = vpop.f32.mrf.mxu0
      %v4314 = vadd.f32 0.0, %v4313
      %4315 = vmatmul.bf16.gmra.mxu0 %v4172
      %v4316 = vpop.f32.mrf.mxu0
      %v4317 = vadd.f32 0.0, %v4316
      %v4318 = vpop.f32.mrf.mxu0
      %v4319 = vadd.f32 0.0, %v4318
      %4320 = vmatmul.bf16.gmra.mxu0 %v4175
      %v4321 = vpop.f32.mrf.mxu0
      %v4322 = vadd.f32 0.0, %v4321
      %v4323 = vpop.f32.mrf.mxu0
      %v4324 = vadd.f32 0.0, %v4323
      %4325 = vmatmul.bf16.gmra.mxu0 %v4178
      %v4326 = vpop.f32.mrf.mxu0
      %v4327 = vadd.f32 0.0, %v4326
      %v4328 = vpop.f32.mrf.mxu0
      %v4329 = vadd.f32 0.0, %v4328
      %4330 = vmatmul.bf16.gmra.mxu0 %v4181
      %v4331 = vpop.f32.mrf.mxu0
      %v4332 = vadd.f32 0.0, %v4331
      %v4333 = vpop.f32.mrf.mxu0
      %v4334 = vadd.f32 0.0, %v4333
      %4335 = vmatmul.bf16.gmra.mxu0 %v4184
      %v4336 = vpop.f32.mrf.mxu0
      %v4337 = vadd.f32 0.0, %v4336
      %v4338 = vpop.f32.mrf.mxu0
      %v4339 = vadd.f32 0.0, %v4338
      %4340 = vmatmul.bf16.gmra.mxu0 %v4187
      %v4341 = vpop.f32.mrf.mxu0
      %v4342 = vadd.f32 0.0, %v4341
      %v4343 = vpop.f32.mrf.mxu0
      %v4344 = vadd.f32 0.0, %v4343
      %4345 = vmatmul.bf16.gmra.mxu0 %v4190
      %v4346 = vpop.f32.mrf.mxu0
      %v4347 = vadd.f32 0.0, %v4346
      %v4348 = vpop.f32.mrf.mxu0
      %v4349 = vadd.f32 0.0, %v4348
      %4350 = vmatmul.bf16.gmra.mxu0 %v4193
      %v4351 = vpop.f32.mrf.mxu0
      %v4352 = vadd.f32 0.0, %v4351
      %v4353 = vpop.f32.mrf.mxu0
      %v4354 = vadd.f32 0.0, %v4353
      %4355 = vmatmul.bf16.gmra.mxu0 %v4196
      %v4356 = vpop.f32.mrf.mxu0
      %v4357 = vadd.f32 0.0, %v4356
      %v4358 = vpop.f32.mrf.mxu0
      %v4359 = vadd.f32 0.0, %v4358
      %4360 = vmatmul.bf16.gmra.mxu0 %v4199
      %v4361 = vpop.f32.mrf.mxu0
      %v4362 = vadd.f32 0.0, %v4361
      %v4363 = vpop.f32.mrf.mxu0
      %v4364 = vadd.f32 0.0, %v4363
      %4365 = vmatmul.bf16.gmra.mxu0 %v4202
      %v4366 = vpop.f32.mrf.mxu0
      %v4367 = vadd.f32 0.0, %v4366
      %v4368 = vpop.f32.mrf.mxu0
      %v4369 = vadd.f32 0.0, %v4368
      %4370 = vmatmul.bf16.gmra.mxu0 %v4205
      %v4371 = vpop.f32.mrf.mxu0
      %v4372 = vadd.f32 0.0, %v4371
      %v4373 = vpop.f32.mrf.mxu0
      %v4374 = vadd.f32 0.0, %v4373
      %4375 = vdwg.mxu0
      %v4376 = vadd.f32 %v3919, %v4217
      %v4377 = vadd.f32 %v3920, %v4219
      %v4378 = vadd.f32 %v3921, %v4222
      %v4379 = vadd.f32 %v3922, %v4224
      %v4380 = vadd.f32 %v3923, %v4227
      %v4381 = vadd.f32 %v3924, %v4229
      %v4382 = vadd.f32 %v3925, %v4232
      %v4383 = vadd.f32 %v3926, %v4234
      %v4384 = vadd.f32 %v3927, %v4237
      %v4385 = vadd.f32 %v3928, %v4239
      %v4386 = vadd.f32 %v3929, %v4242
      %v4387 = vadd.f32 %v3930, %v4244
      %v4388 = vadd.f32 %v3931, %v4247
      %v4389 = vadd.f32 %v3932, %v4249
      %v4390 = vadd.f32 %v3933, %v4252
      %v4391 = vadd.f32 %v3934, %v4254
      %v4392 = vadd.f32 %v3935, %v4257
      %v4393 = vadd.f32 %v3936, %v4259
      %v4394 = vadd.f32 %v3937, %v4262
      %v4395 = vadd.f32 %v3938, %v4264
      %v4396 = vadd.f32 %v3939, %v4267
      %v4397 = vadd.f32 %v3940, %v4269
      %v4398 = vadd.f32 %v3941, %v4272
      %v4399 = vadd.f32 %v3942, %v4274
      %v4400 = vadd.f32 %v3943, %v4277
      %v4401 = vadd.f32 %v3944, %v4279
      %v4402 = vadd.f32 %v3945, %v4282
      %v4403 = vadd.f32 %v3946, %v4284
      %v4404 = vadd.f32 %v3947, %v4287
      %v4405 = vadd.f32 %v3948, %v4289
      %v4406 = vadd.f32 %v3949, %v4292
      %v4407 = vadd.f32 %v3950, %v4294
      %v4408 = vadd.f32 %v3951, %v4297
      %v4409 = vadd.f32 %v3952, %v4299
      %v4410 = vadd.f32 %v3953, %v4302
      %v4411 = vadd.f32 %v3954, %v4304
      %v4412 = vadd.f32 %v3955, %v4307
      %v4413 = vadd.f32 %v3956, %v4309
      %v4414 = vadd.f32 %v3957, %v4312
      %v4415 = vadd.f32 %v3958, %v4314
      %v4416 = vadd.f32 %v3959, %v4317
      %v4417 = vadd.f32 %v3960, %v4319
      %v4418 = vadd.f32 %v3961, %v4322
      %v4419 = vadd.f32 %v3962, %v4324
      %v4420 = vadd.f32 %v3963, %v4327
      %v4421 = vadd.f32 %v3964, %v4329
      %v4422 = vadd.f32 %v3965, %v4332
      %v4423 = vadd.f32 %v3966, %v4334
      %v4424 = vadd.f32 %v3967, %v4337
      %v4425 = vadd.f32 %v3968, %v4339
      %v4426 = vadd.f32 %v3969, %v4342
      %v4427 = vadd.f32 %v3970, %v4344
      %v4428 = vadd.f32 %v3971, %v4347
      %v4429 = vadd.f32 %v3972, %v4349
      %v4430 = vadd.f32 %v3973, %v4352
      %v4431 = vadd.f32 %v3974, %v4354
      %v4432 = vadd.f32 %v3975, %v4357
      %v4433 = vadd.f32 %v3976, %v4359
      %v4434 = vadd.f32 %v3977, %v4362
      %v4435 = vadd.f32 %v3978, %v4364
      %v4436 = vadd.f32 %v3979, %v4367
      %v4437 = vadd.f32 %v3980, %v4369
      %v4438 = vadd.f32 %v3981, %v4372
      %v4439 = vadd.f32 %v3982, %v4374
      %v4440 = vld [vmem:[%s3] sm:$0x1]
      %v4442 = vperm.slane %v4440, 0
      %v4444 = vadd.f32 %v4376, %v4442
      %v4445 = vadd.f32 %v4377, %v4442
      %v4446 = vadd.f32 %v4378, %v4442
      %v4447 = vadd.f32 %v4379, %v4442
      %v4448 = vadd.f32 %v4380, %v4442
      %v4449 = vadd.f32 %v4381, %v4442
      %v4450 = vadd.f32 %v4382, %v4442
      %v4451 = vadd.f32 %v4383, %v4442
      %v4452 = vadd.f32 %v4384, %v4442
      %v4453 = vadd.f32 %v4385, %v4442
      %v4454 = vadd.f32 %v4386, %v4442
      %v4455 = vadd.f32 %v4387, %v4442
      %v4456 = vadd.f32 %v4388, %v4442
      %v4457 = vadd.f32 %v4389, %v4442
      %v4458 = vadd.f32 %v4390, %v4442
      %v4459 = vadd.f32 %v4391, %v4442
      %v4460 = vadd.f32 %v4392, %v4442
      %v4461 = vadd.f32 %v4393, %v4442
      %v4462 = vadd.f32 %v4394, %v4442
      %v4463 = vadd.f32 %v4395, %v4442
      %v4464 = vadd.f32 %v4396, %v4442
      %v4465 = vadd.f32 %v4397, %v4442
      %v4466 = vadd.f32 %v4398, %v4442
      %v4467 = vadd.f32 %v4399, %v4442
      %v4468 = vadd.f32 %v4400, %v4442
      %v4469 = vadd.f32 %v4401, %v4442
      %v4470 = vadd.f32 %v4402, %v4442
      %v4471 = vadd.f32 %v4403, %v4442
      %v4472 = vadd.f32 %v4404, %v4442
      %v4473 = vadd.f32 %v4405, %v4442
      %v4474 = vadd.f32 %v4406, %v4442
      %v4475 = vadd.f32 %v4407, %v4442
      %v4476 = vadd.f32 %v4408, %v4442
      %v4477 = vadd.f32 %v4409, %v4442
      %v4478 = vadd.f32 %v4410, %v4442
      %v4479 = vadd.f32 %v4411, %v4442
      %v4480 = vadd.f32 %v4412, %v4442
      %v4481 = vadd.f32 %v4413, %v4442
      %v4482 = vadd.f32 %v4414, %v4442
      %v4483 = vadd.f32 %v4415, %v4442
      %v4484 = vadd.f32 %v4416, %v4442
      %v4485 = vadd.f32 %v4417, %v4442
      %v4486 = vadd.f32 %v4418, %v4442
      %v4487 = vadd.f32 %v4419, %v4442
      %v4488 = vadd.f32 %v4420, %v4442
      %v4489 = vadd.f32 %v4421, %v4442
      %v4490 = vadd.f32 %v4422, %v4442
      %v4491 = vadd.f32 %v4423, %v4442
      %v4492 = vadd.f32 %v4424, %v4442
      %v4493 = vadd.f32 %v4425, %v4442
      %v4494 = vadd.f32 %v4426, %v4442
      %v4495 = vadd.f32 %v4427, %v4442
      %v4496 = vadd.f32 %v4428, %v4442
      %v4497 = vadd.f32 %v4429, %v4442
      %v4498 = vadd.f32 %v4430, %v4442
      %v4499 = vadd.f32 %v4431, %v4442
      %v4500 = vadd.f32 %v4432, %v4442
      %v4501 = vadd.f32 %v4433, %v4442
      %v4502 = vadd.f32 %v4434, %v4442
      %v4503 = vadd.f32 %v4435, %v4442
      %v4504 = vadd.f32 %v4436, %v4442
      %v4505 = vadd.f32 %v4437, %v4442
      %v4506 = vadd.f32 %v4438, %v4442
      %v4507 = vadd.f32 %v4439, %v4442
      %v4508 = vmax.f32 %v4444, 0.0
      %v4509 = vmax.f32 %v4445, 0.0
      %v4510 = vmax.f32 %v4446, 0.0
      %v4511 = vmax.f32 %v4447, 0.0
      %v4512 = vmax.f32 %v4448, 0.0
      %v4513 = vmax.f32 %v4449, 0.0
      %v4514 = vmax.f32 %v4450, 0.0
      %v4515 = vmax.f32 %v4451, 0.0
      %v4516 = vmax.f32 %v4452, 0.0
      %v4517 = vmax.f32 %v4453, 0.0
      %v4518 = vmax.f32 %v4454, 0.0
      %v4519 = vmax.f32 %v4455, 0.0
      %v4520 = vmax.f32 %v4456, 0.0
      %v4521 = vmax.f32 %v4457, 0.0
      %v4522 = vmax.f32 %v4458, 0.0
      %v4523 = vmax.f32 %v4459, 0.0
      %v4524 = vmax.f32 %v4460, 0.0
      %v4525 = vmax.f32 %v4461, 0.0
      %v4526 = vmax.f32 %v4462, 0.0
      %v4527 = vmax.f32 %v4463, 0.0
      %v4528 = vmax.f32 %v4464, 0.0
      %v4529 = vmax.f32 %v4465, 0.0
      %v4530 = vmax.f32 %v4466, 0.0
      %v4531 = vmax.f32 %v4467, 0.0
      %v4532 = vmax.f32 %v4468, 0.0
      %v4533 = vmax.f32 %v4469, 0.0
      %v4534 = vmax.f32 %v4470, 0.0
      %v4535 = vmax.f32 %v4471, 0.0
      %v4536 = vmax.f32 %v4472, 0.0
      %v4537 = vmax.f32 %v4473, 0.0
      %v4538 = vmax.f32 %v4474, 0.0
      %v4539 = vmax.f32 %v4475, 0.0
      %v4540 = vmax.f32 %v4476, 0.0
      %v4541 = vmax.f32 %v4477, 0.0
      %v4542 = vmax.f32 %v4478, 0.0
      %v4543 = vmax.f32 %v4479, 0.0
      %v4544 = vmax.f32 %v4480, 0.0
      %v4545 = vmax.f32 %v4481, 0.0
      %v4546 = vmax.f32 %v4482, 0.0
      %v4547 = vmax.f32 %v4483, 0.0
      %v4548 = vmax.f32 %v4484, 0.0
      %v4549 = vmax.f32 %v4485, 0.0
      %v4550 = vmax.f32 %v4486, 0.0
      %v4551 = vmax.f32 %v4487, 0.0
      %v4552 = vmax.f32 %v4488, 0.0
      %v4553 = vmax.f32 %v4489, 0.0
      %v4554 = vmax.f32 %v4490, 0.0
      %v4555 = vmax.f32 %v4491, 0.0
      %v4556 = vmax.f32 %v4492, 0.0
      %v4557 = vmax.f32 %v4493, 0.0
      %v4558 = vmax.f32 %v4494, 0.0
      %v4559 = vmax.f32 %v4495, 0.0
      %v4560 = vmax.f32 %v4496, 0.0
      %v4561 = vmax.f32 %v4497, 0.0
      %v4562 = vmax.f32 %v4498, 0.0
      %v4563 = vmax.f32 %v4499, 0.0
      %v4564 = vmax.f32 %v4500, 0.0
      %v4565 = vmax.f32 %v4501, 0.0
      %v4566 = vmax.f32 %v4502, 0.0
      %v4567 = vmax.f32 %v4503, 0.0
      %v4568 = vmax.f32 %v4504, 0.0
      %v4569 = vmax.f32 %v4505, 0.0
      %v4570 = vmax.f32 %v4506, 0.0
      %v4571 = vmax.f32 %v4507, 0.0
      %v4572 = vpack.c.bf16 %v4508, %v4508
      %v4573 = vpack.c.bf16 %v4509, %v4509
      %v4574 = vpack.c.bf16 %v4510, %v4510
      %v4575 = vpack.c.bf16 %v4511, %v4511
      %v4576 = vpack.c.bf16 %v4512, %v4512
      %v4577 = vpack.c.bf16 %v4513, %v4513
      %v4578 = vpack.c.bf16 %v4514, %v4514
      %v4579 = vpack.c.bf16 %v4515, %v4515
      %v4580 = vpack.c.bf16 %v4516, %v4516
      %v4581 = vpack.c.bf16 %v4517, %v4517
      %v4582 = vpack.c.bf16 %v4518, %v4518
      %v4583 = vpack.c.bf16 %v4519, %v4519
      %v4584 = vpack.c.bf16 %v4520, %v4520
      %v4585 = vpack.c.bf16 %v4521, %v4521
      %v4586 = vpack.c.bf16 %v4522, %v4522
      %v4587 = vpack.c.bf16 %v4523, %v4523
      %v4588 = vpack.c.bf16 %v4524, %v4524
      %v4589 = vpack.c.bf16 %v4525, %v4525
      %v4590 = vpack.c.bf16 %v4526, %v4526
      %v4591 = vpack.c.bf16 %v4527, %v4527
      %v4592 = vpack.c.bf16 %v4528, %v4528
      %v4593 = vpack.c.bf16 %v4529, %v4529
      %v4594 = vpack.c.bf16 %v4530, %v4530
      %v4595 = vpack.c.bf16 %v4531, %v4531
      %v4596 = vpack.c.bf16 %v4532, %v4532
      %v4597 = vpack.c.bf16 %v4533, %v4533
      %v4598 = vpack.c.bf16 %v4534, %v4534
      %v4599 = vpack.c.bf16 %v4535, %v4535
      %v4600 = vpack.c.bf16 %v4536, %v4536
      %v4601 = vpack.c.bf16 %v4537, %v4537
      %v4602 = vpack.c.bf16 %v4538, %v4538
      %v4603 = vpack.c.bf16 %v4539, %v4539
      %v4604 = vpack.c.bf16 %v4540, %v4540
      %v4605 = vpack.c.bf16 %v4541, %v4541
      %v4606 = vpack.c.bf16 %v4542, %v4542
      %v4607 = vpack.c.bf16 %v4543, %v4543
      %v4608 = vpack.c.bf16 %v4544, %v4544
      %v4609 = vpack.c.bf16 %v4545, %v4545
      %v4610 = vpack.c.bf16 %v4546, %v4546
      %v4611 = vpack.c.bf16 %v4547, %v4547
      %v4612 = vpack.c.bf16 %v4548, %v4548
      %v4613 = vpack.c.bf16 %v4549, %v4549
      %v4614 = vpack.c.bf16 %v4550, %v4550
      %v4615 = vpack.c.bf16 %v4551, %v4551
      %v4616 = vpack.c.bf16 %v4552, %v4552
      %v4617 = vpack.c.bf16 %v4553, %v4553
      %v4618 = vpack.c.bf16 %v4554, %v4554
      %v4619 = vpack.c.bf16 %v4555, %v4555
      %v4620 = vpack.c.bf16 %v4556, %v4556
      %v4621 = vpack.c.bf16 %v4557, %v4557
      %v4622 = vpack.c.bf16 %v4558, %v4558
      %v4623 = vpack.c.bf16 %v4559, %v4559
      %v4624 = vpack.c.bf16 %v4560, %v4560
      %v4625 = vpack.c.bf16 %v4561, %v4561
      %v4626 = vpack.c.bf16 %v4562, %v4562
      %v4627 = vpack.c.bf16 %v4563, %v4563
      %v4628 = vpack.c.bf16 %v4564, %v4564
      %v4629 = vpack.c.bf16 %v4565, %v4565
      %v4630 = vpack.c.bf16 %v4566, %v4566
      %v4631 = vpack.c.bf16 %v4567, %v4567
      %v4632 = vpack.c.bf16 %v4568, %v4568
      %v4633 = vpack.c.bf16 %v4569, %v4569
      %v4634 = vpack.c.bf16 %v4570, %v4570
      %v4635 = vpack.c.bf16 %v4571, %v4571
      %4636 = vst [vmem:[%s235] sm:$0xf] %v4572
      %4637 = vst [vmem:[%s235 + $0x4] sm:$0xf] %v4573
      %4638 = vst [vmem:[%s235 + $0x8] sm:$0xf] %v4574
      %4639 = vst [vmem:[%s235 + $0xc] sm:$0xf] %v4575
      %4640 = vst [vmem:[%s235 + $0x10] sm:$0xf] %v4576
      %4641 = vst [vmem:[%s235 + $0x14] sm:$0xf] %v4577
      %4642 = vst [vmem:[%s235 + $0x18] sm:$0xf] %v4578
      %4643 = vst [vmem:[%s235 + $0x1c] sm:$0xf] %v4579
      %4644 = vst [vmem:[%s235 + $0x20] sm:$0xf] %v4580
      %4645 = vst [vmem:[%s235 + $0x24] sm:$0xf] %v4581
      %4646 = vst [vmem:[%s235 + $0x28] sm:$0xf] %v4582
      %4647 = vst [vmem:[%s235 + $0x2c] sm:$0xf] %v4583
      %4648 = vst [vmem:[%s235 + $0x30] sm:$0xf] %v4584
      %4649 = vst [vmem:[%s235 + $0x34] sm:$0xf] %v4585
      %4650 = vst [vmem:[%s235 + $0x38] sm:$0xf] %v4586
      %4651 = vst [vmem:[%s235 + $0x3c] sm:$0xf] %v4587
      %4652 = vst [vmem:[%s235 + $0x40] sm:$0xf] %v4588
      %4653 = vst [vmem:[%s235 + $0x44] sm:$0xf] %v4589
      %4654 = vst [vmem:[%s235 + $0x48] sm:$0xf] %v4590
      %4655 = vst [vmem:[%s235 + $0x4c] sm:$0xf] %v4591
      %4656 = vst [vmem:[%s235 + $0x50] sm:$0xf] %v4592
      %4657 = vst [vmem:[%s235 + $0x54] sm:$0xf] %v4593
      %4658 = vst [vmem:[%s235 + $0x58] sm:$0xf] %v4594
      %4659 = vst [vmem:[%s235 + $0x5c] sm:$0xf] %v4595
      %4660 = vst [vmem:[%s235 + $0x60] sm:$0xf] %v4596
      %4661 = vst [vmem:[%s235 + $0x64] sm:$0xf] %v4597
      %4662 = vst [vmem:[%s235 + $0x68] sm:$0xf] %v4598
      %4663 = vst [vmem:[%s235 + $0x6c] sm:$0xf] %v4599
      %4664 = vst [vmem:[%s235 + $0x70] sm:$0xf] %v4600
      %4665 = vst [vmem:[%s235 + $0x74] sm:$0xf] %v4601
      %4666 = vst [vmem:[%s235 + $0x78] sm:$0xf] %v4602
      %4667 = vst [vmem:[%s235 + $0x7c] sm:$0xf] %v4603
      %4668 = vst [vmem:[%s235 + $0x80] sm:$0xf] %v4604
      %4669 = vst [vmem:[%s235 + $0x84] sm:$0xf] %v4605
      %4670 = vst [vmem:[%s235 + $0x88] sm:$0xf] %v4606
      %4671 = vst [vmem:[%s235 + $0x8c] sm:$0xf] %v4607
      %4672 = vst [vmem:[%s235 + $0x90] sm:$0xf] %v4608
      %4673 = vst [vmem:[%s235 + $0x94] sm:$0xf] %v4609
      %4674 = vst [vmem:[%s235 + $0x98] sm:$0xf] %v4610
      %4675 = vst [vmem:[%s235 + $0x9c] sm:$0xf] %v4611
      %4676 = vst [vmem:[%s235 + $0xa0] sm:$0xf] %v4612
      %4677 = vst [vmem:[%s235 + $0xa4] sm:$0xf] %v4613
      %4678 = vst [vmem:[%s235 + $0xa8] sm:$0xf] %v4614
      %4679 = vst [vmem:[%s235 + $0xac] sm:$0xf] %v4615
      %4680 = vst [vmem:[%s235 + $0xb0] sm:$0xf] %v4616
      %4681 = vst [vmem:[%s235 + $0xb4] sm:$0xf] %v4617
      %4682 = vst [vmem:[%s235 + $0xb8] sm:$0xf] %v4618
      %4683 = vst [vmem:[%s235 + $0xbc] sm:$0xf] %v4619
      %4684 = vst [vmem:[%s235 + $0xc0] sm:$0xf] %v4620
      %4685 = vst [vmem:[%s235 + $0xc4] sm:$0xf] %v4621
      %4686 = vst [vmem:[%s235 + $0xc8] sm:$0xf] %v4622
      %4687 = vst [vmem:[%s235 + $0xcc] sm:$0xf] %v4623
      %4688 = vst [vmem:[%s235 + $0xd0] sm:$0xf] %v4624
      %4689 = vst [vmem:[%s235 + $0xd4] sm:$0xf] %v4625
      %4690 = vst [vmem:[%s235 + $0xd8] sm:$0xf] %v4626
      %4691 = vst [vmem:[%s235 + $0xdc] sm:$0xf] %v4627
      %4692 = vst [vmem:[%s235 + $0xe0] sm:$0xf] %v4628
      %4693 = vst [vmem:[%s235 + $0xe4] sm:$0xf] %v4629
      %4694 = vst [vmem:[%s235 + $0xe8] sm:$0xf] %v4630
      %4695 = vst [vmem:[%s235 + $0xec] sm:$0xf] %v4631
      %4696 = vst [vmem:[%s235 + $0xf0] sm:$0xf] %v4632
      %4697 = vst [vmem:[%s235 + $0xf4] sm:$0xf] %v4633
      %4698 = vst [vmem:[%s235 + $0xf8] sm:$0xf] %v4634
      %4699 = vst [vmem:[%s235 + $0xfc] sm:$0xf] %v4635
      %s4700 = smul.u32 64, %s15
      %p4701 = scmp.lt.s32.totalorder %s4700, 127
      %s4702 = scalar_select %p4701, %s4700, 127
      %s4703 = smul.addr %s4702, 4
      %s4704 = scalar_lea.vmem %s4, %s4703
      // Predicated region
      $region37: #{dlf_convnet3_forward.4} parent=35 // pred_check
        %p4705 = pneg %p131
      $region38: #{dlf_convnet3_forward.4} parent=35 // pred_check_branch
        %4707 = sbr.rel (%p4705) target = $region40
      $region39: #{dlf_convnet3_forward.4} parent=35 // pred_region
        %s4708 = smul.u32 64, %s15
      $region40: #{dlf_convnet3_forward.4} parent=35 // pred_fallthru
        _
    $region36: #{dlf_convnet3_forward.4} parent=5 // pred_fallthru
      _
    %p4709 = scmp.le.s32.totalorder 2, %s10
    // Predicated region
    $region41: #{dlf_convnet3_forward.4} parent=5 // pred_check
      %p4710 = pneg %p4709
    $region42: #{dlf_convnet3_forward.4} parent=5 // pred_check_branch
      %4712 = sbr.rel (%p4710) target = $region44
    $region43: #{dlf_convnet3_forward.4} parent=5 // pred_region
      %s4713 = ssub.s32 %s10, 2
      // Predicated region
      $region45: #{dlf_convnet3_forward.4} parent=43 // pred_check
        %p4714 = pneg %p137
      $region46: #{dlf_convnet3_forward.4} parent=43 // pred_check_branch
        %4716 = sbr.rel (%p4714) target = $region48
      $region47: #{dlf_convnet3_forward.4} parent=43 // pred_region
        %s4717 = smul.u32 64, %s16
        %p4718 = scmp.lt.s32.totalorder %s4717, 127
        %s4719 = scalar_select %p4718, %s4717, 127
        %s4720 = smul.addr %s4719, 4
        %s4721 = scalar_lea.vmem %s4, %s4720
      $region48: #{dlf_convnet3_forward.4} parent=43 // pred_fallthru
        _
    $region44: #{dlf_convnet3_forward.4} parent=5 // pred_fallthru
      _
  $region6: #{dlf_convnet3_forward.4} parent=0 // loop_footer
    %s14 = sadd.s32 1, %s10
  $region7: #{dlf_convnet3_forward.4} parent=0 // loop_footer_branch
    %9 = sbr.rel target = $region3
  $region8: #{dlf_convnet3_forward.4} parent=0 // loop_exit
    _

// kernel: dlf_convnet3_forward.5
$region0: #{dlf_convnet3_forward.5}
  #allocation0 [shape = 'u32[]', space=smem, size = 0x4, offset = 0x4, fixed_abs, tag = 'smem constant byte address 0x4 - core index']
  #allocation1 [shape = 'u32[72,128]{1,0:T(1,128)}', space=vmem, size = 0x9000, scoped, tag = 'internal scratch']
  %s0 = inlined_call_operand.vmem [shape: bf16[2,8192], index: 0, kind: input, shape index: {}]
  %s1 = inlined_call_operand.vmem [shape: bf16[8192,256], index: 1, kind: input, shape index: {}]
  %s2 = inlined_call_operand.vmem [shape: f32[1,256], index: 2, kind: input, shape index: {}]
  %s3 = inlined_call_operand.vmem [shape: bf16[256,128], index: 3, kind: input, shape index: {}]
  %s4 = inlined_call_operand.vmem [shape: f32[1,128], index: 4, kind: input, shape index: {}]
  %s5 = inlined_call_operand.hbm [shape: f32[2,128], index: 5, kind: output, shape index: {0}]
  %s6 = inlined_call_operand.hbm [shape: f32[2,256], index: 6, kind: output, shape index: {1}]
  %7 = xla_tuple %s5, %s6
  %s8 = sld [smem:[#allocation0]]
  $region38: #{dlf_convnet3_forward.5} parent=0
    _
  %s10 = ssub.s32 1, %s8
  %s11 = scalar_select 0, %s10, %s8
  $region1: #{dlf_convnet3_forward.5} parent=0
    #allocation2 [shape = 'u8[1024]{0}', space=vmem, size = 0x400, scoped, tag = 'output window, operand 0, single buffered']
    #allocation3 [shape = 's32[1]{0}', space=sflag, size = 0x4, scoped, tag = 'scoped memory for dlf_convnet3_forward.5']
    #allocation4 [shape = 'u8[2048]{0}', space=vmem, size = 0x800, scoped, tag = 'output window, operand 1, single buffered']
    #allocation5 [shape = 's32[1]{0}', space=sflag, size = 0x4, scoped, tag = 'scoped memory for dlf_convnet3_forward.5']
    %12 = vsyncpa [#allocation3], 0
    %13 = vsyncpa [#allocation5], 0
    // Predicated region
    $region2: #{dlf_convnet3_forward.5} parent=1 // pred_check
      _
    $region3: #{dlf_convnet3_forward.5} parent=1 // pred_check_branch
      %15 = sbr.rel (0) target = $region5
    $region4: #{dlf_convnet3_forward.5} parent=1 // pred_region
      _
    $region5: #{dlf_convnet3_forward.5} parent=1 // pred_fallthru
      _
    // Predicated region
    $region6: #{dlf_convnet3_forward.5} parent=1 // pred_check
      _
    $region7: #{dlf_convnet3_forward.5} parent=1 // pred_check_branch
      %17 = sbr.rel (0) target = $region9
    $region8: #{dlf_convnet3_forward.5} parent=1 // pred_region
      _
    $region9: #{dlf_convnet3_forward.5} parent=1 // pred_fallthru
      _
    // Predicated region
    $region10: #{dlf_convnet3_forward.5} parent=1 // pred_check
      _
    $region11: #{dlf_convnet3_forward.5} parent=1 // pred_check_branch
      %19 = sbr.rel (0) target = $region13
    $region12: #{dlf_convnet3_forward.5} parent=1 // pred_region
      _
    $region13: #{dlf_convnet3_forward.5} parent=1 // pred_fallthru
      _
    // Predicated region
    $region14: #{dlf_convnet3_forward.5} parent=1 // pred_check
      _
    $region15: #{dlf_convnet3_forward.5} parent=1 // pred_check_branch
      %21 = sbr.rel (0) target = $region17
    $region16: #{dlf_convnet3_forward.5} parent=1 // pred_region
      _
    $region17: #{dlf_convnet3_forward.5} parent=1 // pred_fallthru
      _
    // Predicated region
    $region18: #{dlf_convnet3_forward.5} parent=1 // pred_check
      _
    $region19: #{dlf_convnet3_forward.5} parent=1 // pred_check_branch
      %23 = sbr.rel (0) target = $region21
    $region20: #{dlf_convnet3_forward.5} parent=1 // pred_region
      _
    $region21: #{dlf_convnet3_forward.5} parent=1 // pred_fallthru
      _
    %v24 = vld [vmem:[%s0] sm:$0xff]
    %v25 = vld [vmem:[%s0 + $0x8] sm:$0xff]
    %v26 = vld [vmem:[%s0 + $0x10] sm:$0xff]
    %v27 = vld [vmem:[%s0 + $0x18] sm:$0xff]
    %v28 = vld [vmem:[%s0 + $0x20] sm:$0xff]
    %v29 = vld [vmem:[%s0 + $0x28] sm:$0xff]
    %v30 = vld [vmem:[%s0 + $0x30] sm:$0xff]
    %v31 = vld [vmem:[%s0 + $0x38] sm:$0xff]
    %v32 = vld [vmem:[%s1] sm:$0xff]
    %v33 = vld [vmem:[%s1 + $0x8] sm:$0xff]
    %v34 = vld [vmem:[%s1 + $0x10] sm:$0xff]
    %v35 = vld [vmem:[%s1 + $0x18] sm:$0xff]
    %v36 = vld [vmem:[%s1 + $0x20] sm:$0xff]
    %v37 = vld [vmem:[%s1 + $0x28] sm:$0xff]
    %v38 = vld [vmem:[%s1 + $0x30] sm:$0xff]
    %v39 = vld [vmem:[%s1 + $0x38] sm:$0xff]
    %v40 = vld [vmem:[%s1 + $0x40] sm:$0xff]
    %v41 = vld [vmem:[%s1 + $0x48] sm:$0xff]
    %v42 = vld [vmem:[%s1 + $0x50] sm:$0xff]
    %v43 = vld [vmem:[%s1 + $0x58] sm:$0xff]
    %v44 = vld [vmem:[%s1 + $0x60] sm:$0xff]
    %v45 = vld [vmem:[%s1 + $0x68] sm:$0xff]
    %v46 = vld [vmem:[%s1 + $0x70] sm:$0xff]
    %v47 = vld [vmem:[%s1 + $0x78] sm:$0xff]
    %v48 = vld [vmem:[%s1 + $0x80] sm:$0xff]
    %v49 = vld [vmem:[%s1 + $0x88] sm:$0xff]
    %v50 = vld [vmem:[%s1 + $0x90] sm:$0xff]
    %v51 = vld [vmem:[%s1 + $0x98] sm:$0xff]
    %v52 = vld [vmem:[%s1 + $0xa0] sm:$0xff]
    %v53 = vld [vmem:[%s1 + $0xa8] sm:$0xff]
    %v54 = vld [vmem:[%s1 + $0xb0] sm:$0xff]
    %v55 = vld [vmem:[%s1 + $0xb8] sm:$0xff]
    %v56 = vld [vmem:[%s1 + $0xc0] sm:$0xff]
    %v57 = vld [vmem:[%s1 + $0xc8] sm:$0xff]
    %v58 = vld [vmem:[%s1 + $0xd0] sm:$0xff]
    %v59 = vld [vmem:[%s1 + $0xd8] sm:$0xff]
    %v60 = vld [vmem:[%s1 + $0xe0] sm:$0xff]
    %v61 = vld [vmem:[%s1 + $0xe8] sm:$0xff]
    %v62 = vld [vmem:[%s1 + $0xf0] sm:$0xff]
    %v63 = vld [vmem:[%s1 + $0xf8] sm:$0xff]
    %v64 = vld [vmem:[%s1 + $0x100] sm:$0xff]
    %v65 = vld [vmem:[%s1 + $0x108] sm:$0xff]
    %v66 = vld [vmem:[%s1 + $0x110] sm:$0xff]
    %v67 = vld [vmem:[%s1 + $0x118] sm:$0xff]
    %v68 = vld [vmem:[%s1 + $0x120] sm:$0xff]
    %v69 = vld [vmem:[%s1 + $0x128] sm:$0xff]
    %v70 = vld [vmem:[%s1 + $0x130] sm:$0xff]
    %v71 = vld [vmem:[%s1 + $0x138] sm:$0xff]
    %v72 = vld [vmem:[%s1 + $0x140] sm:$0xff]
    %v73 = vld [vmem:[%s1 + $0x148] sm:$0xff]
    %v74 = vld [vmem:[%s1 + $0x150] sm:$0xff]
    %v75 = vld [vmem:[%s1 + $0x158] sm:$0xff]
    %v76 = vld [vmem:[%s1 + $0x160] sm:$0xff]
    %v77 = vld [vmem:[%s1 + $0x168] sm:$0xff]
    %v78 = vld [vmem:[%s1 + $0x170] sm:$0xff]
    %v79 = vld [vmem:[%s1 + $0x178] sm:$0xff]
    %v80 = vld [vmem:[%s1 + $0x180] sm:$0xff]
    %v81 = vld [vmem:[%s1 + $0x188] sm:$0xff]
    %v82 = vld [vmem:[%s1 + $0x190] sm:$0xff]
    %v83 = vld [vmem:[%s1 + $0x198] sm:$0xff]
    %v84 = vld [vmem:[%s1 + $0x1a0] sm:$0xff]
    %v85 = vld [vmem:[%s1 + $0x1a8] sm:$0xff]
    %v86 = vld [vmem:[%s1 + $0x1b0] sm:$0xff]
    %v87 = vld [vmem:[%s1 + $0x1b8] sm:$0xff]
    %v88 = vld [vmem:[%s1 + $0x1c0] sm:$0xff]
    %v89 = vld [vmem:[%s1 + $0x1c8] sm:$0xff]
    %v90 = vld [vmem:[%s1 + $0x1d0] sm:$0xff]
    %v91 = vld [vmem:[%s1 + $0x1d8] sm:$0xff]
    %v92 = vld [vmem:[%s1 + $0x1e0] sm:$0xff]
    %v93 = vld [vmem:[%s1 + $0x1e8] sm:$0xff]
    %v94 = vld [vmem:[%s1 + $0x1f0] sm:$0xff]
    %v95 = vld [vmem:[%s1 + $0x1f8] sm:$0xff]
    %v96 = vld [vmem:[%s1 + $0x200] sm:$0xff]
    %v97 = vld [vmem:[%s1 + $0x208] sm:$0xff]
    %v98 = vld [vmem:[%s1 + $0x210] sm:$0xff]
    %v99 = vld [vmem:[%s1 + $0x218] sm:$0xff]
    %v100 = vld [vmem:[%s1 + $0x220] sm:$0xff]
    %v101 = vld [vmem:[%s1 + $0x228] sm:$0xff]
    %v102 = vld [vmem:[%s1 + $0x230] sm:$0xff]
    %v103 = vld [vmem:[%s1 + $0x238] sm:$0xff]
    %v104 = vld [vmem:[%s1 + $0x240] sm:$0xff]
    %v105 = vld [vmem:[%s1 + $0x248] sm:$0xff]
    %v106 = vld [vmem:[%s1 + $0x250] sm:$0xff]
    %v107 = vld [vmem:[%s1 + $0x258] sm:$0xff]
    %v108 = vld [vmem:[%s1 + $0x260] sm:$0xff]
    %v109 = vld [vmem:[%s1 + $0x268] sm:$0xff]
    %v110 = vld [vmem:[%s1 + $0x270] sm:$0xff]
    %v111 = vld [vmem:[%s1 + $0x278] sm:$0xff]
    %v112 = vld [vmem:[%s1 + $0x280] sm:$0xff]
    %v113 = vld [vmem:[%s1 + $0x288] sm:$0xff]
    %v114 = vld [vmem:[%s1 + $0x290] sm:$0xff]
    %v115 = vld [vmem:[%s1 + $0x298] sm:$0xff]
    %v116 = vld [vmem:[%s1 + $0x2a0] sm:$0xff]
    %v117 = vld [vmem:[%s1 + $0x2a8] sm:$0xff]
    %v118 = vld [vmem:[%s1 + $0x2b0] sm:$0xff]
    %v119 = vld [vmem:[%s1 + $0x2b8] sm:$0xff]
    %v120 = vld [vmem:[%s1 + $0x2c0] sm:$0xff]
    %v121 = vld [vmem:[%s1 + $0x2c8] sm:$0xff]
    %v122 = vld [vmem:[%s1 + $0x2d0] sm:$0xff]
    %v123 = vld [vmem:[%s1 + $0x2d8] sm:$0xff]
    %v124 = vld [vmem:[%s1 + $0x2e0] sm:$0xff]
    %v125 = vld [vmem:[%s1 + $0x2e8] sm:$0xff]
    %v126 = vld [vmem:[%s1 + $0x2f0] sm:$0xff]
    %v127 = vld [vmem:[%s1 + $0x2f8] sm:$0xff]
    %v128 = vld [vmem:[%s1 + $0x300] sm:$0xff]
    %v129 = vld [vmem:[%s1 + $0x308] sm:$0xff]
    %v130 = vld [vmem:[%s1 + $0x310] sm:$0xff]
    %v131 = vld [vmem:[%s1 + $0x318] sm:$0xff]
    %v132 = vld [vmem:[%s1 + $0x320] sm:$0xff]
    %v133 = vld [vmem:[%s1 + $0x328] sm:$0xff]
    %v134 = vld [vmem:[%s1 + $0x330] sm:$0xff]
    %v135 = vld [vmem:[%s1 + $0x338] sm:$0xff]
    %v136 = vld [vmem:[%s1 + $0x340] sm:$0xff]
    %v137 = vld [vmem:[%s1 + $0x348] sm:$0xff]
    %v138 = vld [vmem:[%s1 + $0x350] sm:$0xff]
    %v139 = vld [vmem:[%s1 + $0x358] sm:$0xff]
    %v140 = vld [vmem:[%s1 + $0x360] sm:$0xff]
    %v141 = vld [vmem:[%s1 + $0x368] sm:$0xff]
    %v142 = vld [vmem:[%s1 + $0x370] sm:$0xff]
    %v143 = vld [vmem:[%s1 + $0x378] sm:$0xff]
    %v144 = vld [vmem:[%s1 + $0x380] sm:$0xff]
    %v145 = vld [vmem:[%s1 + $0x388] sm:$0xff]
    %v146 = vld [vmem:[%s1 + $0x390] sm:$0xff]
    %v147 = vld [vmem:[%s1 + $0x398] sm:$0xff]
    %v148 = vld [vmem:[%s1 + $0x3a0] sm:$0xff]
    %v149 = vld [vmem:[%s1 + $0x3a8] sm:$0xff]
    %v150 = vld [vmem:[%s1 + $0x3b0] sm:$0xff]
    %v151 = vld [vmem:[%s1 + $0x3b8] sm:$0xff]
    %v152 = vld [vmem:[%s1 + $0x3c0] sm:$0xff]
    %v153 = vld [vmem:[%s1 + $0x3c8] sm:$0xff]
    %v154 = vld [vmem:[%s1 + $0x3d0] sm:$0xff]
    %v155 = vld [vmem:[%s1 + $0x3d8] sm:$0xff]
    %v156 = vld [vmem:[%s1 + $0x3e0] sm:$0xff]
    %v157 = vld [vmem:[%s1 + $0x3e8] sm:$0xff]
    %v158 = vld [vmem:[%s1 + $0x3f0] sm:$0xff]
    %v159 = vld [vmem:[%s1 + $0x3f8] sm:$0xff]
    %v160 = vld [vmem:[%s1 + $0x400] sm:$0xff]
    %v161 = vld [vmem:[%s1 + $0x408] sm:$0xff]
    %v162 = vld [vmem:[%s1 + $0x410] sm:$0xff]
    %v163 = vld [vmem:[%s1 + $0x418] sm:$0xff]
    %v164 = vld [vmem:[%s1 + $0x420] sm:$0xff]
    %v165 = vld [vmem:[%s1 + $0x428] sm:$0xff]
    %v166 = vld [vmem:[%s1 + $0x430] sm:$0xff]
    %v167 = vld [vmem:[%s1 + $0x438] sm:$0xff]
    %v168 = vld [vmem:[%s1 + $0x440] sm:$0xff]
    %v169 = vld [vmem:[%s1 + $0x448] sm:$0xff]
    %v170 = vld [vmem:[%s1 + $0x450] sm:$0xff]
    %v171 = vld [vmem:[%s1 + $0x458] sm:$0xff]
    %v172 = vld [vmem:[%s1 + $0x460] sm:$0xff]
    %v173 = vld [vmem:[%s1 + $0x468] sm:$0xff]
    %v174 = vld [vmem:[%s1 + $0x470] sm:$0xff]
    %v175 = vld [vmem:[%s1 + $0x478] sm:$0xff]
    %v176 = vld [vmem:[%s1 + $0x480] sm:$0xff]
    %v177 = vld [vmem:[%s1 + $0x488] sm:$0xff]
    %v178 = vld [vmem:[%s1 + $0x490] sm:$0xff]
    %v179 = vld [vmem:[%s1 + $0x498] sm:$0xff]
    %v180 = vld [vmem:[%s1 + $0x4a0] sm:$0xff]
    %v181 = vld [vmem:[%s1 + $0x4a8] sm:$0xff]
    %v182 = vld [vmem:[%s1 + $0x4b0] sm:$0xff]
    %v183 = vld [vmem:[%s1 + $0x4b8] sm:$0xff]
    %v184 = vld [vmem:[%s1 + $0x4c0] sm:$0xff]
    %v185 = vld [vmem:[%s1 + $0x4c8] sm:$0xff]
    %v186 = vld [vmem:[%s1 + $0x4d0] sm:$0xff]
    %v187 = vld [vmem:[%s1 + $0x4d8] sm:$0xff]
    %v188 = vld [vmem:[%s1 + $0x4e0] sm:$0xff]
    %v189 = vld [vmem:[%s1 + $0x4e8] sm:$0xff]
    %v190 = vld [vmem:[%s1 + $0x4f0] sm:$0xff]
    %v191 = vld [vmem:[%s1 + $0x4f8] sm:$0xff]
    %v192 = vld [vmem:[%s1 + $0x500] sm:$0xff]
    %v193 = vld [vmem:[%s1 + $0x508] sm:$0xff]
    %v194 = vld [vmem:[%s1 + $0x510] sm:$0xff]
    %v195 = vld [vmem:[%s1 + $0x518] sm:$0xff]
    %v196 = vld [vmem:[%s1 + $0x520] sm:$0xff]
    %v197 = vld [vmem:[%s1 + $0x528] sm:$0xff]
    %v198 = vld [vmem:[%s1 + $0x530] sm:$0xff]
    %v199 = vld [vmem:[%s1 + $0x538] sm:$0xff]
    %v200 = vld [vmem:[%s1 + $0x540] sm:$0xff]
    %v201 = vld [vmem:[%s1 + $0x548] sm:$0xff]
    %v202 = vld [vmem:[%s1 + $0x550] sm:$0xff]
    %v203 = vld [vmem:[%s1 + $0x558] sm:$0xff]
    %v204 = vld [vmem:[%s1 + $0x560] sm:$0xff]
    %v205 = vld [vmem:[%s1 + $0x568] sm:$0xff]
    %v206 = vld [vmem:[%s1 + $0x570] sm:$0xff]
    %v207 = vld [vmem:[%s1 + $0x578] sm:$0xff]
    %v208 = vld [vmem:[%s1 + $0x580] sm:$0xff]
    %v209 = vld [vmem:[%s1 + $0x588] sm:$0xff]
    %v210 = vld [vmem:[%s1 + $0x590] sm:$0xff]
    %v211 = vld [vmem:[%s1 + $0x598] sm:$0xff]
    %v212 = vld [vmem:[%s1 + $0x5a0] sm:$0xff]
    %v213 = vld [vmem:[%s1 + $0x5a8] sm:$0xff]
    %v214 = vld [vmem:[%s1 + $0x5b0] sm:$0xff]
    %v215 = vld [vmem:[%s1 + $0x5b8] sm:$0xff]
    %v216 = vld [vmem:[%s1 + $0x5c0] sm:$0xff]
    %v217 = vld [vmem:[%s1 + $0x5c8] sm:$0xff]
    %v218 = vld [vmem:[%s1 + $0x5d0] sm:$0xff]
    %v219 = vld [vmem:[%s1 + $0x5d8] sm:$0xff]
    %v220 = vld [vmem:[%s1 + $0x5e0] sm:$0xff]
    %v221 = vld [vmem:[%s1 + $0x5e8] sm:$0xff]
    %v222 = vld [vmem:[%s1 + $0x5f0] sm:$0xff]
    %v223 = vld [vmem:[%s1 + $0x5f8] sm:$0xff]
    %v224 = vld [vmem:[%s1 + $0x600] sm:$0xff]
    %v225 = vld [vmem:[%s1 + $0x608] sm:$0xff]
    %v226 = vld [vmem:[%s1 + $0x610] sm:$0xff]
    %v227 = vld [vmem:[%s1 + $0x618] sm:$0xff]
    %v228 = vld [vmem:[%s1 + $0x620] sm:$0xff]
    %v229 = vld [vmem:[%s1 + $0x628] sm:$0xff]
    %v230 = vld [vmem:[%s1 + $0x630] sm:$0xff]
    %v231 = vld [vmem:[%s1 + $0x638] sm:$0xff]
    %v232 = vld [vmem:[%s1 + $0x640] sm:$0xff]
    %v233 = vld [vmem:[%s1 + $0x648] sm:$0xff]
    %v234 = vld [vmem:[%s1 + $0x650] sm:$0xff]
    %v235 = vld [vmem:[%s1 + $0x658] sm:$0xff]
    %v236 = vld [vmem:[%s1 + $0x660] sm:$0xff]
    %v237 = vld [vmem:[%s1 + $0x668] sm:$0xff]
    %v238 = vld [vmem:[%s1 + $0x670] sm:$0xff]
    %v239 = vld [vmem:[%s1 + $0x678] sm:$0xff]
    %v240 = vld [vmem:[%s1 + $0x680] sm:$0xff]
    %v241 = vld [vmem:[%s1 + $0x688] sm:$0xff]
    %v242 = vld [vmem:[%s1 + $0x690] sm:$0xff]
    %v243 = vld [vmem:[%s1 + $0x698] sm:$0xff]
    %v244 = vld [vmem:[%s1 + $0x6a0] sm:$0xff]
    %v245 = vld [vmem:[%s1 + $0x6a8] sm:$0xff]
    %v246 = vld [vmem:[%s1 + $0x6b0] sm:$0xff]
    %v247 = vld [vmem:[%s1 + $0x6b8] sm:$0xff]
    %v248 = vld [vmem:[%s1 + $0x6c0] sm:$0xff]
    %v249 = vld [vmem:[%s1 + $0x6c8] sm:$0xff]
    %v250 = vld [vmem:[%s1 + $0x6d0] sm:$0xff]
    %v251 = vld [vmem:[%s1 + $0x6d8] sm:$0xff]
    %v252 = vld [vmem:[%s1 + $0x6e0] sm:$0xff]
    %v253 = vld [vmem:[%s1 + $0x6e8] sm:$0xff]
    %v254 = vld [vmem:[%s1 + $0x6f0] sm:$0xff]
    %v255 = vld [vmem:[%s1 + $0x6f8] sm:$0xff]
    %v256 = vld [vmem:[%s1 + $0x700] sm:$0xff]
    %v257 = vld [vmem:[%s1 + $0x708] sm:$0xff]
    %v258 = vld [vmem:[%s1 + $0x710] sm:$0xff]
    %v259 = vld [vmem:[%s1 + $0x718] sm:$0xff]
    %v260 = vld [vmem:[%s1 + $0x720] sm:$0xff]
    %v261 = vld [vmem:[%s1 + $0x728] sm:$0xff]
    %v262 = vld [vmem:[%s1 + $0x730] sm:$0xff]
    %v263 = vld [vmem:[%s1 + $0x738] sm:$0xff]
    %v264 = vld [vmem:[%s1 + $0x740] sm:$0xff]
    %v265 = vld [vmem:[%s1 + $0x748] sm:$0xff]
    %v266 = vld [vmem:[%s1 + $0x750] sm:$0xff]
    %v267 = vld [vmem:[%s1 + $0x758] sm:$0xff]
    %v268 = vld [vmem:[%s1 + $0x760] sm:$0xff]
    %v269 = vld [vmem:[%s1 + $0x768] sm:$0xff]
    %v270 = vld [vmem:[%s1 + $0x770] sm:$0xff]
    %v271 = vld [vmem:[%s1 + $0x778] sm:$0xff]
    %v272 = vld [vmem:[%s1 + $0x780] sm:$0xff]
    %v273 = vld [vmem:[%s1 + $0x788] sm:$0xff]
    %v274 = vld [vmem:[%s1 + $0x790] sm:$0xff]
    %v275 = vld [vmem:[%s1 + $0x798] sm:$0xff]
    %v276 = vld [vmem:[%s1 + $0x7a0] sm:$0xff]
    %v277 = vld [vmem:[%s1 + $0x7a8] sm:$0xff]
    %v278 = vld [vmem:[%s1 + $0x7b0] sm:$0xff]
    %v279 = vld [vmem:[%s1 + $0x7b8] sm:$0xff]
    %v280 = vld [vmem:[%s1 + $0x7c0] sm:$0xff]
    %v281 = vld [vmem:[%s1 + $0x7c8] sm:$0xff]
    %v282 = vld [vmem:[%s1 + $0x7d0] sm:$0xff]
    %v283 = vld [vmem:[%s1 + $0x7d8] sm:$0xff]
    %v284 = vld [vmem:[%s1 + $0x7e0] sm:$0xff]
    %v285 = vld [vmem:[%s1 + $0x7e8] sm:$0xff]
    %v286 = vld [vmem:[%s1 + $0x7f0] sm:$0xff]
    %v287 = vld [vmem:[%s1 + $0x7f8] sm:$0xff]
    %v288 = vld [vmem:[%s1 + $0x800] sm:$0xff]
    %v289 = vld [vmem:[%s1 + $0x808] sm:$0xff]
    %v290 = vld [vmem:[%s1 + $0x810] sm:$0xff]
    %v291 = vld [vmem:[%s1 + $0x818] sm:$0xff]
    %v292 = vld [vmem:[%s1 + $0x820] sm:$0xff]
    %v293 = vld [vmem:[%s1 + $0x828] sm:$0xff]
    %v294 = vld [vmem:[%s1 + $0x830] sm:$0xff]
    %v295 = vld [vmem:[%s1 + $0x838] sm:$0xff]
    %v296 = vld [vmem:[%s1 + $0x840] sm:$0xff]
    %v297 = vld [vmem:[%s1 + $0x848] sm:$0xff]
    %v298 = vld [vmem:[%s1 + $0x850] sm:$0xff]
    %v299 = vld [vmem:[%s1 + $0x858] sm:$0xff]
    %v300 = vld [vmem:[%s1 + $0x860] sm:$0xff]
    %v301 = vld [vmem:[%s1 + $0x868] sm:$0xff]
    %v302 = vld [vmem:[%s1 + $0x870] sm:$0xff]
    %v303 = vld [vmem:[%s1 + $0x878] sm:$0xff]
    %v304 = vld [vmem:[%s1 + $0x880] sm:$0xff]
    %v305 = vld [vmem:[%s1 + $0x888] sm:$0xff]
    %v306 = vld [vmem:[%s1 + $0x890] sm:$0xff]
    %v307 = vld [vmem:[%s1 + $0x898] sm:$0xff]
    %v308 = vld [vmem:[%s1 + $0x8a0] sm:$0xff]
    %v309 = vld [vmem:[%s1 + $0x8a8] sm:$0xff]
    %v310 = vld [vmem:[%s1 + $0x8b0] sm:$0xff]
    %v311 = vld [vmem:[%s1 + $0x8b8] sm:$0xff]
    %v312 = vld [vmem:[%s1 + $0x8c0] sm:$0xff]
    %v313 = vld [vmem:[%s1 + $0x8c8] sm:$0xff]
    %v314 = vld [vmem:[%s1 + $0x8d0] sm:$0xff]
    %v315 = vld [vmem:[%s1 + $0x8d8] sm:$0xff]
    %v316 = vld [vmem:[%s1 + $0x8e0] sm:$0xff]
    %v317 = vld [vmem:[%s1 + $0x8e8] sm:$0xff]
    %v318 = vld [vmem:[%s1 + $0x8f0] sm:$0xff]
    %v319 = vld [vmem:[%s1 + $0x8f8] sm:$0xff]
    %v320 = vld [vmem:[%s1 + $0x900] sm:$0xff]
    %v321 = vld [vmem:[%s1 + $0x908] sm:$0xff]
    %v322 = vld [vmem:[%s1 + $0x910] sm:$0xff]
    %v323 = vld [vmem:[%s1 + $0x918] sm:$0xff]
    %v324 = vld [vmem:[%s1 + $0x920] sm:$0xff]
    %v325 = vld [vmem:[%s1 + $0x928] sm:$0xff]
    %v326 = vld [vmem:[%s1 + $0x930] sm:$0xff]
    %v327 = vld [vmem:[%s1 + $0x938] sm:$0xff]
    %v328 = vld [vmem:[%s1 + $0x940] sm:$0xff]
    %v329 = vld [vmem:[%s1 + $0x948] sm:$0xff]
    %v330 = vld [vmem:[%s1 + $0x950] sm:$0xff]
    %v331 = vld [vmem:[%s1 + $0x958] sm:$0xff]
    %v332 = vld [vmem:[%s1 + $0x960] sm:$0xff]
    %v333 = vld [vmem:[%s1 + $0x968] sm:$0xff]
    %v334 = vld [vmem:[%s1 + $0x970] sm:$0xff]
    %v335 = vld [vmem:[%s1 + $0x978] sm:$0xff]
    %v336 = vld [vmem:[%s1 + $0x980] sm:$0xff]
    %v337 = vld [vmem:[%s1 + $0x988] sm:$0xff]
    %v338 = vld [vmem:[%s1 + $0x990] sm:$0xff]
    %v339 = vld [vmem:[%s1 + $0x998] sm:$0xff]
    %v340 = vld [vmem:[%s1 + $0x9a0] sm:$0xff]
    %v341 = vld [vmem:[%s1 + $0x9a8] sm:$0xff]
    %v342 = vld [vmem:[%s1 + $0x9b0] sm:$0xff]
    %v343 = vld [vmem:[%s1 + $0x9b8] sm:$0xff]
    %v344 = vld [vmem:[%s1 + $0x9c0] sm:$0xff]
    %v345 = vld [vmem:[%s1 + $0x9c8] sm:$0xff]
    %v346 = vld [vmem:[%s1 + $0x9d0] sm:$0xff]
    %v347 = vld [vmem:[%s1 + $0x9d8] sm:$0xff]
    %v348 = vld [vmem:[%s1 + $0x9e0] sm:$0xff]
    %v349 = vld [vmem:[%s1 + $0x9e8] sm:$0xff]
    %v350 = vld [vmem:[%s1 + $0x9f0] sm:$0xff]
    %v351 = vld [vmem:[%s1 + $0x9f8] sm:$0xff]
    %v352 = vld [vmem:[%s1 + $0xa00] sm:$0xff]
    %v353 = vld [vmem:[%s1 + $0xa08] sm:$0xff]
    %v354 = vld [vmem:[%s1 + $0xa10] sm:$0xff]
    %v355 = vld [vmem:[%s1 + $0xa18] sm:$0xff]
    %v356 = vld [vmem:[%s1 + $0xa20] sm:$0xff]
    %v357 = vld [vmem:[%s1 + $0xa28] sm:$0xff]
    %v358 = vld [vmem:[%s1 + $0xa30] sm:$0xff]
    %v359 = vld [vmem:[%s1 + $0xa38] sm:$0xff]
    %v360 = vld [vmem:[%s1 + $0xa40] sm:$0xff]
    %v361 = vld [vmem:[%s1 + $0xa48] sm:$0xff]
    %v362 = vld [vmem:[%s1 + $0xa50] sm:$0xff]
    %v363 = vld [vmem:[%s1 + $0xa58] sm:$0xff]
    %v364 = vld [vmem:[%s1 + $0xa60] sm:$0xff]
    %v365 = vld [vmem:[%s1 + $0xa68] sm:$0xff]
    %v366 = vld [vmem:[%s1 + $0xa70] sm:$0xff]
    %v367 = vld [vmem:[%s1 + $0xa78] sm:$0xff]
    %v368 = vld [vmem:[%s1 + $0xa80] sm:$0xff]
    %v369 = vld [vmem:[%s1 + $0xa88] sm:$0xff]
    %v370 = vld [vmem:[%s1 + $0xa90] sm:$0xff]
    %v371 = vld [vmem:[%s1 + $0xa98] sm:$0xff]
    %v372 = vld [vmem:[%s1 + $0xaa0] sm:$0xff]
    %v373 = vld [vmem:[%s1 + $0xaa8] sm:$0xff]
    %v374 = vld [vmem:[%s1 + $0xab0] sm:$0xff]
    %v375 = vld [vmem:[%s1 + $0xab8] sm:$0xff]
    %v376 = vld [vmem:[%s1 + $0xac0] sm:$0xff]
    %v377 = vld [vmem:[%s1 + $0xac8] sm:$0xff]
    %v378 = vld [vmem:[%s1 + $0xad0] sm:$0xff]
    %v379 = vld [vmem:[%s1 + $0xad8] sm:$0xff]
    %v380 = vld [vmem:[%s1 + $0xae0] sm:$0xff]
    %v381 = vld [vmem:[%s1 + $0xae8] sm:$0xff]
    %v382 = vld [vmem:[%s1 + $0xaf0] sm:$0xff]
    %v383 = vld [vmem:[%s1 + $0xaf8] sm:$0xff]
    %v384 = vld [vmem:[%s1 + $0xb00] sm:$0xff]
    %v385 = vld [vmem:[%s1 + $0xb08] sm:$0xff]
    %v386 = vld [vmem:[%s1 + $0xb10] sm:$0xff]
    %v387 = vld [vmem:[%s1 + $0xb18] sm:$0xff]
    %v388 = vld [vmem:[%s1 + $0xb20] sm:$0xff]
    %v389 = vld [vmem:[%s1 + $0xb28] sm:$0xff]
    %v390 = vld [vmem:[%s1 + $0xb30] sm:$0xff]
    %v391 = vld [vmem:[%s1 + $0xb38] sm:$0xff]
    %v392 = vld [vmem:[%s1 + $0xb40] sm:$0xff]
    %v393 = vld [vmem:[%s1 + $0xb48] sm:$0xff]
    %v394 = vld [vmem:[%s1 + $0xb50] sm:$0xff]
    %v395 = vld [vmem:[%s1 + $0xb58] sm:$0xff]
    %v396 = vld [vmem:[%s1 + $0xb60] sm:$0xff]
    %v397 = vld [vmem:[%s1 + $0xb68] sm:$0xff]
    %v398 = vld [vmem:[%s1 + $0xb70] sm:$0xff]
    %v399 = vld [vmem:[%s1 + $0xb78] sm:$0xff]
    %v400 = vld [vmem:[%s1 + $0xb80] sm:$0xff]
    %v401 = vld [vmem:[%s1 + $0xb88] sm:$0xff]
    %v402 = vld [vmem:[%s1 + $0xb90] sm:$0xff]
    %v403 = vld [vmem:[%s1 + $0xb98] sm:$0xff]
    %v404 = vld [vmem:[%s1 + $0xba0] sm:$0xff]
    %v405 = vld [vmem:[%s1 + $0xba8] sm:$0xff]
    %v406 = vld [vmem:[%s1 + $0xbb0] sm:$0xff]
    %v407 = vld [vmem:[%s1 + $0xbb8] sm:$0xff]
    %v408 = vld [vmem:[%s1 + $0xbc0] sm:$0xff]
    %v409 = vld [vmem:[%s1 + $0xbc8] sm:$0xff]
    %v410 = vld [vmem:[%s1 + $0xbd0] sm:$0xff]
    %v411 = vld [vmem:[%s1 + $0xbd8] sm:$0xff]
    %v412 = vld [vmem:[%s1 + $0xbe0] sm:$0xff]
    %v413 = vld [vmem:[%s1 + $0xbe8] sm:$0xff]
    %v414 = vld [vmem:[%s1 + $0xbf0] sm:$0xff]
    %v415 = vld [vmem:[%s1 + $0xbf8] sm:$0xff]
    %v416 = vld [vmem:[%s1 + $0xc00] sm:$0xff]
    %v417 = vld [vmem:[%s1 + $0xc08] sm:$0xff]
    %v418 = vld [vmem:[%s1 + $0xc10] sm:$0xff]
    %v419 = vld [vmem:[%s1 + $0xc18] sm:$0xff]
    %v420 = vld [vmem:[%s1 + $0xc20] sm:$0xff]
    %v421 = vld [vmem:[%s1 + $0xc28] sm:$0xff]
    %v422 = vld [vmem:[%s1 + $0xc30] sm:$0xff]
    %v423 = vld [vmem:[%s1 + $0xc38] sm:$0xff]
    %v424 = vld [vmem:[%s1 + $0xc40] sm:$0xff]
    %v425 = vld [vmem:[%s1 + $0xc48] sm:$0xff]
    %v426 = vld [vmem:[%s1 + $0xc50] sm:$0xff]
    %v427 = vld [vmem:[%s1 + $0xc58] sm:$0xff]
    %v428 = vld [vmem:[%s1 + $0xc60] sm:$0xff]
    %v429 = vld [vmem:[%s1 + $0xc68] sm:$0xff]
    %v430 = vld [vmem:[%s1 + $0xc70] sm:$0xff]
    %v431 = vld [vmem:[%s1 + $0xc78] sm:$0xff]
    %v432 = vld [vmem:[%s1 + $0xc80] sm:$0xff]
    %v433 = vld [vmem:[%s1 + $0xc88] sm:$0xff]
    %v434 = vld [vmem:[%s1 + $0xc90] sm:$0xff]
    %v435 = vld [vmem:[%s1 + $0xc98] sm:$0xff]
    %v436 = vld [vmem:[%s1 + $0xca0] sm:$0xff]
    %v437 = vld [vmem:[%s1 + $0xca8] sm:$0xff]
    %v438 = vld [vmem:[%s1 + $0xcb0] sm:$0xff]
    %v439 = vld [vmem:[%s1 + $0xcb8] sm:$0xff]
    %v440 = vld [vmem:[%s1 + $0xcc0] sm:$0xff]
    %v441 = vld [vmem:[%s1 + $0xcc8] sm:$0xff]
    %v442 = vld [vmem:[%s1 + $0xcd0] sm:$0xff]
    %v443 = vld [vmem:[%s1 + $0xcd8] sm:$0xff]
    %v444 = vld [vmem:[%s1 + $0xce0] sm:$0xff]
    %v445 = vld [vmem:[%s1 + $0xce8] sm:$0xff]
    %v446 = vld [vmem:[%s1 + $0xcf0] sm:$0xff]
    %v447 = vld [vmem:[%s1 + $0xcf8] sm:$0xff]
    %v448 = vld [vmem:[%s1 + $0xd00] sm:$0xff]
    %v449 = vld [vmem:[%s1 + $0xd08] sm:$0xff]
    %v450 = vld [vmem:[%s1 + $0xd10] sm:$0xff]
    %v451 = vld [vmem:[%s1 + $0xd18] sm:$0xff]
    %v452 = vld [vmem:[%s1 + $0xd20] sm:$0xff]
    %v453 = vld [vmem:[%s1 + $0xd28] sm:$0xff]
    %v454 = vld [vmem:[%s1 + $0xd30] sm:$0xff]
    %v455 = vld [vmem:[%s1 + $0xd38] sm:$0xff]
    %v456 = vld [vmem:[%s1 + $0xd40] sm:$0xff]
    %v457 = vld [vmem:[%s1 + $0xd48] sm:$0xff]
    %v458 = vld [vmem:[%s1 + $0xd50] sm:$0xff]
    %v459 = vld [vmem:[%s1 + $0xd58] sm:$0xff]
    %v460 = vld [vmem:[%s1 + $0xd60] sm:$0xff]
    %v461 = vld [vmem:[%s1 + $0xd68] sm:$0xff]
    %v462 = vld [vmem:[%s1 + $0xd70] sm:$0xff]
    %v463 = vld [vmem:[%s1 + $0xd78] sm:$0xff]
    %v464 = vld [vmem:[%s1 + $0xd80] sm:$0xff]
    %v465 = vld [vmem:[%s1 + $0xd88] sm:$0xff]
    %v466 = vld [vmem:[%s1 + $0xd90] sm:$0xff]
    %v467 = vld [vmem:[%s1 + $0xd98] sm:$0xff]
    %v468 = vld [vmem:[%s1 + $0xda0] sm:$0xff]
    %v469 = vld [vmem:[%s1 + $0xda8] sm:$0xff]
    %v470 = vld [vmem:[%s1 + $0xdb0] sm:$0xff]
    %v471 = vld [vmem:[%s1 + $0xdb8] sm:$0xff]
    %v472 = vld [vmem:[%s1 + $0xdc0] sm:$0xff]
    %v473 = vld [vmem:[%s1 + $0xdc8] sm:$0xff]
    %v474 = vld [vmem:[%s1 + $0xdd0] sm:$0xff]
    %v475 = vld [vmem:[%s1 + $0xdd8] sm:$0xff]
    %v476 = vld [vmem:[%s1 + $0xde0] sm:$0xff]
    %v477 = vld [vmem:[%s1 + $0xde8] sm:$0xff]
    %v478 = vld [vmem:[%s1 + $0xdf0] sm:$0xff]
    %v479 = vld [vmem:[%s1 + $0xdf8] sm:$0xff]
    %v480 = vld [vmem:[%s1 + $0xe00] sm:$0xff]
    %v481 = vld [vmem:[%s1 + $0xe08] sm:$0xff]
    %v482 = vld [vmem:[%s1 + $0xe10] sm:$0xff]
    %v483 = vld [vmem:[%s1 + $0xe18] sm:$0xff]
    %v484 = vld [vmem:[%s1 + $0xe20] sm:$0xff]
    %v485 = vld [vmem:[%s1 + $0xe28] sm:$0xff]
    %v486 = vld [vmem:[%s1 + $0xe30] sm:$0xff]
    %v487 = vld [vmem:[%s1 + $0xe38] sm:$0xff]
    %v488 = vld [vmem:[%s1 + $0xe40] sm:$0xff]
    %v489 = vld [vmem:[%s1 + $0xe48] sm:$0xff]
    %v490 = vld [vmem:[%s1 + $0xe50] sm:$0xff]
    %v491 = vld [vmem:[%s1 + $0xe58] sm:$0xff]
    %v492 = vld [vmem:[%s1 + $0xe60] sm:$0xff]
    %v493 = vld [vmem:[%s1 + $0xe68] sm:$0xff]
    %v494 = vld [vmem:[%s1 + $0xe70] sm:$0xff]
    %v495 = vld [vmem:[%s1 + $0xe78] sm:$0xff]
    %v496 = vld [vmem:[%s1 + $0xe80] sm:$0xff]
    %v497 = vld [vmem:[%s1 + $0xe88] sm:$0xff]
    %v498 = vld [vmem:[%s1 + $0xe90] sm:$0xff]
    %v499 = vld [vmem:[%s1 + $0xe98] sm:$0xff]
    %v500 = vld [vmem:[%s1 + $0xea0] sm:$0xff]
    %v501 = vld [vmem:[%s1 + $0xea8] sm:$0xff]
    %v502 = vld [vmem:[%s1 + $0xeb0] sm:$0xff]
    %v503 = vld [vmem:[%s1 + $0xeb8] sm:$0xff]
    %v504 = vld [vmem:[%s1 + $0xec0] sm:$0xff]
    %v505 = vld [vmem:[%s1 + $0xec8] sm:$0xff]
    %v506 = vld [vmem:[%s1 + $0xed0] sm:$0xff]
    %v507 = vld [vmem:[%s1 + $0xed8] sm:$0xff]
    %v508 = vld [vmem:[%s1 + $0xee0] sm:$0xff]
    %v509 = vld [vmem:[%s1 + $0xee8] sm:$0xff]
    %v510 = vld [vmem:[%s1 + $0xef0] sm:$0xff]
    %v511 = vld [vmem:[%s1 + $0xef8] sm:$0xff]
    %v512 = vld [vmem:[%s1 + $0xf00] sm:$0xff]
    %v513 = vld [vmem:[%s1 + $0xf08] sm:$0xff]
    %v514 = vld [vmem:[%s1 + $0xf10] sm:$0xff]
    %v515 = vld [vmem:[%s1 + $0xf18] sm:$0xff]
    %v516 = vld [vmem:[%s1 + $0xf20] sm:$0xff]
    %v517 = vld [vmem:[%s1 + $0xf28] sm:$0xff]
    %v518 = vld [vmem:[%s1 + $0xf30] sm:$0xff]
    %v519 = vld [vmem:[%s1 + $0xf38] sm:$0xff]
    %v520 = vld [vmem:[%s1 + $0xf40] sm:$0xff]
    %v521 = vld [vmem:[%s1 + $0xf48] sm:$0xff]
    %v522 = vld [vmem:[%s1 + $0xf50] sm:$0xff]
    %v523 = vld [vmem:[%s1 + $0xf58] sm:$0xff]
    %v524 = vld [vmem:[%s1 + $0xf60] sm:$0xff]
    %v525 = vld [vmem:[%s1 + $0xf68] sm:$0xff]
    %v526 = vld [vmem:[%s1 + $0xf70] sm:$0xff]
    %v527 = vld [vmem:[%s1 + $0xf78] sm:$0xff]
    %v528 = vld [vmem:[%s1 + $0xf80] sm:$0xff]
    %v529 = vld [vmem:[%s1 + $0xf88] sm:$0xff]
    %v530 = vld [vmem:[%s1 + $0xf90] sm:$0xff]
    %v531 = vld [vmem:[%s1 + $0xf98] sm:$0xff]
    %v532 = vld [vmem:[%s1 + $0xfa0] sm:$0xff]
    %v533 = vld [vmem:[%s1 + $0xfa8] sm:$0xff]
    %v534 = vld [vmem:[%s1 + $0xfb0] sm:$0xff]
    %v535 = vld [vmem:[%s1 + $0xfb8] sm:$0xff]
    %v536 = vld [vmem:[%s1 + $0xfc0] sm:$0xff]
    %v537 = vld [vmem:[%s1 + $0xfc8] sm:$0xff]
    %v538 = vld [vmem:[%s1 + $0xfd0] sm:$0xff]
    %v539 = vld [vmem:[%s1 + $0xfd8] sm:$0xff]
    %v540 = vld [vmem:[%s1 + $0xfe0] sm:$0xff]
    %v541 = vld [vmem:[%s1 + $0xfe8] sm:$0xff]
    %v542 = vld [vmem:[%s1 + $0xff0] sm:$0xff]
    %v543 = vld [vmem:[%s1 + $0xff8] sm:$0xff]
    %v544 = vld [vmem:[%s1 + $0x1000] sm:$0xff]
    %v545 = vld [vmem:[%s1 + $0x1008] sm:$0xff]
    %v546 = vld [vmem:[%s1 + $0x1010] sm:$0xff]
    %v547 = vld [vmem:[%s1 + $0x1018] sm:$0xff]
    %v548 = vld [vmem:[%s1 + $0x1020] sm:$0xff]
    %v549 = vld [vmem:[%s1 + $0x1028] sm:$0xff]
    %v550 = vld [vmem:[%s1 + $0x1030] sm:$0xff]
    %v551 = vld [vmem:[%s1 + $0x1038] sm:$0xff]
    %v552 = vld [vmem:[%s1 + $0x1040] sm:$0xff]
    %v553 = vld [vmem:[%s1 + $0x1048] sm:$0xff]
    %v554 = vld [vmem:[%s1 + $0x1050] sm:$0xff]
    %v555 = vld [vmem:[%s1 + $0x1058] sm:$0xff]
    %v556 = vld [vmem:[%s1 + $0x1060] sm:$0xff]
    %v557 = vld [vmem:[%s1 + $0x1068] sm:$0xff]
    %v558 = vld [vmem:[%s1 + $0x1070] sm:$0xff]
    %v559 = vld [vmem:[%s1 + $0x1078] sm:$0xff]
    %v560 = vld [vmem:[%s1 + $0x1080] sm:$0xff]
    %v561 = vld [vmem:[%s1 + $0x1088] sm:$0xff]
    %v562 = vld [vmem:[%s1 + $0x1090] sm:$0xff]
    %v563 = vld [vmem:[%s1 + $0x1098] sm:$0xff]
    %v564 = vld [vmem:[%s1 + $0x10a0] sm:$0xff]
    %v565 = vld [vmem:[%s1 + $0x10a8] sm:$0xff]
    %v566 = vld [vmem:[%s1 + $0x10b0] sm:$0xff]
    %v567 = vld [vmem:[%s1 + $0x10b8] sm:$0xff]
    %v568 = vld [vmem:[%s1 + $0x10c0] sm:$0xff]
    %v569 = vld [vmem:[%s1 + $0x10c8] sm:$0xff]
    %v570 = vld [vmem:[%s1 + $0x10d0] sm:$0xff]
    %v571 = vld [vmem:[%s1 + $0x10d8] sm:$0xff]
    %v572 = vld [vmem:[%s1 + $0x10e0] sm:$0xff]
    %v573 = vld [vmem:[%s1 + $0x10e8] sm:$0xff]
    %v574 = vld [vmem:[%s1 + $0x10f0] sm:$0xff]
    %v575 = vld [vmem:[%s1 + $0x10f8] sm:$0xff]
    %v576 = vld [vmem:[%s1 + $0x1100] sm:$0xff]
    %v577 = vld [vmem:[%s1 + $0x1108] sm:$0xff]
    %v578 = vld [vmem:[%s1 + $0x1110] sm:$0xff]
    %v579 = vld [vmem:[%s1 + $0x1118] sm:$0xff]
    %v580 = vld [vmem:[%s1 + $0x1120] sm:$0xff]
    %v581 = vld [vmem:[%s1 + $0x1128] sm:$0xff]
    %v582 = vld [vmem:[%s1 + $0x1130] sm:$0xff]
    %v583 = vld [vmem:[%s1 + $0x1138] sm:$0xff]
    %v584 = vld [vmem:[%s1 + $0x1140] sm:$0xff]
    %v585 = vld [vmem:[%s1 + $0x1148] sm:$0xff]
    %v586 = vld [vmem:[%s1 + $0x1150] sm:$0xff]
    %v587 = vld [vmem:[%s1 + $0x1158] sm:$0xff]
    %v588 = vld [vmem:[%s1 + $0x1160] sm:$0xff]
    %v589 = vld [vmem:[%s1 + $0x1168] sm:$0xff]
    %v590 = vld [vmem:[%s1 + $0x1170] sm:$0xff]
    %v591 = vld [vmem:[%s1 + $0x1178] sm:$0xff]
    %v592 = vld [vmem:[%s1 + $0x1180] sm:$0xff]
    %v593 = vld [vmem:[%s1 + $0x1188] sm:$0xff]
    %v594 = vld [vmem:[%s1 + $0x1190] sm:$0xff]
    %v595 = vld [vmem:[%s1 + $0x1198] sm:$0xff]
    %v596 = vld [vmem:[%s1 + $0x11a0] sm:$0xff]
    %v597 = vld [vmem:[%s1 + $0x11a8] sm:$0xff]
    %v598 = vld [vmem:[%s1 + $0x11b0] sm:$0xff]
    %v599 = vld [vmem:[%s1 + $0x11b8] sm:$0xff]
    %v600 = vld [vmem:[%s1 + $0x11c0] sm:$0xff]
    %v601 = vld [vmem:[%s1 + $0x11c8] sm:$0xff]
    %v602 = vld [vmem:[%s1 + $0x11d0] sm:$0xff]
    %v603 = vld [vmem:[%s1 + $0x11d8] sm:$0xff]
    %v604 = vld [vmem:[%s1 + $0x11e0] sm:$0xff]
    %v605 = vld [vmem:[%s1 + $0x11e8] sm:$0xff]
    %v606 = vld [vmem:[%s1 + $0x11f0] sm:$0xff]
    %v607 = vld [vmem:[%s1 + $0x11f8] sm:$0xff]
    %v608 = vld [vmem:[%s1 + $0x1200] sm:$0xff]
    %v609 = vld [vmem:[%s1 + $0x1208] sm:$0xff]
    %v610 = vld [vmem:[%s1 + $0x1210] sm:$0xff]
    %v611 = vld [vmem:[%s1 + $0x1218] sm:$0xff]
    %v612 = vld [vmem:[%s1 + $0x1220] sm:$0xff]
    %v613 = vld [vmem:[%s1 + $0x1228] sm:$0xff]
    %v614 = vld [vmem:[%s1 + $0x1230] sm:$0xff]
    %v615 = vld [vmem:[%s1 + $0x1238] sm:$0xff]
    %v616 = vld [vmem:[%s1 + $0x1240] sm:$0xff]
    %v617 = vld [vmem:[%s1 + $0x1248] sm:$0xff]
    %v618 = vld [vmem:[%s1 + $0x1250] sm:$0xff]
    %v619 = vld [vmem:[%s1 + $0x1258] sm:$0xff]
    %v620 = vld [vmem:[%s1 + $0x1260] sm:$0xff]
    %v621 = vld [vmem:[%s1 + $0x1268] sm:$0xff]
    %v622 = vld [vmem:[%s1 + $0x1270] sm:$0xff]
    %v623 = vld [vmem:[%s1 + $0x1278] sm:$0xff]
    %v624 = vld [vmem:[%s1 + $0x1280] sm:$0xff]
    %v625 = vld [vmem:[%s1 + $0x1288] sm:$0xff]
    %v626 = vld [vmem:[%s1 + $0x1290] sm:$0xff]
    %v627 = vld [vmem:[%s1 + $0x1298] sm:$0xff]
    %v628 = vld [vmem:[%s1 + $0x12a0] sm:$0xff]
    %v629 = vld [vmem:[%s1 + $0x12a8] sm:$0xff]
    %v630 = vld [vmem:[%s1 + $0x12b0] sm:$0xff]
    %v631 = vld [vmem:[%s1 + $0x12b8] sm:$0xff]
    %v632 = vld [vmem:[%s1 + $0x12c0] sm:$0xff]
    %v633 = vld [vmem:[%s1 + $0x12c8] sm:$0xff]
    %v634 = vld [vmem:[%s1 + $0x12d0] sm:$0xff]
    %v635 = vld [vmem:[%s1 + $0x12d8] sm:$0xff]
    %v636 = vld [vmem:[%s1 + $0x12e0] sm:$0xff]
    %v637 = vld [vmem:[%s1 + $0x12e8] sm:$0xff]
    %v638 = vld [vmem:[%s1 + $0x12f0] sm:$0xff]
    %v639 = vld [vmem:[%s1 + $0x12f8] sm:$0xff]
    %v640 = vld [vmem:[%s1 + $0x1300] sm:$0xff]
    %v641 = vld [vmem:[%s1 + $0x1308] sm:$0xff]
    %v642 = vld [vmem:[%s1 + $0x1310] sm:$0xff]
    %v643 = vld [vmem:[%s1 + $0x1318] sm:$0xff]
    %v644 = vld [vmem:[%s1 + $0x1320] sm:$0xff]
    %v645 = vld [vmem:[%s1 + $0x1328] sm:$0xff]
    %v646 = vld [vmem:[%s1 + $0x1330] sm:$0xff]
    %v647 = vld [vmem:[%s1 + $0x1338] sm:$0xff]
    %v648 = vld [vmem:[%s1 + $0x1340] sm:$0xff]
    %v649 = vld [vmem:[%s1 + $0x1348] sm:$0xff]
    %v650 = vld [vmem:[%s1 + $0x1350] sm:$0xff]
    %v651 = vld [vmem:[%s1 + $0x1358] sm:$0xff]
    %v652 = vld [vmem:[%s1 + $0x1360] sm:$0xff]
    %v653 = vld [vmem:[%s1 + $0x1368] sm:$0xff]
    %v654 = vld [vmem:[%s1 + $0x1370] sm:$0xff]
    %v655 = vld [vmem:[%s1 + $0x1378] sm:$0xff]
    %v656 = vld [vmem:[%s1 + $0x1380] sm:$0xff]
    %v657 = vld [vmem:[%s1 + $0x1388] sm:$0xff]
    %v658 = vld [vmem:[%s1 + $0x1390] sm:$0xff]
    %v659 = vld [vmem:[%s1 + $0x1398] sm:$0xff]
    %v660 = vld [vmem:[%s1 + $0x13a0] sm:$0xff]
    %v661 = vld [vmem:[%s1 + $0x13a8] sm:$0xff]
    %v662 = vld [vmem:[%s1 + $0x13b0] sm:$0xff]
    %v663 = vld [vmem:[%s1 + $0x13b8] sm:$0xff]
    %v664 = vld [vmem:[%s1 + $0x13c0] sm:$0xff]
    %v665 = vld [vmem:[%s1 + $0x13c8] sm:$0xff]
    %v666 = vld [vmem:[%s1 + $0x13d0] sm:$0xff]
    %v667 = vld [vmem:[%s1 + $0x13d8] sm:$0xff]
    %v668 = vld [vmem:[%s1 + $0x13e0] sm:$0xff]
    %v669 = vld [vmem:[%s1 + $0x13e8] sm:$0xff]
    %v670 = vld [vmem:[%s1 + $0x13f0] sm:$0xff]
    %v671 = vld [vmem:[%s1 + $0x13f8] sm:$0xff]
    %v672 = vld [vmem:[%s1 + $0x1400] sm:$0xff]
    %v673 = vld [vmem:[%s1 + $0x1408] sm:$0xff]
    %v674 = vld [vmem:[%s1 + $0x1410] sm:$0xff]
    %v675 = vld [vmem:[%s1 + $0x1418] sm:$0xff]
    %v676 = vld [vmem:[%s1 + $0x1420] sm:$0xff]
    %v677 = vld [vmem:[%s1 + $0x1428] sm:$0xff]
    %v678 = vld [vmem:[%s1 + $0x1430] sm:$0xff]
    %v679 = vld [vmem:[%s1 + $0x1438] sm:$0xff]
    %v680 = vld [vmem:[%s1 + $0x1440] sm:$0xff]
    %v681 = vld [vmem:[%s1 + $0x1448] sm:$0xff]
    %v682 = vld [vmem:[%s1 + $0x1450] sm:$0xff]
    %v683 = vld [vmem:[%s1 + $0x1458] sm:$0xff]
    %v684 = vld [vmem:[%s1 + $0x1460] sm:$0xff]
    %v685 = vld [vmem:[%s1 + $0x1468] sm:$0xff]
    %v686 = vld [vmem:[%s1 + $0x1470] sm:$0xff]
    %v687 = vld [vmem:[%s1 + $0x1478] sm:$0xff]
    %v688 = vld [vmem:[%s1 + $0x1480] sm:$0xff]
    %v689 = vld [vmem:[%s1 + $0x1488] sm:$0xff]
    %v690 = vld [vmem:[%s1 + $0x1490] sm:$0xff]
    %v691 = vld [vmem:[%s1 + $0x1498] sm:$0xff]
    %v692 = vld [vmem:[%s1 + $0x14a0] sm:$0xff]
    %v693 = vld [vmem:[%s1 + $0x14a8] sm:$0xff]
    %v694 = vld [vmem:[%s1 + $0x14b0] sm:$0xff]
    %v695 = vld [vmem:[%s1 + $0x14b8] sm:$0xff]
    %v696 = vld [vmem:[%s1 + $0x14c0] sm:$0xff]
    %v697 = vld [vmem:[%s1 + $0x14c8] sm:$0xff]
    %v698 = vld [vmem:[%s1 + $0x14d0] sm:$0xff]
    %v699 = vld [vmem:[%s1 + $0x14d8] sm:$0xff]
    %v700 = vld [vmem:[%s1 + $0x14e0] sm:$0xff]
    %v701 = vld [vmem:[%s1 + $0x14e8] sm:$0xff]
    %v702 = vld [vmem:[%s1 + $0x14f0] sm:$0xff]
    %v703 = vld [vmem:[%s1 + $0x14f8] sm:$0xff]
    %v704 = vld [vmem:[%s1 + $0x1500] sm:$0xff]
    %v705 = vld [vmem:[%s1 + $0x1508] sm:$0xff]
    %v706 = vld [vmem:[%s1 + $0x1510] sm:$0xff]
    %v707 = vld [vmem:[%s1 + $0x1518] sm:$0xff]
    %v708 = vld [vmem:[%s1 + $0x1520] sm:$0xff]
    %v709 = vld [vmem:[%s1 + $0x1528] sm:$0xff]
    %v710 = vld [vmem:[%s1 + $0x1530] sm:$0xff]
    %v711 = vld [vmem:[%s1 + $0x1538] sm:$0xff]
    %v712 = vld [vmem:[%s1 + $0x1540] sm:$0xff]
    %v713 = vld [vmem:[%s1 + $0x1548] sm:$0xff]
    %v714 = vld [vmem:[%s1 + $0x1550] sm:$0xff]
    %v715 = vld [vmem:[%s1 + $0x1558] sm:$0xff]
    %v716 = vld [vmem:[%s1 + $0x1560] sm:$0xff]
    %v717 = vld [vmem:[%s1 + $0x1568] sm:$0xff]
    %v718 = vld [vmem:[%s1 + $0x1570] sm:$0xff]
    %v719 = vld [vmem:[%s1 + $0x1578] sm:$0xff]
    %v720 = vld [vmem:[%s1 + $0x1580] sm:$0xff]
    %v721 = vld [vmem:[%s1 + $0x1588] sm:$0xff]
    %v722 = vld [vmem:[%s1 + $0x1590] sm:$0xff]
    %v723 = vld [vmem:[%s1 + $0x1598] sm:$0xff]
    %v724 = vld [vmem:[%s1 + $0x15a0] sm:$0xff]
    %v725 = vld [vmem:[%s1 + $0x15a8] sm:$0xff]
    %v726 = vld [vmem:[%s1 + $0x15b0] sm:$0xff]
    %v727 = vld [vmem:[%s1 + $0x15b8] sm:$0xff]
    %v728 = vld [vmem:[%s1 + $0x15c0] sm:$0xff]
    %v729 = vld [vmem:[%s1 + $0x15c8] sm:$0xff]
    %v730 = vld [vmem:[%s1 + $0x15d0] sm:$0xff]
    %v731 = vld [vmem:[%s1 + $0x15d8] sm:$0xff]
    %v732 = vld [vmem:[%s1 + $0x15e0] sm:$0xff]
    %v733 = vld [vmem:[%s1 + $0x15e8] sm:$0xff]
    %v734 = vld [vmem:[%s1 + $0x15f0] sm:$0xff]
    %v735 = vld [vmem:[%s1 + $0x15f8] sm:$0xff]
    %v736 = vld [vmem:[%s1 + $0x1600] sm:$0xff]
    %v737 = vld [vmem:[%s1 + $0x1608] sm:$0xff]
    %v738 = vld [vmem:[%s1 + $0x1610] sm:$0xff]
    %v739 = vld [vmem:[%s1 + $0x1618] sm:$0xff]
    %v740 = vld [vmem:[%s1 + $0x1620] sm:$0xff]
    %v741 = vld [vmem:[%s1 + $0x1628] sm:$0xff]
    %v742 = vld [vmem:[%s1 + $0x1630] sm:$0xff]
    %v743 = vld [vmem:[%s1 + $0x1638] sm:$0xff]
    %v744 = vld [vmem:[%s1 + $0x1640] sm:$0xff]
    %v745 = vld [vmem:[%s1 + $0x1648] sm:$0xff]
    %v746 = vld [vmem:[%s1 + $0x1650] sm:$0xff]
    %v747 = vld [vmem:[%s1 + $0x1658] sm:$0xff]
    %v748 = vld [vmem:[%s1 + $0x1660] sm:$0xff]
    %v749 = vld [vmem:[%s1 + $0x1668] sm:$0xff]
    %v750 = vld [vmem:[%s1 + $0x1670] sm:$0xff]
    %v751 = vld [vmem:[%s1 + $0x1678] sm:$0xff]
    %v752 = vld [vmem:[%s1 + $0x1680] sm:$0xff]
    %v753 = vld [vmem:[%s1 + $0x1688] sm:$0xff]
    %v754 = vld [vmem:[%s1 + $0x1690] sm:$0xff]
    %v755 = vld [vmem:[%s1 + $0x1698] sm:$0xff]
    %v756 = vld [vmem:[%s1 + $0x16a0] sm:$0xff]
    %v757 = vld [vmem:[%s1 + $0x16a8] sm:$0xff]
    %v758 = vld [vmem:[%s1 + $0x16b0] sm:$0xff]
    %v759 = vld [vmem:[%s1 + $0x16b8] sm:$0xff]
    %v760 = vld [vmem:[%s1 + $0x16c0] sm:$0xff]
    %v761 = vld [vmem:[%s1 + $0x16c8] sm:$0xff]
    %v762 = vld [vmem:[%s1 + $0x16d0] sm:$0xff]
    %v763 = vld [vmem:[%s1 + $0x16d8] sm:$0xff]
    %v764 = vld [vmem:[%s1 + $0x16e0] sm:$0xff]
    %v765 = vld [vmem:[%s1 + $0x16e8] sm:$0xff]
    %v766 = vld [vmem:[%s1 + $0x16f0] sm:$0xff]
    %v767 = vld [vmem:[%s1 + $0x16f8] sm:$0xff]
    %v768 = vld [vmem:[%s1 + $0x1700] sm:$0xff]
    %v769 = vld [vmem:[%s1 + $0x1708] sm:$0xff]
    %v770 = vld [vmem:[%s1 + $0x1710] sm:$0xff]
    %v771 = vld [vmem:[%s1 + $0x1718] sm:$0xff]
    %v772 = vld [vmem:[%s1 + $0x1720] sm:$0xff]
    %v773 = vld [vmem:[%s1 + $0x1728] sm:$0xff]
    %v774 = vld [vmem:[%s1 + $0x1730] sm:$0xff]
    %v775 = vld [vmem:[%s1 + $0x1738] sm:$0xff]
    %v776 = vld [vmem:[%s1 + $0x1740] sm:$0xff]
    %v777 = vld [vmem:[%s1 + $0x1748] sm:$0xff]
    %v778 = vld [vmem:[%s1 + $0x1750] sm:$0xff]
    %v779 = vld [vmem:[%s1 + $0x1758] sm:$0xff]
    %v780 = vld [vmem:[%s1 + $0x1760] sm:$0xff]
    %v781 = vld [vmem:[%s1 + $0x1768] sm:$0xff]
    %v782 = vld [vmem:[%s1 + $0x1770] sm:$0xff]
    %v783 = vld [vmem:[%s1 + $0x1778] sm:$0xff]
    %v784 = vld [vmem:[%s1 + $0x1780] sm:$0xff]
    %v785 = vld [vmem:[%s1 + $0x1788] sm:$0xff]
    %v786 = vld [vmem:[%s1 + $0x1790] sm:$0xff]
    %v787 = vld [vmem:[%s1 + $0x1798] sm:$0xff]
    %v788 = vld [vmem:[%s1 + $0x17a0] sm:$0xff]
    %v789 = vld [vmem:[%s1 + $0x17a8] sm:$0xff]
    %v790 = vld [vmem:[%s1 + $0x17b0] sm:$0xff]
    %v791 = vld [vmem:[%s1 + $0x17b8] sm:$0xff]
    %v792 = vld [vmem:[%s1 + $0x17c0] sm:$0xff]
    %v793 = vld [vmem:[%s1 + $0x17c8] sm:$0xff]
    %v794 = vld [vmem:[%s1 + $0x17d0] sm:$0xff]
    %v795 = vld [vmem:[%s1 + $0x17d8] sm:$0xff]
    %v796 = vld [vmem:[%s1 + $0x17e0] sm:$0xff]
    %v797 = vld [vmem:[%s1 + $0x17e8] sm:$0xff]
    %v798 = vld [vmem:[%s1 + $0x17f0] sm:$0xff]
    %v799 = vld [vmem:[%s1 + $0x17f8] sm:$0xff]
    %v800 = vld [vmem:[%s1 + $0x1800] sm:$0xff]
    %v801 = vld [vmem:[%s1 + $0x1808] sm:$0xff]
    %v802 = vld [vmem:[%s1 + $0x1810] sm:$0xff]
    %v803 = vld [vmem:[%s1 + $0x1818] sm:$0xff]
    %v804 = vld [vmem:[%s1 + $0x1820] sm:$0xff]
    %v805 = vld [vmem:[%s1 + $0x1828] sm:$0xff]
    %v806 = vld [vmem:[%s1 + $0x1830] sm:$0xff]
    %v807 = vld [vmem:[%s1 + $0x1838] sm:$0xff]
    %v808 = vld [vmem:[%s1 + $0x1840] sm:$0xff]
    %v809 = vld [vmem:[%s1 + $0x1848] sm:$0xff]
    %v810 = vld [vmem:[%s1 + $0x1850] sm:$0xff]
    %v811 = vld [vmem:[%s1 + $0x1858] sm:$0xff]
    %v812 = vld [vmem:[%s1 + $0x1860] sm:$0xff]
    %v813 = vld [vmem:[%s1 + $0x1868] sm:$0xff]
    %v814 = vld [vmem:[%s1 + $0x1870] sm:$0xff]
    %v815 = vld [vmem:[%s1 + $0x1878] sm:$0xff]
    %v816 = vld [vmem:[%s1 + $0x1880] sm:$0xff]
    %v817 = vld [vmem:[%s1 + $0x1888] sm:$0xff]
    %v818 = vld [vmem:[%s1 + $0x1890] sm:$0xff]
    %v819 = vld [vmem:[%s1 + $0x1898] sm:$0xff]
    %v820 = vld [vmem:[%s1 + $0x18a0] sm:$0xff]
    %v821 = vld [vmem:[%s1 + $0x18a8] sm:$0xff]
    %v822 = vld [vmem:[%s1 + $0x18b0] sm:$0xff]
    %v823 = vld [vmem:[%s1 + $0x18b8] sm:$0xff]
    %v824 = vld [vmem:[%s1 + $0x18c0] sm:$0xff]
    %v825 = vld [vmem:[%s1 + $0x18c8] sm:$0xff]
    %v826 = vld [vmem:[%s1 + $0x18d0] sm:$0xff]
    %v827 = vld [vmem:[%s1 + $0x18d8] sm:$0xff]
    %v828 = vld [vmem:[%s1 + $0x18e0] sm:$0xff]
    %v829 = vld [vmem:[%s1 + $0x18e8] sm:$0xff]
    %v830 = vld [vmem:[%s1 + $0x18f0] sm:$0xff]
    %v831 = vld [vmem:[%s1 + $0x18f8] sm:$0xff]
    %v832 = vld [vmem:[%s1 + $0x1900] sm:$0xff]
    %v833 = vld [vmem:[%s1 + $0x1908] sm:$0xff]
    %v834 = vld [vmem:[%s1 + $0x1910] sm:$0xff]
    %v835 = vld [vmem:[%s1 + $0x1918] sm:$0xff]
    %v836 = vld [vmem:[%s1 + $0x1920] sm:$0xff]
    %v837 = vld [vmem:[%s1 + $0x1928] sm:$0xff]
    %v838 = vld [vmem:[%s1 + $0x1930] sm:$0xff]
    %v839 = vld [vmem:[%s1 + $0x1938] sm:$0xff]
    %v840 = vld [vmem:[%s1 + $0x1940] sm:$0xff]
    %v841 = vld [vmem:[%s1 + $0x1948] sm:$0xff]
    %v842 = vld [vmem:[%s1 + $0x1950] sm:$0xff]
    %v843 = vld [vmem:[%s1 + $0x1958] sm:$0xff]
    %v844 = vld [vmem:[%s1 + $0x1960] sm:$0xff]
    %v845 = vld [vmem:[%s1 + $0x1968] sm:$0xff]
    %v846 = vld [vmem:[%s1 + $0x1970] sm:$0xff]
    %v847 = vld [vmem:[%s1 + $0x1978] sm:$0xff]
    %v848 = vld [vmem:[%s1 + $0x1980] sm:$0xff]
    %v849 = vld [vmem:[%s1 + $0x1988] sm:$0xff]
    %v850 = vld [vmem:[%s1 + $0x1990] sm:$0xff]
    %v851 = vld [vmem:[%s1 + $0x1998] sm:$0xff]
    %v852 = vld [vmem:[%s1 + $0x19a0] sm:$0xff]
    %v853 = vld [vmem:[%s1 + $0x19a8] sm:$0xff]
    %v854 = vld [vmem:[%s1 + $0x19b0] sm:$0xff]
    %v855 = vld [vmem:[%s1 + $0x19b8] sm:$0xff]
    %v856 = vld [vmem:[%s1 + $0x19c0] sm:$0xff]
    %v857 = vld [vmem:[%s1 + $0x19c8] sm:$0xff]
    %v858 = vld [vmem:[%s1 + $0x19d0] sm:$0xff]
    %v859 = vld [vmem:[%s1 + $0x19d8] sm:$0xff]
    %v860 = vld [vmem:[%s1 + $0x19e0] sm:$0xff]
    %v861 = vld [vmem:[%s1 + $0x19e8] sm:$0xff]
    %v862 = vld [vmem:[%s1 + $0x19f0] sm:$0xff]
    %v863 = vld [vmem:[%s1 + $0x19f8] sm:$0xff]
    %v864 = vld [vmem:[%s1 + $0x1a00] sm:$0xff]
    %v865 = vld [vmem:[%s1 + $0x1a08] sm:$0xff]
    %v866 = vld [vmem:[%s1 + $0x1a10] sm:$0xff]
    %v867 = vld [vmem:[%s1 + $0x1a18] sm:$0xff]
    %v868 = vld [vmem:[%s1 + $0x1a20] sm:$0xff]
    %v869 = vld [vmem:[%s1 + $0x1a28] sm:$0xff]
    %v870 = vld [vmem:[%s1 + $0x1a30] sm:$0xff]
    %v871 = vld [vmem:[%s1 + $0x1a38] sm:$0xff]
    %v872 = vld [vmem:[%s1 + $0x1a40] sm:$0xff]
    %v873 = vld [vmem:[%s1 + $0x1a48] sm:$0xff]
    %v874 = vld [vmem:[%s1 + $0x1a50] sm:$0xff]
    %v875 = vld [vmem:[%s1 + $0x1a58] sm:$0xff]
    %v876 = vld [vmem:[%s1 + $0x1a60] sm:$0xff]
    %v877 = vld [vmem:[%s1 + $0x1a68] sm:$0xff]
    %v878 = vld [vmem:[%s1 + $0x1a70] sm:$0xff]
    %v879 = vld [vmem:[%s1 + $0x1a78] sm:$0xff]
    %v880 = vld [vmem:[%s1 + $0x1a80] sm:$0xff]
    %v881 = vld [vmem:[%s1 + $0x1a88] sm:$0xff]
    %v882 = vld [vmem:[%s1 + $0x1a90] sm:$0xff]
    %v883 = vld [vmem:[%s1 + $0x1a98] sm:$0xff]
    %v884 = vld [vmem:[%s1 + $0x1aa0] sm:$0xff]
    %v885 = vld [vmem:[%s1 + $0x1aa8] sm:$0xff]
    %v886 = vld [vmem:[%s1 + $0x1ab0] sm:$0xff]
    %v887 = vld [vmem:[%s1 + $0x1ab8] sm:$0xff]
    %v888 = vld [vmem:[%s1 + $0x1ac0] sm:$0xff]
    %v889 = vld [vmem:[%s1 + $0x1ac8] sm:$0xff]
    %v890 = vld [vmem:[%s1 + $0x1ad0] sm:$0xff]
    %v891 = vld [vmem:[%s1 + $0x1ad8] sm:$0xff]
    %v892 = vld [vmem:[%s1 + $0x1ae0] sm:$0xff]
    %v893 = vld [vmem:[%s1 + $0x1ae8] sm:$0xff]
    %v894 = vld [vmem:[%s1 + $0x1af0] sm:$0xff]
    %v895 = vld [vmem:[%s1 + $0x1af8] sm:$0xff]
    %v896 = vld [vmem:[%s1 + $0x1b00] sm:$0xff]
    %v897 = vld [vmem:[%s1 + $0x1b08] sm:$0xff]
    %v898 = vld [vmem:[%s1 + $0x1b10] sm:$0xff]
    %v899 = vld [vmem:[%s1 + $0x1b18] sm:$0xff]
    %v900 = vld [vmem:[%s1 + $0x1b20] sm:$0xff]
    %v901 = vld [vmem:[%s1 + $0x1b28] sm:$0xff]
    %v902 = vld [vmem:[%s1 + $0x1b30] sm:$0xff]
    %v903 = vld [vmem:[%s1 + $0x1b38] sm:$0xff]
    %v904 = vld [vmem:[%s1 + $0x1b40] sm:$0xff]
    %v905 = vld [vmem:[%s1 + $0x1b48] sm:$0xff]
    %v906 = vld [vmem:[%s1 + $0x1b50] sm:$0xff]
    %v907 = vld [vmem:[%s1 + $0x1b58] sm:$0xff]
    %v908 = vld [vmem:[%s1 + $0x1b60] sm:$0xff]
    %v909 = vld [vmem:[%s1 + $0x1b68] sm:$0xff]
    %v910 = vld [vmem:[%s1 + $0x1b70] sm:$0xff]
    %v911 = vld [vmem:[%s1 + $0x1b78] sm:$0xff]
    %v912 = vld [vmem:[%s1 + $0x1b80] sm:$0xff]
    %v913 = vld [vmem:[%s1 + $0x1b88] sm:$0xff]
    %v914 = vld [vmem:[%s1 + $0x1b90] sm:$0xff]
    %v915 = vld [vmem:[%s1 + $0x1b98] sm:$0xff]
    %v916 = vld [vmem:[%s1 + $0x1ba0] sm:$0xff]
    %v917 = vld [vmem:[%s1 + $0x1ba8] sm:$0xff]
    %v918 = vld [vmem:[%s1 + $0x1bb0] sm:$0xff]
    %v919 = vld [vmem:[%s1 + $0x1bb8] sm:$0xff]
    %v920 = vld [vmem:[%s1 + $0x1bc0] sm:$0xff]
    %v921 = vld [vmem:[%s1 + $0x1bc8] sm:$0xff]
    %v922 = vld [vmem:[%s1 + $0x1bd0] sm:$0xff]
    %v923 = vld [vmem:[%s1 + $0x1bd8] sm:$0xff]
    %v924 = vld [vmem:[%s1 + $0x1be0] sm:$0xff]
    %v925 = vld [vmem:[%s1 + $0x1be8] sm:$0xff]
    %v926 = vld [vmem:[%s1 + $0x1bf0] sm:$0xff]
    %v927 = vld [vmem:[%s1 + $0x1bf8] sm:$0xff]
    %v928 = vld [vmem:[%s1 + $0x1c00] sm:$0xff]
    %v929 = vld [vmem:[%s1 + $0x1c08] sm:$0xff]
    %v930 = vld [vmem:[%s1 + $0x1c10] sm:$0xff]
    %v931 = vld [vmem:[%s1 + $0x1c18] sm:$0xff]
    %v932 = vld [vmem:[%s1 + $0x1c20] sm:$0xff]
    %v933 = vld [vmem:[%s1 + $0x1c28] sm:$0xff]
    %v934 = vld [vmem:[%s1 + $0x1c30] sm:$0xff]
    %v935 = vld [vmem:[%s1 + $0x1c38] sm:$0xff]
    %v936 = vld [vmem:[%s1 + $0x1c40] sm:$0xff]
    %v937 = vld [vmem:[%s1 + $0x1c48] sm:$0xff]
    %v938 = vld [vmem:[%s1 + $0x1c50] sm:$0xff]
    %v939 = vld [vmem:[%s1 + $0x1c58] sm:$0xff]
    %v940 = vld [vmem:[%s1 + $0x1c60] sm:$0xff]
    %v941 = vld [vmem:[%s1 + $0x1c68] sm:$0xff]
    %v942 = vld [vmem:[%s1 + $0x1c70] sm:$0xff]
    %v943 = vld [vmem:[%s1 + $0x1c78] sm:$0xff]
    %v944 = vld [vmem:[%s1 + $0x1c80] sm:$0xff]
    %v945 = vld [vmem:[%s1 + $0x1c88] sm:$0xff]
    %v946 = vld [vmem:[%s1 + $0x1c90] sm:$0xff]
    %v947 = vld [vmem:[%s1 + $0x1c98] sm:$0xff]
    %v948 = vld [vmem:[%s1 + $0x1ca0] sm:$0xff]
    %v949 = vld [vmem:[%s1 + $0x1ca8] sm:$0xff]
    %v950 = vld [vmem:[%s1 + $0x1cb0] sm:$0xff]
    %v951 = vld [vmem:[%s1 + $0x1cb8] sm:$0xff]
    %v952 = vld [vmem:[%s1 + $0x1cc0] sm:$0xff]
    %v953 = vld [vmem:[%s1 + $0x1cc8] sm:$0xff]
    %v954 = vld [vmem:[%s1 + $0x1cd0] sm:$0xff]
    %v955 = vld [vmem:[%s1 + $0x1cd8] sm:$0xff]
    %v956 = vld [vmem:[%s1 + $0x1ce0] sm:$0xff]
    %v957 = vld [vmem:[%s1 + $0x1ce8] sm:$0xff]
    %v958 = vld [vmem:[%s1 + $0x1cf0] sm:$0xff]
    %v959 = vld [vmem:[%s1 + $0x1cf8] sm:$0xff]
    %v960 = vld [vmem:[%s1 + $0x1d00] sm:$0xff]
    %v961 = vld [vmem:[%s1 + $0x1d08] sm:$0xff]
    %v962 = vld [vmem:[%s1 + $0x1d10] sm:$0xff]
    %v963 = vld [vmem:[%s1 + $0x1d18] sm:$0xff]
    %v964 = vld [vmem:[%s1 + $0x1d20] sm:$0xff]
    %v965 = vld [vmem:[%s1 + $0x1d28] sm:$0xff]
    %v966 = vld [vmem:[%s1 + $0x1d30] sm:$0xff]
    %v967 = vld [vmem:[%s1 + $0x1d38] sm:$0xff]
    %v968 = vld [vmem:[%s1 + $0x1d40] sm:$0xff]
    %v969 = vld [vmem:[%s1 + $0x1d48] sm:$0xff]
    %v970 = vld [vmem:[%s1 + $0x1d50] sm:$0xff]
    %v971 = vld [vmem:[%s1 + $0x1d58] sm:$0xff]
    %v972 = vld [vmem:[%s1 + $0x1d60] sm:$0xff]
    %v973 = vld [vmem:[%s1 + $0x1d68] sm:$0xff]
    %v974 = vld [vmem:[%s1 + $0x1d70] sm:$0xff]
    %v975 = vld [vmem:[%s1 + $0x1d78] sm:$0xff]
    %v976 = vld [vmem:[%s1 + $0x1d80] sm:$0xff]
    %v977 = vld [vmem:[%s1 + $0x1d88] sm:$0xff]
    %v978 = vld [vmem:[%s1 + $0x1d90] sm:$0xff]
    %v979 = vld [vmem:[%s1 + $0x1d98] sm:$0xff]
    %v980 = vld [vmem:[%s1 + $0x1da0] sm:$0xff]
    %v981 = vld [vmem:[%s1 + $0x1da8] sm:$0xff]
    %v982 = vld [vmem:[%s1 + $0x1db0] sm:$0xff]
    %v983 = vld [vmem:[%s1 + $0x1db8] sm:$0xff]
    %v984 = vld [vmem:[%s1 + $0x1dc0] sm:$0xff]
    %v985 = vld [vmem:[%s1 + $0x1dc8] sm:$0xff]
    %v986 = vld [vmem:[%s1 + $0x1dd0] sm:$0xff]
    %v987 = vld [vmem:[%s1 + $0x1dd8] sm:$0xff]
    %v988 = vld [vmem:[%s1 + $0x1de0] sm:$0xff]
    %v989 = vld [vmem:[%s1 + $0x1de8] sm:$0xff]
    %v990 = vld [vmem:[%s1 + $0x1df0] sm:$0xff]
    %v991 = vld [vmem:[%s1 + $0x1df8] sm:$0xff]
    %v992 = vld [vmem:[%s1 + $0x1e00] sm:$0xff]
    %v993 = vld [vmem:[%s1 + $0x1e08] sm:$0xff]
    %v994 = vld [vmem:[%s1 + $0x1e10] sm:$0xff]
    %v995 = vld [vmem:[%s1 + $0x1e18] sm:$0xff]
    %v996 = vld [vmem:[%s1 + $0x1e20] sm:$0xff]
    %v997 = vld [vmem:[%s1 + $0x1e28] sm:$0xff]
    %v998 = vld [vmem:[%s1 + $0x1e30] sm:$0xff]
    %v999 = vld [vmem:[%s1 + $0x1e38] sm:$0xff]
    %v1000 = vld [vmem:[%s1 + $0x1e40] sm:$0xff]
    %v1001 = vld [vmem:[%s1 + $0x1e48] sm:$0xff]
    %v1002 = vld [vmem:[%s1 + $0x1e50] sm:$0xff]
    %v1003 = vld [vmem:[%s1 + $0x1e58] sm:$0xff]
    %v1004 = vld [vmem:[%s1 + $0x1e60] sm:$0xff]
    %v1005 = vld [vmem:[%s1 + $0x1e68] sm:$0xff]
    %v1006 = vld [vmem:[%s1 + $0x1e70] sm:$0xff]
    %v1007 = vld [vmem:[%s1 + $0x1e78] sm:$0xff]
    %v1008 = vld [vmem:[%s1 + $0x1e80] sm:$0xff]
    %v1009 = vld [vmem:[%s1 + $0x1e88] sm:$0xff]
    %v1010 = vld [vmem:[%s1 + $0x1e90] sm:$0xff]
    %v1011 = vld [vmem:[%s1 + $0x1e98] sm:$0xff]
    %v1012 = vld [vmem:[%s1 + $0x1ea0] sm:$0xff]
    %v1013 = vld [vmem:[%s1 + $0x1ea8] sm:$0xff]
    %v1014 = vld [vmem:[%s1 + $0x1eb0] sm:$0xff]
    %v1015 = vld [vmem:[%s1 + $0x1eb8] sm:$0xff]
    %v1016 = vld [vmem:[%s1 + $0x1ec0] sm:$0xff]
    %v1017 = vld [vmem:[%s1 + $0x1ec8] sm:$0xff]
    %v1018 = vld [vmem:[%s1 + $0x1ed0] sm:$0xff]
    %v1019 = vld [vmem:[%s1 + $0x1ed8] sm:$0xff]
    %v1020 = vld [vmem:[%s1 + $0x1ee0] sm:$0xff]
    %v1021 = vld [vmem:[%s1 + $0x1ee8] sm:$0xff]
    %v1022 = vld [vmem:[%s1 + $0x1ef0] sm:$0xff]
    %v1023 = vld [vmem:[%s1 + $0x1ef8] sm:$0xff]
    %v1024 = vld [vmem:[%s1 + $0x1f00] sm:$0xff]
    %v1025 = vld [vmem:[%s1 + $0x1f08] sm:$0xff]
    %v1026 = vld [vmem:[%s1 + $0x1f10] sm:$0xff]
    %v1027 = vld [vmem:[%s1 + $0x1f18] sm:$0xff]
    %v1028 = vld [vmem:[%s1 + $0x1f20] sm:$0xff]
    %v1029 = vld [vmem:[%s1 + $0x1f28] sm:$0xff]
    %v1030 = vld [vmem:[%s1 + $0x1f30] sm:$0xff]
    %v1031 = vld [vmem:[%s1 + $0x1f38] sm:$0xff]
    %v1032 = vld [vmem:[%s1 + $0x1f40] sm:$0xff]
    %v1033 = vld [vmem:[%s1 + $0x1f48] sm:$0xff]
    %v1034 = vld [vmem:[%s1 + $0x1f50] sm:$0xff]
    %v1035 = vld [vmem:[%s1 + $0x1f58] sm:$0xff]
    %v1036 = vld [vmem:[%s1 + $0x1f60] sm:$0xff]
    %v1037 = vld [vmem:[%s1 + $0x1f68] sm:$0xff]
    %v1038 = vld [vmem:[%s1 + $0x1f70] sm:$0xff]
    %v1039 = vld [vmem:[%s1 + $0x1f78] sm:$0xff]
    %v1040 = vld [vmem:[%s1 + $0x1f80] sm:$0xff]
    %v1041 = vld [vmem:[%s1 + $0x1f88] sm:$0xff]
    %v1042 = vld [vmem:[%s1 + $0x1f90] sm:$0xff]
    %v1043 = vld [vmem:[%s1 + $0x1f98] sm:$0xff]
    %v1044 = vld [vmem:[%s1 + $0x1fa0] sm:$0xff]
    %v1045 = vld [vmem:[%s1 + $0x1fa8] sm:$0xff]
    %v1046 = vld [vmem:[%s1 + $0x1fb0] sm:$0xff]
    %v1047 = vld [vmem:[%s1 + $0x1fb8] sm:$0xff]
    %v1048 = vld [vmem:[%s1 + $0x1fc0] sm:$0xff]
    %v1049 = vld [vmem:[%s1 + $0x1fc8] sm:$0xff]
    %v1050 = vld [vmem:[%s1 + $0x1fd0] sm:$0xff]
    %v1051 = vld [vmem:[%s1 + $0x1fd8] sm:$0xff]
    %v1052 = vld [vmem:[%s1 + $0x1fe0] sm:$0xff]
    %v1053 = vld [vmem:[%s1 + $0x1fe8] sm:$0xff]
    %v1054 = vld [vmem:[%s1 + $0x1ff0] sm:$0xff]
    %v1055 = vld [vmem:[%s1 + $0x1ff8] sm:$0xff]
    %v1056 = vld [vmem:[%s2] sm:$0x3]
    %v1058 = vperm.slane %v1056, 0
    %v1059 = vperm.slane %v1056, 1
    %1063 = vst [vmem:[#allocation1] ss:$9 sm:$0xff] %v24
    %v1064 = vld [vmem:[#allocation1] sm:$0xff]
    %v1065 = vld [vmem:[#allocation1 + $0x9] sm:$0xff]
    %v1066 = vld [vmem:[#allocation1 + $0x12] sm:$0xff]
    %v1067 = vld [vmem:[#allocation1 + $0x1b] sm:$0xff]
    %v1068 = vld [vmem:[#allocation1 + $0x24] sm:$0xff]
    %v1069 = vld [vmem:[#allocation1 + $0x2d] sm:$0xff]
    %v1070 = vld [vmem:[#allocation1 + $0x36] sm:$0xff]
    %v1071 = vld [vmem:[#allocation1 + $0x3f] sm:$0xff]
    %1073 = vst [vmem:[#allocation1] ss:$9 sm:$0xff] %v25
    %v1074 = vld [vmem:[#allocation1] sm:$0xff]
    %v1075 = vld [vmem:[#allocation1 + $0x9] sm:$0xff]
    %v1076 = vld [vmem:[#allocation1 + $0x12] sm:$0xff]
    %v1077 = vld [vmem:[#allocation1 + $0x1b] sm:$0xff]
    %v1078 = vld [vmem:[#allocation1 + $0x24] sm:$0xff]
    %v1079 = vld [vmem:[#allocation1 + $0x2d] sm:$0xff]
    %v1080 = vld [vmem:[#allocation1 + $0x36] sm:$0xff]
    %v1081 = vld [vmem:[#allocation1 + $0x3f] sm:$0xff]
    %1083 = vst [vmem:[#allocation1] ss:$9 sm:$0xff] %v26
    %v1084 = vld [vmem:[#allocation1] sm:$0xff]
    %v1085 = vld [vmem:[#allocation1 + $0x9] sm:$0xff]
    %v1086 = vld [vmem:[#allocation1 + $0x12] sm:$0xff]
    %v1087 = vld [vmem:[#allocation1 + $0x1b] sm:$0xff]
    %v1088 = vld [vmem:[#allocation1 + $0x24] sm:$0xff]
    %v1089 = vld [vmem:[#allocation1 + $0x2d] sm:$0xff]
    %v1090 = vld [vmem:[#allocation1 + $0x36] sm:$0xff]
    %v1091 = vld [vmem:[#allocation1 + $0x3f] sm:$0xff]
    %1093 = vst [vmem:[#allocation1] ss:$9 sm:$0xff] %v27
    %v1094 = vld [vmem:[#allocation1] sm:$0xff]
    %v1095 = vld [vmem:[#allocation1 + $0x9] sm:$0xff]
    %v1096 = vld [vmem:[#allocation1 + $0x12] sm:$0xff]
    %v1097 = vld [vmem:[#allocation1 + $0x1b] sm:$0xff]
    %v1098 = vld [vmem:[#allocation1 + $0x24] sm:$0xff]
    %v1099 = vld [vmem:[#allocation1 + $0x2d] sm:$0xff]
    %v1100 = vld [vmem:[#allocation1 + $0x36] sm:$0xff]
    %v1101 = vld [vmem:[#allocation1 + $0x3f] sm:$0xff]
    %1103 = vst [vmem:[#allocation1] ss:$9 sm:$0xff] %v28
    %v1104 = vld [vmem:[#allocation1] sm:$0xff]
    %v1105 = vld [vmem:[#allocation1 + $0x9] sm:$0xff]
    %v1106 = vld [vmem:[#allocation1 + $0x12] sm:$0xff]
    %v1107 = vld [vmem:[#allocation1 + $0x1b] sm:$0xff]
    %v1108 = vld [vmem:[#allocation1 + $0x24] sm:$0xff]
    %v1109 = vld [vmem:[#allocation1 + $0x2d] sm:$0xff]
    %v1110 = vld [vmem:[#allocation1 + $0x36] sm:$0xff]
    %v1111 = vld [vmem:[#allocation1 + $0x3f] sm:$0xff]
    %1113 = vst [vmem:[#allocation1] ss:$9 sm:$0xff] %v29
    %v1114 = vld [vmem:[#allocation1] sm:$0xff]
    %v1115 = vld [vmem:[#allocation1 + $0x9] sm:$0xff]
    %v1116 = vld [vmem:[#allocation1 + $0x12] sm:$0xff]
    %v1117 = vld [vmem:[#allocation1 + $0x1b] sm:$0xff]
    %v1118 = vld [vmem:[#allocation1 + $0x24] sm:$0xff]
    %v1119 = vld [vmem:[#allocation1 + $0x2d] sm:$0xff]
    %v1120 = vld [vmem:[#allocation1 + $0x36] sm:$0xff]
    %v1121 = vld [vmem:[#allocation1 + $0x3f] sm:$0xff]
    %1123 = vst [vmem:[#allocation1] ss:$9 sm:$0xff] %v30
    %v1124 = vld [vmem:[#allocation1] sm:$0xff]
    %v1125 = vld [vmem:[#allocation1 + $0x9] sm:$0xff]
    %v1126 = vld [vmem:[#allocation1 + $0x12] sm:$0xff]
    %v1127 = vld [vmem:[#allocation1 + $0x1b] sm:$0xff]
    %v1128 = vld [vmem:[#allocation1 + $0x24] sm:$0xff]
    %v1129 = vld [vmem:[#allocation1 + $0x2d] sm:$0xff]
    %v1130 = vld [vmem:[#allocation1 + $0x36] sm:$0xff]
    %v1131 = vld [vmem:[#allocation1 + $0x3f] sm:$0xff]
    %1133 = vst [vmem:[#allocation1] ss:$9 sm:$0xff] %v31
    %v1134 = vld [vmem:[#allocation1] sm:$0xff]
    %v1135 = vld [vmem:[#allocation1 + $0x9] sm:$0xff]
    %v1136 = vld [vmem:[#allocation1 + $0x12] sm:$0xff]
    %v1137 = vld [vmem:[#allocation1 + $0x1b] sm:$0xff]
    %v1138 = vld [vmem:[#allocation1 + $0x24] sm:$0xff]
    %v1139 = vld [vmem:[#allocation1 + $0x2d] sm:$0xff]
    %v1140 = vld [vmem:[#allocation1 + $0x36] sm:$0xff]
    %v1141 = vld [vmem:[#allocation1 + $0x3f] sm:$0xff]
    %v2230 = vunpack.c.l.b16 %v32
    %v2231 = vunpack.c.h.b16 %v32
    %v2232 = vunpack.c.l.b16 %v33
    %v2233 = vunpack.c.h.b16 %v33
    %v2234 = vunpack.c.l.b16 %v34
    %v2235 = vunpack.c.h.b16 %v34
    %v2236 = vunpack.c.l.b16 %v35
    %v2237 = vunpack.c.h.b16 %v35
    %v2238 = vunpack.c.l.b16 %v36
    %v2239 = vunpack.c.h.b16 %v36
    %v2240 = vunpack.c.l.b16 %v37
    %v2241 = vunpack.c.h.b16 %v37
    %v2242 = vunpack.c.l.b16 %v38
    %v2243 = vunpack.c.h.b16 %v38
    %v2244 = vunpack.c.l.b16 %v39
    %v2245 = vunpack.c.h.b16 %v39
    %v2246 = vunpack.c.l.b16 %v40
    %v2247 = vunpack.c.h.b16 %v40
    %v2248 = vunpack.c.l.b16 %v41
    %v2249 = vunpack.c.h.b16 %v41
    %v2250 = vunpack.c.l.b16 %v42
    %v2251 = vunpack.c.h.b16 %v42
    %v2252 = vunpack.c.l.b16 %v43
    %v2253 = vunpack.c.h.b16 %v43
    %v2254 = vunpack.c.l.b16 %v44
    %v2255 = vunpack.c.h.b16 %v44
    %v2256 = vunpack.c.l.b16 %v45
    %v2257 = vunpack.c.h.b16 %v45
    %v2258 = vunpack.c.l.b16 %v46
    %v2259 = vunpack.c.h.b16 %v46
    %v2260 = vunpack.c.l.b16 %v47
    %v2261 = vunpack.c.h.b16 %v47
    %v2262 = vunpack.c.l.b16 %v48
    %v2263 = vunpack.c.h.b16 %v48
    %v2264 = vunpack.c.l.b16 %v49
    %v2265 = vunpack.c.h.b16 %v49
    %v2266 = vunpack.c.l.b16 %v50
    %v2267 = vunpack.c.h.b16 %v50
    %v2268 = vunpack.c.l.b16 %v51
    %v2269 = vunpack.c.h.b16 %v51
    %v2270 = vunpack.c.l.b16 %v52
    %v2271 = vunpack.c.h.b16 %v52
    %v2272 = vunpack.c.l.b16 %v53
    %v2273 = vunpack.c.h.b16 %v53
    %v2274 = vunpack.c.l.b16 %v54
    %v2275 = vunpack.c.h.b16 %v54
    %v2276 = vunpack.c.l.b16 %v55
    %v2277 = vunpack.c.h.b16 %v55
    %v2278 = vunpack.c.l.b16 %v56
    %v2279 = vunpack.c.h.b16 %v56
    %v2280 = vunpack.c.l.b16 %v57
    %v2281 = vunpack.c.h.b16 %v57
    %v2282 = vunpack.c.l.b16 %v58
    %v2283 = vunpack.c.h.b16 %v58
    %v2284 = vunpack.c.l.b16 %v59
    %v2285 = vunpack.c.h.b16 %v59
    %v2286 = vunpack.c.l.b16 %v60
    %v2287 = vunpack.c.h.b16 %v60
    %v2288 = vunpack.c.l.b16 %v61
    %v2289 = vunpack.c.h.b16 %v61
    %v2290 = vunpack.c.l.b16 %v62
    %v2291 = vunpack.c.h.b16 %v62
    %v2292 = vunpack.c.l.b16 %v63
    %v2293 = vunpack.c.h.b16 %v63
    %v2294 = vunpack.c.l.b16 %v64
    %v2295 = vunpack.c.h.b16 %v64
    %v2296 = vunpack.c.l.b16 %v65
    %v2297 = vunpack.c.h.b16 %v65
    %v2298 = vunpack.c.l.b16 %v66
    %v2299 = vunpack.c.h.b16 %v66
    %v2300 = vunpack.c.l.b16 %v67
    %v2301 = vunpack.c.h.b16 %v67
    %v2302 = vunpack.c.l.b16 %v68
    %v2303 = vunpack.c.h.b16 %v68
    %v2304 = vunpack.c.l.b16 %v69
    %v2305 = vunpack.c.h.b16 %v69
    %v2306 = vunpack.c.l.b16 %v70
    %v2307 = vunpack.c.h.b16 %v70
    %v2308 = vunpack.c.l.b16 %v71
    %v2309 = vunpack.c.h.b16 %v71
    %v2310 = vunpack.c.l.b16 %v72
    %v2311 = vunpack.c.h.b16 %v72
    %v2312 = vunpack.c.l.b16 %v73
    %v2313 = vunpack.c.h.b16 %v73
    %v2314 = vunpack.c.l.b16 %v74
    %v2315 = vunpack.c.h.b16 %v74
    %v2316 = vunpack.c.l.b16 %v75
    %v2317 = vunpack.c.h.b16 %v75
    %v2318 = vunpack.c.l.b16 %v76
    %v2319 = vunpack.c.h.b16 %v76
    %v2320 = vunpack.c.l.b16 %v77
    %v2321 = vunpack.c.h.b16 %v77
    %v2322 = vunpack.c.l.b16 %v78
    %v2323 = vunpack.c.h.b16 %v78
    %v2324 = vunpack.c.l.b16 %v79
    %v2325 = vunpack.c.h.b16 %v79
    %v2326 = vunpack.c.l.b16 %v80
    %v2327 = vunpack.c.h.b16 %v80
    %v2328 = vunpack.c.l.b16 %v81
    %v2329 = vunpack.c.h.b16 %v81
    %v2330 = vunpack.c.l.b16 %v82
    %v2331 = vunpack.c.h.b16 %v82
    %v2332 = vunpack.c.l.b16 %v83
    %v2333 = vunpack.c.h.b16 %v83
    %v2334 = vunpack.c.l.b16 %v84
    %v2335 = vunpack.c.h.b16 %v84
    %v2336 = vunpack.c.l.b16 %v85
    %v2337 = vunpack.c.h.b16 %v85
    %v2338 = vunpack.c.l.b16 %v86
    %v2339 = vunpack.c.h.b16 %v86
    %v2340 = vunpack.c.l.b16 %v87
    %v2341 = vunpack.c.h.b16 %v87
    %v2342 = vunpack.c.l.b16 %v88
    %v2343 = vunpack.c.h.b16 %v88
    %v2344 = vunpack.c.l.b16 %v89
    %v2345 = vunpack.c.h.b16 %v89
    %v2346 = vunpack.c.l.b16 %v90
    %v2347 = vunpack.c.h.b16 %v90
    %v2348 = vunpack.c.l.b16 %v91
    %v2349 = vunpack.c.h.b16 %v91
    %v2350 = vunpack.c.l.b16 %v92
    %v2351 = vunpack.c.h.b16 %v92
    %v2352 = vunpack.c.l.b16 %v93
    %v2353 = vunpack.c.h.b16 %v93
    %v2354 = vunpack.c.l.b16 %v94
    %v2355 = vunpack.c.h.b16 %v94
    %v2356 = vunpack.c.l.b16 %v95
    %v2357 = vunpack.c.h.b16 %v95
    %v2358 = vunpack.c.l.b16 %v96
    %v2359 = vunpack.c.h.b16 %v96
    %v2360 = vunpack.c.l.b16 %v97
    %v2361 = vunpack.c.h.b16 %v97
    %v2362 = vunpack.c.l.b16 %v98
    %v2363 = vunpack.c.h.b16 %v98
    %v2364 = vunpack.c.l.b16 %v99
    %v2365 = vunpack.c.h.b16 %v99
    %v2366 = vunpack.c.l.b16 %v100
    %v2367 = vunpack.c.h.b16 %v100
    %v2368 = vunpack.c.l.b16 %v101
    %v2369 = vunpack.c.h.b16 %v101
    %v2370 = vunpack.c.l.b16 %v102
    %v2371 = vunpack.c.h.b16 %v102
    %v2372 = vunpack.c.l.b16 %v103
    %v2373 = vunpack.c.h.b16 %v103
    %v2374 = vunpack.c.l.b16 %v104
    %v2375 = vunpack.c.h.b16 %v104
    %v2376 = vunpack.c.l.b16 %v105
    %v2377 = vunpack.c.h.b16 %v105
    %v2378 = vunpack.c.l.b16 %v106
    %v2379 = vunpack.c.h.b16 %v106
    %v2380 = vunpack.c.l.b16 %v107
    %v2381 = vunpack.c.h.b16 %v107
    %v2382 = vunpack.c.l.b16 %v108
    %v2383 = vunpack.c.h.b16 %v108
    %v2384 = vunpack.c.l.b16 %v109
    %v2385 = vunpack.c.h.b16 %v109
    %v2386 = vunpack.c.l.b16 %v110
    %v2387 = vunpack.c.h.b16 %v110
    %v2388 = vunpack.c.l.b16 %v111
    %v2389 = vunpack.c.h.b16 %v111
    %v2390 = vunpack.c.l.b16 %v112
    %v2391 = vunpack.c.h.b16 %v112
    %v2392 = vunpack.c.l.b16 %v113
    %v2393 = vunpack.c.h.b16 %v113
    %v2394 = vunpack.c.l.b16 %v114
    %v2395 = vunpack.c.h.b16 %v114
    %v2396 = vunpack.c.l.b16 %v115
    %v2397 = vunpack.c.h.b16 %v115
    %v2398 = vunpack.c.l.b16 %v116
    %v2399 = vunpack.c.h.b16 %v116
    %v2400 = vunpack.c.l.b16 %v117
    %v2401 = vunpack.c.h.b16 %v117
    %v2402 = vunpack.c.l.b16 %v118
    %v2403 = vunpack.c.h.b16 %v118
    %v2404 = vunpack.c.l.b16 %v119
    %v2405 = vunpack.c.h.b16 %v119
    %v2406 = vunpack.c.l.b16 %v120
    %v2407 = vunpack.c.h.b16 %v120
    %v2408 = vunpack.c.l.b16 %v121
    %v2409 = vunpack.c.h.b16 %v121
    %v2410 = vunpack.c.l.b16 %v122
    %v2411 = vunpack.c.h.b16 %v122
    %v2412 = vunpack.c.l.b16 %v123
    %v2413 = vunpack.c.h.b16 %v123
    %v2414 = vunpack.c.l.b16 %v124
    %v2415 = vunpack.c.h.b16 %v124
    %v2416 = vunpack.c.l.b16 %v125
    %v2417 = vunpack.c.h.b16 %v125
    %v2418 = vunpack.c.l.b16 %v126
    %v2419 = vunpack.c.h.b16 %v126
    %v2420 = vunpack.c.l.b16 %v127
    %v2421 = vunpack.c.h.b16 %v127
    %v2422 = vunpack.c.l.b16 %v128
    %v2423 = vunpack.c.h.b16 %v128
    %v2424 = vunpack.c.l.b16 %v129
    %v2425 = vunpack.c.h.b16 %v129
    %v2426 = vunpack.c.l.b16 %v130
    %v2427 = vunpack.c.h.b16 %v130
    %v2428 = vunpack.c.l.b16 %v131
    %v2429 = vunpack.c.h.b16 %v131
    %v2430 = vunpack.c.l.b16 %v132
    %v2431 = vunpack.c.h.b16 %v132
    %v2432 = vunpack.c.l.b16 %v133
    %v2433 = vunpack.c.h.b16 %v133
    %v2434 = vunpack.c.l.b16 %v134
    %v2435 = vunpack.c.h.b16 %v134
    %v2436 = vunpack.c.l.b16 %v135
    %v2437 = vunpack.c.h.b16 %v135
    %v2438 = vunpack.c.l.b16 %v136
    %v2439 = vunpack.c.h.b16 %v136
    %v2440 = vunpack.c.l.b16 %v137
    %v2441 = vunpack.c.h.b16 %v137
    %v2442 = vunpack.c.l.b16 %v138
    %v2443 = vunpack.c.h.b16 %v138
    %v2444 = vunpack.c.l.b16 %v139
    %v2445 = vunpack.c.h.b16 %v139
    %v2446 = vunpack.c.l.b16 %v140
    %v2447 = vunpack.c.h.b16 %v140
    %v2448 = vunpack.c.l.b16 %v141
    %v2449 = vunpack.c.h.b16 %v141
    %v2450 = vunpack.c.l.b16 %v142
    %v2451 = vunpack.c.h.b16 %v142
    %v2452 = vunpack.c.l.b16 %v143
    %v2453 = vunpack.c.h.b16 %v143
    %v2454 = vunpack.c.l.b16 %v144
    %v2455 = vunpack.c.h.b16 %v144
    %v2456 = vunpack.c.l.b16 %v145
    %v2457 = vunpack.c.h.b16 %v145
    %v2458 = vunpack.c.l.b16 %v146
    %v2459 = vunpack.c.h.b16 %v146
    %v2460 = vunpack.c.l.b16 %v147
    %v2461 = vunpack.c.h.b16 %v147
    %v2462 = vunpack.c.l.b16 %v148
    %v2463 = vunpack.c.h.b16 %v148
    %v2464 = vunpack.c.l.b16 %v149
    %v2465 = vunpack.c.h.b16 %v149
    %v2466 = vunpack.c.l.b16 %v150
    %v2467 = vunpack.c.h.b16 %v150
    %v2468 = vunpack.c.l.b16 %v151
    %v2469 = vunpack.c.h.b16 %v151
    %v2470 = vunpack.c.l.b16 %v152
    %v2471 = vunpack.c.h.b16 %v152
    %v2472 = vunpack.c.l.b16 %v153
    %v2473 = vunpack.c.h.b16 %v153
    %v2474 = vunpack.c.l.b16 %v154
    %v2475 = vunpack.c.h.b16 %v154
    %v2476 = vunpack.c.l.b16 %v155
    %v2477 = vunpack.c.h.b16 %v155
    %v2478 = vunpack.c.l.b16 %v156
    %v2479 = vunpack.c.h.b16 %v156
    %v2480 = vunpack.c.l.b16 %v157
    %v2481 = vunpack.c.h.b16 %v157
    %v2482 = vunpack.c.l.b16 %v158
    %v2483 = vunpack.c.h.b16 %v158
    %v2484 = vunpack.c.l.b16 %v159
    %v2485 = vunpack.c.h.b16 %v159
    %v2486 = vunpack.c.l.b16 %v160
    %v2487 = vunpack.c.h.b16 %v160
    %v2488 = vunpack.c.l.b16 %v161
    %v2489 = vunpack.c.h.b16 %v161
    %v2490 = vunpack.c.l.b16 %v162
    %v2491 = vunpack.c.h.b16 %v162
    %v2492 = vunpack.c.l.b16 %v163
    %v2493 = vunpack.c.h.b16 %v163
    %v2494 = vunpack.c.l.b16 %v164
    %v2495 = vunpack.c.h.b16 %v164
    %v2496 = vunpack.c.l.b16 %v165
    %v2497 = vunpack.c.h.b16 %v165
    %v2498 = vunpack.c.l.b16 %v166
    %v2499 = vunpack.c.h.b16 %v166
    %v2500 = vunpack.c.l.b16 %v167
    %v2501 = vunpack.c.h.b16 %v167
    %v2502 = vunpack.c.l.b16 %v168
    %v2503 = vunpack.c.h.b16 %v168
    %v2504 = vunpack.c.l.b16 %v169
    %v2505 = vunpack.c.h.b16 %v169
    %v2506 = vunpack.c.l.b16 %v170
    %v2507 = vunpack.c.h.b16 %v170
    %v2508 = vunpack.c.l.b16 %v171
    %v2509 = vunpack.c.h.b16 %v171
    %v2510 = vunpack.c.l.b16 %v172
    %v2511 = vunpack.c.h.b16 %v172
    %v2512 = vunpack.c.l.b16 %v173
    %v2513 = vunpack.c.h.b16 %v173
    %v2514 = vunpack.c.l.b16 %v174
    %v2515 = vunpack.c.h.b16 %v174
    %v2516 = vunpack.c.l.b16 %v175
    %v2517 = vunpack.c.h.b16 %v175
    %v2518 = vunpack.c.l.b16 %v176
    %v2519 = vunpack.c.h.b16 %v176
    %v2520 = vunpack.c.l.b16 %v177
    %v2521 = vunpack.c.h.b16 %v177
    %v2522 = vunpack.c.l.b16 %v178
    %v2523 = vunpack.c.h.b16 %v178
    %v2524 = vunpack.c.l.b16 %v179
    %v2525 = vunpack.c.h.b16 %v179
    %v2526 = vunpack.c.l.b16 %v180
    %v2527 = vunpack.c.h.b16 %v180
    %v2528 = vunpack.c.l.b16 %v181
    %v2529 = vunpack.c.h.b16 %v181
    %v2530 = vunpack.c.l.b16 %v182
    %v2531 = vunpack.c.h.b16 %v182
    %v2532 = vunpack.c.l.b16 %v183
    %v2533 = vunpack.c.h.b16 %v183
    %v2534 = vunpack.c.l.b16 %v184
    %v2535 = vunpack.c.h.b16 %v184
    %v2536 = vunpack.c.l.b16 %v185
    %v2537 = vunpack.c.h.b16 %v185
    %v2538 = vunpack.c.l.b16 %v186
    %v2539 = vunpack.c.h.b16 %v186
    %v2540 = vunpack.c.l.b16 %v187
    %v2541 = vunpack.c.h.b16 %v187
    %v2542 = vunpack.c.l.b16 %v188
    %v2543 = vunpack.c.h.b16 %v188
    %v2544 = vunpack.c.l.b16 %v189
    %v2545 = vunpack.c.h.b16 %v189
    %v2546 = vunpack.c.l.b16 %v190
    %v2547 = vunpack.c.h.b16 %v190
    %v2548 = vunpack.c.l.b16 %v191
    %v2549 = vunpack.c.h.b16 %v191
    %v2550 = vunpack.c.l.b16 %v192
    %v2551 = vunpack.c.h.b16 %v192
    %v2552 = vunpack.c.l.b16 %v193
    %v2553 = vunpack.c.h.b16 %v193
    %v2554 = vunpack.c.l.b16 %v194
    %v2555 = vunpack.c.h.b16 %v194
    %v2556 = vunpack.c.l.b16 %v195
    %v2557 = vunpack.c.h.b16 %v195
    %v2558 = vunpack.c.l.b16 %v196
    %v2559 = vunpack.c.h.b16 %v196
    %v2560 = vunpack.c.l.b16 %v197
    %v2561 = vunpack.c.h.b16 %v197
    %v2562 = vunpack.c.l.b16 %v198
    %v2563 = vunpack.c.h.b16 %v198
    %v2564 = vunpack.c.l.b16 %v199
    %v2565 = vunpack.c.h.b16 %v199
    %v2566 = vunpack.c.l.b16 %v200
    %v2567 = vunpack.c.h.b16 %v200
    %v2568 = vunpack.c.l.b16 %v201
    %v2569 = vunpack.c.h.b16 %v201
    %v2570 = vunpack.c.l.b16 %v202
    %v2571 = vunpack.c.h.b16 %v202
    %v2572 = vunpack.c.l.b16 %v203
    %v2573 = vunpack.c.h.b16 %v203
    %v2574 = vunpack.c.l.b16 %v204
    %v2575 = vunpack.c.h.b16 %v204
    %v2576 = vunpack.c.l.b16 %v205
    %v2577 = vunpack.c.h.b16 %v205
    %v2578 = vunpack.c.l.b16 %v206
    %v2579 = vunpack.c.h.b16 %v206
    %v2580 = vunpack.c.l.b16 %v207
    %v2581 = vunpack.c.h.b16 %v207
    %v2582 = vunpack.c.l.b16 %v208
    %v2583 = vunpack.c.h.b16 %v208
    %v2584 = vunpack.c.l.b16 %v209
    %v2585 = vunpack.c.h.b16 %v209
    %v2586 = vunpack.c.l.b16 %v210
    %v2587 = vunpack.c.h.b16 %v210
    %v2588 = vunpack.c.l.b16 %v211
    %v2589 = vunpack.c.h.b16 %v211
    %v2590 = vunpack.c.l.b16 %v212
    %v2591 = vunpack.c.h.b16 %v212
    %v2592 = vunpack.c.l.b16 %v213
    %v2593 = vunpack.c.h.b16 %v213
    %v2594 = vunpack.c.l.b16 %v214
    %v2595 = vunpack.c.h.b16 %v214
    %v2596 = vunpack.c.l.b16 %v215
    %v2597 = vunpack.c.h.b16 %v215
    %v2598 = vunpack.c.l.b16 %v216
    %v2599 = vunpack.c.h.b16 %v216
    %v2600 = vunpack.c.l.b16 %v217
    %v2601 = vunpack.c.h.b16 %v217
    %v2602 = vunpack.c.l.b16 %v218
    %v2603 = vunpack.c.h.b16 %v218
    %v2604 = vunpack.c.l.b16 %v219
    %v2605 = vunpack.c.h.b16 %v219
    %v2606 = vunpack.c.l.b16 %v220
    %v2607 = vunpack.c.h.b16 %v220
    %v2608 = vunpack.c.l.b16 %v221
    %v2609 = vunpack.c.h.b16 %v221
    %v2610 = vunpack.c.l.b16 %v222
    %v2611 = vunpack.c.h.b16 %v222
    %v2612 = vunpack.c.l.b16 %v223
    %v2613 = vunpack.c.h.b16 %v223
    %v2614 = vunpack.c.l.b16 %v224
    %v2615 = vunpack.c.h.b16 %v224
    %v2616 = vunpack.c.l.b16 %v225
    %v2617 = vunpack.c.h.b16 %v225
    %v2618 = vunpack.c.l.b16 %v226
    %v2619 = vunpack.c.h.b16 %v226
    %v2620 = vunpack.c.l.b16 %v227
    %v2621 = vunpack.c.h.b16 %v227
    %v2622 = vunpack.c.l.b16 %v228
    %v2623 = vunpack.c.h.b16 %v228
    %v2624 = vunpack.c.l.b16 %v229
    %v2625 = vunpack.c.h.b16 %v229
    %v2626 = vunpack.c.l.b16 %v230
    %v2627 = vunpack.c.h.b16 %v230
    %v2628 = vunpack.c.l.b16 %v231
    %v2629 = vunpack.c.h.b16 %v231
    %v2630 = vunpack.c.l.b16 %v232
    %v2631 = vunpack.c.h.b16 %v232
    %v2632 = vunpack.c.l.b16 %v233
    %v2633 = vunpack.c.h.b16 %v233
    %v2634 = vunpack.c.l.b16 %v234
    %v2635 = vunpack.c.h.b16 %v234
    %v2636 = vunpack.c.l.b16 %v235
    %v2637 = vunpack.c.h.b16 %v235
    %v2638 = vunpack.c.l.b16 %v236
    %v2639 = vunpack.c.h.b16 %v236
    %v2640 = vunpack.c.l.b16 %v237
    %v2641 = vunpack.c.h.b16 %v237
    %v2642 = vunpack.c.l.b16 %v238
    %v2643 = vunpack.c.h.b16 %v238
    %v2644 = vunpack.c.l.b16 %v239
    %v2645 = vunpack.c.h.b16 %v239
    %v2646 = vunpack.c.l.b16 %v240
    %v2647 = vunpack.c.h.b16 %v240
    %v2648 = vunpack.c.l.b16 %v241
    %v2649 = vunpack.c.h.b16 %v241
    %v2650 = vunpack.c.l.b16 %v242
    %v2651 = vunpack.c.h.b16 %v242
    %v2652 = vunpack.c.l.b16 %v243
    %v2653 = vunpack.c.h.b16 %v243
    %v2654 = vunpack.c.l.b16 %v244
    %v2655 = vunpack.c.h.b16 %v244
    %v2656 = vunpack.c.l.b16 %v245
    %v2657 = vunpack.c.h.b16 %v245
    %v2658 = vunpack.c.l.b16 %v246
    %v2659 = vunpack.c.h.b16 %v246
    %v2660 = vunpack.c.l.b16 %v247
    %v2661 = vunpack.c.h.b16 %v247
    %v2662 = vunpack.c.l.b16 %v248
    %v2663 = vunpack.c.h.b16 %v248
    %v2664 = vunpack.c.l.b16 %v249
    %v2665 = vunpack.c.h.b16 %v249
    %v2666 = vunpack.c.l.b16 %v250
    %v2667 = vunpack.c.h.b16 %v250
    %v2668 = vunpack.c.l.b16 %v251
    %v2669 = vunpack.c.h.b16 %v251
    %v2670 = vunpack.c.l.b16 %v252
    %v2671 = vunpack.c.h.b16 %v252
    %v2672 = vunpack.c.l.b16 %v253
    %v2673 = vunpack.c.h.b16 %v253
    %v2674 = vunpack.c.l.b16 %v254
    %v2675 = vunpack.c.h.b16 %v254
    %v2676 = vunpack.c.l.b16 %v255
    %v2677 = vunpack.c.h.b16 %v255
    %v2678 = vunpack.c.l.b16 %v256
    %v2679 = vunpack.c.h.b16 %v256
    %v2680 = vunpack.c.l.b16 %v257
    %v2681 = vunpack.c.h.b16 %v257
    %v2682 = vunpack.c.l.b16 %v258
    %v2683 = vunpack.c.h.b16 %v258
    %v2684 = vunpack.c.l.b16 %v259
    %v2685 = vunpack.c.h.b16 %v259
    %v2686 = vunpack.c.l.b16 %v260
    %v2687 = vunpack.c.h.b16 %v260
    %v2688 = vunpack.c.l.b16 %v261
    %v2689 = vunpack.c.h.b16 %v261
    %v2690 = vunpack.c.l.b16 %v262
    %v2691 = vunpack.c.h.b16 %v262
    %v2692 = vunpack.c.l.b16 %v263
    %v2693 = vunpack.c.h.b16 %v263
    %v2694 = vunpack.c.l.b16 %v264
    %v2695 = vunpack.c.h.b16 %v264
    %v2696 = vunpack.c.l.b16 %v265
    %v2697 = vunpack.c.h.b16 %v265
    %v2698 = vunpack.c.l.b16 %v266
    %v2699 = vunpack.c.h.b16 %v266
    %v2700 = vunpack.c.l.b16 %v267
    %v2701 = vunpack.c.h.b16 %v267
    %v2702 = vunpack.c.l.b16 %v268
    %v2703 = vunpack.c.h.b16 %v268
    %v2704 = vunpack.c.l.b16 %v269
    %v2705 = vunpack.c.h.b16 %v269
    %v2706 = vunpack.c.l.b16 %v270
    %v2707 = vunpack.c.h.b16 %v270
    %v2708 = vunpack.c.l.b16 %v271
    %v2709 = vunpack.c.h.b16 %v271
    %v2710 = vunpack.c.l.b16 %v272
    %v2711 = vunpack.c.h.b16 %v272
    %v2712 = vunpack.c.l.b16 %v273
    %v2713 = vunpack.c.h.b16 %v273
    %v2714 = vunpack.c.l.b16 %v274
    %v2715 = vunpack.c.h.b16 %v274
    %v2716 = vunpack.c.l.b16 %v275
    %v2717 = vunpack.c.h.b16 %v275
    %v2718 = vunpack.c.l.b16 %v276
    %v2719 = vunpack.c.h.b16 %v276
    %v2720 = vunpack.c.l.b16 %v277
    %v2721 = vunpack.c.h.b16 %v277
    %v2722 = vunpack.c.l.b16 %v278
    %v2723 = vunpack.c.h.b16 %v278
    %v2724 = vunpack.c.l.b16 %v279
    %v2725 = vunpack.c.h.b16 %v279
    %v2726 = vunpack.c.l.b16 %v280
    %v2727 = vunpack.c.h.b16 %v280
    %v2728 = vunpack.c.l.b16 %v281
    %v2729 = vunpack.c.h.b16 %v281
    %v2730 = vunpack.c.l.b16 %v282
    %v2731 = vunpack.c.h.b16 %v282
    %v2732 = vunpack.c.l.b16 %v283
    %v2733 = vunpack.c.h.b16 %v283
    %v2734 = vunpack.c.l.b16 %v284
    %v2735 = vunpack.c.h.b16 %v284
    %v2736 = vunpack.c.l.b16 %v285
    %v2737 = vunpack.c.h.b16 %v285
    %v2738 = vunpack.c.l.b16 %v286
    %v2739 = vunpack.c.h.b16 %v286
    %v2740 = vunpack.c.l.b16 %v287
    %v2741 = vunpack.c.h.b16 %v287
    %v2742 = vunpack.c.l.b16 %v288
    %v2743 = vunpack.c.h.b16 %v288
    %v2744 = vunpack.c.l.b16 %v289
    %v2745 = vunpack.c.h.b16 %v289
    %v2746 = vunpack.c.l.b16 %v290
    %v2747 = vunpack.c.h.b16 %v290
    %v2748 = vunpack.c.l.b16 %v291
    %v2749 = vunpack.c.h.b16 %v291
    %v2750 = vunpack.c.l.b16 %v292
    %v2751 = vunpack.c.h.b16 %v292
    %v2752 = vunpack.c.l.b16 %v293
    %v2753 = vunpack.c.h.b16 %v293
    %v2754 = vunpack.c.l.b16 %v294
    %v2755 = vunpack.c.h.b16 %v294
    %v2756 = vunpack.c.l.b16 %v295
    %v2757 = vunpack.c.h.b16 %v295
    %v2758 = vunpack.c.l.b16 %v296
    %v2759 = vunpack.c.h.b16 %v296
    %v2760 = vunpack.c.l.b16 %v297
    %v2761 = vunpack.c.h.b16 %v297
    %v2762 = vunpack.c.l.b16 %v298
    %v2763 = vunpack.c.h.b16 %v298
    %v2764 = vunpack.c.l.b16 %v299
    %v2765 = vunpack.c.h.b16 %v299
    %v2766 = vunpack.c.l.b16 %v300
    %v2767 = vunpack.c.h.b16 %v300
    %v2768 = vunpack.c.l.b16 %v301
    %v2769 = vunpack.c.h.b16 %v301
    %v2770 = vunpack.c.l.b16 %v302
    %v2771 = vunpack.c.h.b16 %v302
    %v2772 = vunpack.c.l.b16 %v303
    %v2773 = vunpack.c.h.b16 %v303
    %v2774 = vunpack.c.l.b16 %v304
    %v2775 = vunpack.c.h.b16 %v304
    %v2776 = vunpack.c.l.b16 %v305
    %v2777 = vunpack.c.h.b16 %v305
    %v2778 = vunpack.c.l.b16 %v306
    %v2779 = vunpack.c.h.b16 %v306
    %v2780 = vunpack.c.l.b16 %v307
    %v2781 = vunpack.c.h.b16 %v307
    %v2782 = vunpack.c.l.b16 %v308
    %v2783 = vunpack.c.h.b16 %v308
    %v2784 = vunpack.c.l.b16 %v309
    %v2785 = vunpack.c.h.b16 %v309
    %v2786 = vunpack.c.l.b16 %v310
    %v2787 = vunpack.c.h.b16 %v310
    %v2788 = vunpack.c.l.b16 %v311
    %v2789 = vunpack.c.h.b16 %v311
    %v2790 = vunpack.c.l.b16 %v312
    %v2791 = vunpack.c.h.b16 %v312
    %v2792 = vunpack.c.l.b16 %v313
    %v2793 = vunpack.c.h.b16 %v313
    %v2794 = vunpack.c.l.b16 %v314
    %v2795 = vunpack.c.h.b16 %v314
    %v2796 = vunpack.c.l.b16 %v315
    %v2797 = vunpack.c.h.b16 %v315
    %v2798 = vunpack.c.l.b16 %v316
    %v2799 = vunpack.c.h.b16 %v316
    %v2800 = vunpack.c.l.b16 %v317
    %v2801 = vunpack.c.h.b16 %v317
    %v2802 = vunpack.c.l.b16 %v318
    %v2803 = vunpack.c.h.b16 %v318
    %v2804 = vunpack.c.l.b16 %v319
    %v2805 = vunpack.c.h.b16 %v319
    %v2806 = vunpack.c.l.b16 %v320
    %v2807 = vunpack.c.h.b16 %v320
    %v2808 = vunpack.c.l.b16 %v321
    %v2809 = vunpack.c.h.b16 %v321
    %v2810 = vunpack.c.l.b16 %v322
    %v2811 = vunpack.c.h.b16 %v322
    %v2812 = vunpack.c.l.b16 %v323
    %v2813 = vunpack.c.h.b16 %v323
    %v2814 = vunpack.c.l.b16 %v324
    %v2815 = vunpack.c.h.b16 %v324
    %v2816 = vunpack.c.l.b16 %v325
    %v2817 = vunpack.c.h.b16 %v325
    %v2818 = vunpack.c.l.b16 %v326
    %v2819 = vunpack.c.h.b16 %v326
    %v2820 = vunpack.c.l.b16 %v327
    %v2821 = vunpack.c.h.b16 %v327
    %v2822 = vunpack.c.l.b16 %v328
    %v2823 = vunpack.c.h.b16 %v328
    %v2824 = vunpack.c.l.b16 %v329
    %v2825 = vunpack.c.h.b16 %v329
    %v2826 = vunpack.c.l.b16 %v330
    %v2827 = vunpack.c.h.b16 %v330
    %v2828 = vunpack.c.l.b16 %v331
    %v2829 = vunpack.c.h.b16 %v331
    %v2830 = vunpack.c.l.b16 %v332
    %v2831 = vunpack.c.h.b16 %v332
    %v2832 = vunpack.c.l.b16 %v333
    %v2833 = vunpack.c.h.b16 %v333
    %v2834 = vunpack.c.l.b16 %v334
    %v2835 = vunpack.c.h.b16 %v334
    %v2836 = vunpack.c.l.b16 %v335
    %v2837 = vunpack.c.h.b16 %v335
    %v2838 = vunpack.c.l.b16 %v336
    %v2839 = vunpack.c.h.b16 %v336
    %v2840 = vunpack.c.l.b16 %v337
    %v2841 = vunpack.c.h.b16 %v337
    %v2842 = vunpack.c.l.b16 %v338
    %v2843 = vunpack.c.h.b16 %v338
    %v2844 = vunpack.c.l.b16 %v339
    %v2845 = vunpack.c.h.b16 %v339
    %v2846 = vunpack.c.l.b16 %v340
    %v2847 = vunpack.c.h.b16 %v340
    %v2848 = vunpack.c.l.b16 %v341
    %v2849 = vunpack.c.h.b16 %v341
    %v2850 = vunpack.c.l.b16 %v342
    %v2851 = vunpack.c.h.b16 %v342
    %v2852 = vunpack.c.l.b16 %v343
    %v2853 = vunpack.c.h.b16 %v343
    %v2854 = vunpack.c.l.b16 %v344
    %v2855 = vunpack.c.h.b16 %v344
    %v2856 = vunpack.c.l.b16 %v345
    %v2857 = vunpack.c.h.b16 %v345
    %v2858 = vunpack.c.l.b16 %v346
    %v2859 = vunpack.c.h.b16 %v346
    %v2860 = vunpack.c.l.b16 %v347
    %v2861 = vunpack.c.h.b16 %v347
    %v2862 = vunpack.c.l.b16 %v348
    %v2863 = vunpack.c.h.b16 %v348
    %v2864 = vunpack.c.l.b16 %v349
    %v2865 = vunpack.c.h.b16 %v349
    %v2866 = vunpack.c.l.b16 %v350
    %v2867 = vunpack.c.h.b16 %v350
    %v2868 = vunpack.c.l.b16 %v351
    %v2869 = vunpack.c.h.b16 %v351
    %v2870 = vunpack.c.l.b16 %v352
    %v2871 = vunpack.c.h.b16 %v352
    %v2872 = vunpack.c.l.b16 %v353
    %v2873 = vunpack.c.h.b16 %v353
    %v2874 = vunpack.c.l.b16 %v354
    %v2875 = vunpack.c.h.b16 %v354
    %v2876 = vunpack.c.l.b16 %v355
    %v2877 = vunpack.c.h.b16 %v355
    %v2878 = vunpack.c.l.b16 %v356
    %v2879 = vunpack.c.h.b16 %v356
    %v2880 = vunpack.c.l.b16 %v357
    %v2881 = vunpack.c.h.b16 %v357
    %v2882 = vunpack.c.l.b16 %v358
    %v2883 = vunpack.c.h.b16 %v358
    %v2884 = vunpack.c.l.b16 %v359
    %v2885 = vunpack.c.h.b16 %v359
    %v2886 = vunpack.c.l.b16 %v360
    %v2887 = vunpack.c.h.b16 %v360
    %v2888 = vunpack.c.l.b16 %v361
    %v2889 = vunpack.c.h.b16 %v361
    %v2890 = vunpack.c.l.b16 %v362
    %v2891 = vunpack.c.h.b16 %v362
    %v2892 = vunpack.c.l.b16 %v363
    %v2893 = vunpack.c.h.b16 %v363
    %v2894 = vunpack.c.l.b16 %v364
    %v2895 = vunpack.c.h.b16 %v364
    %v2896 = vunpack.c.l.b16 %v365
    %v2897 = vunpack.c.h.b16 %v365
    %v2898 = vunpack.c.l.b16 %v366
    %v2899 = vunpack.c.h.b16 %v366
    %v2900 = vunpack.c.l.b16 %v367
    %v2901 = vunpack.c.h.b16 %v367
    %v2902 = vunpack.c.l.b16 %v368
    %v2903 = vunpack.c.h.b16 %v368
    %v2904 = vunpack.c.l.b16 %v369
    %v2905 = vunpack.c.h.b16 %v369
    %v2906 = vunpack.c.l.b16 %v370
    %v2907 = vunpack.c.h.b16 %v370
    %v2908 = vunpack.c.l.b16 %v371
    %v2909 = vunpack.c.h.b16 %v371
    %v2910 = vunpack.c.l.b16 %v372
    %v2911 = vunpack.c.h.b16 %v372
    %v2912 = vunpack.c.l.b16 %v373
    %v2913 = vunpack.c.h.b16 %v373
    %v2914 = vunpack.c.l.b16 %v374
    %v2915 = vunpack.c.h.b16 %v374
    %v2916 = vunpack.c.l.b16 %v375
    %v2917 = vunpack.c.h.b16 %v375
    %v2918 = vunpack.c.l.b16 %v376
    %v2919 = vunpack.c.h.b16 %v376
    %v2920 = vunpack.c.l.b16 %v377
    %v2921 = vunpack.c.h.b16 %v377
    %v2922 = vunpack.c.l.b16 %v378
    %v2923 = vunpack.c.h.b16 %v378
    %v2924 = vunpack.c.l.b16 %v379
    %v2925 = vunpack.c.h.b16 %v379
    %v2926 = vunpack.c.l.b16 %v380
    %v2927 = vunpack.c.h.b16 %v380
    %v2928 = vunpack.c.l.b16 %v381
    %v2929 = vunpack.c.h.b16 %v381
    %v2930 = vunpack.c.l.b16 %v382
    %v2931 = vunpack.c.h.b16 %v382
    %v2932 = vunpack.c.l.b16 %v383
    %v2933 = vunpack.c.h.b16 %v383
    %v2934 = vunpack.c.l.b16 %v384
    %v2935 = vunpack.c.h.b16 %v384
    %v2936 = vunpack.c.l.b16 %v385
    %v2937 = vunpack.c.h.b16 %v385
    %v2938 = vunpack.c.l.b16 %v386
    %v2939 = vunpack.c.h.b16 %v386
    %v2940 = vunpack.c.l.b16 %v387
    %v2941 = vunpack.c.h.b16 %v387
    %v2942 = vunpack.c.l.b16 %v388
    %v2943 = vunpack.c.h.b16 %v388
    %v2944 = vunpack.c.l.b16 %v389
    %v2945 = vunpack.c.h.b16 %v389
    %v2946 = vunpack.c.l.b16 %v390
    %v2947 = vunpack.c.h.b16 %v390
    %v2948 = vunpack.c.l.b16 %v391
    %v2949 = vunpack.c.h.b16 %v391
    %v2950 = vunpack.c.l.b16 %v392
    %v2951 = vunpack.c.h.b16 %v392
    %v2952 = vunpack.c.l.b16 %v393
    %v2953 = vunpack.c.h.b16 %v393
    %v2954 = vunpack.c.l.b16 %v394
    %v2955 = vunpack.c.h.b16 %v394
    %v2956 = vunpack.c.l.b16 %v395
    %v2957 = vunpack.c.h.b16 %v395
    %v2958 = vunpack.c.l.b16 %v396
    %v2959 = vunpack.c.h.b16 %v396
    %v2960 = vunpack.c.l.b16 %v397
    %v2961 = vunpack.c.h.b16 %v397
    %v2962 = vunpack.c.l.b16 %v398
    %v2963 = vunpack.c.h.b16 %v398
    %v2964 = vunpack.c.l.b16 %v399
    %v2965 = vunpack.c.h.b16 %v399
    %v2966 = vunpack.c.l.b16 %v400
    %v2967 = vunpack.c.h.b16 %v400
    %v2968 = vunpack.c.l.b16 %v401
    %v2969 = vunpack.c.h.b16 %v401
    %v2970 = vunpack.c.l.b16 %v402
    %v2971 = vunpack.c.h.b16 %v402
    %v2972 = vunpack.c.l.b16 %v403
    %v2973 = vunpack.c.h.b16 %v403
    %v2974 = vunpack.c.l.b16 %v404
    %v2975 = vunpack.c.h.b16 %v404
    %v2976 = vunpack.c.l.b16 %v405
    %v2977 = vunpack.c.h.b16 %v405
    %v2978 = vunpack.c.l.b16 %v406
    %v2979 = vunpack.c.h.b16 %v406
    %v2980 = vunpack.c.l.b16 %v407
    %v2981 = vunpack.c.h.b16 %v407
    %v2982 = vunpack.c.l.b16 %v408
    %v2983 = vunpack.c.h.b16 %v408
    %v2984 = vunpack.c.l.b16 %v409
    %v2985 = vunpack.c.h.b16 %v409
    %v2986 = vunpack.c.l.b16 %v410
    %v2987 = vunpack.c.h.b16 %v410
    %v2988 = vunpack.c.l.b16 %v411
    %v2989 = vunpack.c.h.b16 %v411
    %v2990 = vunpack.c.l.b16 %v412
    %v2991 = vunpack.c.h.b16 %v412
    %v2992 = vunpack.c.l.b16 %v413
    %v2993 = vunpack.c.h.b16 %v413
    %v2994 = vunpack.c.l.b16 %v414
    %v2995 = vunpack.c.h.b16 %v414
    %v2996 = vunpack.c.l.b16 %v415
    %v2997 = vunpack.c.h.b16 %v415
    %v2998 = vunpack.c.l.b16 %v416
    %v2999 = vunpack.c.h.b16 %v416
    %v3000 = vunpack.c.l.b16 %v417
    %v3001 = vunpack.c.h.b16 %v417
    %v3002 = vunpack.c.l.b16 %v418
    %v3003 = vunpack.c.h.b16 %v418
    %v3004 = vunpack.c.l.b16 %v419
    %v3005 = vunpack.c.h.b16 %v419
    %v3006 = vunpack.c.l.b16 %v420
    %v3007 = vunpack.c.h.b16 %v420
    %v3008 = vunpack.c.l.b16 %v421
    %v3009 = vunpack.c.h.b16 %v421
    %v3010 = vunpack.c.l.b16 %v422
    %v3011 = vunpack.c.h.b16 %v422
    %v3012 = vunpack.c.l.b16 %v423
    %v3013 = vunpack.c.h.b16 %v423
    %v3014 = vunpack.c.l.b16 %v424
    %v3015 = vunpack.c.h.b16 %v424
    %v3016 = vunpack.c.l.b16 %v425
    %v3017 = vunpack.c.h.b16 %v425
    %v3018 = vunpack.c.l.b16 %v426
    %v3019 = vunpack.c.h.b16 %v426
    %v3020 = vunpack.c.l.b16 %v427
    %v3021 = vunpack.c.h.b16 %v427
    %v3022 = vunpack.c.l.b16 %v428
    %v3023 = vunpack.c.h.b16 %v428
    %v3024 = vunpack.c.l.b16 %v429
    %v3025 = vunpack.c.h.b16 %v429
    %v3026 = vunpack.c.l.b16 %v430
    %v3027 = vunpack.c.h.b16 %v430
    %v3028 = vunpack.c.l.b16 %v431
    %v3029 = vunpack.c.h.b16 %v431
    %v3030 = vunpack.c.l.b16 %v432
    %v3031 = vunpack.c.h.b16 %v432
    %v3032 = vunpack.c.l.b16 %v433
    %v3033 = vunpack.c.h.b16 %v433
    %v3034 = vunpack.c.l.b16 %v434
    %v3035 = vunpack.c.h.b16 %v434
    %v3036 = vunpack.c.l.b16 %v435
    %v3037 = vunpack.c.h.b16 %v435
    %v3038 = vunpack.c.l.b16 %v436
    %v3039 = vunpack.c.h.b16 %v436
    %v3040 = vunpack.c.l.b16 %v437
    %v3041 = vunpack.c.h.b16 %v437
    %v3042 = vunpack.c.l.b16 %v438
    %v3043 = vunpack.c.h.b16 %v438
    %v3044 = vunpack.c.l.b16 %v439
    %v3045 = vunpack.c.h.b16 %v439
    %v3046 = vunpack.c.l.b16 %v440
    %v3047 = vunpack.c.h.b16 %v440
    %v3048 = vunpack.c.l.b16 %v441
    %v3049 = vunpack.c.h.b16 %v441
    %v3050 = vunpack.c.l.b16 %v442
    %v3051 = vunpack.c.h.b16 %v442
    %v3052 = vunpack.c.l.b16 %v443
    %v3053 = vunpack.c.h.b16 %v443
    %v3054 = vunpack.c.l.b16 %v444
    %v3055 = vunpack.c.h.b16 %v444
    %v3056 = vunpack.c.l.b16 %v445
    %v3057 = vunpack.c.h.b16 %v445
    %v3058 = vunpack.c.l.b16 %v446
    %v3059 = vunpack.c.h.b16 %v446
    %v3060 = vunpack.c.l.b16 %v447
    %v3061 = vunpack.c.h.b16 %v447
    %v3062 = vunpack.c.l.b16 %v448
    %v3063 = vunpack.c.h.b16 %v448
    %v3064 = vunpack.c.l.b16 %v449
    %v3065 = vunpack.c.h.b16 %v449
    %v3066 = vunpack.c.l.b16 %v450
    %v3067 = vunpack.c.h.b16 %v450
    %v3068 = vunpack.c.l.b16 %v451
    %v3069 = vunpack.c.h.b16 %v451
    %v3070 = vunpack.c.l.b16 %v452
    %v3071 = vunpack.c.h.b16 %v452
    %v3072 = vunpack.c.l.b16 %v453
    %v3073 = vunpack.c.h.b16 %v453
    %v3074 = vunpack.c.l.b16 %v454
    %v3075 = vunpack.c.h.b16 %v454
    %v3076 = vunpack.c.l.b16 %v455
    %v3077 = vunpack.c.h.b16 %v455
    %v3078 = vunpack.c.l.b16 %v456
    %v3079 = vunpack.c.h.b16 %v456
    %v3080 = vunpack.c.l.b16 %v457
    %v3081 = vunpack.c.h.b16 %v457
    %v3082 = vunpack.c.l.b16 %v458
    %v3083 = vunpack.c.h.b16 %v458
    %v3084 = vunpack.c.l.b16 %v459
    %v3085 = vunpack.c.h.b16 %v459
    %v3086 = vunpack.c.l.b16 %v460
    %v3087 = vunpack.c.h.b16 %v460
    %v3088 = vunpack.c.l.b16 %v461
    %v3089 = vunpack.c.h.b16 %v461
    %v3090 = vunpack.c.l.b16 %v462
    %v3091 = vunpack.c.h.b16 %v462
    %v3092 = vunpack.c.l.b16 %v463
    %v3093 = vunpack.c.h.b16 %v463
    %v3094 = vunpack.c.l.b16 %v464
    %v3095 = vunpack.c.h.b16 %v464
    %v3096 = vunpack.c.l.b16 %v465
    %v3097 = vunpack.c.h.b16 %v465
    %v3098 = vunpack.c.l.b16 %v466
    %v3099 = vunpack.c.h.b16 %v466
    %v3100 = vunpack.c.l.b16 %v467
    %v3101 = vunpack.c.h.b16 %v467
    %v3102 = vunpack.c.l.b16 %v468
    %v3103 = vunpack.c.h.b16 %v468
    %v3104 = vunpack.c.l.b16 %v469
    %v3105 = vunpack.c.h.b16 %v469
    %v3106 = vunpack.c.l.b16 %v470
    %v3107 = vunpack.c.h.b16 %v470
    %v3108 = vunpack.c.l.b16 %v471
    %v3109 = vunpack.c.h.b16 %v471
    %v3110 = vunpack.c.l.b16 %v472
    %v3111 = vunpack.c.h.b16 %v472
    %v3112 = vunpack.c.l.b16 %v473
    %v3113 = vunpack.c.h.b16 %v473
    %v3114 = vunpack.c.l.b16 %v474
    %v3115 = vunpack.c.h.b16 %v474
    %v3116 = vunpack.c.l.b16 %v475
    %v3117 = vunpack.c.h.b16 %v475
    %v3118 = vunpack.c.l.b16 %v476
    %v3119 = vunpack.c.h.b16 %v476
    %v3120 = vunpack.c.l.b16 %v477
    %v3121 = vunpack.c.h.b16 %v477
    %v3122 = vunpack.c.l.b16 %v478
    %v3123 = vunpack.c.h.b16 %v478
    %v3124 = vunpack.c.l.b16 %v479
    %v3125 = vunpack.c.h.b16 %v479
    %v3126 = vunpack.c.l.b16 %v480
    %v3127 = vunpack.c.h.b16 %v480
    %v3128 = vunpack.c.l.b16 %v481
    %v3129 = vunpack.c.h.b16 %v481
    %v3130 = vunpack.c.l.b16 %v482
    %v3131 = vunpack.c.h.b16 %v482
    %v3132 = vunpack.c.l.b16 %v483
    %v3133 = vunpack.c.h.b16 %v483
    %v3134 = vunpack.c.l.b16 %v484
    %v3135 = vunpack.c.h.b16 %v484
    %v3136 = vunpack.c.l.b16 %v485
    %v3137 = vunpack.c.h.b16 %v485
    %v3138 = vunpack.c.l.b16 %v486
    %v3139 = vunpack.c.h.b16 %v486
    %v3140 = vunpack.c.l.b16 %v487
    %v3141 = vunpack.c.h.b16 %v487
    %v3142 = vunpack.c.l.b16 %v488
    %v3143 = vunpack.c.h.b16 %v488
    %v3144 = vunpack.c.l.b16 %v489
    %v3145 = vunpack.c.h.b16 %v489
    %v3146 = vunpack.c.l.b16 %v490
    %v3147 = vunpack.c.h.b16 %v490
    %v3148 = vunpack.c.l.b16 %v491
    %v3149 = vunpack.c.h.b16 %v491
    %v3150 = vunpack.c.l.b16 %v492
    %v3151 = vunpack.c.h.b16 %v492
    %v3152 = vunpack.c.l.b16 %v493
    %v3153 = vunpack.c.h.b16 %v493
    %v3154 = vunpack.c.l.b16 %v494
    %v3155 = vunpack.c.h.b16 %v494
    %v3156 = vunpack.c.l.b16 %v495
    %v3157 = vunpack.c.h.b16 %v495
    %v3158 = vunpack.c.l.b16 %v496
    %v3159 = vunpack.c.h.b16 %v496
    %v3160 = vunpack.c.l.b16 %v497
    %v3161 = vunpack.c.h.b16 %v497
    %v3162 = vunpack.c.l.b16 %v498
    %v3163 = vunpack.c.h.b16 %v498
    %v3164 = vunpack.c.l.b16 %v499
    %v3165 = vunpack.c.h.b16 %v499
    %v3166 = vunpack.c.l.b16 %v500
    %v3167 = vunpack.c.h.b16 %v500
    %v3168 = vunpack.c.l.b16 %v501
    %v3169 = vunpack.c.h.b16 %v501
    %v3170 = vunpack.c.l.b16 %v502
    %v3171 = vunpack.c.h.b16 %v502
    %v3172 = vunpack.c.l.b16 %v503
    %v3173 = vunpack.c.h.b16 %v503
    %v3174 = vunpack.c.l.b16 %v504
    %v3175 = vunpack.c.h.b16 %v504
    %v3176 = vunpack.c.l.b16 %v505
    %v3177 = vunpack.c.h.b16 %v505
    %v3178 = vunpack.c.l.b16 %v506
    %v3179 = vunpack.c.h.b16 %v506
    %v3180 = vunpack.c.l.b16 %v507
    %v3181 = vunpack.c.h.b16 %v507
    %v3182 = vunpack.c.l.b16 %v508
    %v3183 = vunpack.c.h.b16 %v508
    %v3184 = vunpack.c.l.b16 %v509
    %v3185 = vunpack.c.h.b16 %v509
    %v3186 = vunpack.c.l.b16 %v510
    %v3187 = vunpack.c.h.b16 %v510
    %v3188 = vunpack.c.l.b16 %v511
    %v3189 = vunpack.c.h.b16 %v511
    %v3190 = vunpack.c.l.b16 %v512
    %v3191 = vunpack.c.h.b16 %v512
    %v3192 = vunpack.c.l.b16 %v513
    %v3193 = vunpack.c.h.b16 %v513
    %v3194 = vunpack.c.l.b16 %v514
    %v3195 = vunpack.c.h.b16 %v514
    %v3196 = vunpack.c.l.b16 %v515
    %v3197 = vunpack.c.h.b16 %v515
    %v3198 = vunpack.c.l.b16 %v516
    %v3199 = vunpack.c.h.b16 %v516
    %v3200 = vunpack.c.l.b16 %v517
    %v3201 = vunpack.c.h.b16 %v517
    %v3202 = vunpack.c.l.b16 %v518
    %v3203 = vunpack.c.h.b16 %v518
    %v3204 = vunpack.c.l.b16 %v519
    %v3205 = vunpack.c.h.b16 %v519
    %v3206 = vunpack.c.l.b16 %v520
    %v3207 = vunpack.c.h.b16 %v520
    %v3208 = vunpack.c.l.b16 %v521
    %v3209 = vunpack.c.h.b16 %v521
    %v3210 = vunpack.c.l.b16 %v522
    %v3211 = vunpack.c.h.b16 %v522
    %v3212 = vunpack.c.l.b16 %v523
    %v3213 = vunpack.c.h.b16 %v523
    %v3214 = vunpack.c.l.b16 %v524
    %v3215 = vunpack.c.h.b16 %v524
    %v3216 = vunpack.c.l.b16 %v525
    %v3217 = vunpack.c.h.b16 %v525
    %v3218 = vunpack.c.l.b16 %v526
    %v3219 = vunpack.c.h.b16 %v526
    %v3220 = vunpack.c.l.b16 %v527
    %v3221 = vunpack.c.h.b16 %v527
    %v3222 = vunpack.c.l.b16 %v528
    %v3223 = vunpack.c.h.b16 %v528
    %v3224 = vunpack.c.l.b16 %v529
    %v3225 = vunpack.c.h.b16 %v529
    %v3226 = vunpack.c.l.b16 %v530
    %v3227 = vunpack.c.h.b16 %v530
    %v3228 = vunpack.c.l.b16 %v531
    %v3229 = vunpack.c.h.b16 %v531
    %v3230 = vunpack.c.l.b16 %v532
    %v3231 = vunpack.c.h.b16 %v532
    %v3232 = vunpack.c.l.b16 %v533
    %v3233 = vunpack.c.h.b16 %v533
    %v3234 = vunpack.c.l.b16 %v534
    %v3235 = vunpack.c.h.b16 %v534
    %v3236 = vunpack.c.l.b16 %v535
    %v3237 = vunpack.c.h.b16 %v535
    %v3238 = vunpack.c.l.b16 %v536
    %v3239 = vunpack.c.h.b16 %v536
    %v3240 = vunpack.c.l.b16 %v537
    %v3241 = vunpack.c.h.b16 %v537
    %v3242 = vunpack.c.l.b16 %v538
    %v3243 = vunpack.c.h.b16 %v538
    %v3244 = vunpack.c.l.b16 %v539
    %v3245 = vunpack.c.h.b16 %v539
    %v3246 = vunpack.c.l.b16 %v540
    %v3247 = vunpack.c.h.b16 %v540
    %v3248 = vunpack.c.l.b16 %v541
    %v3249 = vunpack.c.h.b16 %v541
    %v3250 = vunpack.c.l.b16 %v542
    %v3251 = vunpack.c.h.b16 %v542
    %v3252 = vunpack.c.l.b16 %v543
    %v3253 = vunpack.c.h.b16 %v543
    %v3254 = vunpack.c.l.b16 %v544
    %v3255 = vunpack.c.h.b16 %v544
    %v3256 = vunpack.c.l.b16 %v545
    %v3257 = vunpack.c.h.b16 %v545
    %v3258 = vunpack.c.l.b16 %v546
    %v3259 = vunpack.c.h.b16 %v546
    %v3260 = vunpack.c.l.b16 %v547
    %v3261 = vunpack.c.h.b16 %v547
    %v3262 = vunpack.c.l.b16 %v548
    %v3263 = vunpack.c.h.b16 %v548
    %v3264 = vunpack.c.l.b16 %v549
    %v3265 = vunpack.c.h.b16 %v549
    %v3266 = vunpack.c.l.b16 %v550
    %v3267 = vunpack.c.h.b16 %v550
    %v3268 = vunpack.c.l.b16 %v551
    %v3269 = vunpack.c.h.b16 %v551
    %v3270 = vunpack.c.l.b16 %v552
    %v3271 = vunpack.c.h.b16 %v552
    %v3272 = vunpack.c.l.b16 %v553
    %v3273 = vunpack.c.h.b16 %v553
    %v3274 = vunpack.c.l.b16 %v554
    %v3275 = vunpack.c.h.b16 %v554
    %v3276 = vunpack.c.l.b16 %v555
    %v3277 = vunpack.c.h.b16 %v555
    %v3278 = vunpack.c.l.b16 %v556
    %v3279 = vunpack.c.h.b16 %v556
    %v3280 = vunpack.c.l.b16 %v557
    %v3281 = vunpack.c.h.b16 %v557
    %v3282 = vunpack.c.l.b16 %v558
    %v3283 = vunpack.c.h.b16 %v558
    %v3284 = vunpack.c.l.b16 %v559
    %v3285 = vunpack.c.h.b16 %v559
    %v3286 = vunpack.c.l.b16 %v560
    %v3287 = vunpack.c.h.b16 %v560
    %v3288 = vunpack.c.l.b16 %v561
    %v3289 = vunpack.c.h.b16 %v561
    %v3290 = vunpack.c.l.b16 %v562
    %v3291 = vunpack.c.h.b16 %v562
    %v3292 = vunpack.c.l.b16 %v563
    %v3293 = vunpack.c.h.b16 %v563
    %v3294 = vunpack.c.l.b16 %v564
    %v3295 = vunpack.c.h.b16 %v564
    %v3296 = vunpack.c.l.b16 %v565
    %v3297 = vunpack.c.h.b16 %v565
    %v3298 = vunpack.c.l.b16 %v566
    %v3299 = vunpack.c.h.b16 %v566
    %v3300 = vunpack.c.l.b16 %v567
    %v3301 = vunpack.c.h.b16 %v567
    %v3302 = vunpack.c.l.b16 %v568
    %v3303 = vunpack.c.h.b16 %v568
    %v3304 = vunpack.c.l.b16 %v569
    %v3305 = vunpack.c.h.b16 %v569
    %v3306 = vunpack.c.l.b16 %v570
    %v3307 = vunpack.c.h.b16 %v570
    %v3308 = vunpack.c.l.b16 %v571
    %v3309 = vunpack.c.h.b16 %v571
    %v3310 = vunpack.c.l.b16 %v572
    %v3311 = vunpack.c.h.b16 %v572
    %v3312 = vunpack.c.l.b16 %v573
    %v3313 = vunpack.c.h.b16 %v573
    %v3314 = vunpack.c.l.b16 %v574
    %v3315 = vunpack.c.h.b16 %v574
    %v3316 = vunpack.c.l.b16 %v575
    %v3317 = vunpack.c.h.b16 %v575
    %v3318 = vunpack.c.l.b16 %v576
    %v3319 = vunpack.c.h.b16 %v576
    %v3320 = vunpack.c.l.b16 %v577
    %v3321 = vunpack.c.h.b16 %v577
    %v3322 = vunpack.c.l.b16 %v578
    %v3323 = vunpack.c.h.b16 %v578
    %v3324 = vunpack.c.l.b16 %v579
    %v3325 = vunpack.c.h.b16 %v579
    %v3326 = vunpack.c.l.b16 %v580
    %v3327 = vunpack.c.h.b16 %v580
    %v3328 = vunpack.c.l.b16 %v581
    %v3329 = vunpack.c.h.b16 %v581
    %v3330 = vunpack.c.l.b16 %v582
    %v3331 = vunpack.c.h.b16 %v582
    %v3332 = vunpack.c.l.b16 %v583
    %v3333 = vunpack.c.h.b16 %v583
    %v3334 = vunpack.c.l.b16 %v584
    %v3335 = vunpack.c.h.b16 %v584
    %v3336 = vunpack.c.l.b16 %v585
    %v3337 = vunpack.c.h.b16 %v585
    %v3338 = vunpack.c.l.b16 %v586
    %v3339 = vunpack.c.h.b16 %v586
    %v3340 = vunpack.c.l.b16 %v587
    %v3341 = vunpack.c.h.b16 %v587
    %v3342 = vunpack.c.l.b16 %v588
    %v3343 = vunpack.c.h.b16 %v588
    %v3344 = vunpack.c.l.b16 %v589
    %v3345 = vunpack.c.h.b16 %v589
    %v3346 = vunpack.c.l.b16 %v590
    %v3347 = vunpack.c.h.b16 %v590
    %v3348 = vunpack.c.l.b16 %v591
    %v3349 = vunpack.c.h.b16 %v591
    %v3350 = vunpack.c.l.b16 %v592
    %v3351 = vunpack.c.h.b16 %v592
    %v3352 = vunpack.c.l.b16 %v593
    %v3353 = vunpack.c.h.b16 %v593
    %v3354 = vunpack.c.l.b16 %v594
    %v3355 = vunpack.c.h.b16 %v594
    %v3356 = vunpack.c.l.b16 %v595
    %v3357 = vunpack.c.h.b16 %v595
    %v3358 = vunpack.c.l.b16 %v596
    %v3359 = vunpack.c.h.b16 %v596
    %v3360 = vunpack.c.l.b16 %v597
    %v3361 = vunpack.c.h.b16 %v597
    %v3362 = vunpack.c.l.b16 %v598
    %v3363 = vunpack.c.h.b16 %v598
    %v3364 = vunpack.c.l.b16 %v599
    %v3365 = vunpack.c.h.b16 %v599
    %v3366 = vunpack.c.l.b16 %v600
    %v3367 = vunpack.c.h.b16 %v600
    %v3368 = vunpack.c.l.b16 %v601
    %v3369 = vunpack.c.h.b16 %v601
    %v3370 = vunpack.c.l.b16 %v602
    %v3371 = vunpack.c.h.b16 %v602
    %v3372 = vunpack.c.l.b16 %v603
    %v3373 = vunpack.c.h.b16 %v603
    %v3374 = vunpack.c.l.b16 %v604
    %v3375 = vunpack.c.h.b16 %v604
    %v3376 = vunpack.c.l.b16 %v605
    %v3377 = vunpack.c.h.b16 %v605
    %v3378 = vunpack.c.l.b16 %v606
    %v3379 = vunpack.c.h.b16 %v606
    %v3380 = vunpack.c.l.b16 %v607
    %v3381 = vunpack.c.h.b16 %v607
    %v3382 = vunpack.c.l.b16 %v608
    %v3383 = vunpack.c.h.b16 %v608
    %v3384 = vunpack.c.l.b16 %v609
    %v3385 = vunpack.c.h.b16 %v609
    %v3386 = vunpack.c.l.b16 %v610
    %v3387 = vunpack.c.h.b16 %v610
    %v3388 = vunpack.c.l.b16 %v611
    %v3389 = vunpack.c.h.b16 %v611
    %v3390 = vunpack.c.l.b16 %v612
    %v3391 = vunpack.c.h.b16 %v612
    %v3392 = vunpack.c.l.b16 %v613
    %v3393 = vunpack.c.h.b16 %v613
    %v3394 = vunpack.c.l.b16 %v614
    %v3395 = vunpack.c.h.b16 %v614
    %v3396 = vunpack.c.l.b16 %v615
    %v3397 = vunpack.c.h.b16 %v615
    %v3398 = vunpack.c.l.b16 %v616
    %v3399 = vunpack.c.h.b16 %v616
    %v3400 = vunpack.c.l.b16 %v617
    %v3401 = vunpack.c.h.b16 %v617
    %v3402 = vunpack.c.l.b16 %v618
    %v3403 = vunpack.c.h.b16 %v618
    %v3404 = vunpack.c.l.b16 %v619
    %v3405 = vunpack.c.h.b16 %v619
    %v3406 = vunpack.c.l.b16 %v620
    %v3407 = vunpack.c.h.b16 %v620
    %v3408 = vunpack.c.l.b16 %v621
    %v3409 = vunpack.c.h.b16 %v621
    %v3410 = vunpack.c.l.b16 %v622
    %v3411 = vunpack.c.h.b16 %v622
    %v3412 = vunpack.c.l.b16 %v623
    %v3413 = vunpack.c.h.b16 %v623
    %v3414 = vunpack.c.l.b16 %v624
    %v3415 = vunpack.c.h.b16 %v624
    %v3416 = vunpack.c.l.b16 %v625
    %v3417 = vunpack.c.h.b16 %v625
    %v3418 = vunpack.c.l.b16 %v626
    %v3419 = vunpack.c.h.b16 %v626
    %v3420 = vunpack.c.l.b16 %v627
    %v3421 = vunpack.c.h.b16 %v627
    %v3422 = vunpack.c.l.b16 %v628
    %v3423 = vunpack.c.h.b16 %v628
    %v3424 = vunpack.c.l.b16 %v629
    %v3425 = vunpack.c.h.b16 %v629
    %v3426 = vunpack.c.l.b16 %v630
    %v3427 = vunpack.c.h.b16 %v630
    %v3428 = vunpack.c.l.b16 %v631
    %v3429 = vunpack.c.h.b16 %v631
    %v3430 = vunpack.c.l.b16 %v632
    %v3431 = vunpack.c.h.b16 %v632
    %v3432 = vunpack.c.l.b16 %v633
    %v3433 = vunpack.c.h.b16 %v633
    %v3434 = vunpack.c.l.b16 %v634
    %v3435 = vunpack.c.h.b16 %v634
    %v3436 = vunpack.c.l.b16 %v635
    %v3437 = vunpack.c.h.b16 %v635
    %v3438 = vunpack.c.l.b16 %v636
    %v3439 = vunpack.c.h.b16 %v636
    %v3440 = vunpack.c.l.b16 %v637
    %v3441 = vunpack.c.h.b16 %v637
    %v3442 = vunpack.c.l.b16 %v638
    %v3443 = vunpack.c.h.b16 %v638
    %v3444 = vunpack.c.l.b16 %v639
    %v3445 = vunpack.c.h.b16 %v639
    %v3446 = vunpack.c.l.b16 %v640
    %v3447 = vunpack.c.h.b16 %v640
    %v3448 = vunpack.c.l.b16 %v641
    %v3449 = vunpack.c.h.b16 %v641
    %v3450 = vunpack.c.l.b16 %v642
    %v3451 = vunpack.c.h.b16 %v642
    %v3452 = vunpack.c.l.b16 %v643
    %v3453 = vunpack.c.h.b16 %v643
    %v3454 = vunpack.c.l.b16 %v644
    %v3455 = vunpack.c.h.b16 %v644
    %v3456 = vunpack.c.l.b16 %v645
    %v3457 = vunpack.c.h.b16 %v645
    %v3458 = vunpack.c.l.b16 %v646
    %v3459 = vunpack.c.h.b16 %v646
    %v3460 = vunpack.c.l.b16 %v647
    %v3461 = vunpack.c.h.b16 %v647
    %v3462 = vunpack.c.l.b16 %v648
    %v3463 = vunpack.c.h.b16 %v648
    %v3464 = vunpack.c.l.b16 %v649
    %v3465 = vunpack.c.h.b16 %v649
    %v3466 = vunpack.c.l.b16 %v650
    %v3467 = vunpack.c.h.b16 %v650
    %v3468 = vunpack.c.l.b16 %v651
    %v3469 = vunpack.c.h.b16 %v651
    %v3470 = vunpack.c.l.b16 %v652
    %v3471 = vunpack.c.h.b16 %v652
    %v3472 = vunpack.c.l.b16 %v653
    %v3473 = vunpack.c.h.b16 %v653
    %v3474 = vunpack.c.l.b16 %v654
    %v3475 = vunpack.c.h.b16 %v654
    %v3476 = vunpack.c.l.b16 %v655
    %v3477 = vunpack.c.h.b16 %v655
    %v3478 = vunpack.c.l.b16 %v656
    %v3479 = vunpack.c.h.b16 %v656
    %v3480 = vunpack.c.l.b16 %v657
    %v3481 = vunpack.c.h.b16 %v657
    %v3482 = vunpack.c.l.b16 %v658
    %v3483 = vunpack.c.h.b16 %v658
    %v3484 = vunpack.c.l.b16 %v659
    %v3485 = vunpack.c.h.b16 %v659
    %v3486 = vunpack.c.l.b16 %v660
    %v3487 = vunpack.c.h.b16 %v660
    %v3488 = vunpack.c.l.b16 %v661
    %v3489 = vunpack.c.h.b16 %v661
    %v3490 = vunpack.c.l.b16 %v662
    %v3491 = vunpack.c.h.b16 %v662
    %v3492 = vunpack.c.l.b16 %v663
    %v3493 = vunpack.c.h.b16 %v663
    %v3494 = vunpack.c.l.b16 %v664
    %v3495 = vunpack.c.h.b16 %v664
    %v3496 = vunpack.c.l.b16 %v665
    %v3497 = vunpack.c.h.b16 %v665
    %v3498 = vunpack.c.l.b16 %v666
    %v3499 = vunpack.c.h.b16 %v666
    %v3500 = vunpack.c.l.b16 %v667
    %v3501 = vunpack.c.h.b16 %v667
    %v3502 = vunpack.c.l.b16 %v668
    %v3503 = vunpack.c.h.b16 %v668
    %v3504 = vunpack.c.l.b16 %v669
    %v3505 = vunpack.c.h.b16 %v669
    %v3506 = vunpack.c.l.b16 %v670
    %v3507 = vunpack.c.h.b16 %v670
    %v3508 = vunpack.c.l.b16 %v671
    %v3509 = vunpack.c.h.b16 %v671
    %v3510 = vunpack.c.l.b16 %v672
    %v3511 = vunpack.c.h.b16 %v672
    %v3512 = vunpack.c.l.b16 %v673
    %v3513 = vunpack.c.h.b16 %v673
    %v3514 = vunpack.c.l.b16 %v674
    %v3515 = vunpack.c.h.b16 %v674
    %v3516 = vunpack.c.l.b16 %v675
    %v3517 = vunpack.c.h.b16 %v675
    %v3518 = vunpack.c.l.b16 %v676
    %v3519 = vunpack.c.h.b16 %v676
    %v3520 = vunpack.c.l.b16 %v677
    %v3521 = vunpack.c.h.b16 %v677
    %v3522 = vunpack.c.l.b16 %v678
    %v3523 = vunpack.c.h.b16 %v678
    %v3524 = vunpack.c.l.b16 %v679
    %v3525 = vunpack.c.h.b16 %v679
    %v3526 = vunpack.c.l.b16 %v680
    %v3527 = vunpack.c.h.b16 %v680
    %v3528 = vunpack.c.l.b16 %v681
    %v3529 = vunpack.c.h.b16 %v681
    %v3530 = vunpack.c.l.b16 %v682
    %v3531 = vunpack.c.h.b16 %v682
    %v3532 = vunpack.c.l.b16 %v683
    %v3533 = vunpack.c.h.b16 %v683
    %v3534 = vunpack.c.l.b16 %v684
    %v3535 = vunpack.c.h.b16 %v684
    %v3536 = vunpack.c.l.b16 %v685
    %v3537 = vunpack.c.h.b16 %v685
    %v3538 = vunpack.c.l.b16 %v686
    %v3539 = vunpack.c.h.b16 %v686
    %v3540 = vunpack.c.l.b16 %v687
    %v3541 = vunpack.c.h.b16 %v687
    %v3542 = vunpack.c.l.b16 %v688
    %v3543 = vunpack.c.h.b16 %v688
    %v3544 = vunpack.c.l.b16 %v689
    %v3545 = vunpack.c.h.b16 %v689
    %v3546 = vunpack.c.l.b16 %v690
    %v3547 = vunpack.c.h.b16 %v690
    %v3548 = vunpack.c.l.b16 %v691
    %v3549 = vunpack.c.h.b16 %v691
    %v3550 = vunpack.c.l.b16 %v692
    %v3551 = vunpack.c.h.b16 %v692
    %v3552 = vunpack.c.l.b16 %v693
    %v3553 = vunpack.c.h.b16 %v693
    %v3554 = vunpack.c.l.b16 %v694
    %v3555 = vunpack.c.h.b16 %v694
    %v3556 = vunpack.c.l.b16 %v695
    %v3557 = vunpack.c.h.b16 %v695
    %v3558 = vunpack.c.l.b16 %v696
    %v3559 = vunpack.c.h.b16 %v696
    %v3560 = vunpack.c.l.b16 %v697
    %v3561 = vunpack.c.h.b16 %v697
    %v3562 = vunpack.c.l.b16 %v698
    %v3563 = vunpack.c.h.b16 %v698
    %v3564 = vunpack.c.l.b16 %v699
    %v3565 = vunpack.c.h.b16 %v699
    %v3566 = vunpack.c.l.b16 %v700
    %v3567 = vunpack.c.h.b16 %v700
    %v3568 = vunpack.c.l.b16 %v701
    %v3569 = vunpack.c.h.b16 %v701
    %v3570 = vunpack.c.l.b16 %v702
    %v3571 = vunpack.c.h.b16 %v702
    %v3572 = vunpack.c.l.b16 %v703
    %v3573 = vunpack.c.h.b16 %v703
    %v3574 = vunpack.c.l.b16 %v704
    %v3575 = vunpack.c.h.b16 %v704
    %v3576 = vunpack.c.l.b16 %v705
    %v3577 = vunpack.c.h.b16 %v705
    %v3578 = vunpack.c.l.b16 %v706
    %v3579 = vunpack.c.h.b16 %v706
    %v3580 = vunpack.c.l.b16 %v707
    %v3581 = vunpack.c.h.b16 %v707
    %v3582 = vunpack.c.l.b16 %v708
    %v3583 = vunpack.c.h.b16 %v708
    %v3584 = vunpack.c.l.b16 %v709
    %v3585 = vunpack.c.h.b16 %v709
    %v3586 = vunpack.c.l.b16 %v710
    %v3587 = vunpack.c.h.b16 %v710
    %v3588 = vunpack.c.l.b16 %v711
    %v3589 = vunpack.c.h.b16 %v711
    %v3590 = vunpack.c.l.b16 %v712
    %v3591 = vunpack.c.h.b16 %v712
    %v3592 = vunpack.c.l.b16 %v713
    %v3593 = vunpack.c.h.b16 %v713
    %v3594 = vunpack.c.l.b16 %v714
    %v3595 = vunpack.c.h.b16 %v714
    %v3596 = vunpack.c.l.b16 %v715
    %v3597 = vunpack.c.h.b16 %v715
    %v3598 = vunpack.c.l.b16 %v716
    %v3599 = vunpack.c.h.b16 %v716
    %v3600 = vunpack.c.l.b16 %v717
    %v3601 = vunpack.c.h.b16 %v717
    %v3602 = vunpack.c.l.b16 %v718
    %v3603 = vunpack.c.h.b16 %v718
    %v3604 = vunpack.c.l.b16 %v719
    %v3605 = vunpack.c.h.b16 %v719
    %v3606 = vunpack.c.l.b16 %v720
    %v3607 = vunpack.c.h.b16 %v720
    %v3608 = vunpack.c.l.b16 %v721
    %v3609 = vunpack.c.h.b16 %v721
    %v3610 = vunpack.c.l.b16 %v722
    %v3611 = vunpack.c.h.b16 %v722
    %v3612 = vunpack.c.l.b16 %v723
    %v3613 = vunpack.c.h.b16 %v723
    %v3614 = vunpack.c.l.b16 %v724
    %v3615 = vunpack.c.h.b16 %v724
    %v3616 = vunpack.c.l.b16 %v725
    %v3617 = vunpack.c.h.b16 %v725
    %v3618 = vunpack.c.l.b16 %v726
    %v3619 = vunpack.c.h.b16 %v726
    %v3620 = vunpack.c.l.b16 %v727
    %v3621 = vunpack.c.h.b16 %v727
    %v3622 = vunpack.c.l.b16 %v728
    %v3623 = vunpack.c.h.b16 %v728
    %v3624 = vunpack.c.l.b16 %v729
    %v3625 = vunpack.c.h.b16 %v729
    %v3626 = vunpack.c.l.b16 %v730
    %v3627 = vunpack.c.h.b16 %v730
    %v3628 = vunpack.c.l.b16 %v731
    %v3629 = vunpack.c.h.b16 %v731
    %v3630 = vunpack.c.l.b16 %v732
    %v3631 = vunpack.c.h.b16 %v732
    %v3632 = vunpack.c.l.b16 %v733
    %v3633 = vunpack.c.h.b16 %v733
    %v3634 = vunpack.c.l.b16 %v734
    %v3635 = vunpack.c.h.b16 %v734
    %v3636 = vunpack.c.l.b16 %v735
    %v3637 = vunpack.c.h.b16 %v735
    %v3638 = vunpack.c.l.b16 %v736
    %v3639 = vunpack.c.h.b16 %v736
    %v3640 = vunpack.c.l.b16 %v737
    %v3641 = vunpack.c.h.b16 %v737
    %v3642 = vunpack.c.l.b16 %v738
    %v3643 = vunpack.c.h.b16 %v738
    %v3644 = vunpack.c.l.b16 %v739
    %v3645 = vunpack.c.h.b16 %v739
    %v3646 = vunpack.c.l.b16 %v740
    %v3647 = vunpack.c.h.b16 %v740
    %v3648 = vunpack.c.l.b16 %v741
    %v3649 = vunpack.c.h.b16 %v741
    %v3650 = vunpack.c.l.b16 %v742
    %v3651 = vunpack.c.h.b16 %v742
    %v3652 = vunpack.c.l.b16 %v743
    %v3653 = vunpack.c.h.b16 %v743
    %v3654 = vunpack.c.l.b16 %v744
    %v3655 = vunpack.c.h.b16 %v744
    %v3656 = vunpack.c.l.b16 %v745
    %v3657 = vunpack.c.h.b16 %v745
    %v3658 = vunpack.c.l.b16 %v746
    %v3659 = vunpack.c.h.b16 %v746
    %v3660 = vunpack.c.l.b16 %v747
    %v3661 = vunpack.c.h.b16 %v747
    %v3662 = vunpack.c.l.b16 %v748
    %v3663 = vunpack.c.h.b16 %v748
    %v3664 = vunpack.c.l.b16 %v749
    %v3665 = vunpack.c.h.b16 %v749
    %v3666 = vunpack.c.l.b16 %v750
    %v3667 = vunpack.c.h.b16 %v750
    %v3668 = vunpack.c.l.b16 %v751
    %v3669 = vunpack.c.h.b16 %v751
    %v3670 = vunpack.c.l.b16 %v752
    %v3671 = vunpack.c.h.b16 %v752
    %v3672 = vunpack.c.l.b16 %v753
    %v3673 = vunpack.c.h.b16 %v753
    %v3674 = vunpack.c.l.b16 %v754
    %v3675 = vunpack.c.h.b16 %v754
    %v3676 = vunpack.c.l.b16 %v755
    %v3677 = vunpack.c.h.b16 %v755
    %v3678 = vunpack.c.l.b16 %v756
    %v3679 = vunpack.c.h.b16 %v756
    %v3680 = vunpack.c.l.b16 %v757
    %v3681 = vunpack.c.h.b16 %v757
    %v3682 = vunpack.c.l.b16 %v758
    %v3683 = vunpack.c.h.b16 %v758
    %v3684 = vunpack.c.l.b16 %v759
    %v3685 = vunpack.c.h.b16 %v759
    %v3686 = vunpack.c.l.b16 %v760
    %v3687 = vunpack.c.h.b16 %v760
    %v3688 = vunpack.c.l.b16 %v761
    %v3689 = vunpack.c.h.b16 %v761
    %v3690 = vunpack.c.l.b16 %v762
    %v3691 = vunpack.c.h.b16 %v762
    %v3692 = vunpack.c.l.b16 %v763
    %v3693 = vunpack.c.h.b16 %v763
    %v3694 = vunpack.c.l.b16 %v764
    %v3695 = vunpack.c.h.b16 %v764
    %v3696 = vunpack.c.l.b16 %v765
    %v3697 = vunpack.c.h.b16 %v765
    %v3698 = vunpack.c.l.b16 %v766
    %v3699 = vunpack.c.h.b16 %v766
    %v3700 = vunpack.c.l.b16 %v767
    %v3701 = vunpack.c.h.b16 %v767
    %v3702 = vunpack.c.l.b16 %v768
    %v3703 = vunpack.c.h.b16 %v768
    %v3704 = vunpack.c.l.b16 %v769
    %v3705 = vunpack.c.h.b16 %v769
    %v3706 = vunpack.c.l.b16 %v770
    %v3707 = vunpack.c.h.b16 %v770
    %v3708 = vunpack.c.l.b16 %v771
    %v3709 = vunpack.c.h.b16 %v771
    %v3710 = vunpack.c.l.b16 %v772
    %v3711 = vunpack.c.h.b16 %v772
    %v3712 = vunpack.c.l.b16 %v773
    %v3713 = vunpack.c.h.b16 %v773
    %v3714 = vunpack.c.l.b16 %v774
    %v3715 = vunpack.c.h.b16 %v774
    %v3716 = vunpack.c.l.b16 %v775
    %v3717 = vunpack.c.h.b16 %v775
    %v3718 = vunpack.c.l.b16 %v776
    %v3719 = vunpack.c.h.b16 %v776
    %v3720 = vunpack.c.l.b16 %v777
    %v3721 = vunpack.c.h.b16 %v777
    %v3722 = vunpack.c.l.b16 %v778
    %v3723 = vunpack.c.h.b16 %v778
    %v3724 = vunpack.c.l.b16 %v779
    %v3725 = vunpack.c.h.b16 %v779
    %v3726 = vunpack.c.l.b16 %v780
    %v3727 = vunpack.c.h.b16 %v780
    %v3728 = vunpack.c.l.b16 %v781
    %v3729 = vunpack.c.h.b16 %v781
    %v3730 = vunpack.c.l.b16 %v782
    %v3731 = vunpack.c.h.b16 %v782
    %v3732 = vunpack.c.l.b16 %v783
    %v3733 = vunpack.c.h.b16 %v783
    %v3734 = vunpack.c.l.b16 %v784
    %v3735 = vunpack.c.h.b16 %v784
    %v3736 = vunpack.c.l.b16 %v785
    %v3737 = vunpack.c.h.b16 %v785
    %v3738 = vunpack.c.l.b16 %v786
    %v3739 = vunpack.c.h.b16 %v786
    %v3740 = vunpack.c.l.b16 %v787
    %v3741 = vunpack.c.h.b16 %v787
    %v3742 = vunpack.c.l.b16 %v788
    %v3743 = vunpack.c.h.b16 %v788
    %v3744 = vunpack.c.l.b16 %v789
    %v3745 = vunpack.c.h.b16 %v789
    %v3746 = vunpack.c.l.b16 %v790
    %v3747 = vunpack.c.h.b16 %v790
    %v3748 = vunpack.c.l.b16 %v791
    %v3749 = vunpack.c.h.b16 %v791
    %v3750 = vunpack.c.l.b16 %v792
    %v3751 = vunpack.c.h.b16 %v792
    %v3752 = vunpack.c.l.b16 %v793
    %v3753 = vunpack.c.h.b16 %v793
    %v3754 = vunpack.c.l.b16 %v794
    %v3755 = vunpack.c.h.b16 %v794
    %v3756 = vunpack.c.l.b16 %v795
    %v3757 = vunpack.c.h.b16 %v795
    %v3758 = vunpack.c.l.b16 %v796
    %v3759 = vunpack.c.h.b16 %v796
    %v3760 = vunpack.c.l.b16 %v797
    %v3761 = vunpack.c.h.b16 %v797
    %v3762 = vunpack.c.l.b16 %v798
    %v3763 = vunpack.c.h.b16 %v798
    %v3764 = vunpack.c.l.b16 %v799
    %v3765 = vunpack.c.h.b16 %v799
    %v3766 = vunpack.c.l.b16 %v800
    %v3767 = vunpack.c.h.b16 %v800
    %v3768 = vunpack.c.l.b16 %v801
    %v3769 = vunpack.c.h.b16 %v801
    %v3770 = vunpack.c.l.b16 %v802
    %v3771 = vunpack.c.h.b16 %v802
    %v3772 = vunpack.c.l.b16 %v803
    %v3773 = vunpack.c.h.b16 %v803
    %v3774 = vunpack.c.l.b16 %v804
    %v3775 = vunpack.c.h.b16 %v804
    %v3776 = vunpack.c.l.b16 %v805
    %v3777 = vunpack.c.h.b16 %v805
    %v3778 = vunpack.c.l.b16 %v806
    %v3779 = vunpack.c.h.b16 %v806
    %v3780 = vunpack.c.l.b16 %v807
    %v3781 = vunpack.c.h.b16 %v807
    %v3782 = vunpack.c.l.b16 %v808
    %v3783 = vunpack.c.h.b16 %v808
    %v3784 = vunpack.c.l.b16 %v809
    %v3785 = vunpack.c.h.b16 %v809
    %v3786 = vunpack.c.l.b16 %v810
    %v3787 = vunpack.c.h.b16 %v810
    %v3788 = vunpack.c.l.b16 %v811
    %v3789 = vunpack.c.h.b16 %v811
    %v3790 = vunpack.c.l.b16 %v812
    %v3791 = vunpack.c.h.b16 %v812
    %v3792 = vunpack.c.l.b16 %v813
    %v3793 = vunpack.c.h.b16 %v813
    %v3794 = vunpack.c.l.b16 %v814
    %v3795 = vunpack.c.h.b16 %v814
    %v3796 = vunpack.c.l.b16 %v815
    %v3797 = vunpack.c.h.b16 %v815
    %v3798 = vunpack.c.l.b16 %v816
    %v3799 = vunpack.c.h.b16 %v816
    %v3800 = vunpack.c.l.b16 %v817
    %v3801 = vunpack.c.h.b16 %v817
    %v3802 = vunpack.c.l.b16 %v818
    %v3803 = vunpack.c.h.b16 %v818
    %v3804 = vunpack.c.l.b16 %v819
    %v3805 = vunpack.c.h.b16 %v819
    %v3806 = vunpack.c.l.b16 %v820
    %v3807 = vunpack.c.h.b16 %v820
    %v3808 = vunpack.c.l.b16 %v821
    %v3809 = vunpack.c.h.b16 %v821
    %v3810 = vunpack.c.l.b16 %v822
    %v3811 = vunpack.c.h.b16 %v822
    %v3812 = vunpack.c.l.b16 %v823
    %v3813 = vunpack.c.h.b16 %v823
    %v3814 = vunpack.c.l.b16 %v824
    %v3815 = vunpack.c.h.b16 %v824
    %v3816 = vunpack.c.l.b16 %v825
    %v3817 = vunpack.c.h.b16 %v825
    %v3818 = vunpack.c.l.b16 %v826
    %v3819 = vunpack.c.h.b16 %v826
    %v3820 = vunpack.c.l.b16 %v827
    %v3821 = vunpack.c.h.b16 %v827
    %v3822 = vunpack.c.l.b16 %v828
    %v3823 = vunpack.c.h.b16 %v828
    %v3824 = vunpack.c.l.b16 %v829
    %v3825 = vunpack.c.h.b16 %v829
    %v3826 = vunpack.c.l.b16 %v830
    %v3827 = vunpack.c.h.b16 %v830
    %v3828 = vunpack.c.l.b16 %v831
    %v3829 = vunpack.c.h.b16 %v831
    %v3830 = vunpack.c.l.b16 %v832
    %v3831 = vunpack.c.h.b16 %v832
    %v3832 = vunpack.c.l.b16 %v833
    %v3833 = vunpack.c.h.b16 %v833
    %v3834 = vunpack.c.l.b16 %v834
    %v3835 = vunpack.c.h.b16 %v834
    %v3836 = vunpack.c.l.b16 %v835
    %v3837 = vunpack.c.h.b16 %v835
    %v3838 = vunpack.c.l.b16 %v836
    %v3839 = vunpack.c.h.b16 %v836
    %v3840 = vunpack.c.l.b16 %v837
    %v3841 = vunpack.c.h.b16 %v837
    %v3842 = vunpack.c.l.b16 %v838
    %v3843 = vunpack.c.h.b16 %v838
    %v3844 = vunpack.c.l.b16 %v839
    %v3845 = vunpack.c.h.b16 %v839
    %v3846 = vunpack.c.l.b16 %v840
    %v3847 = vunpack.c.h.b16 %v840
    %v3848 = vunpack.c.l.b16 %v841
    %v3849 = vunpack.c.h.b16 %v841
    %v3850 = vunpack.c.l.b16 %v842
    %v3851 = vunpack.c.h.b16 %v842
    %v3852 = vunpack.c.l.b16 %v843
    %v3853 = vunpack.c.h.b16 %v843
    %v3854 = vunpack.c.l.b16 %v844
    %v3855 = vunpack.c.h.b16 %v844
    %v3856 = vunpack.c.l.b16 %v845
    %v3857 = vunpack.c.h.b16 %v845
    %v3858 = vunpack.c.l.b16 %v846
    %v3859 = vunpack.c.h.b16 %v846
    %v3860 = vunpack.c.l.b16 %v847
    %v3861 = vunpack.c.h.b16 %v847
    %v3862 = vunpack.c.l.b16 %v848
    %v3863 = vunpack.c.h.b16 %v848
    %v3864 = vunpack.c.l.b16 %v849
    %v3865 = vunpack.c.h.b16 %v849
    %v3866 = vunpack.c.l.b16 %v850
    %v3867 = vunpack.c.h.b16 %v850
    %v3868 = vunpack.c.l.b16 %v851
    %v3869 = vunpack.c.h.b16 %v851
    %v3870 = vunpack.c.l.b16 %v852
    %v3871 = vunpack.c.h.b16 %v852
    %v3872 = vunpack.c.l.b16 %v853
    %v3873 = vunpack.c.h.b16 %v853
    %v3874 = vunpack.c.l.b16 %v854
    %v3875 = vunpack.c.h.b16 %v854
    %v3876 = vunpack.c.l.b16 %v855
    %v3877 = vunpack.c.h.b16 %v855
    %v3878 = vunpack.c.l.b16 %v856
    %v3879 = vunpack.c.h.b16 %v856
    %v3880 = vunpack.c.l.b16 %v857
    %v3881 = vunpack.c.h.b16 %v857
    %v3882 = vunpack.c.l.b16 %v858
    %v3883 = vunpack.c.h.b16 %v858
    %v3884 = vunpack.c.l.b16 %v859
    %v3885 = vunpack.c.h.b16 %v859
    %v3886 = vunpack.c.l.b16 %v860
    %v3887 = vunpack.c.h.b16 %v860
    %v3888 = vunpack.c.l.b16 %v861
    %v3889 = vunpack.c.h.b16 %v861
    %v3890 = vunpack.c.l.b16 %v862
    %v3891 = vunpack.c.h.b16 %v862
    %v3892 = vunpack.c.l.b16 %v863
    %v3893 = vunpack.c.h.b16 %v863
    %v3894 = vunpack.c.l.b16 %v864
    %v3895 = vunpack.c.h.b16 %v864
    %v3896 = vunpack.c.l.b16 %v865
    %v3897 = vunpack.c.h.b16 %v865
    %v3898 = vunpack.c.l.b16 %v866
    %v3899 = vunpack.c.h.b16 %v866
    %v3900 = vunpack.c.l.b16 %v867
    %v3901 = vunpack.c.h.b16 %v867
    %v3902 = vunpack.c.l.b16 %v868
    %v3903 = vunpack.c.h.b16 %v868
    %v3904 = vunpack.c.l.b16 %v869
    %v3905 = vunpack.c.h.b16 %v869
    %v3906 = vunpack.c.l.b16 %v870
    %v3907 = vunpack.c.h.b16 %v870
    %v3908 = vunpack.c.l.b16 %v871
    %v3909 = vunpack.c.h.b16 %v871
    %v3910 = vunpack.c.l.b16 %v872
    %v3911 = vunpack.c.h.b16 %v872
    %v3912 = vunpack.c.l.b16 %v873
    %v3913 = vunpack.c.h.b16 %v873
    %v3914 = vunpack.c.l.b16 %v874
    %v3915 = vunpack.c.h.b16 %v874
    %v3916 = vunpack.c.l.b16 %v875
    %v3917 = vunpack.c.h.b16 %v875
    %v3918 = vunpack.c.l.b16 %v876
    %v3919 = vunpack.c.h.b16 %v876
    %v3920 = vunpack.c.l.b16 %v877
    %v3921 = vunpack.c.h.b16 %v877
    %v3922 = vunpack.c.l.b16 %v878
    %v3923 = vunpack.c.h.b16 %v878
    %v3924 = vunpack.c.l.b16 %v879
    %v3925 = vunpack.c.h.b16 %v879
    %v3926 = vunpack.c.l.b16 %v880
    %v3927 = vunpack.c.h.b16 %v880
    %v3928 = vunpack.c.l.b16 %v881
    %v3929 = vunpack.c.h.b16 %v881
    %v3930 = vunpack.c.l.b16 %v882
    %v3931 = vunpack.c.h.b16 %v882
    %v3932 = vunpack.c.l.b16 %v883
    %v3933 = vunpack.c.h.b16 %v883
    %v3934 = vunpack.c.l.b16 %v884
    %v3935 = vunpack.c.h.b16 %v884
    %v3936 = vunpack.c.l.b16 %v885
    %v3937 = vunpack.c.h.b16 %v885
    %v3938 = vunpack.c.l.b16 %v886
    %v3939 = vunpack.c.h.b16 %v886
    %v3940 = vunpack.c.l.b16 %v887
    %v3941 = vunpack.c.h.b16 %v887
    %v3942 = vunpack.c.l.b16 %v888
    %v3943 = vunpack.c.h.b16 %v888
    %v3944 = vunpack.c.l.b16 %v889
    %v3945 = vunpack.c.h.b16 %v889
    %v3946 = vunpack.c.l.b16 %v890
    %v3947 = vunpack.c.h.b16 %v890
    %v3948 = vunpack.c.l.b16 %v891
    %v3949 = vunpack.c.h.b16 %v891
    %v3950 = vunpack.c.l.b16 %v892
    %v3951 = vunpack.c.h.b16 %v892
    %v3952 = vunpack.c.l.b16 %v893
    %v3953 = vunpack.c.h.b16 %v893
    %v3954 = vunpack.c.l.b16 %v894
    %v3955 = vunpack.c.h.b16 %v894
    %v3956 = vunpack.c.l.b16 %v895
    %v3957 = vunpack.c.h.b16 %v895
    %v3958 = vunpack.c.l.b16 %v896
    %v3959 = vunpack.c.h.b16 %v896
    %v3960 = vunpack.c.l.b16 %v897
    %v3961 = vunpack.c.h.b16 %v897
    %v3962 = vunpack.c.l.b16 %v898
    %v3963 = vunpack.c.h.b16 %v898
    %v3964 = vunpack.c.l.b16 %v899
    %v3965 = vunpack.c.h.b16 %v899
    %v3966 = vunpack.c.l.b16 %v900
    %v3967 = vunpack.c.h.b16 %v900
    %v3968 = vunpack.c.l.b16 %v901
    %v3969 = vunpack.c.h.b16 %v901
    %v3970 = vunpack.c.l.b16 %v902
    %v3971 = vunpack.c.h.b16 %v902
    %v3972 = vunpack.c.l.b16 %v903
    %v3973 = vunpack.c.h.b16 %v903
    %v3974 = vunpack.c.l.b16 %v904
    %v3975 = vunpack.c.h.b16 %v904
    %v3976 = vunpack.c.l.b16 %v905
    %v3977 = vunpack.c.h.b16 %v905
    %v3978 = vunpack.c.l.b16 %v906
    %v3979 = vunpack.c.h.b16 %v906
    %v3980 = vunpack.c.l.b16 %v907
    %v3981 = vunpack.c.h.b16 %v907
    %v3982 = vunpack.c.l.b16 %v908
    %v3983 = vunpack.c.h.b16 %v908
    %v3984 = vunpack.c.l.b16 %v909
    %v3985 = vunpack.c.h.b16 %v909
    %v3986 = vunpack.c.l.b16 %v910
    %v3987 = vunpack.c.h.b16 %v910
    %v3988 = vunpack.c.l.b16 %v911
    %v3989 = vunpack.c.h.b16 %v911
    %v3990 = vunpack.c.l.b16 %v912
    %v3991 = vunpack.c.h.b16 %v912
    %v3992 = vunpack.c.l.b16 %v913
    %v3993 = vunpack.c.h.b16 %v913
    %v3994 = vunpack.c.l.b16 %v914
    %v3995 = vunpack.c.h.b16 %v914
    %v3996 = vunpack.c.l.b16 %v915
    %v3997 = vunpack.c.h.b16 %v915
    %v3998 = vunpack.c.l.b16 %v916
    %v3999 = vunpack.c.h.b16 %v916
    %v4000 = vunpack.c.l.b16 %v917
    %v4001 = vunpack.c.h.b16 %v917
    %v4002 = vunpack.c.l.b16 %v918
    %v4003 = vunpack.c.h.b16 %v918
    %v4004 = vunpack.c.l.b16 %v919
    %v4005 = vunpack.c.h.b16 %v919
    %v4006 = vunpack.c.l.b16 %v920
    %v4007 = vunpack.c.h.b16 %v920
    %v4008 = vunpack.c.l.b16 %v921
    %v4009 = vunpack.c.h.b16 %v921
    %v4010 = vunpack.c.l.b16 %v922
    %v4011 = vunpack.c.h.b16 %v922
    %v4012 = vunpack.c.l.b16 %v923
    %v4013 = vunpack.c.h.b16 %v923
    %v4014 = vunpack.c.l.b16 %v924
    %v4015 = vunpack.c.h.b16 %v924
    %v4016 = vunpack.c.l.b16 %v925
    %v4017 = vunpack.c.h.b16 %v925
    %v4018 = vunpack.c.l.b16 %v926
    %v4019 = vunpack.c.h.b16 %v926
    %v4020 = vunpack.c.l.b16 %v927
    %v4021 = vunpack.c.h.b16 %v927
    %v4022 = vunpack.c.l.b16 %v928
    %v4023 = vunpack.c.h.b16 %v928
    %v4024 = vunpack.c.l.b16 %v929
    %v4025 = vunpack.c.h.b16 %v929
    %v4026 = vunpack.c.l.b16 %v930
    %v4027 = vunpack.c.h.b16 %v930
    %v4028 = vunpack.c.l.b16 %v931
    %v4029 = vunpack.c.h.b16 %v931
    %v4030 = vunpack.c.l.b16 %v932
    %v4031 = vunpack.c.h.b16 %v932
    %v4032 = vunpack.c.l.b16 %v933
    %v4033 = vunpack.c.h.b16 %v933
    %v4034 = vunpack.c.l.b16 %v934
    %v4035 = vunpack.c.h.b16 %v934
    %v4036 = vunpack.c.l.b16 %v935
    %v4037 = vunpack.c.h.b16 %v935
    %v4038 = vunpack.c.l.b16 %v936
    %v4039 = vunpack.c.h.b16 %v936
    %v4040 = vunpack.c.l.b16 %v937
    %v4041 = vunpack.c.h.b16 %v937
    %v4042 = vunpack.c.l.b16 %v938
    %v4043 = vunpack.c.h.b16 %v938
    %v4044 = vunpack.c.l.b16 %v939
    %v4045 = vunpack.c.h.b16 %v939
    %v4046 = vunpack.c.l.b16 %v940
    %v4047 = vunpack.c.h.b16 %v940
    %v4048 = vunpack.c.l.b16 %v941
    %v4049 = vunpack.c.h.b16 %v941
    %v4050 = vunpack.c.l.b16 %v942
    %v4051 = vunpack.c.h.b16 %v942
    %v4052 = vunpack.c.l.b16 %v943
    %v4053 = vunpack.c.h.b16 %v943
    %v4054 = vunpack.c.l.b16 %v944
    %v4055 = vunpack.c.h.b16 %v944
    %v4056 = vunpack.c.l.b16 %v945
    %v4057 = vunpack.c.h.b16 %v945
    %v4058 = vunpack.c.l.b16 %v946
    %v4059 = vunpack.c.h.b16 %v946
    %v4060 = vunpack.c.l.b16 %v947
    %v4061 = vunpack.c.h.b16 %v947
    %v4062 = vunpack.c.l.b16 %v948
    %v4063 = vunpack.c.h.b16 %v948
    %v4064 = vunpack.c.l.b16 %v949
    %v4065 = vunpack.c.h.b16 %v949
    %v4066 = vunpack.c.l.b16 %v950
    %v4067 = vunpack.c.h.b16 %v950
    %v4068 = vunpack.c.l.b16 %v951
    %v4069 = vunpack.c.h.b16 %v951
    %v4070 = vunpack.c.l.b16 %v952
    %v4071 = vunpack.c.h.b16 %v952
    %v4072 = vunpack.c.l.b16 %v953
    %v4073 = vunpack.c.h.b16 %v953
    %v4074 = vunpack.c.l.b16 %v954
    %v4075 = vunpack.c.h.b16 %v954
    %v4076 = vunpack.c.l.b16 %v955
    %v4077 = vunpack.c.h.b16 %v955
    %v4078 = vunpack.c.l.b16 %v956
    %v4079 = vunpack.c.h.b16 %v956
    %v4080 = vunpack.c.l.b16 %v957
    %v4081 = vunpack.c.h.b16 %v957
    %v4082 = vunpack.c.l.b16 %v958
    %v4083 = vunpack.c.h.b16 %v958
    %v4084 = vunpack.c.l.b16 %v959
    %v4085 = vunpack.c.h.b16 %v959
    %v4086 = vunpack.c.l.b16 %v960
    %v4087 = vunpack.c.h.b16 %v960
    %v4088 = vunpack.c.l.b16 %v961
    %v4089 = vunpack.c.h.b16 %v961
    %v4090 = vunpack.c.l.b16 %v962
    %v4091 = vunpack.c.h.b16 %v962
    %v4092 = vunpack.c.l.b16 %v963
    %v4093 = vunpack.c.h.b16 %v963
    %v4094 = vunpack.c.l.b16 %v964
    %v4095 = vunpack.c.h.b16 %v964
    %v4096 = vunpack.c.l.b16 %v965
    %v4097 = vunpack.c.h.b16 %v965
    %v4098 = vunpack.c.l.b16 %v966
    %v4099 = vunpack.c.h.b16 %v966
    %v4100 = vunpack.c.l.b16 %v967
    %v4101 = vunpack.c.h.b16 %v967
    %v4102 = vunpack.c.l.b16 %v968
    %v4103 = vunpack.c.h.b16 %v968
    %v4104 = vunpack.c.l.b16 %v969
    %v4105 = vunpack.c.h.b16 %v969
    %v4106 = vunpack.c.l.b16 %v970
    %v4107 = vunpack.c.h.b16 %v970
    %v4108 = vunpack.c.l.b16 %v971
    %v4109 = vunpack.c.h.b16 %v971
    %v4110 = vunpack.c.l.b16 %v972
    %v4111 = vunpack.c.h.b16 %v972
    %v4112 = vunpack.c.l.b16 %v973
    %v4113 = vunpack.c.h.b16 %v973
    %v4114 = vunpack.c.l.b16 %v974
    %v4115 = vunpack.c.h.b16 %v974
    %v4116 = vunpack.c.l.b16 %v975
    %v4117 = vunpack.c.h.b16 %v975
    %v4118 = vunpack.c.l.b16 %v976
    %v4119 = vunpack.c.h.b16 %v976
    %v4120 = vunpack.c.l.b16 %v977
    %v4121 = vunpack.c.h.b16 %v977
    %v4122 = vunpack.c.l.b16 %v978
    %v4123 = vunpack.c.h.b16 %v978
    %v4124 = vunpack.c.l.b16 %v979
    %v4125 = vunpack.c.h.b16 %v979
    %v4126 = vunpack.c.l.b16 %v980
    %v4127 = vunpack.c.h.b16 %v980
    %v4128 = vunpack.c.l.b16 %v981
    %v4129 = vunpack.c.h.b16 %v981
    %v4130 = vunpack.c.l.b16 %v982
    %v4131 = vunpack.c.h.b16 %v982
    %v4132 = vunpack.c.l.b16 %v983
    %v4133 = vunpack.c.h.b16 %v983
    %v4134 = vunpack.c.l.b16 %v984
    %v4135 = vunpack.c.h.b16 %v984
    %v4136 = vunpack.c.l.b16 %v985
    %v4137 = vunpack.c.h.b16 %v985
    %v4138 = vunpack.c.l.b16 %v986
    %v4139 = vunpack.c.h.b16 %v986
    %v4140 = vunpack.c.l.b16 %v987
    %v4141 = vunpack.c.h.b16 %v987
    %v4142 = vunpack.c.l.b16 %v988
    %v4143 = vunpack.c.h.b16 %v988
    %v4144 = vunpack.c.l.b16 %v989
    %v4145 = vunpack.c.h.b16 %v989
    %v4146 = vunpack.c.l.b16 %v990
    %v4147 = vunpack.c.h.b16 %v990
    %v4148 = vunpack.c.l.b16 %v991
    %v4149 = vunpack.c.h.b16 %v991
    %v4150 = vunpack.c.l.b16 %v992
    %v4151 = vunpack.c.h.b16 %v992
    %v4152 = vunpack.c.l.b16 %v993
    %v4153 = vunpack.c.h.b16 %v993
    %v4154 = vunpack.c.l.b16 %v994
    %v4155 = vunpack.c.h.b16 %v994
    %v4156 = vunpack.c.l.b16 %v995
    %v4157 = vunpack.c.h.b16 %v995
    %v4158 = vunpack.c.l.b16 %v996
    %v4159 = vunpack.c.h.b16 %v996
    %v4160 = vunpack.c.l.b16 %v997
    %v4161 = vunpack.c.h.b16 %v997
    %v4162 = vunpack.c.l.b16 %v998
    %v4163 = vunpack.c.h.b16 %v998
    %v4164 = vunpack.c.l.b16 %v999
    %v4165 = vunpack.c.h.b16 %v999
    %v4166 = vunpack.c.l.b16 %v1000
    %v4167 = vunpack.c.h.b16 %v1000
    %v4168 = vunpack.c.l.b16 %v1001
    %v4169 = vunpack.c.h.b16 %v1001
    %v4170 = vunpack.c.l.b16 %v1002
    %v4171 = vunpack.c.h.b16 %v1002
    %v4172 = vunpack.c.l.b16 %v1003
    %v4173 = vunpack.c.h.b16 %v1003
    %v4174 = vunpack.c.l.b16 %v1004
    %v4175 = vunpack.c.h.b16 %v1004
    %v4176 = vunpack.c.l.b16 %v1005
    %v4177 = vunpack.c.h.b16 %v1005
    %v4178 = vunpack.c.l.b16 %v1006
    %v4179 = vunpack.c.h.b16 %v1006
    %v4180 = vunpack.c.l.b16 %v1007
    %v4181 = vunpack.c.h.b16 %v1007
    %v4182 = vunpack.c.l.b16 %v1008
    %v4183 = vunpack.c.h.b16 %v1008
    %v4184 = vunpack.c.l.b16 %v1009
    %v4185 = vunpack.c.h.b16 %v1009
    %v4186 = vunpack.c.l.b16 %v1010
    %v4187 = vunpack.c.h.b16 %v1010
    %v4188 = vunpack.c.l.b16 %v1011
    %v4189 = vunpack.c.h.b16 %v1011
    %v4190 = vunpack.c.l.b16 %v1012
    %v4191 = vunpack.c.h.b16 %v1012
    %v4192 = vunpack.c.l.b16 %v1013
    %v4193 = vunpack.c.h.b16 %v1013
    %v4194 = vunpack.c.l.b16 %v1014
    %v4195 = vunpack.c.h.b16 %v1014
    %v4196 = vunpack.c.l.b16 %v1015
    %v4197 = vunpack.c.h.b16 %v1015
    %v4198 = vunpack.c.l.b16 %v1016
    %v4199 = vunpack.c.h.b16 %v1016
    %v4200 = vunpack.c.l.b16 %v1017
    %v4201 = vunpack.c.h.b16 %v1017
    %v4202 = vunpack.c.l.b16 %v1018
    %v4203 = vunpack.c.h.b16 %v1018
    %v4204 = vunpack.c.l.b16 %v1019
    %v4205 = vunpack.c.h.b16 %v1019
    %v4206 = vunpack.c.l.b16 %v1020
    %v4207 = vunpack.c.h.b16 %v1020
    %v4208 = vunpack.c.l.b16 %v1021
    %v4209 = vunpack.c.h.b16 %v1021
    %v4210 = vunpack.c.l.b16 %v1022
    %v4211 = vunpack.c.h.b16 %v1022
    %v4212 = vunpack.c.l.b16 %v1023
    %v4213 = vunpack.c.h.b16 %v1023
    %v4214 = vunpack.c.l.b16 %v1024
    %v4215 = vunpack.c.h.b16 %v1024
    %v4216 = vunpack.c.l.b16 %v1025
    %v4217 = vunpack.c.h.b16 %v1025
    %v4218 = vunpack.c.l.b16 %v1026
    %v4219 = vunpack.c.h.b16 %v1026
    %v4220 = vunpack.c.l.b16 %v1027
    %v4221 = vunpack.c.h.b16 %v1027
    %v4222 = vunpack.c.l.b16 %v1028
    %v4223 = vunpack.c.h.b16 %v1028
    %v4224 = vunpack.c.l.b16 %v1029
    %v4225 = vunpack.c.h.b16 %v1029
    %v4226 = vunpack.c.l.b16 %v1030
    %v4227 = vunpack.c.h.b16 %v1030
    %v4228 = vunpack.c.l.b16 %v1031
    %v4229 = vunpack.c.h.b16 %v1031
    %v4230 = vunpack.c.l.b16 %v1032
    %v4231 = vunpack.c.h.b16 %v1032
    %v4232 = vunpack.c.l.b16 %v1033
    %v4233 = vunpack.c.h.b16 %v1033
    %v4234 = vunpack.c.l.b16 %v1034
    %v4235 = vunpack.c.h.b16 %v1034
    %v4236 = vunpack.c.l.b16 %v1035
    %v4237 = vunpack.c.h.b16 %v1035
    %v4238 = vunpack.c.l.b16 %v1036
    %v4239 = vunpack.c.h.b16 %v1036
    %v4240 = vunpack.c.l.b16 %v1037
    %v4241 = vunpack.c.h.b16 %v1037
    %v4242 = vunpack.c.l.b16 %v1038
    %v4243 = vunpack.c.h.b16 %v1038
    %v4244 = vunpack.c.l.b16 %v1039
    %v4245 = vunpack.c.h.b16 %v1039
    %v4246 = vunpack.c.l.b16 %v1040
    %v4247 = vunpack.c.h.b16 %v1040
    %v4248 = vunpack.c.l.b16 %v1041
    %v4249 = vunpack.c.h.b16 %v1041
    %v4250 = vunpack.c.l.b16 %v1042
    %v4251 = vunpack.c.h.b16 %v1042
    %v4252 = vunpack.c.l.b16 %v1043
    %v4253 = vunpack.c.h.b16 %v1043
    %v4254 = vunpack.c.l.b16 %v1044
    %v4255 = vunpack.c.h.b16 %v1044
    %v4256 = vunpack.c.l.b16 %v1045
    %v4257 = vunpack.c.h.b16 %v1045
    %v4258 = vunpack.c.l.b16 %v1046
    %v4259 = vunpack.c.h.b16 %v1046
    %v4260 = vunpack.c.l.b16 %v1047
    %v4261 = vunpack.c.h.b16 %v1047
    %v4262 = vunpack.c.l.b16 %v1048
    %v4263 = vunpack.c.h.b16 %v1048
    %v4264 = vunpack.c.l.b16 %v1049
    %v4265 = vunpack.c.h.b16 %v1049
    %v4266 = vunpack.c.l.b16 %v1050
    %v4267 = vunpack.c.h.b16 %v1050
    %v4268 = vunpack.c.l.b16 %v1051
    %v4269 = vunpack.c.h.b16 %v1051
    %v4270 = vunpack.c.l.b16 %v1052
    %v4271 = vunpack.c.h.b16 %v1052
    %v4272 = vunpack.c.l.b16 %v1053
    %v4273 = vunpack.c.h.b16 %v1053
    %v4274 = vunpack.c.l.b16 %v1054
    %v4275 = vunpack.c.h.b16 %v1054
    %v4276 = vunpack.c.l.b16 %v1055
    %v4277 = vunpack.c.h.b16 %v1055
    %v4278 = vpack.c.b16 %v2232, %v2230
    %v4279 = vpack.c.b16 %v2233, %v2231
    %v4280 = vpack.c.b16 %v2236, %v2234
    %v4281 = vpack.c.b16 %v2237, %v2235
    %v4282 = vpack.c.b16 %v2240, %v2238
    %v4283 = vpack.c.b16 %v2241, %v2239
    %v4284 = vpack.c.b16 %v2244, %v2242
    %v4285 = vpack.c.b16 %v2245, %v2243
    %v4286 = vpack.c.b16 %v2248, %v2246
    %v4287 = vpack.c.b16 %v2249, %v2247
    %v4288 = vpack.c.b16 %v2252, %v2250
    %v4289 = vpack.c.b16 %v2253, %v2251
    %v4290 = vpack.c.b16 %v2256, %v2254
    %v4291 = vpack.c.b16 %v2257, %v2255
    %v4292 = vpack.c.b16 %v2260, %v2258
    %v4293 = vpack.c.b16 %v2261, %v2259
    %v4294 = vpack.c.b16 %v2264, %v2262
    %v4295 = vpack.c.b16 %v2265, %v2263
    %v4296 = vpack.c.b16 %v2268, %v2266
    %v4297 = vpack.c.b16 %v2269, %v2267
    %v4298 = vpack.c.b16 %v2272, %v2270
    %v4299 = vpack.c.b16 %v2273, %v2271
    %v4300 = vpack.c.b16 %v2276, %v2274
    %v4301 = vpack.c.b16 %v2277, %v2275
    %v4302 = vpack.c.b16 %v2280, %v2278
    %v4303 = vpack.c.b16 %v2281, %v2279
    %v4304 = vpack.c.b16 %v2284, %v2282
    %v4305 = vpack.c.b16 %v2285, %v2283
    %v4306 = vpack.c.b16 %v2288, %v2286
    %v4307 = vpack.c.b16 %v2289, %v2287
    %v4308 = vpack.c.b16 %v2292, %v2290
    %v4309 = vpack.c.b16 %v2293, %v2291
    %v4310 = vpack.c.b16 %v2296, %v2294
    %v4311 = vpack.c.b16 %v2297, %v2295
    %v4312 = vpack.c.b16 %v2300, %v2298
    %v4313 = vpack.c.b16 %v2301, %v2299
    %v4314 = vpack.c.b16 %v2304, %v2302
    %v4315 = vpack.c.b16 %v2305, %v2303
    %v4316 = vpack.c.b16 %v2308, %v2306
    %v4317 = vpack.c.b16 %v2309, %v2307
    %v4318 = vpack.c.b16 %v2312, %v2310
    %v4319 = vpack.c.b16 %v2313, %v2311
    %v4320 = vpack.c.b16 %v2316, %v2314
    %v4321 = vpack.c.b16 %v2317, %v2315
    %v4322 = vpack.c.b16 %v2320, %v2318
    %v4323 = vpack.c.b16 %v2321, %v2319
    %v4324 = vpack.c.b16 %v2324, %v2322
    %v4325 = vpack.c.b16 %v2325, %v2323
    %v4326 = vpack.c.b16 %v2328, %v2326
    %v4327 = vpack.c.b16 %v2329, %v2327
    %v4328 = vpack.c.b16 %v2332, %v2330
    %v4329 = vpack.c.b16 %v2333, %v2331
    %v4330 = vpack.c.b16 %v2336, %v2334
    %v4331 = vpack.c.b16 %v2337, %v2335
    %v4332 = vpack.c.b16 %v2340, %v2338
    %v4333 = vpack.c.b16 %v2341, %v2339
    %v4334 = vpack.c.b16 %v2344, %v2342
    %v4335 = vpack.c.b16 %v2345, %v2343
    %v4336 = vpack.c.b16 %v2348, %v2346
    %v4337 = vpack.c.b16 %v2349, %v2347
    %v4338 = vpack.c.b16 %v2352, %v2350
    %v4339 = vpack.c.b16 %v2353, %v2351
    %v4340 = vpack.c.b16 %v2356, %v2354
    %v4341 = vpack.c.b16 %v2357, %v2355
    %v4342 = vpack.c.b16 %v2360, %v2358
    %v4343 = vpack.c.b16 %v2361, %v2359
    %v4344 = vpack.c.b16 %v2364, %v2362
    %v4345 = vpack.c.b16 %v2365, %v2363
    %v4346 = vpack.c.b16 %v2368, %v2366
    %v4347 = vpack.c.b16 %v2369, %v2367
    %v4348 = vpack.c.b16 %v2372, %v2370
    %v4349 = vpack.c.b16 %v2373, %v2371
    %v4350 = vpack.c.b16 %v2376, %v2374
    %v4351 = vpack.c.b16 %v2377, %v2375
    %v4352 = vpack.c.b16 %v2380, %v2378
    %v4353 = vpack.c.b16 %v2381, %v2379
    %v4354 = vpack.c.b16 %v2384, %v2382
    %v4355 = vpack.c.b16 %v2385, %v2383
    %v4356 = vpack.c.b16 %v2388, %v2386
    %v4357 = vpack.c.b16 %v2389, %v2387
    %v4358 = vpack.c.b16 %v2392, %v2390
    %v4359 = vpack.c.b16 %v2393, %v2391
    %v4360 = vpack.c.b16 %v2396, %v2394
    %v4361 = vpack.c.b16 %v2397, %v2395
    %v4362 = vpack.c.b16 %v2400, %v2398
    %v4363 = vpack.c.b16 %v2401, %v2399
    %v4364 = vpack.c.b16 %v2404, %v2402
    %v4365 = vpack.c.b16 %v2405, %v2403
    %v4366 = vpack.c.b16 %v2408, %v2406
    %v4367 = vpack.c.b16 %v2409, %v2407
    %v4368 = vpack.c.b16 %v2412, %v2410
    %v4369 = vpack.c.b16 %v2413, %v2411
    %v4370 = vpack.c.b16 %v2416, %v2414
    %v4371 = vpack.c.b16 %v2417, %v2415
    %v4372 = vpack.c.b16 %v2420, %v2418
    %v4373 = vpack.c.b16 %v2421, %v2419
    %v4374 = vpack.c.b16 %v2424, %v2422
    %v4375 = vpack.c.b16 %v2425, %v2423
    %v4376 = vpack.c.b16 %v2428, %v2426
    %v4377 = vpack.c.b16 %v2429, %v2427
    %v4378 = vpack.c.b16 %v2432, %v2430
    %v4379 = vpack.c.b16 %v2433, %v2431
    %v4380 = vpack.c.b16 %v2436, %v2434
    %v4381 = vpack.c.b16 %v2437, %v2435
    %v4382 = vpack.c.b16 %v2440, %v2438
    %v4383 = vpack.c.b16 %v2441, %v2439
    %v4384 = vpack.c.b16 %v2444, %v2442
    %v4385 = vpack.c.b16 %v2445, %v2443
    %v4386 = vpack.c.b16 %v2448, %v2446
    %v4387 = vpack.c.b16 %v2449, %v2447
    %v4388 = vpack.c.b16 %v2452, %v2450
    %v4389 = vpack.c.b16 %v2453, %v2451
    %v4390 = vpack.c.b16 %v2456, %v2454
    %v4391 = vpack.c.b16 %v2457, %v2455
    %v4392 = vpack.c.b16 %v2460, %v2458
    %v4393 = vpack.c.b16 %v2461, %v2459
    %v4394 = vpack.c.b16 %v2464, %v2462
    %v4395 = vpack.c.b16 %v2465, %v2463
    %v4396 = vpack.c.b16 %v2468, %v2466
    %v4397 = vpack.c.b16 %v2469, %v2467
    %v4398 = vpack.c.b16 %v2472, %v2470
    %v4399 = vpack.c.b16 %v2473, %v2471
    %v4400 = vpack.c.b16 %v2476, %v2474
    %v4401 = vpack.c.b16 %v2477, %v2475
    %v4402 = vpack.c.b16 %v2480, %v2478
    %v4403 = vpack.c.b16 %v2481, %v2479
    %v4404 = vpack.c.b16 %v2484, %v2482
    %v4405 = vpack.c.b16 %v2485, %v2483
    %v4406 = vpack.c.b16 %v2488, %v2486
    %v4407 = vpack.c.b16 %v2489, %v2487
    %v4408 = vpack.c.b16 %v2492, %v2490
    %v4409 = vpack.c.b16 %v2493, %v2491
    %v4410 = vpack.c.b16 %v2496, %v2494
    %v4411 = vpack.c.b16 %v2497, %v2495
    %v4412 = vpack.c.b16 %v2500, %v2498
    %v4413 = vpack.c.b16 %v2501, %v2499
    %v4414 = vpack.c.b16 %v2504, %v2502
    %v4415 = vpack.c.b16 %v2505, %v2503
    %v4416 = vpack.c.b16 %v2508, %v2506
    %v4417 = vpack.c.b16 %v2509, %v2507
    %v4418 = vpack.c.b16 %v2512, %v2510
    %v4419 = vpack.c.b16 %v2513, %v2511
    %v4420 = vpack.c.b16 %v2516, %v2514
    %v4421 = vpack.c.b16 %v2517, %v2515
    %v4422 = vpack.c.b16 %v2520, %v2518
    %v4423 = vpack.c.b16 %v2521, %v2519
    %v4424 = vpack.c.b16 %v2524, %v2522
    %v4425 = vpack.c.b16 %v2525, %v2523
    %v4426 = vpack.c.b16 %v2528, %v2526
    %v4427 = vpack.c.b16 %v2529, %v2527
    %v4428 = vpack.c.b16 %v2532, %v2530
    %v4429 = vpack.c.b16 %v2533, %v2531
    %v4430 = vpack.c.b16 %v2536, %v2534
    %v4431 = vpack.c.b16 %v2537, %v2535
    %v4432 = vpack.c.b16 %v2540, %v2538
    %v4433 = vpack.c.b16 %v2541, %v2539
    %v4434 = vpack.c.b16 %v2544, %v2542
    %v4435 = vpack.c.b16 %v2545, %v2543
    %v4436 = vpack.c.b16 %v2548, %v2546
    %v4437 = vpack.c.b16 %v2549, %v2547
    %v4438 = vpack.c.b16 %v2552, %v2550
    %v4439 = vpack.c.b16 %v2553, %v2551
    %v4440 = vpack.c.b16 %v2556, %v2554
    %v4441 = vpack.c.b16 %v2557, %v2555
    %v4442 = vpack.c.b16 %v2560, %v2558
    %v4443 = vpack.c.b16 %v2561, %v2559
    %v4444 = vpack.c.b16 %v2564, %v2562
    %v4445 = vpack.c.b16 %v2565, %v2563
    %v4446 = vpack.c.b16 %v2568, %v2566
    %v4447 = vpack.c.b16 %v2569, %v2567
    %v4448 = vpack.c.b16 %v2572, %v2570
    %v4449 = vpack.c.b16 %v2573, %v2571
    %v4450 = vpack.c.b16 %v2576, %v2574
    %v4451 = vpack.c.b16 %v2577, %v2575
    %v4452 = vpack.c.b16 %v2580, %v2578
    %v4453 = vpack.c.b16 %v2581, %v2579
    %v4454 = vpack.c.b16 %v2584, %v2582
    %v4455 = vpack.c.b16 %v2585, %v2583
    %v4456 = vpack.c.b16 %v2588, %v2586
    %v4457 = vpack.c.b16 %v2589, %v2587
    %v4458 = vpack.c.b16 %v2592, %v2590
    %v4459 = vpack.c.b16 %v2593, %v2591
    %v4460 = vpack.c.b16 %v2596, %v2594
    %v4461 = vpack.c.b16 %v2597, %v2595
    %v4462 = vpack.c.b16 %v2600, %v2598
    %v4463 = vpack.c.b16 %v2601, %v2599
    %v4464 = vpack.c.b16 %v2604, %v2602
    %v4465 = vpack.c.b16 %v2605, %v2603
    %v4466 = vpack.c.b16 %v2608, %v2606
    %v4467 = vpack.c.b16 %v2609, %v2607
    %v4468 = vpack.c.b16 %v2612, %v2610
    %v4469 = vpack.c.b16 %v2613, %v2611
    %v4470 = vpack.c.b16 %v2616, %v2614
    %v4471 = vpack.c.b16 %v2617, %v2615
    %v4472 = vpack.c.b16 %v2620, %v2618
    %v4473 = vpack.c.b16 %v2621, %v2619
    %v4474 = vpack.c.b16 %v2624, %v2622
    %v4475 = vpack.c.b16 %v2625, %v2623
    %v4476 = vpack.c.b16 %v2628, %v2626
    %v4477 = vpack.c.b16 %v2629, %v2627
    %v4478 = vpack.c.b16 %v2632, %v2630
    %v4479 = vpack.c.b16 %v2633, %v2631
    %v4480 = vpack.c.b16 %v2636, %v2634
    %v4481 = vpack.c.b16 %v2637, %v2635
    %v4482 = vpack.c.b16 %v2640, %v2638
    %v4483 = vpack.c.b16 %v2641, %v2639
    %v4484 = vpack.c.b16 %v2644, %v2642
    %v4485 = vpack.c.b16 %v2645, %v2643
    %v4486 = vpack.c.b16 %v2648, %v2646
    %v4487 = vpack.c.b16 %v2649, %v2647
    %v4488 = vpack.c.b16 %v2652, %v2650
    %v4489 = vpack.c.b16 %v2653, %v2651
    %v4490 = vpack.c.b16 %v2656, %v2654
    %v4491 = vpack.c.b16 %v2657, %v2655
    %v4492 = vpack.c.b16 %v2660, %v2658
    %v4493 = vpack.c.b16 %v2661, %v2659
    %v4494 = vpack.c.b16 %v2664, %v2662
    %v4495 = vpack.c.b16 %v2665, %v2663
    %v4496 = vpack.c.b16 %v2668, %v2666
    %v4497 = vpack.c.b16 %v2669, %v2667
    %v4498 = vpack.c.b16 %v2672, %v2670
    %v4499 = vpack.c.b16 %v2673, %v2671
    %v4500 = vpack.c.b16 %v2676, %v2674
    %v4501 = vpack.c.b16 %v2677, %v2675
    %v4502 = vpack.c.b16 %v2680, %v2678
    %v4503 = vpack.c.b16 %v2681, %v2679
    %v4504 = vpack.c.b16 %v2684, %v2682
    %v4505 = vpack.c.b16 %v2685, %v2683
    %v4506 = vpack.c.b16 %v2688, %v2686
    %v4507 = vpack.c.b16 %v2689, %v2687
    %v4508 = vpack.c.b16 %v2692, %v2690
    %v4509 = vpack.c.b16 %v2693, %v2691
    %v4510 = vpack.c.b16 %v2696, %v2694
    %v4511 = vpack.c.b16 %v2697, %v2695
    %v4512 = vpack.c.b16 %v2700, %v2698
    %v4513 = vpack.c.b16 %v2701, %v2699
    %v4514 = vpack.c.b16 %v2704, %v2702
    %v4515 = vpack.c.b16 %v2705, %v2703
    %v4516 = vpack.c.b16 %v2708, %v2706
    %v4517 = vpack.c.b16 %v2709, %v2707
    %v4518 = vpack.c.b16 %v2712, %v2710
    %v4519 = vpack.c.b16 %v2713, %v2711
    %v4520 = vpack.c.b16 %v2716, %v2714
    %v4521 = vpack.c.b16 %v2717, %v2715
    %v4522 = vpack.c.b16 %v2720, %v2718
    %v4523 = vpack.c.b16 %v2721, %v2719
    %v4524 = vpack.c.b16 %v2724, %v2722
    %v4525 = vpack.c.b16 %v2725, %v2723
    %v4526 = vpack.c.b16 %v2728, %v2726
    %v4527 = vpack.c.b16 %v2729, %v2727
    %v4528 = vpack.c.b16 %v2732, %v2730
    %v4529 = vpack.c.b16 %v2733, %v2731
    %v4530 = vpack.c.b16 %v2736, %v2734
    %v4531 = vpack.c.b16 %v2737, %v2735
    %v4532 = vpack.c.b16 %v2740, %v2738
    %v4533 = vpack.c.b16 %v2741, %v2739
    %v4534 = vpack.c.b16 %v2744, %v2742
    %v4535 = vpack.c.b16 %v2745, %v2743
    %v4536 = vpack.c.b16 %v2748, %v2746
    %v4537 = vpack.c.b16 %v2749, %v2747
    %v4538 = vpack.c.b16 %v2752, %v2750
    %v4539 = vpack.c.b16 %v2753, %v2751
    %v4540 = vpack.c.b16 %v2756, %v2754
    %v4541 = vpack.c.b16 %v2757, %v2755
    %v4542 = vpack.c.b16 %v2760, %v2758
    %v4543 = vpack.c.b16 %v2761, %v2759
    %v4544 = vpack.c.b16 %v2764, %v2762
    %v4545 = vpack.c.b16 %v2765, %v2763
    %v4546 = vpack.c.b16 %v2768, %v2766
    %v4547 = vpack.c.b16 %v2769, %v2767
    %v4548 = vpack.c.b16 %v2772, %v2770
    %v4549 = vpack.c.b16 %v2773, %v2771
    %v4550 = vpack.c.b16 %v2776, %v2774
    %v4551 = vpack.c.b16 %v2777, %v2775
    %v4552 = vpack.c.b16 %v2780, %v2778
    %v4553 = vpack.c.b16 %v2781, %v2779
    %v4554 = vpack.c.b16 %v2784, %v2782
    %v4555 = vpack.c.b16 %v2785, %v2783
    %v4556 = vpack.c.b16 %v2788, %v2786
    %v4557 = vpack.c.b16 %v2789, %v2787
    %v4558 = vpack.c.b16 %v2792, %v2790
    %v4559 = vpack.c.b16 %v2793, %v2791
    %v4560 = vpack.c.b16 %v2796, %v2794
    %v4561 = vpack.c.b16 %v2797, %v2795
    %v4562 = vpack.c.b16 %v2800, %v2798
    %v4563 = vpack.c.b16 %v2801, %v2799
    %v4564 = vpack.c.b16 %v2804, %v2802
    %v4565 = vpack.c.b16 %v2805, %v2803
    %v4566 = vpack.c.b16 %v2808, %v2806
    %v4567 = vpack.c.b16 %v2809, %v2807
    %v4568 = vpack.c.b16 %v2812, %v2810
    %v4569 = vpack.c.b16 %v2813, %v2811
    %v4570 = vpack.c.b16 %v2816, %v2814
    %v4571 = vpack.c.b16 %v2817, %v2815
    %v4572 = vpack.c.b16 %v2820, %v2818
    %v4573 = vpack.c.b16 %v2821, %v2819
    %v4574 = vpack.c.b16 %v2824, %v2822
    %v4575 = vpack.c.b16 %v2825, %v2823
    %v4576 = vpack.c.b16 %v2828, %v2826
    %v4577 = vpack.c.b16 %v2829, %v2827
    %v4578 = vpack.c.b16 %v2832, %v2830
    %v4579 = vpack.c.b16 %v2833, %v2831
    %v4580 = vpack.c.b16 %v2836, %v2834
    %v4581 = vpack.c.b16 %v2837, %v2835
    %v4582 = vpack.c.b16 %v2840, %v2838
    %v4583 = vpack.c.b16 %v2841, %v2839
    %v4584 = vpack.c.b16 %v2844, %v2842
    %v4585 = vpack.c.b16 %v2845, %v2843
    %v4586 = vpack.c.b16 %v2848, %v2846
    %v4587 = vpack.c.b16 %v2849, %v2847
    %v4588 = vpack.c.b16 %v2852, %v2850
    %v4589 = vpack.c.b16 %v2853, %v2851
    %v4590 = vpack.c.b16 %v2856, %v2854
    %v4591 = vpack.c.b16 %v2857, %v2855
    %v4592 = vpack.c.b16 %v2860, %v2858
    %v4593 = vpack.c.b16 %v2861, %v2859
    %v4594 = vpack.c.b16 %v2864, %v2862
    %v4595 = vpack.c.b16 %v2865, %v2863
    %v4596 = vpack.c.b16 %v2868, %v2866
    %v4597 = vpack.c.b16 %v2869, %v2867
    %v4598 = vpack.c.b16 %v2872, %v2870
    %v4599 = vpack.c.b16 %v2873, %v2871
    %v4600 = vpack.c.b16 %v2876, %v2874
    %v4601 = vpack.c.b16 %v2877, %v2875
    %v4602 = vpack.c.b16 %v2880, %v2878
    %v4603 = vpack.c.b16 %v2881, %v2879
    %v4604 = vpack.c.b16 %v2884, %v2882
    %v4605 = vpack.c.b16 %v2885, %v2883
    %v4606 = vpack.c.b16 %v2888, %v2886
    %v4607 = vpack.c.b16 %v2889, %v2887
    %v4608 = vpack.c.b16 %v2892, %v2890
    %v4609 = vpack.c.b16 %v2893, %v2891
    %v4610 = vpack.c.b16 %v2896, %v2894
    %v4611 = vpack.c.b16 %v2897, %v2895
    %v4612 = vpack.c.b16 %v2900, %v2898
    %v4613 = vpack.c.b16 %v2901, %v2899
    %v4614 = vpack.c.b16 %v2904, %v2902
    %v4615 = vpack.c.b16 %v2905, %v2903
    %v4616 = vpack.c.b16 %v2908, %v2906
    %v4617 = vpack.c.b16 %v2909, %v2907
    %v4618 = vpack.c.b16 %v2912, %v2910
    %v4619 = vpack.c.b16 %v2913, %v2911
    %v4620 = vpack.c.b16 %v2916, %v2914
    %v4621 = vpack.c.b16 %v2917, %v2915
    %v4622 = vpack.c.b16 %v2920, %v2918
    %v4623 = vpack.c.b16 %v2921, %v2919
    %v4624 = vpack.c.b16 %v2924, %v2922
    %v4625 = vpack.c.b16 %v2925, %v2923
    %v4626 = vpack.c.b16 %v2928, %v2926
    %v4627 = vpack.c.b16 %v2929, %v2927
    %v4628 = vpack.c.b16 %v2932, %v2930
    %v4629 = vpack.c.b16 %v2933, %v2931
    %v4630 = vpack.c.b16 %v2936, %v2934
    %v4631 = vpack.c.b16 %v2937, %v2935
    %v4632 = vpack.c.b16 %v2940, %v2938
    %v4633 = vpack.c.b16 %v2941, %v2939
    %v4634 = vpack.c.b16 %v2944, %v2942
    %v4635 = vpack.c.b16 %v2945, %v2943
    %v4636 = vpack.c.b16 %v2948, %v2946
    %v4637 = vpack.c.b16 %v2949, %v2947
    %v4638 = vpack.c.b16 %v2952, %v2950
    %v4639 = vpack.c.b16 %v2953, %v2951
    %v4640 = vpack.c.b16 %v2956, %v2954
    %v4641 = vpack.c.b16 %v2957, %v2955
    %v4642 = vpack.c.b16 %v2960, %v2958
    %v4643 = vpack.c.b16 %v2961, %v2959
    %v4644 = vpack.c.b16 %v2964, %v2962
    %v4645 = vpack.c.b16 %v2965, %v2963
    %v4646 = vpack.c.b16 %v2968, %v2966
    %v4647 = vpack.c.b16 %v2969, %v2967
    %v4648 = vpack.c.b16 %v2972, %v2970
    %v4649 = vpack.c.b16 %v2973, %v2971
    %v4650 = vpack.c.b16 %v2976, %v2974
    %v4651 = vpack.c.b16 %v2977, %v2975
    %v4652 = vpack.c.b16 %v2980, %v2978
    %v4653 = vpack.c.b16 %v2981, %v2979
    %v4654 = vpack.c.b16 %v2984, %v2982
    %v4655 = vpack.c.b16 %v2985, %v2983
    %v4656 = vpack.c.b16 %v2988, %v2986
    %v4657 = vpack.c.b16 %v2989, %v2987
    %v4658 = vpack.c.b16 %v2992, %v2990
    %v4659 = vpack.c.b16 %v2993, %v2991
    %v4660 = vpack.c.b16 %v2996, %v2994
    %v4661 = vpack.c.b16 %v2997, %v2995
    %v4662 = vpack.c.b16 %v3000, %v2998
    %v4663 = vpack.c.b16 %v3001, %v2999
    %v4664 = vpack.c.b16 %v3004, %v3002
    %v4665 = vpack.c.b16 %v3005, %v3003
    %v4666 = vpack.c.b16 %v3008, %v3006
    %v4667 = vpack.c.b16 %v3009, %v3007
    %v4668 = vpack.c.b16 %v3012, %v3010
    %v4669 = vpack.c.b16 %v3013, %v3011
    %v4670 = vpack.c.b16 %v3016, %v3014
    %v4671 = vpack.c.b16 %v3017, %v3015
    %v4672 = vpack.c.b16 %v3020, %v3018
    %v4673 = vpack.c.b16 %v3021, %v3019
    %v4674 = vpack.c.b16 %v3024, %v3022
    %v4675 = vpack.c.b16 %v3025, %v3023
    %v4676 = vpack.c.b16 %v3028, %v3026
    %v4677 = vpack.c.b16 %v3029, %v3027
    %v4678 = vpack.c.b16 %v3032, %v3030
    %v4679 = vpack.c.b16 %v3033, %v3031
    %v4680 = vpack.c.b16 %v3036, %v3034
    %v4681 = vpack.c.b16 %v3037, %v3035
    %v4682 = vpack.c.b16 %v3040, %v3038
    %v4683 = vpack.c.b16 %v3041, %v3039
    %v4684 = vpack.c.b16 %v3044, %v3042
    %v4685 = vpack.c.b16 %v3045, %v3043
    %v4686 = vpack.c.b16 %v3048, %v3046
    %v4687 = vpack.c.b16 %v3049, %v3047
    %v4688 = vpack.c.b16 %v3052, %v3050
    %v4689 = vpack.c.b16 %v3053, %v3051
    %v4690 = vpack.c.b16 %v3056, %v3054
    %v4691 = vpack.c.b16 %v3057, %v3055
    %v4692 = vpack.c.b16 %v3060, %v3058
    %v4693 = vpack.c.b16 %v3061, %v3059
    %v4694 = vpack.c.b16 %v3064, %v3062
    %v4695 = vpack.c.b16 %v3065, %v3063
    %v4696 = vpack.c.b16 %v3068, %v3066
    %v4697 = vpack.c.b16 %v3069, %v3067
    %v4698 = vpack.c.b16 %v3072, %v3070
    %v4699 = vpack.c.b16 %v3073, %v3071
    %v4700 = vpack.c.b16 %v3076, %v3074
    %v4701 = vpack.c.b16 %v3077, %v3075
    %v4702 = vpack.c.b16 %v3080, %v3078
    %v4703 = vpack.c.b16 %v3081, %v3079
    %v4704 = vpack.c.b16 %v3084, %v3082
    %v4705 = vpack.c.b16 %v3085, %v3083
    %v4706 = vpack.c.b16 %v3088, %v3086
    %v4707 = vpack.c.b16 %v3089, %v3087
    %v4708 = vpack.c.b16 %v3092, %v3090
    %v4709 = vpack.c.b16 %v3093, %v3091
    %v4710 = vpack.c.b16 %v3096, %v3094
    %v4711 = vpack.c.b16 %v3097, %v3095
    %v4712 = vpack.c.b16 %v3100, %v3098
    %v4713 = vpack.c.b16 %v3101, %v3099
    %v4714 = vpack.c.b16 %v3104, %v3102
    %v4715 = vpack.c.b16 %v3105, %v3103
    %v4716 = vpack.c.b16 %v3108, %v3106
    %v4717 = vpack.c.b16 %v3109, %v3107
    %v4718 = vpack.c.b16 %v3112, %v3110
    %v4719 = vpack.c.b16 %v3113, %v3111
    %v4720 = vpack.c.b16 %v3116, %v3114
    %v4721 = vpack.c.b16 %v3117, %v3115
    %v4722 = vpack.c.b16 %v3120, %v3118
    %v4723 = vpack.c.b16 %v3121, %v3119
    %v4724 = vpack.c.b16 %v3124, %v3122
    %v4725 = vpack.c.b16 %v3125, %v3123
    %v4726 = vpack.c.b16 %v3128, %v3126
    %v4727 = vpack.c.b16 %v3129, %v3127
    %v4728 = vpack.c.b16 %v3132, %v3130
    %v4729 = vpack.c.b16 %v3133, %v3131
    %v4730 = vpack.c.b16 %v3136, %v3134
    %v4731 = vpack.c.b16 %v3137, %v3135
    %v4732 = vpack.c.b16 %v3140, %v3138
    %v4733 = vpack.c.b16 %v3141, %v3139
    %v4734 = vpack.c.b16 %v3144, %v3142
    %v4735 = vpack.c.b16 %v3145, %v3143
    %v4736 = vpack.c.b16 %v3148, %v3146
    %v4737 = vpack.c.b16 %v3149, %v3147
    %v4738 = vpack.c.b16 %v3152, %v3150
    %v4739 = vpack.c.b16 %v3153, %v3151
    %v4740 = vpack.c.b16 %v3156, %v3154
    %v4741 = vpack.c.b16 %v3157, %v3155
    %v4742 = vpack.c.b16 %v3160, %v3158
    %v4743 = vpack.c.b16 %v3161, %v3159
    %v4744 = vpack.c.b16 %v3164, %v3162
    %v4745 = vpack.c.b16 %v3165, %v3163
    %v4746 = vpack.c.b16 %v3168, %v3166
    %v4747 = vpack.c.b16 %v3169, %v3167
    %v4748 = vpack.c.b16 %v3172, %v3170
    %v4749 = vpack.c.b16 %v3173, %v3171
    %v4750 = vpack.c.b16 %v3176, %v3174
    %v4751 = vpack.c.b16 %v3177, %v3175
    %v4752 = vpack.c.b16 %v3180, %v3178
    %v4753 = vpack.c.b16 %v3181, %v3179
    %v4754 = vpack.c.b16 %v3184, %v3182
    %v4755 = vpack.c.b16 %v3185, %v3183
    %v4756 = vpack.c.b16 %v3188, %v3186
    %v4757 = vpack.c.b16 %v3189, %v3187
    %v4758 = vpack.c.b16 %v3192, %v3190
    %v4759 = vpack.c.b16 %v3193, %v3191
    %v4760 = vpack.c.b16 %v3196, %v3194
    %v4761 = vpack.c.b16 %v3197, %v3195
    %v4762 = vpack.c.b16 %v3200, %v3198
    %v4763 = vpack.c.b16 %v3201, %v3199
    %v4764 = vpack.c.b16 %v3204, %v3202
    %v4765 = vpack.c.b16 %v3205, %v3203
    %v4766 = vpack.c.b16 %v3208, %v3206
    %v4767 = vpack.c.b16 %v3209, %v3207
    %v4768 = vpack.c.b16 %v3212, %v3210
    %v4769 = vpack.c.b16 %v3213, %v3211
    %v4770 = vpack.c.b16 %v3216, %v3214
    %v4771 = vpack.c.b16 %v3217, %v3215
    %v4772 = vpack.c.b16 %v3220, %v3218
    %v4773 = vpack.c.b16 %v3221, %v3219
    %v4774 = vpack.c.b16 %v3224, %v3222
    %v4775 = vpack.c.b16 %v3225, %v3223
    %v4776 = vpack.c.b16 %v3228, %v3226
    %v4777 = vpack.c.b16 %v3229, %v3227
    %v4778 = vpack.c.b16 %v3232, %v3230
    %v4779 = vpack.c.b16 %v3233, %v3231
    %v4780 = vpack.c.b16 %v3236, %v3234
    %v4781 = vpack.c.b16 %v3237, %v3235
    %v4782 = vpack.c.b16 %v3240, %v3238
    %v4783 = vpack.c.b16 %v3241, %v3239
    %v4784 = vpack.c.b16 %v3244, %v3242
    %v4785 = vpack.c.b16 %v3245, %v3243
    %v4786 = vpack.c.b16 %v3248, %v3246
    %v4787 = vpack.c.b16 %v3249, %v3247
    %v4788 = vpack.c.b16 %v3252, %v3250
    %v4789 = vpack.c.b16 %v3253, %v3251
    %v4790 = vpack.c.b16 %v3256, %v3254
    %v4791 = vpack.c.b16 %v3257, %v3255
    %v4792 = vpack.c.b16 %v3260, %v3258
    %v4793 = vpack.c.b16 %v3261, %v3259
    %v4794 = vpack.c.b16 %v3264, %v3262
    %v4795 = vpack.c.b16 %v3265, %v3263
    %v4796 = vpack.c.b16 %v3268, %v3266
    %v4797 = vpack.c.b16 %v3269, %v3267
    %v4798 = vpack.c.b16 %v3272, %v3270
    %v4799 = vpack.c.b16 %v3273, %v3271
    %v4800 = vpack.c.b16 %v3276, %v3274
    %v4801 = vpack.c.b16 %v3277, %v3275
    %v4802 = vpack.c.b16 %v3280, %v3278
    %v4803 = vpack.c.b16 %v3281, %v3279
    %v4804 = vpack.c.b16 %v3284, %v3282
    %v4805 = vpack.c.b16 %v3285, %v3283
    %v4806 = vpack.c.b16 %v3288, %v3286
    %v4807 = vpack.c.b16 %v3289, %v3287
    %v4808 = vpack.c.b16 %v3292, %v3290
    %v4809 = vpack.c.b16 %v3293, %v3291
    %v4810 = vpack.c.b16 %v3296, %v3294
    %v4811 = vpack.c.b16 %v3297, %v3295
    %v4812 = vpack.c.b16 %v3300, %v3298
    %v4813 = vpack.c.b16 %v3301, %v3299
    %v4814 = vpack.c.b16 %v3304, %v3302
    %v4815 = vpack.c.b16 %v3305, %v3303
    %v4816 = vpack.c.b16 %v3308, %v3306
    %v4817 = vpack.c.b16 %v3309, %v3307
    %v4818 = vpack.c.b16 %v3312, %v3310
    %v4819 = vpack.c.b16 %v3313, %v3311
    %v4820 = vpack.c.b16 %v3316, %v3314
    %v4821 = vpack.c.b16 %v3317, %v3315
    %v4822 = vpack.c.b16 %v3320, %v3318
    %v4823 = vpack.c.b16 %v3321, %v3319
    %v4824 = vpack.c.b16 %v3324, %v3322
    %v4825 = vpack.c.b16 %v3325, %v3323
    %v4826 = vpack.c.b16 %v3328, %v3326
    %v4827 = vpack.c.b16 %v3329, %v3327
    %v4828 = vpack.c.b16 %v3332, %v3330
    %v4829 = vpack.c.b16 %v3333, %v3331
    %v4830 = vpack.c.b16 %v3336, %v3334
    %v4831 = vpack.c.b16 %v3337, %v3335
    %v4832 = vpack.c.b16 %v3340, %v3338
    %v4833 = vpack.c.b16 %v3341, %v3339
    %v4834 = vpack.c.b16 %v3344, %v3342
    %v4835 = vpack.c.b16 %v3345, %v3343
    %v4836 = vpack.c.b16 %v3348, %v3346
    %v4837 = vpack.c.b16 %v3349, %v3347
    %v4838 = vpack.c.b16 %v3352, %v3350
    %v4839 = vpack.c.b16 %v3353, %v3351
    %v4840 = vpack.c.b16 %v3356, %v3354
    %v4841 = vpack.c.b16 %v3357, %v3355
    %v4842 = vpack.c.b16 %v3360, %v3358
    %v4843 = vpack.c.b16 %v3361, %v3359
    %v4844 = vpack.c.b16 %v3364, %v3362
    %v4845 = vpack.c.b16 %v3365, %v3363
    %v4846 = vpack.c.b16 %v3368, %v3366
    %v4847 = vpack.c.b16 %v3369, %v3367
    %v4848 = vpack.c.b16 %v3372, %v3370
    %v4849 = vpack.c.b16 %v3373, %v3371
    %v4850 = vpack.c.b16 %v3376, %v3374
    %v4851 = vpack.c.b16 %v3377, %v3375
    %v4852 = vpack.c.b16 %v3380, %v3378
    %v4853 = vpack.c.b16 %v3381, %v3379
    %v4854 = vpack.c.b16 %v3384, %v3382
    %v4855 = vpack.c.b16 %v3385, %v3383
    %v4856 = vpack.c.b16 %v3388, %v3386
    %v4857 = vpack.c.b16 %v3389, %v3387
    %v4858 = vpack.c.b16 %v3392, %v3390
    %v4859 = vpack.c.b16 %v3393, %v3391
    %v4860 = vpack.c.b16 %v3396, %v3394
    %v4861 = vpack.c.b16 %v3397, %v3395
    %v4862 = vpack.c.b16 %v3400, %v3398
    %v4863 = vpack.c.b16 %v3401, %v3399
    %v4864 = vpack.c.b16 %v3404, %v3402
    %v4865 = vpack.c.b16 %v3405, %v3403
    %v4866 = vpack.c.b16 %v3408, %v3406
    %v4867 = vpack.c.b16 %v3409, %v3407
    %v4868 = vpack.c.b16 %v3412, %v3410
    %v4869 = vpack.c.b16 %v3413, %v3411
    %v4870 = vpack.c.b16 %v3416, %v3414
    %v4871 = vpack.c.b16 %v3417, %v3415
    %v4872 = vpack.c.b16 %v3420, %v3418
    %v4873 = vpack.c.b16 %v3421, %v3419
    %v4874 = vpack.c.b16 %v3424, %v3422
    %v4875 = vpack.c.b16 %v3425, %v3423
    %v4876 = vpack.c.b16 %v3428, %v3426
    %v4877 = vpack.c.b16 %v3429, %v3427
    %v4878 = vpack.c.b16 %v3432, %v3430
    %v4879 = vpack.c.b16 %v3433, %v3431
    %v4880 = vpack.c.b16 %v3436, %v3434
    %v4881 = vpack.c.b16 %v3437, %v3435
    %v4882 = vpack.c.b16 %v3440, %v3438
    %v4883 = vpack.c.b16 %v3441, %v3439
    %v4884 = vpack.c.b16 %v3444, %v3442
    %v4885 = vpack.c.b16 %v3445, %v3443
    %v4886 = vpack.c.b16 %v3448, %v3446
    %v4887 = vpack.c.b16 %v3449, %v3447
    %v4888 = vpack.c.b16 %v3452, %v3450
    %v4889 = vpack.c.b16 %v3453, %v3451
    %v4890 = vpack.c.b16 %v3456, %v3454
    %v4891 = vpack.c.b16 %v3457, %v3455
    %v4892 = vpack.c.b16 %v3460, %v3458
    %v4893 = vpack.c.b16 %v3461, %v3459
    %v4894 = vpack.c.b16 %v3464, %v3462
    %v4895 = vpack.c.b16 %v3465, %v3463
    %v4896 = vpack.c.b16 %v3468, %v3466
    %v4897 = vpack.c.b16 %v3469, %v3467
    %v4898 = vpack.c.b16 %v3472, %v3470
    %v4899 = vpack.c.b16 %v3473, %v3471
    %v4900 = vpack.c.b16 %v3476, %v3474
    %v4901 = vpack.c.b16 %v3477, %v3475
    %v4902 = vpack.c.b16 %v3480, %v3478
    %v4903 = vpack.c.b16 %v3481, %v3479
    %v4904 = vpack.c.b16 %v3484, %v3482
    %v4905 = vpack.c.b16 %v3485, %v3483
    %v4906 = vpack.c.b16 %v3488, %v3486
    %v4907 = vpack.c.b16 %v3489, %v3487
    %v4908 = vpack.c.b16 %v3492, %v3490
    %v4909 = vpack.c.b16 %v3493, %v3491
    %v4910 = vpack.c.b16 %v3496, %v3494
    %v4911 = vpack.c.b16 %v3497, %v3495
    %v4912 = vpack.c.b16 %v3500, %v3498
    %v4913 = vpack.c.b16 %v3501, %v3499
    %v4914 = vpack.c.b16 %v3504, %v3502
    %v4915 = vpack.c.b16 %v3505, %v3503
    %v4916 = vpack.c.b16 %v3508, %v3506
    %v4917 = vpack.c.b16 %v3509, %v3507
    %v4918 = vpack.c.b16 %v3512, %v3510
    %v4919 = vpack.c.b16 %v3513, %v3511
    %v4920 = vpack.c.b16 %v3516, %v3514
    %v4921 = vpack.c.b16 %v3517, %v3515
    %v4922 = vpack.c.b16 %v3520, %v3518
    %v4923 = vpack.c.b16 %v3521, %v3519
    %v4924 = vpack.c.b16 %v3524, %v3522
    %v4925 = vpack.c.b16 %v3525, %v3523
    %v4926 = vpack.c.b16 %v3528, %v3526
    %v4927 = vpack.c.b16 %v3529, %v3527
    %v4928 = vpack.c.b16 %v3532, %v3530
    %v4929 = vpack.c.b16 %v3533, %v3531
    %v4930 = vpack.c.b16 %v3536, %v3534
    %v4931 = vpack.c.b16 %v3537, %v3535
    %v4932 = vpack.c.b16 %v3540, %v3538
    %v4933 = vpack.c.b16 %v3541, %v3539
    %v4934 = vpack.c.b16 %v3544, %v3542
    %v4935 = vpack.c.b16 %v3545, %v3543
    %v4936 = vpack.c.b16 %v3548, %v3546
    %v4937 = vpack.c.b16 %v3549, %v3547
    %v4938 = vpack.c.b16 %v3552, %v3550
    %v4939 = vpack.c.b16 %v3553, %v3551
    %v4940 = vpack.c.b16 %v3556, %v3554
    %v4941 = vpack.c.b16 %v3557, %v3555
    %v4942 = vpack.c.b16 %v3560, %v3558
    %v4943 = vpack.c.b16 %v3561, %v3559
    %v4944 = vpack.c.b16 %v3564, %v3562
    %v4945 = vpack.c.b16 %v3565, %v3563
    %v4946 = vpack.c.b16 %v3568, %v3566
    %v4947 = vpack.c.b16 %v3569, %v3567
    %v4948 = vpack.c.b16 %v3572, %v3570
    %v4949 = vpack.c.b16 %v3573, %v3571
    %v4950 = vpack.c.b16 %v3576, %v3574
    %v4951 = vpack.c.b16 %v3577, %v3575
    %v4952 = vpack.c.b16 %v3580, %v3578
    %v4953 = vpack.c.b16 %v3581, %v3579
    %v4954 = vpack.c.b16 %v3584, %v3582
    %v4955 = vpack.c.b16 %v3585, %v3583
    %v4956 = vpack.c.b16 %v3588, %v3586
    %v4957 = vpack.c.b16 %v3589, %v3587
    %v4958 = vpack.c.b16 %v3592, %v3590
    %v4959 = vpack.c.b16 %v3593, %v3591
    %v4960 = vpack.c.b16 %v3596, %v3594
    %v4961 = vpack.c.b16 %v3597, %v3595
    %v4962 = vpack.c.b16 %v3600, %v3598
    %v4963 = vpack.c.b16 %v3601, %v3599
    %v4964 = vpack.c.b16 %v3604, %v3602
    %v4965 = vpack.c.b16 %v3605, %v3603
    %v4966 = vpack.c.b16 %v3608, %v3606
    %v4967 = vpack.c.b16 %v3609, %v3607
    %v4968 = vpack.c.b16 %v3612, %v3610
    %v4969 = vpack.c.b16 %v3613, %v3611
    %v4970 = vpack.c.b16 %v3616, %v3614
    %v4971 = vpack.c.b16 %v3617, %v3615
    %v4972 = vpack.c.b16 %v3620, %v3618
    %v4973 = vpack.c.b16 %v3621, %v3619
    %v4974 = vpack.c.b16 %v3624, %v3622
    %v4975 = vpack.c.b16 %v3625, %v3623
    %v4976 = vpack.c.b16 %v3628, %v3626
    %v4977 = vpack.c.b16 %v3629, %v3627
    %v4978 = vpack.c.b16 %v3632, %v3630
    %v4979 = vpack.c.b16 %v3633, %v3631
    %v4980 = vpack.c.b16 %v3636, %v3634
    %v4981 = vpack.c.b16 %v3637, %v3635
    %v4982 = vpack.c.b16 %v3640, %v3638
    %v4983 = vpack.c.b16 %v3641, %v3639
    %v4984 = vpack.c.b16 %v3644, %v3642
    %v4985 = vpack.c.b16 %v3645, %v3643
    %v4986 = vpack.c.b16 %v3648, %v3646
    %v4987 = vpack.c.b16 %v3649, %v3647
    %v4988 = vpack.c.b16 %v3652, %v3650
    %v4989 = vpack.c.b16 %v3653, %v3651
    %v4990 = vpack.c.b16 %v3656, %v3654
    %v4991 = vpack.c.b16 %v3657, %v3655
    %v4992 = vpack.c.b16 %v3660, %v3658
    %v4993 = vpack.c.b16 %v3661, %v3659
    %v4994 = vpack.c.b16 %v3664, %v3662
    %v4995 = vpack.c.b16 %v3665, %v3663
    %v4996 = vpack.c.b16 %v3668, %v3666
    %v4997 = vpack.c.b16 %v3669, %v3667
    %v4998 = vpack.c.b16 %v3672, %v3670
    %v4999 = vpack.c.b16 %v3673, %v3671
    %v5000 = vpack.c.b16 %v3676, %v3674
    %v5001 = vpack.c.b16 %v3677, %v3675
    %v5002 = vpack.c.b16 %v3680, %v3678
    %v5003 = vpack.c.b16 %v3681, %v3679
    %v5004 = vpack.c.b16 %v3684, %v3682
    %v5005 = vpack.c.b16 %v3685, %v3683
    %v5006 = vpack.c.b16 %v3688, %v3686
    %v5007 = vpack.c.b16 %v3689, %v3687
    %v5008 = vpack.c.b16 %v3692, %v3690
    %v5009 = vpack.c.b16 %v3693, %v3691
    %v5010 = vpack.c.b16 %v3696, %v3694
    %v5011 = vpack.c.b16 %v3697, %v3695
    %v5012 = vpack.c.b16 %v3700, %v3698
    %v5013 = vpack.c.b16 %v3701, %v3699
    %v5014 = vpack.c.b16 %v3704, %v3702
    %v5015 = vpack.c.b16 %v3705, %v3703
    %v5016 = vpack.c.b16 %v3708, %v3706
    %v5017 = vpack.c.b16 %v3709, %v3707
    %v5018 = vpack.c.b16 %v3712, %v3710
    %v5019 = vpack.c.b16 %v3713, %v3711
    %v5020 = vpack.c.b16 %v3716, %v3714
    %v5021 = vpack.c.b16 %v3717, %v3715
    %v5022 = vpack.c.b16 %v3720, %v3718
    %v5023 = vpack.c.b16 %v3721, %v3719
    %v5024 = vpack.c.b16 %v3724, %v3722
    %v5025 = vpack.c.b16 %v3725, %v3723
    %v5026 = vpack.c.b16 %v3728, %v3726
    %v5027 = vpack.c.b16 %v3729, %v3727
    %v5028 = vpack.c.b16 %v3732, %v3730
    %v5029 = vpack.c.b16 %v3733, %v3731
    %v5030 = vpack.c.b16 %v3736, %v3734
    %v5031 = vpack.c.b16 %v3737, %v3735
    %v5032 = vpack.c.b16 %v3740, %v3738
    %v5033 = vpack.c.b16 %v3741, %v3739
    %v5034 = vpack.c.b16 %v3744, %v3742
    %v5035 = vpack.c.b16 %v3745, %v3743
    %v5036 = vpack.c.b16 %v3748, %v3746
    %v5037 = vpack.c.b16 %v3749, %v3747
    %v5038 = vpack.c.b16 %v3752, %v3750
    %v5039 = vpack.c.b16 %v3753, %v3751
    %v5040 = vpack.c.b16 %v3756, %v3754
    %v5041 = vpack.c.b16 %v3757, %v3755
    %v5042 = vpack.c.b16 %v3760, %v3758
    %v5043 = vpack.c.b16 %v3761, %v3759
    %v5044 = vpack.c.b16 %v3764, %v3762
    %v5045 = vpack.c.b16 %v3765, %v3763
    %v5046 = vpack.c.b16 %v3768, %v3766
    %v5047 = vpack.c.b16 %v3769, %v3767
    %v5048 = vpack.c.b16 %v3772, %v3770
    %v5049 = vpack.c.b16 %v3773, %v3771
    %v5050 = vpack.c.b16 %v3776, %v3774
    %v5051 = vpack.c.b16 %v3777, %v3775
    %v5052 = vpack.c.b16 %v3780, %v3778
    %v5053 = vpack.c.b16 %v3781, %v3779
    %v5054 = vpack.c.b16 %v3784, %v3782
    %v5055 = vpack.c.b16 %v3785, %v3783
    %v5056 = vpack.c.b16 %v3788, %v3786
    %v5057 = vpack.c.b16 %v3789, %v3787
    %v5058 = vpack.c.b16 %v3792, %v3790
    %v5059 = vpack.c.b16 %v3793, %v3791
    %v5060 = vpack.c.b16 %v3796, %v3794
    %v5061 = vpack.c.b16 %v3797, %v3795
    %v5062 = vpack.c.b16 %v3800, %v3798
    %v5063 = vpack.c.b16 %v3801, %v3799
    %v5064 = vpack.c.b16 %v3804, %v3802
    %v5065 = vpack.c.b16 %v3805, %v3803
    %v5066 = vpack.c.b16 %v3808, %v3806
    %v5067 = vpack.c.b16 %v3809, %v3807
    %v5068 = vpack.c.b16 %v3812, %v3810
    %v5069 = vpack.c.b16 %v3813, %v3811
    %v5070 = vpack.c.b16 %v3816, %v3814
    %v5071 = vpack.c.b16 %v3817, %v3815
    %v5072 = vpack.c.b16 %v3820, %v3818
    %v5073 = vpack.c.b16 %v3821, %v3819
    %v5074 = vpack.c.b16 %v3824, %v3822
    %v5075 = vpack.c.b16 %v3825, %v3823
    %v5076 = vpack.c.b16 %v3828, %v3826
    %v5077 = vpack.c.b16 %v3829, %v3827
    %v5078 = vpack.c.b16 %v3832, %v3830
    %v5079 = vpack.c.b16 %v3833, %v3831
    %v5080 = vpack.c.b16 %v3836, %v3834
    %v5081 = vpack.c.b16 %v3837, %v3835
    %v5082 = vpack.c.b16 %v3840, %v3838
    %v5083 = vpack.c.b16 %v3841, %v3839
    %v5084 = vpack.c.b16 %v3844, %v3842
    %v5085 = vpack.c.b16 %v3845, %v3843
    %v5086 = vpack.c.b16 %v3848, %v3846
    %v5087 = vpack.c.b16 %v3849, %v3847
    %v5088 = vpack.c.b16 %v3852, %v3850
    %v5089 = vpack.c.b16 %v3853, %v3851
    %v5090 = vpack.c.b16 %v3856, %v3854
    %v5091 = vpack.c.b16 %v3857, %v3855
    %v5092 = vpack.c.b16 %v3860, %v3858
    %v5093 = vpack.c.b16 %v3861, %v3859
    %v5094 = vpack.c.b16 %v3864, %v3862
    %v5095 = vpack.c.b16 %v3865, %v3863
    %v5096 = vpack.c.b16 %v3868, %v3866
    %v5097 = vpack.c.b16 %v3869, %v3867
    %v5098 = vpack.c.b16 %v3872, %v3870
    %v5099 = vpack.c.b16 %v3873, %v3871
    %v5100 = vpack.c.b16 %v3876, %v3874
    %v5101 = vpack.c.b16 %v3877, %v3875
    %v5102 = vpack.c.b16 %v3880, %v3878
    %v5103 = vpack.c.b16 %v3881, %v3879
    %v5104 = vpack.c.b16 %v3884, %v3882
    %v5105 = vpack.c.b16 %v3885, %v3883
    %v5106 = vpack.c.b16 %v3888, %v3886
    %v5107 = vpack.c.b16 %v3889, %v3887
    %v5108 = vpack.c.b16 %v3892, %v3890
    %v5109 = vpack.c.b16 %v3893, %v3891
    %v5110 = vpack.c.b16 %v3896, %v3894
    %v5111 = vpack.c.b16 %v3897, %v3895
    %v5112 = vpack.c.b16 %v3900, %v3898
    %v5113 = vpack.c.b16 %v3901, %v3899
    %v5114 = vpack.c.b16 %v3904, %v3902
    %v5115 = vpack.c.b16 %v3905, %v3903
    %v5116 = vpack.c.b16 %v3908, %v3906
    %v5117 = vpack.c.b16 %v3909, %v3907
    %v5118 = vpack.c.b16 %v3912, %v3910
    %v5119 = vpack.c.b16 %v3913, %v3911
    %v5120 = vpack.c.b16 %v3916, %v3914
    %v5121 = vpack.c.b16 %v3917, %v3915
    %v5122 = vpack.c.b16 %v3920, %v3918
    %v5123 = vpack.c.b16 %v3921, %v3919
    %v5124 = vpack.c.b16 %v3924, %v3922
    %v5125 = vpack.c.b16 %v3925, %v3923
    %v5126 = vpack.c.b16 %v3928, %v3926
    %v5127 = vpack.c.b16 %v3929, %v3927
    %v5128 = vpack.c.b16 %v3932, %v3930
    %v5129 = vpack.c.b16 %v3933, %v3931
    %v5130 = vpack.c.b16 %v3936, %v3934
    %v5131 = vpack.c.b16 %v3937, %v3935
    %v5132 = vpack.c.b16 %v3940, %v3938
    %v5133 = vpack.c.b16 %v3941, %v3939
    %v5134 = vpack.c.b16 %v3944, %v3942
    %v5135 = vpack.c.b16 %v3945, %v3943
    %v5136 = vpack.c.b16 %v3948, %v3946
    %v5137 = vpack.c.b16 %v3949, %v3947
    %v5138 = vpack.c.b16 %v3952, %v3950
    %v5139 = vpack.c.b16 %v3953, %v3951
    %v5140 = vpack.c.b16 %v3956, %v3954
    %v5141 = vpack.c.b16 %v3957, %v3955
    %v5142 = vpack.c.b16 %v3960, %v3958
    %v5143 = vpack.c.b16 %v3961, %v3959
    %v5144 = vpack.c.b16 %v3964, %v3962
    %v5145 = vpack.c.b16 %v3965, %v3963
    %v5146 = vpack.c.b16 %v3968, %v3966
    %v5147 = vpack.c.b16 %v3969, %v3967
    %v5148 = vpack.c.b16 %v3972, %v3970
    %v5149 = vpack.c.b16 %v3973, %v3971
    %v5150 = vpack.c.b16 %v3976, %v3974
    %v5151 = vpack.c.b16 %v3977, %v3975
    %v5152 = vpack.c.b16 %v3980, %v3978
    %v5153 = vpack.c.b16 %v3981, %v3979
    %v5154 = vpack.c.b16 %v3984, %v3982
    %v5155 = vpack.c.b16 %v3985, %v3983
    %v5156 = vpack.c.b16 %v3988, %v3986
    %v5157 = vpack.c.b16 %v3989, %v3987
    %v5158 = vpack.c.b16 %v3992, %v3990
    %v5159 = vpack.c.b16 %v3993, %v3991
    %v5160 = vpack.c.b16 %v3996, %v3994
    %v5161 = vpack.c.b16 %v3997, %v3995
    %v5162 = vpack.c.b16 %v4000, %v3998
    %v5163 = vpack.c.b16 %v4001, %v3999
    %v5164 = vpack.c.b16 %v4004, %v4002
    %v5165 = vpack.c.b16 %v4005, %v4003
    %v5166 = vpack.c.b16 %v4008, %v4006
    %v5167 = vpack.c.b16 %v4009, %v4007
    %v5168 = vpack.c.b16 %v4012, %v4010
    %v5169 = vpack.c.b16 %v4013, %v4011
    %v5170 = vpack.c.b16 %v4016, %v4014
    %v5171 = vpack.c.b16 %v4017, %v4015
    %v5172 = vpack.c.b16 %v4020, %v4018
    %v5173 = vpack.c.b16 %v4021, %v4019
    %v5174 = vpack.c.b16 %v4024, %v4022
    %v5175 = vpack.c.b16 %v4025, %v4023
    %v5176 = vpack.c.b16 %v4028, %v4026
    %v5177 = vpack.c.b16 %v4029, %v4027
    %v5178 = vpack.c.b16 %v4032, %v4030
    %v5179 = vpack.c.b16 %v4033, %v4031
    %v5180 = vpack.c.b16 %v4036, %v4034
    %v5181 = vpack.c.b16 %v4037, %v4035
    %v5182 = vpack.c.b16 %v4040, %v4038
    %v5183 = vpack.c.b16 %v4041, %v4039
    %v5184 = vpack.c.b16 %v4044, %v4042
    %v5185 = vpack.c.b16 %v4045, %v4043
    %v5186 = vpack.c.b16 %v4048, %v4046
    %v5187 = vpack.c.b16 %v4049, %v4047
    %v5188 = vpack.c.b16 %v4052, %v4050
    %v5189 = vpack.c.b16 %v4053, %v4051
    %v5190 = vpack.c.b16 %v4056, %v4054
    %v5191 = vpack.c.b16 %v4057, %v4055
    %v5192 = vpack.c.b16 %v4060, %v4058
    %v5193 = vpack.c.b16 %v4061, %v4059
    %v5194 = vpack.c.b16 %v4064, %v4062
    %v5195 = vpack.c.b16 %v4065, %v4063
    %v5196 = vpack.c.b16 %v4068, %v4066
    %v5197 = vpack.c.b16 %v4069, %v4067
    %v5198 = vpack.c.b16 %v4072, %v4070
    %v5199 = vpack.c.b16 %v4073, %v4071
    %v5200 = vpack.c.b16 %v4076, %v4074
    %v5201 = vpack.c.b16 %v4077, %v4075
    %v5202 = vpack.c.b16 %v4080, %v4078
    %v5203 = vpack.c.b16 %v4081, %v4079
    %v5204 = vpack.c.b16 %v4084, %v4082
    %v5205 = vpack.c.b16 %v4085, %v4083
    %v5206 = vpack.c.b16 %v4088, %v4086
    %v5207 = vpack.c.b16 %v4089, %v4087
    %v5208 = vpack.c.b16 %v4092, %v4090
    %v5209 = vpack.c.b16 %v4093, %v4091
    %v5210 = vpack.c.b16 %v4096, %v4094
    %v5211 = vpack.c.b16 %v4097, %v4095
    %v5212 = vpack.c.b16 %v4100, %v4098
    %v5213 = vpack.c.b16 %v4101, %v4099
    %v5214 = vpack.c.b16 %v4104, %v4102
    %v5215 = vpack.c.b16 %v4105, %v4103
    %v5216 = vpack.c.b16 %v4108, %v4106
    %v5217 = vpack.c.b16 %v4109, %v4107
    %v5218 = vpack.c.b16 %v4112, %v4110
    %v5219 = vpack.c.b16 %v4113, %v4111
    %v5220 = vpack.c.b16 %v4116, %v4114
    %v5221 = vpack.c.b16 %v4117, %v4115
    %v5222 = vpack.c.b16 %v4120, %v4118
    %v5223 = vpack.c.b16 %v4121, %v4119
    %v5224 = vpack.c.b16 %v4124, %v4122
    %v5225 = vpack.c.b16 %v4125, %v4123
    %v5226 = vpack.c.b16 %v4128, %v4126
    %v5227 = vpack.c.b16 %v4129, %v4127
    %v5228 = vpack.c.b16 %v4132, %v4130
    %v5229 = vpack.c.b16 %v4133, %v4131
    %v5230 = vpack.c.b16 %v4136, %v4134
    %v5231 = vpack.c.b16 %v4137, %v4135
    %v5232 = vpack.c.b16 %v4140, %v4138
    %v5233 = vpack.c.b16 %v4141, %v4139
    %v5234 = vpack.c.b16 %v4144, %v4142
    %v5235 = vpack.c.b16 %v4145, %v4143
    %v5236 = vpack.c.b16 %v4148, %v4146
    %v5237 = vpack.c.b16 %v4149, %v4147
    %v5238 = vpack.c.b16 %v4152, %v4150
    %v5239 = vpack.c.b16 %v4153, %v4151
    %v5240 = vpack.c.b16 %v4156, %v4154
    %v5241 = vpack.c.b16 %v4157, %v4155
    %v5242 = vpack.c.b16 %v4160, %v4158
    %v5243 = vpack.c.b16 %v4161, %v4159
    %v5244 = vpack.c.b16 %v4164, %v4162
    %v5245 = vpack.c.b16 %v4165, %v4163
    %v5246 = vpack.c.b16 %v4168, %v4166
    %v5247 = vpack.c.b16 %v4169, %v4167
    %v5248 = vpack.c.b16 %v4172, %v4170
    %v5249 = vpack.c.b16 %v4173, %v4171
    %v5250 = vpack.c.b16 %v4176, %v4174
    %v5251 = vpack.c.b16 %v4177, %v4175
    %v5252 = vpack.c.b16 %v4180, %v4178
    %v5253 = vpack.c.b16 %v4181, %v4179
    %v5254 = vpack.c.b16 %v4184, %v4182
    %v5255 = vpack.c.b16 %v4185, %v4183
    %v5256 = vpack.c.b16 %v4188, %v4186
    %v5257 = vpack.c.b16 %v4189, %v4187
    %v5258 = vpack.c.b16 %v4192, %v4190
    %v5259 = vpack.c.b16 %v4193, %v4191
    %v5260 = vpack.c.b16 %v4196, %v4194
    %v5261 = vpack.c.b16 %v4197, %v4195
    %v5262 = vpack.c.b16 %v4200, %v4198
    %v5263 = vpack.c.b16 %v4201, %v4199
    %v5264 = vpack.c.b16 %v4204, %v4202
    %v5265 = vpack.c.b16 %v4205, %v4203
    %v5266 = vpack.c.b16 %v4208, %v4206
    %v5267 = vpack.c.b16 %v4209, %v4207
    %v5268 = vpack.c.b16 %v4212, %v4210
    %v5269 = vpack.c.b16 %v4213, %v4211
    %v5270 = vpack.c.b16 %v4216, %v4214
    %v5271 = vpack.c.b16 %v4217, %v4215
    %v5272 = vpack.c.b16 %v4220, %v4218
    %v5273 = vpack.c.b16 %v4221, %v4219
    %v5274 = vpack.c.b16 %v4224, %v4222
    %v5275 = vpack.c.b16 %v4225, %v4223
    %v5276 = vpack.c.b16 %v4228, %v4226
    %v5277 = vpack.c.b16 %v4229, %v4227
    %v5278 = vpack.c.b16 %v4232, %v4230
    %v5279 = vpack.c.b16 %v4233, %v4231
    %v5280 = vpack.c.b16 %v4236, %v4234
    %v5281 = vpack.c.b16 %v4237, %v4235
    %v5282 = vpack.c.b16 %v4240, %v4238
    %v5283 = vpack.c.b16 %v4241, %v4239
    %v5284 = vpack.c.b16 %v4244, %v4242
    %v5285 = vpack.c.b16 %v4245, %v4243
    %v5286 = vpack.c.b16 %v4248, %v4246
    %v5287 = vpack.c.b16 %v4249, %v4247
    %v5288 = vpack.c.b16 %v4252, %v4250
    %v5289 = vpack.c.b16 %v4253, %v4251
    %v5290 = vpack.c.b16 %v4256, %v4254
    %v5291 = vpack.c.b16 %v4257, %v4255
    %v5292 = vpack.c.b16 %v4260, %v4258
    %v5293 = vpack.c.b16 %v4261, %v4259
    %v5294 = vpack.c.b16 %v4264, %v4262
    %v5295 = vpack.c.b16 %v4265, %v4263
    %v5296 = vpack.c.b16 %v4268, %v4266
    %v5297 = vpack.c.b16 %v4269, %v4267
    %v5298 = vpack.c.b16 %v4272, %v4270
    %v5299 = vpack.c.b16 %v4273, %v4271
    %v5300 = vpack.c.b16 %v4276, %v4274
    %v5301 = vpack.c.b16 %v4277, %v4275
    %6326 = vmatpush.bf16.msra.mxu0 %v4292
    %6327 = vmatpush.bf16.msra.mxu0 %v4290
    %6328 = vmatpush.bf16.msra.mxu0 %v4288
    %6329 = vmatpush.bf16.msra.mxu0 %v4286
    %6330 = vmatpush.bf16.msra.mxu0 %v4284
    %6331 = vmatpush.bf16.msra.mxu0 %v4282
    %6332 = vmatpush.bf16.msra.mxu0 %v4280
    %6333 = vmatpush.bf16.msra.mxu0 %v4278
    %6334 = vmatmul.bf16.gmra.mxu0 %v1064
    %v6335 = vpop.f32.mrf.mxu0
    %v6336 = vadd.f32 %v1058, %v6335
    %v6337 = vpop.f32.mrf.mxu0
    %6338 = vdwg.mxu0
    %6339 = vmatpush.bf16.msra.mxu0 %v4308
    %6340 = vmatpush.bf16.msra.mxu0 %v4306
    %6341 = vmatpush.bf16.msra.mxu0 %v4304
    %6342 = vmatpush.bf16.msra.mxu0 %v4302
    %6343 = vmatpush.bf16.msra.mxu0 %v4300
    %6344 = vmatpush.bf16.msra.mxu0 %v4298
    %6345 = vmatpush.bf16.msra.mxu0 %v4296
    %6346 = vmatpush.bf16.msra.mxu0 %v4294
    %6347 = vmatmul.bf16.gmra.mxu0 %v1065
    %v6348 = vpop.f32.mrf.mxu0
    %v6349 = vadd.f32 %v6336, %v6348
    %v6350 = vpop.f32.mrf.mxu0
    %6351 = vdwg.mxu0
    %6352 = vmatpush.bf16.msra.mxu0 %v4324
    %6353 = vmatpush.bf16.msra.mxu0 %v4322
    %6354 = vmatpush.bf16.msra.mxu0 %v4320
    %6355 = vmatpush.bf16.msra.mxu0 %v4318
    %6356 = vmatpush.bf16.msra.mxu0 %v4316
    %6357 = vmatpush.bf16.msra.mxu0 %v4314
    %6358 = vmatpush.bf16.msra.mxu0 %v4312
    %6359 = vmatpush.bf16.msra.mxu0 %v4310
    %6360 = vmatmul.bf16.gmra.mxu0 %v1066
    %v6361 = vpop.f32.mrf.mxu0
    %v6362 = vadd.f32 %v6349, %v6361
    %v6363 = vpop.f32.mrf.mxu0
    %6364 = vdwg.mxu0
    %6365 = vmatpush.bf16.msra.mxu0 %v4340
    %6366 = vmatpush.bf16.msra.mxu0 %v4338
    %6367 = vmatpush.bf16.msra.mxu0 %v4336
    %6368 = vmatpush.bf16.msra.mxu0 %v4334
    %6369 = vmatpush.bf16.msra.mxu0 %v4332
    %6370 = vmatpush.bf16.msra.mxu0 %v4330
    %6371 = vmatpush.bf16.msra.mxu0 %v4328
    %6372 = vmatpush.bf16.msra.mxu0 %v4326
    %6373 = vmatmul.bf16.gmra.mxu0 %v1067
    %v6374 = vpop.f32.mrf.mxu0
    %v6375 = vadd.f32 %v6362, %v6374
    %v6376 = vpop.f32.mrf.mxu0
    %6377 = vdwg.mxu0
    %6378 = vmatpush.bf16.msra.mxu0 %v4356
    %6379 = vmatpush.bf16.msra.mxu0 %v4354
    %6380 = vmatpush.bf16.msra.mxu0 %v4352
    %6381 = vmatpush.bf16.msra.mxu0 %v4350
    %6382 = vmatpush.bf16.msra.mxu0 %v4348
    %6383 = vmatpush.bf16.msra.mxu0 %v4346
    %6384 = vmatpush.bf16.msra.mxu0 %v4344
    %6385 = vmatpush.bf16.msra.mxu0 %v4342
    %6386 = vmatmul.bf16.gmra.mxu0 %v1068
    %v6387 = vpop.f32.mrf.mxu0
    %v6388 = vadd.f32 %v6375, %v6387
    %v6389 = vpop.f32.mrf.mxu0
    %6390 = vdwg.mxu0
    %6391 = vmatpush.bf16.msra.mxu0 %v4372
    %6392 = vmatpush.bf16.msra.mxu0 %v4370
    %6393 = vmatpush.bf16.msra.mxu0 %v4368
    %6394 = vmatpush.bf16.msra.mxu0 %v4366
    %6395 = vmatpush.bf16.msra.mxu0 %v4364
    %6396 = vmatpush.bf16.msra.mxu0 %v4362
    %6397 = vmatpush.bf16.msra.mxu0 %v4360
    %6398 = vmatpush.bf16.msra.mxu0 %v4358
    %6399 = vmatmul.bf16.gmra.mxu0 %v1069
    %v6400 = vpop.f32.mrf.mxu0
    %v6401 = vadd.f32 %v6388, %v6400
    %v6402 = vpop.f32.mrf.mxu0
    %6403 = vdwg.mxu0
    %6404 = vmatpush.bf16.msra.mxu0 %v4388
    %6405 = vmatpush.bf16.msra.mxu0 %v4386
    %6406 = vmatpush.bf16.msra.mxu0 %v4384
    %6407 = vmatpush.bf16.msra.mxu0 %v4382
    %6408 = vmatpush.bf16.msra.mxu0 %v4380
    %6409 = vmatpush.bf16.msra.mxu0 %v4378
    %6410 = vmatpush.bf16.msra.mxu0 %v4376
    %6411 = vmatpush.bf16.msra.mxu0 %v4374
    %6412 = vmatmul.bf16.gmra.mxu0 %v1070
    %v6413 = vpop.f32.mrf.mxu0
    %v6414 = vadd.f32 %v6401, %v6413
    %v6415 = vpop.f32.mrf.mxu0
    %6416 = vdwg.mxu0
    %6417 = vmatpush.bf16.msra.mxu0 %v4404
    %6418 = vmatpush.bf16.msra.mxu0 %v4402
    %6419 = vmatpush.bf16.msra.mxu0 %v4400
    %6420 = vmatpush.bf16.msra.mxu0 %v4398
    %6421 = vmatpush.bf16.msra.mxu0 %v4396
    %6422 = vmatpush.bf16.msra.mxu0 %v4394
    %6423 = vmatpush.bf16.msra.mxu0 %v4392
    %6424 = vmatpush.bf16.msra.mxu0 %v4390
    %6425 = vmatmul.bf16.gmra.mxu0 %v1071
    %v6426 = vpop.f32.mrf.mxu0
    %v6427 = vadd.f32 %v6414, %v6426
    %v6428 = vpop.f32.mrf.mxu0
    %6429 = vdwg.mxu0
    %6430 = vmatpush.bf16.msra.mxu0 %v4420
    %6431 = vmatpush.bf16.msra.mxu0 %v4418
    %6432 = vmatpush.bf16.msra.mxu0 %v4416
    %6433 = vmatpush.bf16.msra.mxu0 %v4414
    %6434 = vmatpush.bf16.msra.mxu0 %v4412
    %6435 = vmatpush.bf16.msra.mxu0 %v4410
    %6436 = vmatpush.bf16.msra.mxu0 %v4408
    %6437 = vmatpush.bf16.msra.mxu0 %v4406
    %6438 = vmatmul.bf16.gmra.mxu0 %v1074
    %v6439 = vpop.f32.mrf.mxu0
    %v6440 = vadd.f32 %v6427, %v6439
    %v6441 = vpop.f32.mrf.mxu0
    %6442 = vdwg.mxu0
    %6443 = vmatpush.bf16.msra.mxu0 %v4436
    %6444 = vmatpush.bf16.msra.mxu0 %v4434
    %6445 = vmatpush.bf16.msra.mxu0 %v4432
    %6446 = vmatpush.bf16.msra.mxu0 %v4430
    %6447 = vmatpush.bf16.msra.mxu0 %v4428
    %6448 = vmatpush.bf16.msra.mxu0 %v4426
    %6449 = vmatpush.bf16.msra.mxu0 %v4424
    %6450 = vmatpush.bf16.msra.mxu0 %v4422
    %6451 = vmatmul.bf16.gmra.mxu0 %v1075
    %v6452 = vpop.f32.mrf.mxu0
    %v6453 = vadd.f32 %v6440, %v6452
    %v6454 = vpop.f32.mrf.mxu0
    %6455 = vdwg.mxu0
    %6456 = vmatpush.bf16.msra.mxu0 %v4452
    %6457 = vmatpush.bf16.msra.mxu0 %v4450
    %6458 = vmatpush.bf16.msra.mxu0 %v4448
    %6459 = vmatpush.bf16.msra.mxu0 %v4446
    %6460 = vmatpush.bf16.msra.mxu0 %v4444
    %6461 = vmatpush.bf16.msra.mxu0 %v4442
    %6462 = vmatpush.bf16.msra.mxu0 %v4440
    %6463 = vmatpush.bf16.msra.mxu0 %v4438
    %6464 = vmatmul.bf16.gmra.mxu0 %v1076
    %v6465 = vpop.f32.mrf.mxu0
    %v6466 = vadd.f32 %v6453, %v6465
    %v6467 = vpop.f32.mrf.mxu0
    %6468 = vdwg.mxu0
    %6469 = vmatpush.bf16.msra.mxu0 %v4468
    %6470 = vmatpush.bf16.msra.mxu0 %v4466
    %6471 = vmatpush.bf16.msra.mxu0 %v4464
    %6472 = vmatpush.bf16.msra.mxu0 %v4462
    %6473 = vmatpush.bf16.msra.mxu0 %v4460
    %6474 = vmatpush.bf16.msra.mxu0 %v4458
    %6475 = vmatpush.bf16.msra.mxu0 %v4456
    %6476 = vmatpush.bf16.msra.mxu0 %v4454
    %6477 = vmatmul.bf16.gmra.mxu0 %v1077
    %v6478 = vpop.f32.mrf.mxu0
    %v6479 = vadd.f32 %v6466, %v6478
    %v6480 = vpop.f32.mrf.mxu0
    %6481 = vdwg.mxu0
    %6482 = vmatpush.bf16.msra.mxu0 %v4484
    %6483 = vmatpush.bf16.msra.mxu0 %v4482
    %6484 = vmatpush.bf16.msra.mxu0 %v4480
    %6485 = vmatpush.bf16.msra.mxu0 %v4478
    %6486 = vmatpush.bf16.msra.mxu0 %v4476
    %6487 = vmatpush.bf16.msra.mxu0 %v4474
    %6488 = vmatpush.bf16.msra.mxu0 %v4472
    %6489 = vmatpush.bf16.msra.mxu0 %v4470
    %6490 = vmatmul.bf16.gmra.mxu0 %v1078
    %v6491 = vpop.f32.mrf.mxu0
    %v6492 = vadd.f32 %v6479, %v6491
    %v6493 = vpop.f32.mrf.mxu0
    %6494 = vdwg.mxu0
    %6495 = vmatpush.bf16.msra.mxu0 %v4500
    %6496 = vmatpush.bf16.msra.mxu0 %v4498
    %6497 = vmatpush.bf16.msra.mxu0 %v4496
    %6498 = vmatpush.bf16.msra.mxu0 %v4494
    %6499 = vmatpush.bf16.msra.mxu0 %v4492
    %6500 = vmatpush.bf16.msra.mxu0 %v4490
    %6501 = vmatpush.bf16.msra.mxu0 %v4488
    %6502 = vmatpush.bf16.msra.mxu0 %v4486
    %6503 = vmatmul.bf16.gmra.mxu0 %v1079
    %v6504 = vpop.f32.mrf.mxu0
    %v6505 = vadd.f32 %v6492, %v6504
    %v6506 = vpop.f32.mrf.mxu0
    %6507 = vdwg.mxu0
    %6508 = vmatpush.bf16.msra.mxu0 %v4516
    %6509 = vmatpush.bf16.msra.mxu0 %v4514
    %6510 = vmatpush.bf16.msra.mxu0 %v4512
    %6511 = vmatpush.bf16.msra.mxu0 %v4510
    %6512 = vmatpush.bf16.msra.mxu0 %v4508
    %6513 = vmatpush.bf16.msra.mxu0 %v4506
    %6514 = vmatpush.bf16.msra.mxu0 %v4504
    %6515 = vmatpush.bf16.msra.mxu0 %v4502
    %6516 = vmatmul.bf16.gmra.mxu0 %v1080
    %v6517 = vpop.f32.mrf.mxu0
    %v6518 = vadd.f32 %v6505, %v6517
    %v6519 = vpop.f32.mrf.mxu0
    %6520 = vdwg.mxu0
    %6521 = vmatpush.bf16.msra.mxu0 %v4532
    %6522 = vmatpush.bf16.msra.mxu0 %v4530
    %6523 = vmatpush.bf16.msra.mxu0 %v4528
    %6524 = vmatpush.bf16.msra.mxu0 %v4526
    %6525 = vmatpush.bf16.msra.mxu0 %v4524
    %6526 = vmatpush.bf16.msra.mxu0 %v4522
    %6527 = vmatpush.bf16.msra.mxu0 %v4520
    %6528 = vmatpush.bf16.msra.mxu0 %v4518
    %6529 = vmatmul.bf16.gmra.mxu0 %v1081
    %v6530 = vpop.f32.mrf.mxu0
    %v6531 = vadd.f32 %v6518, %v6530
    %v6532 = vpop.f32.mrf.mxu0
    %6533 = vdwg.mxu0
    %6534 = vmatpush.bf16.msra.mxu0 %v4548
    %6535 = vmatpush.bf16.msra.mxu0 %v4546
    %6536 = vmatpush.bf16.msra.mxu0 %v4544
    %6537 = vmatpush.bf16.msra.mxu0 %v4542
    %6538 = vmatpush.bf16.msra.mxu0 %v4540
    %6539 = vmatpush.bf16.msra.mxu0 %v4538
    %6540 = vmatpush.bf16.msra.mxu0 %v4536
    %6541 = vmatpush.bf16.msra.mxu0 %v4534
    %6542 = vmatmul.bf16.gmra.mxu0 %v1084
    %v6543 = vpop.f32.mrf.mxu0
    %v6544 = vadd.f32 %v6531, %v6543
    %v6545 = vpop.f32.mrf.mxu0
    %6546 = vdwg.mxu0
    %6547 = vmatpush.bf16.msra.mxu0 %v4564
    %6548 = vmatpush.bf16.msra.mxu0 %v4562
    %6549 = vmatpush.bf16.msra.mxu0 %v4560
    %6550 = vmatpush.bf16.msra.mxu0 %v4558
    %6551 = vmatpush.bf16.msra.mxu0 %v4556
    %6552 = vmatpush.bf16.msra.mxu0 %v4554
    %6553 = vmatpush.bf16.msra.mxu0 %v4552
    %6554 = vmatpush.bf16.msra.mxu0 %v4550
    %6555 = vmatmul.bf16.gmra.mxu0 %v1085
    %v6556 = vpop.f32.mrf.mxu0
    %v6557 = vadd.f32 %v6544, %v6556
    %v6558 = vpop.f32.mrf.mxu0
    %6559 = vdwg.mxu0
    %6560 = vmatpush.bf16.msra.mxu0 %v4580
    %6561 = vmatpush.bf16.msra.mxu0 %v4578
    %6562 = vmatpush.bf16.msra.mxu0 %v4576
    %6563 = vmatpush.bf16.msra.mxu0 %v4574
    %6564 = vmatpush.bf16.msra.mxu0 %v4572
    %6565 = vmatpush.bf16.msra.mxu0 %v4570
    %6566 = vmatpush.bf16.msra.mxu0 %v4568
    %6567 = vmatpush.bf16.msra.mxu0 %v4566
    %6568 = vmatmul.bf16.gmra.mxu0 %v1086
    %v6569 = vpop.f32.mrf.mxu0
    %v6570 = vadd.f32 %v6557, %v6569
    %v6571 = vpop.f32.mrf.mxu0
    %6572 = vdwg.mxu0
    %6573 = vmatpush.bf16.msra.mxu0 %v4596
    %6574 = vmatpush.bf16.msra.mxu0 %v4594
    %6575 = vmatpush.bf16.msra.mxu0 %v4592
    %6576 = vmatpush.bf16.msra.mxu0 %v4590
    %6577 = vmatpush.bf16.msra.mxu0 %v4588
    %6578 = vmatpush.bf16.msra.mxu0 %v4586
    %6579 = vmatpush.bf16.msra.mxu0 %v4584
    %6580 = vmatpush.bf16.msra.mxu0 %v4582
    %6581 = vmatmul.bf16.gmra.mxu0 %v1087
    %v6582 = vpop.f32.mrf.mxu0
    %v6583 = vadd.f32 %v6570, %v6582
    %v6584 = vpop.f32.mrf.mxu0
    %6585 = vdwg.mxu0
    %6586 = vmatpush.bf16.msra.mxu0 %v4612
    %6587 = vmatpush.bf16.msra.mxu0 %v4610
    %6588 = vmatpush.bf16.msra.mxu0 %v4608
    %6589 = vmatpush.bf16.msra.mxu0 %v4606
    %6590 = vmatpush.bf16.msra.mxu0 %v4604
    %6591 = vmatpush.bf16.msra.mxu0 %v4602
    %6592 = vmatpush.bf16.msra.mxu0 %v4600
    %6593 = vmatpush.bf16.msra.mxu0 %v4598
    %6594 = vmatmul.bf16.gmra.mxu0 %v1088
    %v6595 = vpop.f32.mrf.mxu0
    %v6596 = vadd.f32 %v6583, %v6595
    %v6597 = vpop.f32.mrf.mxu0
    %6598 = vdwg.mxu0
    %6599 = vmatpush.bf16.msra.mxu0 %v4628
    %6600 = vmatpush.bf16.msra.mxu0 %v4626
    %6601 = vmatpush.bf16.msra.mxu0 %v4624
    %6602 = vmatpush.bf16.msra.mxu0 %v4622
    %6603 = vmatpush.bf16.msra.mxu0 %v4620
    %6604 = vmatpush.bf16.msra.mxu0 %v4618
    %6605 = vmatpush.bf16.msra.mxu0 %v4616
    %6606 = vmatpush.bf16.msra.mxu0 %v4614
    %6607 = vmatmul.bf16.gmra.mxu0 %v1089
    %v6608 = vpop.f32.mrf.mxu0
    %v6609 = vadd.f32 %v6596, %v6608
    %v6610 = vpop.f32.mrf.mxu0
    %6611 = vdwg.mxu0
    %6612 = vmatpush.bf16.msra.mxu0 %v4644
    %6613 = vmatpush.bf16.msra.mxu0 %v4642
    %6614 = vmatpush.bf16.msra.mxu0 %v4640
    %6615 = vmatpush.bf16.msra.mxu0 %v4638
    %6616 = vmatpush.bf16.msra.mxu0 %v4636
    %6617 = vmatpush.bf16.msra.mxu0 %v4634
    %6618 = vmatpush.bf16.msra.mxu0 %v4632
    %6619 = vmatpush.bf16.msra.mxu0 %v4630
    %6620 = vmatmul.bf16.gmra.mxu0 %v1090
    %v6621 = vpop.f32.mrf.mxu0
    %v6622 = vadd.f32 %v6609, %v6621
    %v6623 = vpop.f32.mrf.mxu0
    %6624 = vdwg.mxu0
    %6625 = vmatpush.bf16.msra.mxu0 %v4660
    %6626 = vmatpush.bf16.msra.mxu0 %v4658
    %6627 = vmatpush.bf16.msra.mxu0 %v4656
    %6628 = vmatpush.bf16.msra.mxu0 %v4654
    %6629 = vmatpush.bf16.msra.mxu0 %v4652
    %6630 = vmatpush.bf16.msra.mxu0 %v4650
    %6631 = vmatpush.bf16.msra.mxu0 %v4648
    %6632 = vmatpush.bf16.msra.mxu0 %v4646
    %6633 = vmatmul.bf16.gmra.mxu0 %v1091
    %v6634 = vpop.f32.mrf.mxu0
    %v6635 = vadd.f32 %v6622, %v6634
    %v6636 = vpop.f32.mrf.mxu0
    %6637 = vdwg.mxu0
    %6638 = vmatpush.bf16.msra.mxu0 %v4676
    %6639 = vmatpush.bf16.msra.mxu0 %v4674
    %6640 = vmatpush.bf16.msra.mxu0 %v4672
    %6641 = vmatpush.bf16.msra.mxu0 %v4670
    %6642 = vmatpush.bf16.msra.mxu0 %v4668
    %6643 = vmatpush.bf16.msra.mxu0 %v4666
    %6644 = vmatpush.bf16.msra.mxu0 %v4664
    %6645 = vmatpush.bf16.msra.mxu0 %v4662
    %6646 = vmatmul.bf16.gmra.mxu0 %v1094
    %v6647 = vpop.f32.mrf.mxu0
    %v6648 = vadd.f32 %v6635, %v6647
    %v6649 = vpop.f32.mrf.mxu0
    %6650 = vdwg.mxu0
    %6651 = vmatpush.bf16.msra.mxu0 %v4692
    %6652 = vmatpush.bf16.msra.mxu0 %v4690
    %6653 = vmatpush.bf16.msra.mxu0 %v4688
    %6654 = vmatpush.bf16.msra.mxu0 %v4686
    %6655 = vmatpush.bf16.msra.mxu0 %v4684
    %6656 = vmatpush.bf16.msra.mxu0 %v4682
    %6657 = vmatpush.bf16.msra.mxu0 %v4680
    %6658 = vmatpush.bf16.msra.mxu0 %v4678
    %6659 = vmatmul.bf16.gmra.mxu0 %v1095
    %v6660 = vpop.f32.mrf.mxu0
    %v6661 = vadd.f32 %v6648, %v6660
    %v6662 = vpop.f32.mrf.mxu0
    %6663 = vdwg.mxu0
    %6664 = vmatpush.bf16.msra.mxu0 %v4708
    %6665 = vmatpush.bf16.msra.mxu0 %v4706
    %6666 = vmatpush.bf16.msra.mxu0 %v4704
    %6667 = vmatpush.bf16.msra.mxu0 %v4702
    %6668 = vmatpush.bf16.msra.mxu0 %v4700
    %6669 = vmatpush.bf16.msra.mxu0 %v4698
    %6670 = vmatpush.bf16.msra.mxu0 %v4696
    %6671 = vmatpush.bf16.msra.mxu0 %v4694
    %6672 = vmatmul.bf16.gmra.mxu0 %v1096
    %v6673 = vpop.f32.mrf.mxu0
    %v6674 = vadd.f32 %v6661, %v6673
    %v6675 = vpop.f32.mrf.mxu0
    %6676 = vdwg.mxu0
    %6677 = vmatpush.bf16.msra.mxu0 %v4724
    %6678 = vmatpush.bf16.msra.mxu0 %v4722
    %6679 = vmatpush.bf16.msra.mxu0 %v4720
    %6680 = vmatpush.bf16.msra.mxu0 %v4718
    %6681 = vmatpush.bf16.msra.mxu0 %v4716
    %6682 = vmatpush.bf16.msra.mxu0 %v4714
    %6683 = vmatpush.bf16.msra.mxu0 %v4712
    %6684 = vmatpush.bf16.msra.mxu0 %v4710
    %6685 = vmatmul.bf16.gmra.mxu0 %v1097
    %v6686 = vpop.f32.mrf.mxu0
    %v6687 = vadd.f32 %v6674, %v6686
    %v6688 = vpop.f32.mrf.mxu0
    %6689 = vdwg.mxu0
    %6690 = vmatpush.bf16.msra.mxu0 %v4740
    %6691 = vmatpush.bf16.msra.mxu0 %v4738
    %6692 = vmatpush.bf16.msra.mxu0 %v4736
    %6693 = vmatpush.bf16.msra.mxu0 %v4734
    %6694 = vmatpush.bf16.msra.mxu0 %v4732
    %6695 = vmatpush.bf16.msra.mxu0 %v4730
    %6696 = vmatpush.bf16.msra.mxu0 %v4728
    %6697 = vmatpush.bf16.msra.mxu0 %v4726
    %6698 = vmatmul.bf16.gmra.mxu0 %v1098
    %v6699 = vpop.f32.mrf.mxu0
    %v6700 = vadd.f32 %v6687, %v6699
    %v6701 = vpop.f32.mrf.mxu0
    %6702 = vdwg.mxu0
    %6703 = vmatpush.bf16.msra.mxu0 %v4756
    %6704 = vmatpush.bf16.msra.mxu0 %v4754
    %6705 = vmatpush.bf16.msra.mxu0 %v4752
    %6706 = vmatpush.bf16.msra.mxu0 %v4750
    %6707 = vmatpush.bf16.msra.mxu0 %v4748
    %6708 = vmatpush.bf16.msra.mxu0 %v4746
    %6709 = vmatpush.bf16.msra.mxu0 %v4744
    %6710 = vmatpush.bf16.msra.mxu0 %v4742
    %6711 = vmatmul.bf16.gmra.mxu0 %v1099
    %v6712 = vpop.f32.mrf.mxu0
    %v6713 = vadd.f32 %v6700, %v6712
    %v6714 = vpop.f32.mrf.mxu0
    %6715 = vdwg.mxu0
    %6716 = vmatpush.bf16.msra.mxu0 %v4772
    %6717 = vmatpush.bf16.msra.mxu0 %v4770
    %6718 = vmatpush.bf16.msra.mxu0 %v4768
    %6719 = vmatpush.bf16.msra.mxu0 %v4766
    %6720 = vmatpush.bf16.msra.mxu0 %v4764
    %6721 = vmatpush.bf16.msra.mxu0 %v4762
    %6722 = vmatpush.bf16.msra.mxu0 %v4760
    %6723 = vmatpush.bf16.msra.mxu0 %v4758
    %6724 = vmatmul.bf16.gmra.mxu0 %v1100
    %v6725 = vpop.f32.mrf.mxu0
    %v6726 = vadd.f32 %v6713, %v6725
    %v6727 = vpop.f32.mrf.mxu0
    %6728 = vdwg.mxu0
    %6729 = vmatpush.bf16.msra.mxu0 %v4788
    %6730 = vmatpush.bf16.msra.mxu0 %v4786
    %6731 = vmatpush.bf16.msra.mxu0 %v4784
    %6732 = vmatpush.bf16.msra.mxu0 %v4782
    %6733 = vmatpush.bf16.msra.mxu0 %v4780
    %6734 = vmatpush.bf16.msra.mxu0 %v4778
    %6735 = vmatpush.bf16.msra.mxu0 %v4776
    %6736 = vmatpush.bf16.msra.mxu0 %v4774
    %6737 = vmatmul.bf16.gmra.mxu0 %v1101
    %v6738 = vpop.f32.mrf.mxu0
    %v6739 = vadd.f32 %v6726, %v6738
    %v6740 = vpop.f32.mrf.mxu0
    %6741 = vdwg.mxu0
    %6742 = vmatpush.bf16.msra.mxu0 %v4804
    %6743 = vmatpush.bf16.msra.mxu0 %v4802
    %6744 = vmatpush.bf16.msra.mxu0 %v4800
    %6745 = vmatpush.bf16.msra.mxu0 %v4798
    %6746 = vmatpush.bf16.msra.mxu0 %v4796
    %6747 = vmatpush.bf16.msra.mxu0 %v4794
    %6748 = vmatpush.bf16.msra.mxu0 %v4792
    %6749 = vmatpush.bf16.msra.mxu0 %v4790
    %6750 = vmatmul.bf16.gmra.mxu0 %v1104
    %v6751 = vpop.f32.mrf.mxu0
    %v6752 = vadd.f32 %v6739, %v6751
    %v6753 = vpop.f32.mrf.mxu0
    %6754 = vdwg.mxu0
    %6755 = vmatpush.bf16.msra.mxu0 %v4820
    %6756 = vmatpush.bf16.msra.mxu0 %v4818
    %6757 = vmatpush.bf16.msra.mxu0 %v4816
    %6758 = vmatpush.bf16.msra.mxu0 %v4814
    %6759 = vmatpush.bf16.msra.mxu0 %v4812
    %6760 = vmatpush.bf16.msra.mxu0 %v4810
    %6761 = vmatpush.bf16.msra.mxu0 %v4808
    %6762 = vmatpush.bf16.msra.mxu0 %v4806
    %6763 = vmatmul.bf16.gmra.mxu0 %v1105
    %v6764 = vpop.f32.mrf.mxu0
    %v6765 = vadd.f32 %v6752, %v6764
    %v6766 = vpop.f32.mrf.mxu0
    %6767 = vdwg.mxu0
    %6768 = vmatpush.bf16.msra.mxu0 %v4836
    %6769 = vmatpush.bf16.msra.mxu0 %v4834
    %6770 = vmatpush.bf16.msra.mxu0 %v4832
    %6771 = vmatpush.bf16.msra.mxu0 %v4830
    %6772 = vmatpush.bf16.msra.mxu0 %v4828
    %6773 = vmatpush.bf16.msra.mxu0 %v4826
    %6774 = vmatpush.bf16.msra.mxu0 %v4824
    %6775 = vmatpush.bf16.msra.mxu0 %v4822
    %6776 = vmatmul.bf16.gmra.mxu0 %v1106
    %v6777 = vpop.f32.mrf.mxu0
    %v6778 = vadd.f32 %v6765, %v6777
    %v6779 = vpop.f32.mrf.mxu0
    %6780 = vdwg.mxu0
    %6781 = vmatpush.bf16.msra.mxu0 %v4852
    %6782 = vmatpush.bf16.msra.mxu0 %v4850
    %6783 = vmatpush.bf16.msra.mxu0 %v4848
    %6784 = vmatpush.bf16.msra.mxu0 %v4846
    %6785 = vmatpush.bf16.msra.mxu0 %v4844
    %6786 = vmatpush.bf16.msra.mxu0 %v4842
    %6787 = vmatpush.bf16.msra.mxu0 %v4840
    %6788 = vmatpush.bf16.msra.mxu0 %v4838
    %6789 = vmatmul.bf16.gmra.mxu0 %v1107
    %v6790 = vpop.f32.mrf.mxu0
    %v6791 = vadd.f32 %v6778, %v6790
    %v6792 = vpop.f32.mrf.mxu0
    %6793 = vdwg.mxu0
    %6794 = vmatpush.bf16.msra.mxu0 %v4868
    %6795 = vmatpush.bf16.msra.mxu0 %v4866
    %6796 = vmatpush.bf16.msra.mxu0 %v4864
    %6797 = vmatpush.bf16.msra.mxu0 %v4862
    %6798 = vmatpush.bf16.msra.mxu0 %v4860
    %6799 = vmatpush.bf16.msra.mxu0 %v4858
    %6800 = vmatpush.bf16.msra.mxu0 %v4856
    %6801 = vmatpush.bf16.msra.mxu0 %v4854
    %6802 = vmatmul.bf16.gmra.mxu0 %v1108
    %v6803 = vpop.f32.mrf.mxu0
    %v6804 = vadd.f32 %v6791, %v6803
    %v6805 = vpop.f32.mrf.mxu0
    %6806 = vdwg.mxu0
    %6807 = vmatpush.bf16.msra.mxu0 %v4884
    %6808 = vmatpush.bf16.msra.mxu0 %v4882
    %6809 = vmatpush.bf16.msra.mxu0 %v4880
    %6810 = vmatpush.bf16.msra.mxu0 %v4878
    %6811 = vmatpush.bf16.msra.mxu0 %v4876
    %6812 = vmatpush.bf16.msra.mxu0 %v4874
    %6813 = vmatpush.bf16.msra.mxu0 %v4872
    %6814 = vmatpush.bf16.msra.mxu0 %v4870
    %6815 = vmatmul.bf16.gmra.mxu0 %v1109
    %v6816 = vpop.f32.mrf.mxu0
    %v6817 = vadd.f32 %v6804, %v6816
    %v6818 = vpop.f32.mrf.mxu0
    %6819 = vdwg.mxu0
    %6820 = vmatpush.bf16.msra.mxu0 %v4900
    %6821 = vmatpush.bf16.msra.mxu0 %v4898
    %6822 = vmatpush.bf16.msra.mxu0 %v4896
    %6823 = vmatpush.bf16.msra.mxu0 %v4894
    %6824 = vmatpush.bf16.msra.mxu0 %v4892
    %6825 = vmatpush.bf16.msra.mxu0 %v4890
    %6826 = vmatpush.bf16.msra.mxu0 %v4888
    %6827 = vmatpush.bf16.msra.mxu0 %v4886
    %6828 = vmatmul.bf16.gmra.mxu0 %v1110
    %v6829 = vpop.f32.mrf.mxu0
    %v6830 = vadd.f32 %v6817, %v6829
    %v6831 = vpop.f32.mrf.mxu0
    %6832 = vdwg.mxu0
    %6833 = vmatpush.bf16.msra.mxu0 %v4916
    %6834 = vmatpush.bf16.msra.mxu0 %v4914
    %6835 = vmatpush.bf16.msra.mxu0 %v4912
    %6836 = vmatpush.bf16.msra.mxu0 %v4910
    %6837 = vmatpush.bf16.msra.mxu0 %v4908
    %6838 = vmatpush.bf16.msra.mxu0 %v4906
    %6839 = vmatpush.bf16.msra.mxu0 %v4904
    %6840 = vmatpush.bf16.msra.mxu0 %v4902
    %6841 = vmatmul.bf16.gmra.mxu0 %v1111
    %v6842 = vpop.f32.mrf.mxu0
    %v6843 = vadd.f32 %v6830, %v6842
    %v6844 = vpop.f32.mrf.mxu0
    %6845 = vdwg.mxu0
    %6846 = vmatpush.bf16.msra.mxu0 %v4932
    %6847 = vmatpush.bf16.msra.mxu0 %v4930
    %6848 = vmatpush.bf16.msra.mxu0 %v4928
    %6849 = vmatpush.bf16.msra.mxu0 %v4926
    %6850 = vmatpush.bf16.msra.mxu0 %v4924
    %6851 = vmatpush.bf16.msra.mxu0 %v4922
    %6852 = vmatpush.bf16.msra.mxu0 %v4920
    %6853 = vmatpush.bf16.msra.mxu0 %v4918
    %6854 = vmatmul.bf16.gmra.mxu0 %v1114
    %v6855 = vpop.f32.mrf.mxu0
    %v6856 = vadd.f32 %v6843, %v6855
    %v6857 = vpop.f32.mrf.mxu0
    %6858 = vdwg.mxu0
    %6859 = vmatpush.bf16.msra.mxu0 %v4948
    %6860 = vmatpush.bf16.msra.mxu0 %v4946
    %6861 = vmatpush.bf16.msra.mxu0 %v4944
    %6862 = vmatpush.bf16.msra.mxu0 %v4942
    %6863 = vmatpush.bf16.msra.mxu0 %v4940
    %6864 = vmatpush.bf16.msra.mxu0 %v4938
    %6865 = vmatpush.bf16.msra.mxu0 %v4936
    %6866 = vmatpush.bf16.msra.mxu0 %v4934
    %6867 = vmatmul.bf16.gmra.mxu0 %v1115
    %v6868 = vpop.f32.mrf.mxu0
    %v6869 = vadd.f32 %v6856, %v6868
    %v6870 = vpop.f32.mrf.mxu0
    %6871 = vdwg.mxu0
    %6872 = vmatpush.bf16.msra.mxu0 %v4964
    %6873 = vmatpush.bf16.msra.mxu0 %v4962
    %6874 = vmatpush.bf16.msra.mxu0 %v4960
    %6875 = vmatpush.bf16.msra.mxu0 %v4958
    %6876 = vmatpush.bf16.msra.mxu0 %v4956
    %6877 = vmatpush.bf16.msra.mxu0 %v4954
    %6878 = vmatpush.bf16.msra.mxu0 %v4952
    %6879 = vmatpush.bf16.msra.mxu0 %v4950
    %6880 = vmatmul.bf16.gmra.mxu0 %v1116
    %v6881 = vpop.f32.mrf.mxu0
    %v6882 = vadd.f32 %v6869, %v6881
    %v6883 = vpop.f32.mrf.mxu0
    %6884 = vdwg.mxu0
    %6885 = vmatpush.bf16.msra.mxu0 %v4980
    %6886 = vmatpush.bf16.msra.mxu0 %v4978
    %6887 = vmatpush.bf16.msra.mxu0 %v4976
    %6888 = vmatpush.bf16.msra.mxu0 %v4974
    %6889 = vmatpush.bf16.msra.mxu0 %v4972
    %6890 = vmatpush.bf16.msra.mxu0 %v4970
    %6891 = vmatpush.bf16.msra.mxu0 %v4968
    %6892 = vmatpush.bf16.msra.mxu0 %v4966
    %6893 = vmatmul.bf16.gmra.mxu0 %v1117
    %v6894 = vpop.f32.mrf.mxu0
    %v6895 = vadd.f32 %v6882, %v6894
    %v6896 = vpop.f32.mrf.mxu0
    %6897 = vdwg.mxu0
    %6898 = vmatpush.bf16.msra.mxu0 %v4996
    %6899 = vmatpush.bf16.msra.mxu0 %v4994
    %6900 = vmatpush.bf16.msra.mxu0 %v4992
    %6901 = vmatpush.bf16.msra.mxu0 %v4990
    %6902 = vmatpush.bf16.msra.mxu0 %v4988
    %6903 = vmatpush.bf16.msra.mxu0 %v4986
    %6904 = vmatpush.bf16.msra.mxu0 %v4984
    %6905 = vmatpush.bf16.msra.mxu0 %v4982
    %6906 = vmatmul.bf16.gmra.mxu0 %v1118
    %v6907 = vpop.f32.mrf.mxu0
    %v6908 = vadd.f32 %v6895, %v6907
    %v6909 = vpop.f32.mrf.mxu0
    %6910 = vdwg.mxu0
    %6911 = vmatpush.bf16.msra.mxu0 %v5012
    %6912 = vmatpush.bf16.msra.mxu0 %v5010
    %6913 = vmatpush.bf16.msra.mxu0 %v5008
    %6914 = vmatpush.bf16.msra.mxu0 %v5006
    %6915 = vmatpush.bf16.msra.mxu0 %v5004
    %6916 = vmatpush.bf16.msra.mxu0 %v5002
    %6917 = vmatpush.bf16.msra.mxu0 %v5000
    %6918 = vmatpush.bf16.msra.mxu0 %v4998
    %6919 = vmatmul.bf16.gmra.mxu0 %v1119
    %v6920 = vpop.f32.mrf.mxu0
    %v6921 = vadd.f32 %v6908, %v6920
    %v6922 = vpop.f32.mrf.mxu0
    %6923 = vdwg.mxu0
    %6924 = vmatpush.bf16.msra.mxu0 %v5028
    %6925 = vmatpush.bf16.msra.mxu0 %v5026
    %6926 = vmatpush.bf16.msra.mxu0 %v5024
    %6927 = vmatpush.bf16.msra.mxu0 %v5022
    %6928 = vmatpush.bf16.msra.mxu0 %v5020
    %6929 = vmatpush.bf16.msra.mxu0 %v5018
    %6930 = vmatpush.bf16.msra.mxu0 %v5016
    %6931 = vmatpush.bf16.msra.mxu0 %v5014
    %6932 = vmatmul.bf16.gmra.mxu0 %v1120
    %v6933 = vpop.f32.mrf.mxu0
    %v6934 = vadd.f32 %v6921, %v6933
    %v6935 = vpop.f32.mrf.mxu0
    %6936 = vdwg.mxu0
    %6937 = vmatpush.bf16.msra.mxu0 %v5044
    %6938 = vmatpush.bf16.msra.mxu0 %v5042
    %6939 = vmatpush.bf16.msra.mxu0 %v5040
    %6940 = vmatpush.bf16.msra.mxu0 %v5038
    %6941 = vmatpush.bf16.msra.mxu0 %v5036
    %6942 = vmatpush.bf16.msra.mxu0 %v5034
    %6943 = vmatpush.bf16.msra.mxu0 %v5032
    %6944 = vmatpush.bf16.msra.mxu0 %v5030
    %6945 = vmatmul.bf16.gmra.mxu0 %v1121
    %v6946 = vpop.f32.mrf.mxu0
    %v6947 = vadd.f32 %v6934, %v6946
    %v6948 = vpop.f32.mrf.mxu0
    %6949 = vdwg.mxu0
    %6950 = vmatpush.bf16.msra.mxu0 %v5060
    %6951 = vmatpush.bf16.msra.mxu0 %v5058
    %6952 = vmatpush.bf16.msra.mxu0 %v5056
    %6953 = vmatpush.bf16.msra.mxu0 %v5054
    %6954 = vmatpush.bf16.msra.mxu0 %v5052
    %6955 = vmatpush.bf16.msra.mxu0 %v5050
    %6956 = vmatpush.bf16.msra.mxu0 %v5048
    %6957 = vmatpush.bf16.msra.mxu0 %v5046
    %6958 = vmatmul.bf16.gmra.mxu0 %v1124
    %v6959 = vpop.f32.mrf.mxu0
    %v6960 = vadd.f32 %v6947, %v6959
    %v6961 = vpop.f32.mrf.mxu0
    %6962 = vdwg.mxu0
    %6963 = vmatpush.bf16.msra.mxu0 %v5076
    %6964 = vmatpush.bf16.msra.mxu0 %v5074
    %6965 = vmatpush.bf16.msra.mxu0 %v5072
    %6966 = vmatpush.bf16.msra.mxu0 %v5070
    %6967 = vmatpush.bf16.msra.mxu0 %v5068
    %6968 = vmatpush.bf16.msra.mxu0 %v5066
    %6969 = vmatpush.bf16.msra.mxu0 %v5064
    %6970 = vmatpush.bf16.msra.mxu0 %v5062
    %6971 = vmatmul.bf16.gmra.mxu0 %v1125
    %v6972 = vpop.f32.mrf.mxu0
    %v6973 = vadd.f32 %v6960, %v6972
    %v6974 = vpop.f32.mrf.mxu0
    %6975 = vdwg.mxu0
    %6976 = vmatpush.bf16.msra.mxu0 %v5092
    %6977 = vmatpush.bf16.msra.mxu0 %v5090
    %6978 = vmatpush.bf16.msra.mxu0 %v5088
    %6979 = vmatpush.bf16.msra.mxu0 %v5086
    %6980 = vmatpush.bf16.msra.mxu0 %v5084
    %6981 = vmatpush.bf16.msra.mxu0 %v5082
    %6982 = vmatpush.bf16.msra.mxu0 %v5080
    %6983 = vmatpush.bf16.msra.mxu0 %v5078
    %6984 = vmatmul.bf16.gmra.mxu0 %v1126
    %v6985 = vpop.f32.mrf.mxu0
    %v6986 = vadd.f32 %v6973, %v6985
    %v6987 = vpop.f32.mrf.mxu0
    %6988 = vdwg.mxu0
    %6989 = vmatpush.bf16.msra.mxu0 %v5108
    %6990 = vmatpush.bf16.msra.mxu0 %v5106
    %6991 = vmatpush.bf16.msra.mxu0 %v5104
    %6992 = vmatpush.bf16.msra.mxu0 %v5102
    %6993 = vmatpush.bf16.msra.mxu0 %v5100
    %6994 = vmatpush.bf16.msra.mxu0 %v5098
    %6995 = vmatpush.bf16.msra.mxu0 %v5096
    %6996 = vmatpush.bf16.msra.mxu0 %v5094
    %6997 = vmatmul.bf16.gmra.mxu0 %v1127
    %v6998 = vpop.f32.mrf.mxu0
    %v6999 = vadd.f32 %v6986, %v6998
    %v7000 = vpop.f32.mrf.mxu0
    %7001 = vdwg.mxu0
    %7002 = vmatpush.bf16.msra.mxu0 %v5124
    %7003 = vmatpush.bf16.msra.mxu0 %v5122
    %7004 = vmatpush.bf16.msra.mxu0 %v5120
    %7005 = vmatpush.bf16.msra.mxu0 %v5118
    %7006 = vmatpush.bf16.msra.mxu0 %v5116
    %7007 = vmatpush.bf16.msra.mxu0 %v5114
    %7008 = vmatpush.bf16.msra.mxu0 %v5112
    %7009 = vmatpush.bf16.msra.mxu0 %v5110
    %7010 = vmatmul.bf16.gmra.mxu0 %v1128
    %v7011 = vpop.f32.mrf.mxu0
    %v7012 = vadd.f32 %v6999, %v7011
    %v7013 = vpop.f32.mrf.mxu0
    %7014 = vdwg.mxu0
    %7015 = vmatpush.bf16.msra.mxu0 %v5140
    %7016 = vmatpush.bf16.msra.mxu0 %v5138
    %7017 = vmatpush.bf16.msra.mxu0 %v5136
    %7018 = vmatpush.bf16.msra.mxu0 %v5134
    %7019 = vmatpush.bf16.msra.mxu0 %v5132
    %7020 = vmatpush.bf16.msra.mxu0 %v5130
    %7021 = vmatpush.bf16.msra.mxu0 %v5128
    %7022 = vmatpush.bf16.msra.mxu0 %v5126
    %7023 = vmatmul.bf16.gmra.mxu0 %v1129
    %v7024 = vpop.f32.mrf.mxu0
    %v7025 = vadd.f32 %v7012, %v7024
    %v7026 = vpop.f32.mrf.mxu0
    %7027 = vdwg.mxu0
    %7028 = vmatpush.bf16.msra.mxu0 %v5156
    %7029 = vmatpush.bf16.msra.mxu0 %v5154
    %7030 = vmatpush.bf16.msra.mxu0 %v5152
    %7031 = vmatpush.bf16.msra.mxu0 %v5150
    %7032 = vmatpush.bf16.msra.mxu0 %v5148
    %7033 = vmatpush.bf16.msra.mxu0 %v5146
    %7034 = vmatpush.bf16.msra.mxu0 %v5144
    %7035 = vmatpush.bf16.msra.mxu0 %v5142
    %7036 = vmatmul.bf16.gmra.mxu0 %v1130
    %v7037 = vpop.f32.mrf.mxu0
    %v7038 = vadd.f32 %v7025, %v7037
    %v7039 = vpop.f32.mrf.mxu0
    %7040 = vdwg.mxu0
    %7041 = vmatpush.bf16.msra.mxu0 %v5172
    %7042 = vmatpush.bf16.msra.mxu0 %v5170
    %7043 = vmatpush.bf16.msra.mxu0 %v5168
    %7044 = vmatpush.bf16.msra.mxu0 %v5166
    %7045 = vmatpush.bf16.msra.mxu0 %v5164
    %7046 = vmatpush.bf16.msra.mxu0 %v5162
    %7047 = vmatpush.bf16.msra.mxu0 %v5160
    %7048 = vmatpush.bf16.msra.mxu0 %v5158
    %7049 = vmatmul.bf16.gmra.mxu0 %v1131
    %v7050 = vpop.f32.mrf.mxu0
    %v7051 = vadd.f32 %v7038, %v7050
    %v7052 = vpop.f32.mrf.mxu0
    %7053 = vdwg.mxu0
    %7054 = vmatpush.bf16.msra.mxu0 %v5188
    %7055 = vmatpush.bf16.msra.mxu0 %v5186
    %7056 = vmatpush.bf16.msra.mxu0 %v5184
    %7057 = vmatpush.bf16.msra.mxu0 %v5182
    %7058 = vmatpush.bf16.msra.mxu0 %v5180
    %7059 = vmatpush.bf16.msra.mxu0 %v5178
    %7060 = vmatpush.bf16.msra.mxu0 %v5176
    %7061 = vmatpush.bf16.msra.mxu0 %v5174
    %7062 = vmatmul.bf16.gmra.mxu0 %v1134
    %v7063 = vpop.f32.mrf.mxu0
    %v7064 = vadd.f32 %v7051, %v7063
    %v7065 = vpop.f32.mrf.mxu0
    %7066 = vdwg.mxu0
    %7067 = vmatpush.bf16.msra.mxu0 %v5204
    %7068 = vmatpush.bf16.msra.mxu0 %v5202
    %7069 = vmatpush.bf16.msra.mxu0 %v5200
    %7070 = vmatpush.bf16.msra.mxu0 %v5198
    %7071 = vmatpush.bf16.msra.mxu0 %v5196
    %7072 = vmatpush.bf16.msra.mxu0 %v5194
    %7073 = vmatpush.bf16.msra.mxu0 %v5192
    %7074 = vmatpush.bf16.msra.mxu0 %v5190
    %7075 = vmatmul.bf16.gmra.mxu0 %v1135
    %v7076 = vpop.f32.mrf.mxu0
    %v7077 = vadd.f32 %v7064, %v7076
    %v7078 = vpop.f32.mrf.mxu0
    %7079 = vdwg.mxu0
    %7080 = vmatpush.bf16.msra.mxu0 %v5220
    %7081 = vmatpush.bf16.msra.mxu0 %v5218
    %7082 = vmatpush.bf16.msra.mxu0 %v5216
    %7083 = vmatpush.bf16.msra.mxu0 %v5214
    %7084 = vmatpush.bf16.msra.mxu0 %v5212
    %7085 = vmatpush.bf16.msra.mxu0 %v5210
    %7086 = vmatpush.bf16.msra.mxu0 %v5208
    %7087 = vmatpush.bf16.msra.mxu0 %v5206
    %7088 = vmatmul.bf16.gmra.mxu0 %v1136
    %v7089 = vpop.f32.mrf.mxu0
    %v7090 = vadd.f32 %v7077, %v7089
    %v7091 = vpop.f32.mrf.mxu0
    %7092 = vdwg.mxu0
    %7093 = vmatpush.bf16.msra.mxu0 %v5236
    %7094 = vmatpush.bf16.msra.mxu0 %v5234
    %7095 = vmatpush.bf16.msra.mxu0 %v5232
    %7096 = vmatpush.bf16.msra.mxu0 %v5230
    %7097 = vmatpush.bf16.msra.mxu0 %v5228
    %7098 = vmatpush.bf16.msra.mxu0 %v5226
    %7099 = vmatpush.bf16.msra.mxu0 %v5224
    %7100 = vmatpush.bf16.msra.mxu0 %v5222
    %7101 = vmatmul.bf16.gmra.mxu0 %v1137
    %v7102 = vpop.f32.mrf.mxu0
    %v7103 = vadd.f32 %v7090, %v7102
    %v7104 = vpop.f32.mrf.mxu0
    %7105 = vdwg.mxu0
    %7106 = vmatpush.bf16.msra.mxu0 %v5252
    %7107 = vmatpush.bf16.msra.mxu0 %v5250
    %7108 = vmatpush.bf16.msra.mxu0 %v5248
    %7109 = vmatpush.bf16.msra.mxu0 %v5246
    %7110 = vmatpush.bf16.msra.mxu0 %v5244
    %7111 = vmatpush.bf16.msra.mxu0 %v5242
    %7112 = vmatpush.bf16.msra.mxu0 %v5240
    %7113 = vmatpush.bf16.msra.mxu0 %v5238
    %7114 = vmatmul.bf16.gmra.mxu0 %v1138
    %v7115 = vpop.f32.mrf.mxu0
    %v7116 = vadd.f32 %v7103, %v7115
    %v7117 = vpop.f32.mrf.mxu0
    %7118 = vdwg.mxu0
    %7119 = vmatpush.bf16.msra.mxu0 %v5268
    %7120 = vmatpush.bf16.msra.mxu0 %v5266
    %7121 = vmatpush.bf16.msra.mxu0 %v5264
    %7122 = vmatpush.bf16.msra.mxu0 %v5262
    %7123 = vmatpush.bf16.msra.mxu0 %v5260
    %7124 = vmatpush.bf16.msra.mxu0 %v5258
    %7125 = vmatpush.bf16.msra.mxu0 %v5256
    %7126 = vmatpush.bf16.msra.mxu0 %v5254
    %7127 = vmatmul.bf16.gmra.mxu0 %v1139
    %v7128 = vpop.f32.mrf.mxu0
    %v7129 = vadd.f32 %v7116, %v7128
    %v7130 = vpop.f32.mrf.mxu0
    %7131 = vdwg.mxu0
    %7132 = vmatpush.bf16.msra.mxu0 %v5284
    %7133 = vmatpush.bf16.msra.mxu0 %v5282
    %7134 = vmatpush.bf16.msra.mxu0 %v5280
    %7135 = vmatpush.bf16.msra.mxu0 %v5278
    %7136 = vmatpush.bf16.msra.mxu0 %v5276
    %7137 = vmatpush.bf16.msra.mxu0 %v5274
    %7138 = vmatpush.bf16.msra.mxu0 %v5272
    %7139 = vmatpush.bf16.msra.mxu0 %v5270
    %7140 = vmatmul.bf16.gmra.mxu0 %v1140
    %v7141 = vpop.f32.mrf.mxu0
    %v7142 = vadd.f32 %v7129, %v7141
    %v7143 = vpop.f32.mrf.mxu0
    %7144 = vdwg.mxu0
    %7145 = vmatpush.bf16.msra.mxu0 %v5300
    %7146 = vmatpush.bf16.msra.mxu0 %v5298
    %7147 = vmatpush.bf16.msra.mxu0 %v5296
    %7148 = vmatpush.bf16.msra.mxu0 %v5294
    %7149 = vmatpush.bf16.msra.mxu0 %v5292
    %7150 = vmatpush.bf16.msra.mxu0 %v5290
    %7151 = vmatpush.bf16.msra.mxu0 %v5288
    %7152 = vmatpush.bf16.msra.mxu0 %v5286
    %7153 = vmatmul.bf16.gmra.mxu0 %v1141
    %v7154 = vpop.f32.mrf.mxu0
    %v7155 = vadd.f32 %v7142, %v7154
    %v7156 = vpop.f32.mrf.mxu0
    %7157 = vdwg.mxu0
    %7158 = vmatpush.bf16.msra.mxu0 %v4293
    %7159 = vmatpush.bf16.msra.mxu0 %v4291
    %7160 = vmatpush.bf16.msra.mxu0 %v4289
    %7161 = vmatpush.bf16.msra.mxu0 %v4287
    %7162 = vmatpush.bf16.msra.mxu0 %v4285
    %7163 = vmatpush.bf16.msra.mxu0 %v4283
    %7164 = vmatpush.bf16.msra.mxu0 %v4281
    %7165 = vmatpush.bf16.msra.mxu0 %v4279
    %7166 = vmatmul.bf16.gmra.mxu0 %v1064
    %v7167 = vpop.f32.mrf.mxu0
    %v7168 = vadd.f32 %v1059, %v7167
    %v7169 = vpop.f32.mrf.mxu0
    %7170 = vdwg.mxu0
    %7171 = vmatpush.bf16.msra.mxu0 %v4309
    %7172 = vmatpush.bf16.msra.mxu0 %v4307
    %7173 = vmatpush.bf16.msra.mxu0 %v4305
    %7174 = vmatpush.bf16.msra.mxu0 %v4303
    %7175 = vmatpush.bf16.msra.mxu0 %v4301
    %7176 = vmatpush.bf16.msra.mxu0 %v4299
    %7177 = vmatpush.bf16.msra.mxu0 %v4297
    %7178 = vmatpush.bf16.msra.mxu0 %v4295
    %7179 = vmatmul.bf16.gmra.mxu0 %v1065
    %v7180 = vpop.f32.mrf.mxu0
    %v7181 = vadd.f32 %v7168, %v7180
    %v7182 = vpop.f32.mrf.mxu0
    %7183 = vdwg.mxu0
    %7184 = vmatpush.bf16.msra.mxu0 %v4325
    %7185 = vmatpush.bf16.msra.mxu0 %v4323
    %7186 = vmatpush.bf16.msra.mxu0 %v4321
    %7187 = vmatpush.bf16.msra.mxu0 %v4319
    %7188 = vmatpush.bf16.msra.mxu0 %v4317
    %7189 = vmatpush.bf16.msra.mxu0 %v4315
    %7190 = vmatpush.bf16.msra.mxu0 %v4313
    %7191 = vmatpush.bf16.msra.mxu0 %v4311
    %7192 = vmatmul.bf16.gmra.mxu0 %v1066
    %v7193 = vpop.f32.mrf.mxu0
    %v7194 = vadd.f32 %v7181, %v7193
    %v7195 = vpop.f32.mrf.mxu0
    %7196 = vdwg.mxu0
    %7197 = vmatpush.bf16.msra.mxu0 %v4341
    %7198 = vmatpush.bf16.msra.mxu0 %v4339
    %7199 = vmatpush.bf16.msra.mxu0 %v4337
    %7200 = vmatpush.bf16.msra.mxu0 %v4335
    %7201 = vmatpush.bf16.msra.mxu0 %v4333
    %7202 = vmatpush.bf16.msra.mxu0 %v4331
    %7203 = vmatpush.bf16.msra.mxu0 %v4329
    %7204 = vmatpush.bf16.msra.mxu0 %v4327
    %7205 = vmatmul.bf16.gmra.mxu0 %v1067
    %v7206 = vpop.f32.mrf.mxu0
    %v7207 = vadd.f32 %v7194, %v7206
    %v7208 = vpop.f32.mrf.mxu0
    %7209 = vdwg.mxu0
    %7210 = vmatpush.bf16.msra.mxu0 %v4357
    %7211 = vmatpush.bf16.msra.mxu0 %v4355
    %7212 = vmatpush.bf16.msra.mxu0 %v4353
    %7213 = vmatpush.bf16.msra.mxu0 %v4351
    %7214 = vmatpush.bf16.msra.mxu0 %v4349
    %7215 = vmatpush.bf16.msra.mxu0 %v4347
    %7216 = vmatpush.bf16.msra.mxu0 %v4345
    %7217 = vmatpush.bf16.msra.mxu0 %v4343
    %7218 = vmatmul.bf16.gmra.mxu0 %v1068
    %v7219 = vpop.f32.mrf.mxu0
    %v7220 = vadd.f32 %v7207, %v7219
    %v7221 = vpop.f32.mrf.mxu0
    %7222 = vdwg.mxu0
    %7223 = vmatpush.bf16.msra.mxu0 %v4373
    %7224 = vmatpush.bf16.msra.mxu0 %v4371
    %7225 = vmatpush.bf16.msra.mxu0 %v4369
    %7226 = vmatpush.bf16.msra.mxu0 %v4367
    %7227 = vmatpush.bf16.msra.mxu0 %v4365
    %7228 = vmatpush.bf16.msra.mxu0 %v4363
    %7229 = vmatpush.bf16.msra.mxu0 %v4361
    %7230 = vmatpush.bf16.msra.mxu0 %v4359
    %7231 = vmatmul.bf16.gmra.mxu0 %v1069
    %v7232 = vpop.f32.mrf.mxu0
    %v7233 = vadd.f32 %v7220, %v7232
    %v7234 = vpop.f32.mrf.mxu0
    %7235 = vdwg.mxu0
    %7236 = vmatpush.bf16.msra.mxu0 %v4389
    %7237 = vmatpush.bf16.msra.mxu0 %v4387
    %7238 = vmatpush.bf16.msra.mxu0 %v4385
    %7239 = vmatpush.bf16.msra.mxu0 %v4383
    %7240 = vmatpush.bf16.msra.mxu0 %v4381
    %7241 = vmatpush.bf16.msra.mxu0 %v4379
    %7242 = vmatpush.bf16.msra.mxu0 %v4377
    %7243 = vmatpush.bf16.msra.mxu0 %v4375
    %7244 = vmatmul.bf16.gmra.mxu0 %v1070
    %v7245 = vpop.f32.mrf.mxu0
    %v7246 = vadd.f32 %v7233, %v7245
    %v7247 = vpop.f32.mrf.mxu0
    %7248 = vdwg.mxu0
    %7249 = vmatpush.bf16.msra.mxu0 %v4405
    %7250 = vmatpush.bf16.msra.mxu0 %v4403
    %7251 = vmatpush.bf16.msra.mxu0 %v4401
    %7252 = vmatpush.bf16.msra.mxu0 %v4399
    %7253 = vmatpush.bf16.msra.mxu0 %v4397
    %7254 = vmatpush.bf16.msra.mxu0 %v4395
    %7255 = vmatpush.bf16.msra.mxu0 %v4393
    %7256 = vmatpush.bf16.msra.mxu0 %v4391
    %7257 = vmatmul.bf16.gmra.mxu0 %v1071
    %v7258 = vpop.f32.mrf.mxu0
    %v7259 = vadd.f32 %v7246, %v7258
    %v7260 = vpop.f32.mrf.mxu0
    %7261 = vdwg.mxu0
    %7262 = vmatpush.bf16.msra.mxu0 %v4421
    %7263 = vmatpush.bf16.msra.mxu0 %v4419
    %7264 = vmatpush.bf16.msra.mxu0 %v4417
    %7265 = vmatpush.bf16.msra.mxu0 %v4415
    %7266 = vmatpush.bf16.msra.mxu0 %v4413
    %7267 = vmatpush.bf16.msra.mxu0 %v4411
    %7268 = vmatpush.bf16.msra.mxu0 %v4409
    %7269 = vmatpush.bf16.msra.mxu0 %v4407
    %7270 = vmatmul.bf16.gmra.mxu0 %v1074
    %v7271 = vpop.f32.mrf.mxu0
    %v7272 = vadd.f32 %v7259, %v7271
    %v7273 = vpop.f32.mrf.mxu0
    %7274 = vdwg.mxu0
    %7275 = vmatpush.bf16.msra.mxu0 %v4437
    %7276 = vmatpush.bf16.msra.mxu0 %v4435
    %7277 = vmatpush.bf16.msra.mxu0 %v4433
    %7278 = vmatpush.bf16.msra.mxu0 %v4431
    %7279 = vmatpush.bf16.msra.mxu0 %v4429
    %7280 = vmatpush.bf16.msra.mxu0 %v4427
    %7281 = vmatpush.bf16.msra.mxu0 %v4425
    %7282 = vmatpush.bf16.msra.mxu0 %v4423
    %7283 = vmatmul.bf16.gmra.mxu0 %v1075
    %v7284 = vpop.f32.mrf.mxu0
    %v7285 = vadd.f32 %v7272, %v7284
    %v7286 = vpop.f32.mrf.mxu0
    %7287 = vdwg.mxu0
    %7288 = vmatpush.bf16.msra.mxu0 %v4453
    %7289 = vmatpush.bf16.msra.mxu0 %v4451
    %7290 = vmatpush.bf16.msra.mxu0 %v4449
    %7291 = vmatpush.bf16.msra.mxu0 %v4447
    %7292 = vmatpush.bf16.msra.mxu0 %v4445
    %7293 = vmatpush.bf16.msra.mxu0 %v4443
    %7294 = vmatpush.bf16.msra.mxu0 %v4441
    %7295 = vmatpush.bf16.msra.mxu0 %v4439
    %7296 = vmatmul.bf16.gmra.mxu0 %v1076
    %v7297 = vpop.f32.mrf.mxu0
    %v7298 = vadd.f32 %v7285, %v7297
    %v7299 = vpop.f32.mrf.mxu0
    %7300 = vdwg.mxu0
    %7301 = vmatpush.bf16.msra.mxu0 %v4469
    %7302 = vmatpush.bf16.msra.mxu0 %v4467
    %7303 = vmatpush.bf16.msra.mxu0 %v4465
    %7304 = vmatpush.bf16.msra.mxu0 %v4463
    %7305 = vmatpush.bf16.msra.mxu0 %v4461
    %7306 = vmatpush.bf16.msra.mxu0 %v4459
    %7307 = vmatpush.bf16.msra.mxu0 %v4457
    %7308 = vmatpush.bf16.msra.mxu0 %v4455
    %7309 = vmatmul.bf16.gmra.mxu0 %v1077
    %v7310 = vpop.f32.mrf.mxu0
    %v7311 = vadd.f32 %v7298, %v7310
    %v7312 = vpop.f32.mrf.mxu0
    %7313 = vdwg.mxu0
    %7314 = vmatpush.bf16.msra.mxu0 %v4485
    %7315 = vmatpush.bf16.msra.mxu0 %v4483
    %7316 = vmatpush.bf16.msra.mxu0 %v4481
    %7317 = vmatpush.bf16.msra.mxu0 %v4479
    %7318 = vmatpush.bf16.msra.mxu0 %v4477
    %7319 = vmatpush.bf16.msra.mxu0 %v4475
    %7320 = vmatpush.bf16.msra.mxu0 %v4473
    %7321 = vmatpush.bf16.msra.mxu0 %v4471
    %7322 = vmatmul.bf16.gmra.mxu0 %v1078
    %v7323 = vpop.f32.mrf.mxu0
    %v7324 = vadd.f32 %v7311, %v7323
    %v7325 = vpop.f32.mrf.mxu0
    %7326 = vdwg.mxu0
    %7327 = vmatpush.bf16.msra.mxu0 %v4501
    %7328 = vmatpush.bf16.msra.mxu0 %v4499
    %7329 = vmatpush.bf16.msra.mxu0 %v4497
    %7330 = vmatpush.bf16.msra.mxu0 %v4495
    %7331 = vmatpush.bf16.msra.mxu0 %v4493
    %7332 = vmatpush.bf16.msra.mxu0 %v4491
    %7333 = vmatpush.bf16.msra.mxu0 %v4489
    %7334 = vmatpush.bf16.msra.mxu0 %v4487
    %7335 = vmatmul.bf16.gmra.mxu0 %v1079
    %v7336 = vpop.f32.mrf.mxu0
    %v7337 = vadd.f32 %v7324, %v7336
    %v7338 = vpop.f32.mrf.mxu0
    %7339 = vdwg.mxu0
    %7340 = vmatpush.bf16.msra.mxu0 %v4517
    %7341 = vmatpush.bf16.msra.mxu0 %v4515
    %7342 = vmatpush.bf16.msra.mxu0 %v4513
    %7343 = vmatpush.bf16.msra.mxu0 %v4511
    %7344 = vmatpush.bf16.msra.mxu0 %v4509
    %7345 = vmatpush.bf16.msra.mxu0 %v4507
    %7346 = vmatpush.bf16.msra.mxu0 %v4505
    %7347 = vmatpush.bf16.msra.mxu0 %v4503
    %7348 = vmatmul.bf16.gmra.mxu0 %v1080
    %v7349 = vpop.f32.mrf.mxu0
    %v7350 = vadd.f32 %v7337, %v7349
    %v7351 = vpop.f32.mrf.mxu0
    %7352 = vdwg.mxu0
    %7353 = vmatpush.bf16.msra.mxu0 %v4533
    %7354 = vmatpush.bf16.msra.mxu0 %v4531
    %7355 = vmatpush.bf16.msra.mxu0 %v4529
    %7356 = vmatpush.bf16.msra.mxu0 %v4527
    %7357 = vmatpush.bf16.msra.mxu0 %v4525
    %7358 = vmatpush.bf16.msra.mxu0 %v4523
    %7359 = vmatpush.bf16.msra.mxu0 %v4521
    %7360 = vmatpush.bf16.msra.mxu0 %v4519
    %7361 = vmatmul.bf16.gmra.mxu0 %v1081
    %v7362 = vpop.f32.mrf.mxu0
    %v7363 = vadd.f32 %v7350, %v7362
    %v7364 = vpop.f32.mrf.mxu0
    %7365 = vdwg.mxu0
    %7366 = vmatpush.bf16.msra.mxu0 %v4549
    %7367 = vmatpush.bf16.msra.mxu0 %v4547
    %7368 = vmatpush.bf16.msra.mxu0 %v4545
    %7369 = vmatpush.bf16.msra.mxu0 %v4543
    %7370 = vmatpush.bf16.msra.mxu0 %v4541
    %7371 = vmatpush.bf16.msra.mxu0 %v4539
    %7372 = vmatpush.bf16.msra.mxu0 %v4537
    %7373 = vmatpush.bf16.msra.mxu0 %v4535
    %7374 = vmatmul.bf16.gmra.mxu0 %v1084
    %v7375 = vpop.f32.mrf.mxu0
    %v7376 = vadd.f32 %v7363, %v7375
    %v7377 = vpop.f32.mrf.mxu0
    %7378 = vdwg.mxu0
    %7379 = vmatpush.bf16.msra.mxu0 %v4565
    %7380 = vmatpush.bf16.msra.mxu0 %v4563
    %7381 = vmatpush.bf16.msra.mxu0 %v4561
    %7382 = vmatpush.bf16.msra.mxu0 %v4559
    %7383 = vmatpush.bf16.msra.mxu0 %v4557
    %7384 = vmatpush.bf16.msra.mxu0 %v4555
    %7385 = vmatpush.bf16.msra.mxu0 %v4553
    %7386 = vmatpush.bf16.msra.mxu0 %v4551
    %7387 = vmatmul.bf16.gmra.mxu0 %v1085
    %v7388 = vpop.f32.mrf.mxu0
    %v7389 = vadd.f32 %v7376, %v7388
    %v7390 = vpop.f32.mrf.mxu0
    %7391 = vdwg.mxu0
    %7392 = vmatpush.bf16.msra.mxu0 %v4581
    %7393 = vmatpush.bf16.msra.mxu0 %v4579
    %7394 = vmatpush.bf16.msra.mxu0 %v4577
    %7395 = vmatpush.bf16.msra.mxu0 %v4575
    %7396 = vmatpush.bf16.msra.mxu0 %v4573
    %7397 = vmatpush.bf16.msra.mxu0 %v4571
    %7398 = vmatpush.bf16.msra.mxu0 %v4569
    %7399 = vmatpush.bf16.msra.mxu0 %v4567
    %7400 = vmatmul.bf16.gmra.mxu0 %v1086
    %v7401 = vpop.f32.mrf.mxu0
    %v7402 = vadd.f32 %v7389, %v7401
    %v7403 = vpop.f32.mrf.mxu0
    %7404 = vdwg.mxu0
    %7405 = vmatpush.bf16.msra.mxu0 %v4597
    %7406 = vmatpush.bf16.msra.mxu0 %v4595
    %7407 = vmatpush.bf16.msra.mxu0 %v4593
    %7408 = vmatpush.bf16.msra.mxu0 %v4591
    %7409 = vmatpush.bf16.msra.mxu0 %v4589
    %7410 = vmatpush.bf16.msra.mxu0 %v4587
    %7411 = vmatpush.bf16.msra.mxu0 %v4585
    %7412 = vmatpush.bf16.msra.mxu0 %v4583
    %7413 = vmatmul.bf16.gmra.mxu0 %v1087
    %v7414 = vpop.f32.mrf.mxu0
    %v7415 = vadd.f32 %v7402, %v7414
    %v7416 = vpop.f32.mrf.mxu0
    %7417 = vdwg.mxu0
    %7418 = vmatpush.bf16.msra.mxu0 %v4613
    %7419 = vmatpush.bf16.msra.mxu0 %v4611
    %7420 = vmatpush.bf16.msra.mxu0 %v4609
    %7421 = vmatpush.bf16.msra.mxu0 %v4607
    %7422 = vmatpush.bf16.msra.mxu0 %v4605
    %7423 = vmatpush.bf16.msra.mxu0 %v4603
    %7424 = vmatpush.bf16.msra.mxu0 %v4601
    %7425 = vmatpush.bf16.msra.mxu0 %v4599
    %7426 = vmatmul.bf16.gmra.mxu0 %v1088
    %v7427 = vpop.f32.mrf.mxu0
    %v7428 = vadd.f32 %v7415, %v7427
    %v7429 = vpop.f32.mrf.mxu0
    %7430 = vdwg.mxu0
    %7431 = vmatpush.bf16.msra.mxu0 %v4629
    %7432 = vmatpush.bf16.msra.mxu0 %v4627
    %7433 = vmatpush.bf16.msra.mxu0 %v4625
    %7434 = vmatpush.bf16.msra.mxu0 %v4623
    %7435 = vmatpush.bf16.msra.mxu0 %v4621
    %7436 = vmatpush.bf16.msra.mxu0 %v4619
    %7437 = vmatpush.bf16.msra.mxu0 %v4617
    %7438 = vmatpush.bf16.msra.mxu0 %v4615
    %7439 = vmatmul.bf16.gmra.mxu0 %v1089
    %v7440 = vpop.f32.mrf.mxu0
    %v7441 = vadd.f32 %v7428, %v7440
    %v7442 = vpop.f32.mrf.mxu0
    %7443 = vdwg.mxu0
    %7444 = vmatpush.bf16.msra.mxu0 %v4645
    %7445 = vmatpush.bf16.msra.mxu0 %v4643
    %7446 = vmatpush.bf16.msra.mxu0 %v4641
    %7447 = vmatpush.bf16.msra.mxu0 %v4639
    %7448 = vmatpush.bf16.msra.mxu0 %v4637
    %7449 = vmatpush.bf16.msra.mxu0 %v4635
    %7450 = vmatpush.bf16.msra.mxu0 %v4633
    %7451 = vmatpush.bf16.msra.mxu0 %v4631
    %7452 = vmatmul.bf16.gmra.mxu0 %v1090
    %v7453 = vpop.f32.mrf.mxu0
    %v7454 = vadd.f32 %v7441, %v7453
    %v7455 = vpop.f32.mrf.mxu0
    %7456 = vdwg.mxu0
    %7457 = vmatpush.bf16.msra.mxu0 %v4661
    %7458 = vmatpush.bf16.msra.mxu0 %v4659
    %7459 = vmatpush.bf16.msra.mxu0 %v4657
    %7460 = vmatpush.bf16.msra.mxu0 %v4655
    %7461 = vmatpush.bf16.msra.mxu0 %v4653
    %7462 = vmatpush.bf16.msra.mxu0 %v4651
    %7463 = vmatpush.bf16.msra.mxu0 %v4649
    %7464 = vmatpush.bf16.msra.mxu0 %v4647
    %7465 = vmatmul.bf16.gmra.mxu0 %v1091
    %v7466 = vpop.f32.mrf.mxu0
    %v7467 = vadd.f32 %v7454, %v7466
    %v7468 = vpop.f32.mrf.mxu0
    %7469 = vdwg.mxu0
    %7470 = vmatpush.bf16.msra.mxu0 %v4677
    %7471 = vmatpush.bf16.msra.mxu0 %v4675
    %7472 = vmatpush.bf16.msra.mxu0 %v4673
    %7473 = vmatpush.bf16.msra.mxu0 %v4671
    %7474 = vmatpush.bf16.msra.mxu0 %v4669
    %7475 = vmatpush.bf16.msra.mxu0 %v4667
    %7476 = vmatpush.bf16.msra.mxu0 %v4665
    %7477 = vmatpush.bf16.msra.mxu0 %v4663
    %7478 = vmatmul.bf16.gmra.mxu0 %v1094
    %v7479 = vpop.f32.mrf.mxu0
    %v7480 = vadd.f32 %v7467, %v7479
    %v7481 = vpop.f32.mrf.mxu0
    %7482 = vdwg.mxu0
    %7483 = vmatpush.bf16.msra.mxu0 %v4693
    %7484 = vmatpush.bf16.msra.mxu0 %v4691
    %7485 = vmatpush.bf16.msra.mxu0 %v4689
    %7486 = vmatpush.bf16.msra.mxu0 %v4687
    %7487 = vmatpush.bf16.msra.mxu0 %v4685
    %7488 = vmatpush.bf16.msra.mxu0 %v4683
    %7489 = vmatpush.bf16.msra.mxu0 %v4681
    %7490 = vmatpush.bf16.msra.mxu0 %v4679
    %7491 = vmatmul.bf16.gmra.mxu0 %v1095
    %v7492 = vpop.f32.mrf.mxu0
    %v7493 = vadd.f32 %v7480, %v7492
    %v7494 = vpop.f32.mrf.mxu0
    %7495 = vdwg.mxu0
    %7496 = vmatpush.bf16.msra.mxu0 %v4709
    %7497 = vmatpush.bf16.msra.mxu0 %v4707
    %7498 = vmatpush.bf16.msra.mxu0 %v4705
    %7499 = vmatpush.bf16.msra.mxu0 %v4703
    %7500 = vmatpush.bf16.msra.mxu0 %v4701
    %7501 = vmatpush.bf16.msra.mxu0 %v4699
    %7502 = vmatpush.bf16.msra.mxu0 %v4697
    %7503 = vmatpush.bf16.msra.mxu0 %v4695
    %7504 = vmatmul.bf16.gmra.mxu0 %v1096
    %v7505 = vpop.f32.mrf.mxu0
    %v7506 = vadd.f32 %v7493, %v7505
    %v7507 = vpop.f32.mrf.mxu0
    %7508 = vdwg.mxu0
    %7509 = vmatpush.bf16.msra.mxu0 %v4725
    %7510 = vmatpush.bf16.msra.mxu0 %v4723
    %7511 = vmatpush.bf16.msra.mxu0 %v4721
    %7512 = vmatpush.bf16.msra.mxu0 %v4719
    %7513 = vmatpush.bf16.msra.mxu0 %v4717
    %7514 = vmatpush.bf16.msra.mxu0 %v4715
    %7515 = vmatpush.bf16.msra.mxu0 %v4713
    %7516 = vmatpush.bf16.msra.mxu0 %v4711
    %7517 = vmatmul.bf16.gmra.mxu0 %v1097
    %v7518 = vpop.f32.mrf.mxu0
    %v7519 = vadd.f32 %v7506, %v7518
    %v7520 = vpop.f32.mrf.mxu0
    %7521 = vdwg.mxu0
    %7522 = vmatpush.bf16.msra.mxu0 %v4741
    %7523 = vmatpush.bf16.msra.mxu0 %v4739
    %7524 = vmatpush.bf16.msra.mxu0 %v4737
    %7525 = vmatpush.bf16.msra.mxu0 %v4735
    %7526 = vmatpush.bf16.msra.mxu0 %v4733
    %7527 = vmatpush.bf16.msra.mxu0 %v4731
    %7528 = vmatpush.bf16.msra.mxu0 %v4729
    %7529 = vmatpush.bf16.msra.mxu0 %v4727
    %7530 = vmatmul.bf16.gmra.mxu0 %v1098
    %v7531 = vpop.f32.mrf.mxu0
    %v7532 = vadd.f32 %v7519, %v7531
    %v7533 = vpop.f32.mrf.mxu0
    %7534 = vdwg.mxu0
    %7535 = vmatpush.bf16.msra.mxu0 %v4757
    %7536 = vmatpush.bf16.msra.mxu0 %v4755
    %7537 = vmatpush.bf16.msra.mxu0 %v4753
    %7538 = vmatpush.bf16.msra.mxu0 %v4751
    %7539 = vmatpush.bf16.msra.mxu0 %v4749
    %7540 = vmatpush.bf16.msra.mxu0 %v4747
    %7541 = vmatpush.bf16.msra.mxu0 %v4745
    %7542 = vmatpush.bf16.msra.mxu0 %v4743
    %7543 = vmatmul.bf16.gmra.mxu0 %v1099
    %v7544 = vpop.f32.mrf.mxu0
    %v7545 = vadd.f32 %v7532, %v7544
    %v7546 = vpop.f32.mrf.mxu0
    %7547 = vdwg.mxu0
    %7548 = vmatpush.bf16.msra.mxu0 %v4773
    %7549 = vmatpush.bf16.msra.mxu0 %v4771
    %7550 = vmatpush.bf16.msra.mxu0 %v4769
    %7551 = vmatpush.bf16.msra.mxu0 %v4767
    %7552 = vmatpush.bf16.msra.mxu0 %v4765
    %7553 = vmatpush.bf16.msra.mxu0 %v4763
    %7554 = vmatpush.bf16.msra.mxu0 %v4761
    %7555 = vmatpush.bf16.msra.mxu0 %v4759
    %7556 = vmatmul.bf16.gmra.mxu0 %v1100
    %v7557 = vpop.f32.mrf.mxu0
    %v7558 = vadd.f32 %v7545, %v7557
    %v7559 = vpop.f32.mrf.mxu0
    %7560 = vdwg.mxu0
    %7561 = vmatpush.bf16.msra.mxu0 %v4789
    %7562 = vmatpush.bf16.msra.mxu0 %v4787
    %7563 = vmatpush.bf16.msra.mxu0 %v4785
    %7564 = vmatpush.bf16.msra.mxu0 %v4783
    %7565 = vmatpush.bf16.msra.mxu0 %v4781
    %7566 = vmatpush.bf16.msra.mxu0 %v4779
    %7567 = vmatpush.bf16.msra.mxu0 %v4777
    %7568 = vmatpush.bf16.msra.mxu0 %v4775
    %7569 = vmatmul.bf16.gmra.mxu0 %v1101
    %v7570 = vpop.f32.mrf.mxu0
    %v7571 = vadd.f32 %v7558, %v7570
    %v7572 = vpop.f32.mrf.mxu0
    %7573 = vdwg.mxu0
    %7574 = vmatpush.bf16.msra.mxu0 %v4805
    %7575 = vmatpush.bf16.msra.mxu0 %v4803
    %7576 = vmatpush.bf16.msra.mxu0 %v4801
    %7577 = vmatpush.bf16.msra.mxu0 %v4799
    %7578 = vmatpush.bf16.msra.mxu0 %v4797
    %7579 = vmatpush.bf16.msra.mxu0 %v4795
    %7580 = vmatpush.bf16.msra.mxu0 %v4793
    %7581 = vmatpush.bf16.msra.mxu0 %v4791
    %7582 = vmatmul.bf16.gmra.mxu0 %v1104
    %v7583 = vpop.f32.mrf.mxu0
    %v7584 = vadd.f32 %v7571, %v7583
    %v7585 = vpop.f32.mrf.mxu0
    %7586 = vdwg.mxu0
    %7587 = vmatpush.bf16.msra.mxu0 %v4821
    %7588 = vmatpush.bf16.msra.mxu0 %v4819
    %7589 = vmatpush.bf16.msra.mxu0 %v4817
    %7590 = vmatpush.bf16.msra.mxu0 %v4815
    %7591 = vmatpush.bf16.msra.mxu0 %v4813
    %7592 = vmatpush.bf16.msra.mxu0 %v4811
    %7593 = vmatpush.bf16.msra.mxu0 %v4809
    %7594 = vmatpush.bf16.msra.mxu0 %v4807
    %7595 = vmatmul.bf16.gmra.mxu0 %v1105
    %v7596 = vpop.f32.mrf.mxu0
    %v7597 = vadd.f32 %v7584, %v7596
    %v7598 = vpop.f32.mrf.mxu0
    %7599 = vdwg.mxu0
    %7600 = vmatpush.bf16.msra.mxu0 %v4837
    %7601 = vmatpush.bf16.msra.mxu0 %v4835
    %7602 = vmatpush.bf16.msra.mxu0 %v4833
    %7603 = vmatpush.bf16.msra.mxu0 %v4831
    %7604 = vmatpush.bf16.msra.mxu0 %v4829
    %7605 = vmatpush.bf16.msra.mxu0 %v4827
    %7606 = vmatpush.bf16.msra.mxu0 %v4825
    %7607 = vmatpush.bf16.msra.mxu0 %v4823
    %7608 = vmatmul.bf16.gmra.mxu0 %v1106
    %v7609 = vpop.f32.mrf.mxu0
    %v7610 = vadd.f32 %v7597, %v7609
    %v7611 = vpop.f32.mrf.mxu0
    %7612 = vdwg.mxu0
    %7613 = vmatpush.bf16.msra.mxu0 %v4853
    %7614 = vmatpush.bf16.msra.mxu0 %v4851
    %7615 = vmatpush.bf16.msra.mxu0 %v4849
    %7616 = vmatpush.bf16.msra.mxu0 %v4847
    %7617 = vmatpush.bf16.msra.mxu0 %v4845
    %7618 = vmatpush.bf16.msra.mxu0 %v4843
    %7619 = vmatpush.bf16.msra.mxu0 %v4841
    %7620 = vmatpush.bf16.msra.mxu0 %v4839
    %7621 = vmatmul.bf16.gmra.mxu0 %v1107
    %v7622 = vpop.f32.mrf.mxu0
    %v7623 = vadd.f32 %v7610, %v7622
    %v7624 = vpop.f32.mrf.mxu0
    %7625 = vdwg.mxu0
    %7626 = vmatpush.bf16.msra.mxu0 %v4869
    %7627 = vmatpush.bf16.msra.mxu0 %v4867
    %7628 = vmatpush.bf16.msra.mxu0 %v4865
    %7629 = vmatpush.bf16.msra.mxu0 %v4863
    %7630 = vmatpush.bf16.msra.mxu0 %v4861
    %7631 = vmatpush.bf16.msra.mxu0 %v4859
    %7632 = vmatpush.bf16.msra.mxu0 %v4857
    %7633 = vmatpush.bf16.msra.mxu0 %v4855
    %7634 = vmatmul.bf16.gmra.mxu0 %v1108
    %v7635 = vpop.f32.mrf.mxu0
    %v7636 = vadd.f32 %v7623, %v7635
    %v7637 = vpop.f32.mrf.mxu0
    %7638 = vdwg.mxu0
    %7639 = vmatpush.bf16.msra.mxu0 %v4885
    %7640 = vmatpush.bf16.msra.mxu0 %v4883
    %7641 = vmatpush.bf16.msra.mxu0 %v4881
    %7642 = vmatpush.bf16.msra.mxu0 %v4879
    %7643 = vmatpush.bf16.msra.mxu0 %v4877
    %7644 = vmatpush.bf16.msra.mxu0 %v4875
    %7645 = vmatpush.bf16.msra.mxu0 %v4873
    %7646 = vmatpush.bf16.msra.mxu0 %v4871
    %7647 = vmatmul.bf16.gmra.mxu0 %v1109
    %v7648 = vpop.f32.mrf.mxu0
    %v7649 = vadd.f32 %v7636, %v7648
    %v7650 = vpop.f32.mrf.mxu0
    %7651 = vdwg.mxu0
    %7652 = vmatpush.bf16.msra.mxu0 %v4901
    %7653 = vmatpush.bf16.msra.mxu0 %v4899
    %7654 = vmatpush.bf16.msra.mxu0 %v4897
    %7655 = vmatpush.bf16.msra.mxu0 %v4895
    %7656 = vmatpush.bf16.msra.mxu0 %v4893
    %7657 = vmatpush.bf16.msra.mxu0 %v4891
    %7658 = vmatpush.bf16.msra.mxu0 %v4889
    %7659 = vmatpush.bf16.msra.mxu0 %v4887
    %7660 = vmatmul.bf16.gmra.mxu0 %v1110
    %v7661 = vpop.f32.mrf.mxu0
    %v7662 = vadd.f32 %v7649, %v7661
    %v7663 = vpop.f32.mrf.mxu0
    %7664 = vdwg.mxu0
    %7665 = vmatpush.bf16.msra.mxu0 %v4917
    %7666 = vmatpush.bf16.msra.mxu0 %v4915
    %7667 = vmatpush.bf16.msra.mxu0 %v4913
    %7668 = vmatpush.bf16.msra.mxu0 %v4911
    %7669 = vmatpush.bf16.msra.mxu0 %v4909
    %7670 = vmatpush.bf16.msra.mxu0 %v4907
    %7671 = vmatpush.bf16.msra.mxu0 %v4905
    %7672 = vmatpush.bf16.msra.mxu0 %v4903
    %7673 = vmatmul.bf16.gmra.mxu0 %v1111
    %v7674 = vpop.f32.mrf.mxu0
    %v7675 = vadd.f32 %v7662, %v7674
    %v7676 = vpop.f32.mrf.mxu0
    %7677 = vdwg.mxu0
    %7678 = vmatpush.bf16.msra.mxu0 %v4933
    %7679 = vmatpush.bf16.msra.mxu0 %v4931
    %7680 = vmatpush.bf16.msra.mxu0 %v4929
    %7681 = vmatpush.bf16.msra.mxu0 %v4927
    %7682 = vmatpush.bf16.msra.mxu0 %v4925
    %7683 = vmatpush.bf16.msra.mxu0 %v4923
    %7684 = vmatpush.bf16.msra.mxu0 %v4921
    %7685 = vmatpush.bf16.msra.mxu0 %v4919
    %7686 = vmatmul.bf16.gmra.mxu0 %v1114
    %v7687 = vpop.f32.mrf.mxu0
    %v7688 = vadd.f32 %v7675, %v7687
    %v7689 = vpop.f32.mrf.mxu0
    %7690 = vdwg.mxu0
    %7691 = vmatpush.bf16.msra.mxu0 %v4949
    %7692 = vmatpush.bf16.msra.mxu0 %v4947
    %7693 = vmatpush.bf16.msra.mxu0 %v4945
    %7694 = vmatpush.bf16.msra.mxu0 %v4943
    %7695 = vmatpush.bf16.msra.mxu0 %v4941
    %7696 = vmatpush.bf16.msra.mxu0 %v4939
    %7697 = vmatpush.bf16.msra.mxu0 %v4937
    %7698 = vmatpush.bf16.msra.mxu0 %v4935
    %7699 = vmatmul.bf16.gmra.mxu0 %v1115
    %v7700 = vpop.f32.mrf.mxu0
    %v7701 = vadd.f32 %v7688, %v7700
    %v7702 = vpop.f32.mrf.mxu0
    %7703 = vdwg.mxu0
    %7704 = vmatpush.bf16.msra.mxu0 %v4965
    %7705 = vmatpush.bf16.msra.mxu0 %v4963
    %7706 = vmatpush.bf16.msra.mxu0 %v4961
    %7707 = vmatpush.bf16.msra.mxu0 %v4959
    %7708 = vmatpush.bf16.msra.mxu0 %v4957
    %7709 = vmatpush.bf16.msra.mxu0 %v4955
    %7710 = vmatpush.bf16.msra.mxu0 %v4953
    %7711 = vmatpush.bf16.msra.mxu0 %v4951
    %7712 = vmatmul.bf16.gmra.mxu0 %v1116
    %v7713 = vpop.f32.mrf.mxu0
    %v7714 = vadd.f32 %v7701, %v7713
    %v7715 = vpop.f32.mrf.mxu0
    %7716 = vdwg.mxu0
    %7717 = vmatpush.bf16.msra.mxu0 %v4981
    %7718 = vmatpush.bf16.msra.mxu0 %v4979
    %7719 = vmatpush.bf16.msra.mxu0 %v4977
    %7720 = vmatpush.bf16.msra.mxu0 %v4975
    %7721 = vmatpush.bf16.msra.mxu0 %v4973
    %7722 = vmatpush.bf16.msra.mxu0 %v4971
    %7723 = vmatpush.bf16.msra.mxu0 %v4969
    %7724 = vmatpush.bf16.msra.mxu0 %v4967
    %7725 = vmatmul.bf16.gmra.mxu0 %v1117
    %v7726 = vpop.f32.mrf.mxu0
    %v7727 = vadd.f32 %v7714, %v7726
    %v7728 = vpop.f32.mrf.mxu0
    %7729 = vdwg.mxu0
    %7730 = vmatpush.bf16.msra.mxu0 %v4997
    %7731 = vmatpush.bf16.msra.mxu0 %v4995
    %7732 = vmatpush.bf16.msra.mxu0 %v4993
    %7733 = vmatpush.bf16.msra.mxu0 %v4991
    %7734 = vmatpush.bf16.msra.mxu0 %v4989
    %7735 = vmatpush.bf16.msra.mxu0 %v4987
    %7736 = vmatpush.bf16.msra.mxu0 %v4985
    %7737 = vmatpush.bf16.msra.mxu0 %v4983
    %7738 = vmatmul.bf16.gmra.mxu0 %v1118
    %v7739 = vpop.f32.mrf.mxu0
    %v7740 = vadd.f32 %v7727, %v7739
    %v7741 = vpop.f32.mrf.mxu0
    %7742 = vdwg.mxu0
    %7743 = vmatpush.bf16.msra.mxu0 %v5013
    %7744 = vmatpush.bf16.msra.mxu0 %v5011
    %7745 = vmatpush.bf16.msra.mxu0 %v5009
    %7746 = vmatpush.bf16.msra.mxu0 %v5007
    %7747 = vmatpush.bf16.msra.mxu0 %v5005
    %7748 = vmatpush.bf16.msra.mxu0 %v5003
    %7749 = vmatpush.bf16.msra.mxu0 %v5001
    %7750 = vmatpush.bf16.msra.mxu0 %v4999
    %7751 = vmatmul.bf16.gmra.mxu0 %v1119
    %v7752 = vpop.f32.mrf.mxu0
    %v7753 = vadd.f32 %v7740, %v7752
    %v7754 = vpop.f32.mrf.mxu0
    %7755 = vdwg.mxu0
    %7756 = vmatpush.bf16.msra.mxu0 %v5029
    %7757 = vmatpush.bf16.msra.mxu0 %v5027
    %7758 = vmatpush.bf16.msra.mxu0 %v5025
    %7759 = vmatpush.bf16.msra.mxu0 %v5023
    %7760 = vmatpush.bf16.msra.mxu0 %v5021
    %7761 = vmatpush.bf16.msra.mxu0 %v5019
    %7762 = vmatpush.bf16.msra.mxu0 %v5017
    %7763 = vmatpush.bf16.msra.mxu0 %v5015
    %7764 = vmatmul.bf16.gmra.mxu0 %v1120
    %v7765 = vpop.f32.mrf.mxu0
    %v7766 = vadd.f32 %v7753, %v7765
    %v7767 = vpop.f32.mrf.mxu0
    %7768 = vdwg.mxu0
    %7769 = vmatpush.bf16.msra.mxu0 %v5045
    %7770 = vmatpush.bf16.msra.mxu0 %v5043
    %7771 = vmatpush.bf16.msra.mxu0 %v5041
    %7772 = vmatpush.bf16.msra.mxu0 %v5039
    %7773 = vmatpush.bf16.msra.mxu0 %v5037
    %7774 = vmatpush.bf16.msra.mxu0 %v5035
    %7775 = vmatpush.bf16.msra.mxu0 %v5033
    %7776 = vmatpush.bf16.msra.mxu0 %v5031
    %7777 = vmatmul.bf16.gmra.mxu0 %v1121
    %v7778 = vpop.f32.mrf.mxu0
    %v7779 = vadd.f32 %v7766, %v7778
    %v7780 = vpop.f32.mrf.mxu0
    %7781 = vdwg.mxu0
    %7782 = vmatpush.bf16.msra.mxu0 %v5061
    %7783 = vmatpush.bf16.msra.mxu0 %v5059
    %7784 = vmatpush.bf16.msra.mxu0 %v5057
    %7785 = vmatpush.bf16.msra.mxu0 %v5055
    %7786 = vmatpush.bf16.msra.mxu0 %v5053
    %7787 = vmatpush.bf16.msra.mxu0 %v5051
    %7788 = vmatpush.bf16.msra.mxu0 %v5049
    %7789 = vmatpush.bf16.msra.mxu0 %v5047
    %7790 = vmatmul.bf16.gmra.mxu0 %v1124
    %v7791 = vpop.f32.mrf.mxu0
    %v7792 = vadd.f32 %v7779, %v7791
    %v7793 = vpop.f32.mrf.mxu0
    %7794 = vdwg.mxu0
    %7795 = vmatpush.bf16.msra.mxu0 %v5077
    %7796 = vmatpush.bf16.msra.mxu0 %v5075
    %7797 = vmatpush.bf16.msra.mxu0 %v5073
    %7798 = vmatpush.bf16.msra.mxu0 %v5071
    %7799 = vmatpush.bf16.msra.mxu0 %v5069
    %7800 = vmatpush.bf16.msra.mxu0 %v5067
    %7801 = vmatpush.bf16.msra.mxu0 %v5065
    %7802 = vmatpush.bf16.msra.mxu0 %v5063
    %7803 = vmatmul.bf16.gmra.mxu0 %v1125
    %v7804 = vpop.f32.mrf.mxu0
    %v7805 = vadd.f32 %v7792, %v7804
    %v7806 = vpop.f32.mrf.mxu0
    %7807 = vdwg.mxu0
    %7808 = vmatpush.bf16.msra.mxu0 %v5093
    %7809 = vmatpush.bf16.msra.mxu0 %v5091
    %7810 = vmatpush.bf16.msra.mxu0 %v5089
    %7811 = vmatpush.bf16.msra.mxu0 %v5087
    %7812 = vmatpush.bf16.msra.mxu0 %v5085
    %7813 = vmatpush.bf16.msra.mxu0 %v5083
    %7814 = vmatpush.bf16.msra.mxu0 %v5081
    %7815 = vmatpush.bf16.msra.mxu0 %v5079
    %7816 = vmatmul.bf16.gmra.mxu0 %v1126
    %v7817 = vpop.f32.mrf.mxu0
    %v7818 = vadd.f32 %v7805, %v7817
    %v7819 = vpop.f32.mrf.mxu0
    %7820 = vdwg.mxu0
    %7821 = vmatpush.bf16.msra.mxu0 %v5109
    %7822 = vmatpush.bf16.msra.mxu0 %v5107
    %7823 = vmatpush.bf16.msra.mxu0 %v5105
    %7824 = vmatpush.bf16.msra.mxu0 %v5103
    %7825 = vmatpush.bf16.msra.mxu0 %v5101
    %7826 = vmatpush.bf16.msra.mxu0 %v5099
    %7827 = vmatpush.bf16.msra.mxu0 %v5097
    %7828 = vmatpush.bf16.msra.mxu0 %v5095
    %7829 = vmatmul.bf16.gmra.mxu0 %v1127
    %v7830 = vpop.f32.mrf.mxu0
    %v7831 = vadd.f32 %v7818, %v7830
    %v7832 = vpop.f32.mrf.mxu0
    %7833 = vdwg.mxu0
    %7834 = vmatpush.bf16.msra.mxu0 %v5125
    %7835 = vmatpush.bf16.msra.mxu0 %v5123
    %7836 = vmatpush.bf16.msra.mxu0 %v5121
    %7837 = vmatpush.bf16.msra.mxu0 %v5119
    %7838 = vmatpush.bf16.msra.mxu0 %v5117
    %7839 = vmatpush.bf16.msra.mxu0 %v5115
    %7840 = vmatpush.bf16.msra.mxu0 %v5113
    %7841 = vmatpush.bf16.msra.mxu0 %v5111
    %7842 = vmatmul.bf16.gmra.mxu0 %v1128
    %v7843 = vpop.f32.mrf.mxu0
    %v7844 = vadd.f32 %v7831, %v7843
    %v7845 = vpop.f32.mrf.mxu0
    %7846 = vdwg.mxu0
    %7847 = vmatpush.bf16.msra.mxu0 %v5141
    %7848 = vmatpush.bf16.msra.mxu0 %v5139
    %7849 = vmatpush.bf16.msra.mxu0 %v5137
    %7850 = vmatpush.bf16.msra.mxu0 %v5135
    %7851 = vmatpush.bf16.msra.mxu0 %v5133
    %7852 = vmatpush.bf16.msra.mxu0 %v5131
    %7853 = vmatpush.bf16.msra.mxu0 %v5129
    %7854 = vmatpush.bf16.msra.mxu0 %v5127
    %7855 = vmatmul.bf16.gmra.mxu0 %v1129
    %v7856 = vpop.f32.mrf.mxu0
    %v7857 = vadd.f32 %v7844, %v7856
    %v7858 = vpop.f32.mrf.mxu0
    %7859 = vdwg.mxu0
    %7860 = vmatpush.bf16.msra.mxu0 %v5157
    %7861 = vmatpush.bf16.msra.mxu0 %v5155
    %7862 = vmatpush.bf16.msra.mxu0 %v5153
    %7863 = vmatpush.bf16.msra.mxu0 %v5151
    %7864 = vmatpush.bf16.msra.mxu0 %v5149
    %7865 = vmatpush.bf16.msra.mxu0 %v5147
    %7866 = vmatpush.bf16.msra.mxu0 %v5145
    %7867 = vmatpush.bf16.msra.mxu0 %v5143
    %7868 = vmatmul.bf16.gmra.mxu0 %v1130
    %v7869 = vpop.f32.mrf.mxu0
    %v7870 = vadd.f32 %v7857, %v7869
    %v7871 = vpop.f32.mrf.mxu0
    %7872 = vdwg.mxu0
    %7873 = vmatpush.bf16.msra.mxu0 %v5173
    %7874 = vmatpush.bf16.msra.mxu0 %v5171
    %7875 = vmatpush.bf16.msra.mxu0 %v5169
    %7876 = vmatpush.bf16.msra.mxu0 %v5167
    %7877 = vmatpush.bf16.msra.mxu0 %v5165
    %7878 = vmatpush.bf16.msra.mxu0 %v5163
    %7879 = vmatpush.bf16.msra.mxu0 %v5161
    %7880 = vmatpush.bf16.msra.mxu0 %v5159
    %7881 = vmatmul.bf16.gmra.mxu0 %v1131
    %v7882 = vpop.f32.mrf.mxu0
    %v7883 = vadd.f32 %v7870, %v7882
    %v7884 = vpop.f32.mrf.mxu0
    %7885 = vdwg.mxu0
    %7886 = vmatpush.bf16.msra.mxu0 %v5189
    %7887 = vmatpush.bf16.msra.mxu0 %v5187
    %7888 = vmatpush.bf16.msra.mxu0 %v5185
    %7889 = vmatpush.bf16.msra.mxu0 %v5183
    %7890 = vmatpush.bf16.msra.mxu0 %v5181
    %7891 = vmatpush.bf16.msra.mxu0 %v5179
    %7892 = vmatpush.bf16.msra.mxu0 %v5177
    %7893 = vmatpush.bf16.msra.mxu0 %v5175
    %7894 = vmatmul.bf16.gmra.mxu0 %v1134
    %v7895 = vpop.f32.mrf.mxu0
    %v7896 = vadd.f32 %v7883, %v7895
    %v7897 = vpop.f32.mrf.mxu0
    %7898 = vdwg.mxu0
    %7899 = vmatpush.bf16.msra.mxu0 %v5205
    %7900 = vmatpush.bf16.msra.mxu0 %v5203
    %7901 = vmatpush.bf16.msra.mxu0 %v5201
    %7902 = vmatpush.bf16.msra.mxu0 %v5199
    %7903 = vmatpush.bf16.msra.mxu0 %v5197
    %7904 = vmatpush.bf16.msra.mxu0 %v5195
    %7905 = vmatpush.bf16.msra.mxu0 %v5193
    %7906 = vmatpush.bf16.msra.mxu0 %v5191
    %7907 = vmatmul.bf16.gmra.mxu0 %v1135
    %v7908 = vpop.f32.mrf.mxu0
    %v7909 = vadd.f32 %v7896, %v7908
    %v7910 = vpop.f32.mrf.mxu0
    %7911 = vdwg.mxu0
    %7912 = vmatpush.bf16.msra.mxu0 %v5221
    %7913 = vmatpush.bf16.msra.mxu0 %v5219
    %7914 = vmatpush.bf16.msra.mxu0 %v5217
    %7915 = vmatpush.bf16.msra.mxu0 %v5215
    %7916 = vmatpush.bf16.msra.mxu0 %v5213
    %7917 = vmatpush.bf16.msra.mxu0 %v5211
    %7918 = vmatpush.bf16.msra.mxu0 %v5209
    %7919 = vmatpush.bf16.msra.mxu0 %v5207
    %7920 = vmatmul.bf16.gmra.mxu0 %v1136
    %v7921 = vpop.f32.mrf.mxu0
    %v7922 = vadd.f32 %v7909, %v7921
    %v7923 = vpop.f32.mrf.mxu0
    %7924 = vdwg.mxu0
    %7925 = vmatpush.bf16.msra.mxu0 %v5237
    %7926 = vmatpush.bf16.msra.mxu0 %v5235
    %7927 = vmatpush.bf16.msra.mxu0 %v5233
    %7928 = vmatpush.bf16.msra.mxu0 %v5231
    %7929 = vmatpush.bf16.msra.mxu0 %v5229
    %7930 = vmatpush.bf16.msra.mxu0 %v5227
    %7931 = vmatpush.bf16.msra.mxu0 %v5225
    %7932 = vmatpush.bf16.msra.mxu0 %v5223
    %7933 = vmatmul.bf16.gmra.mxu0 %v1137
    %v7934 = vpop.f32.mrf.mxu0
    %v7935 = vadd.f32 %v7922, %v7934
    %v7936 = vpop.f32.mrf.mxu0
    %7937 = vdwg.mxu0
    %7938 = vmatpush.bf16.msra.mxu0 %v5253
    %7939 = vmatpush.bf16.msra.mxu0 %v5251
    %7940 = vmatpush.bf16.msra.mxu0 %v5249
    %7941 = vmatpush.bf16.msra.mxu0 %v5247
    %7942 = vmatpush.bf16.msra.mxu0 %v5245
    %7943 = vmatpush.bf16.msra.mxu0 %v5243
    %7944 = vmatpush.bf16.msra.mxu0 %v5241
    %7945 = vmatpush.bf16.msra.mxu0 %v5239
    %7946 = vmatmul.bf16.gmra.mxu0 %v1138
    %v7947 = vpop.f32.mrf.mxu0
    %v7948 = vadd.f32 %v7935, %v7947
    %v7949 = vpop.f32.mrf.mxu0
    %7950 = vdwg.mxu0
    %7951 = vmatpush.bf16.msra.mxu0 %v5269
    %7952 = vmatpush.bf16.msra.mxu0 %v5267
    %7953 = vmatpush.bf16.msra.mxu0 %v5265
    %7954 = vmatpush.bf16.msra.mxu0 %v5263
    %7955 = vmatpush.bf16.msra.mxu0 %v5261
    %7956 = vmatpush.bf16.msra.mxu0 %v5259
    %7957 = vmatpush.bf16.msra.mxu0 %v5257
    %7958 = vmatpush.bf16.msra.mxu0 %v5255
    %7959 = vmatmul.bf16.gmra.mxu0 %v1139
    %v7960 = vpop.f32.mrf.mxu0
    %v7961 = vadd.f32 %v7948, %v7960
    %v7962 = vpop.f32.mrf.mxu0
    %7963 = vdwg.mxu0
    %7964 = vmatpush.bf16.msra.mxu0 %v5285
    %7965 = vmatpush.bf16.msra.mxu0 %v5283
    %7966 = vmatpush.bf16.msra.mxu0 %v5281
    %7967 = vmatpush.bf16.msra.mxu0 %v5279
    %7968 = vmatpush.bf16.msra.mxu0 %v5277
    %7969 = vmatpush.bf16.msra.mxu0 %v5275
    %7970 = vmatpush.bf16.msra.mxu0 %v5273
    %7971 = vmatpush.bf16.msra.mxu0 %v5271
    %7972 = vmatmul.bf16.gmra.mxu0 %v1140
    %v7973 = vpop.f32.mrf.mxu0
    %v7974 = vadd.f32 %v7961, %v7973
    %v7975 = vpop.f32.mrf.mxu0
    %7976 = vdwg.mxu0
    %7977 = vmatpush.bf16.msra.mxu0 %v5301
    %7978 = vmatpush.bf16.msra.mxu0 %v5299
    %7979 = vmatpush.bf16.msra.mxu0 %v5297
    %7980 = vmatpush.bf16.msra.mxu0 %v5295
    %7981 = vmatpush.bf16.msra.mxu0 %v5293
    %7982 = vmatpush.bf16.msra.mxu0 %v5291
    %7983 = vmatpush.bf16.msra.mxu0 %v5289
    %7984 = vmatpush.bf16.msra.mxu0 %v5287
    %7985 = vmatmul.bf16.gmra.mxu0 %v1141
    %v7986 = vpop.f32.mrf.mxu0
    %v7987 = vadd.f32 %v7974, %v7986
    %v7988 = vpop.f32.mrf.mxu0
    %7989 = vdwg.mxu0
    %v7990 = vmax.f32 %v7155, 0.0
    %v7991 = vmax.f32 %v7987, 0.0
    %v7994 = vrot.slane %v7991, 6
    %vm7995 = vcmask 1041408
    %v7996 = vsel %vm7995, %v7990, %v7994
    %7998 = vst [vmem:[#allocation4] sm:$0xf] %v7996
    %v7999 = vpack.c.bf16 %v7990, %v7990
    %v8000 = vpack.c.bf16 %v7991, %v7991
    %v8001 = vld [vmem:[%s3] sm:$0xf]
    %v8002 = vld [vmem:[%s3 + $0x4] sm:$0xf]
    %v8003 = vld [vmem:[%s3 + $0x8] sm:$0xf]
    %v8004 = vld [vmem:[%s3 + $0xc] sm:$0xf]
    %v8005 = vld [vmem:[%s3 + $0x10] sm:$0xf]
    %v8006 = vld [vmem:[%s3 + $0x14] sm:$0xf]
    %v8007 = vld [vmem:[%s3 + $0x18] sm:$0xf]
    %v8008 = vld [vmem:[%s3 + $0x1c] sm:$0xf]
    %v8009 = vld [vmem:[%s3 + $0x20] sm:$0xf]
    %v8010 = vld [vmem:[%s3 + $0x24] sm:$0xf]
    %v8011 = vld [vmem:[%s3 + $0x28] sm:$0xf]
    %v8012 = vld [vmem:[%s3 + $0x2c] sm:$0xf]
    %v8013 = vld [vmem:[%s3 + $0x30] sm:$0xf]
    %v8014 = vld [vmem:[%s3 + $0x34] sm:$0xf]
    %v8015 = vld [vmem:[%s3 + $0x38] sm:$0xf]
    %v8016 = vld [vmem:[%s3 + $0x3c] sm:$0xf]
    %v8017 = vld [vmem:[%s3 + $0x40] sm:$0xf]
    %v8018 = vld [vmem:[%s3 + $0x44] sm:$0xf]
    %v8019 = vld [vmem:[%s3 + $0x48] sm:$0xf]
    %v8020 = vld [vmem:[%s3 + $0x4c] sm:$0xf]
    %v8021 = vld [vmem:[%s3 + $0x50] sm:$0xf]
    %v8022 = vld [vmem:[%s3 + $0x54] sm:$0xf]
    %v8023 = vld [vmem:[%s3 + $0x58] sm:$0xf]
    %v8024 = vld [vmem:[%s3 + $0x5c] sm:$0xf]
    %v8025 = vld [vmem:[%s3 + $0x60] sm:$0xf]
    %v8026 = vld [vmem:[%s3 + $0x64] sm:$0xf]
    %v8027 = vld [vmem:[%s3 + $0x68] sm:$0xf]
    %v8028 = vld [vmem:[%s3 + $0x6c] sm:$0xf]
    %v8029 = vld [vmem:[%s3 + $0x70] sm:$0xf]
    %v8030 = vld [vmem:[%s3 + $0x74] sm:$0xf]
    %v8031 = vld [vmem:[%s3 + $0x78] sm:$0xf]
    %v8032 = vld [vmem:[%s3 + $0x7c] sm:$0xf]
    %v8033 = vld [vmem:[%s4] sm:$0x1]
    %v8035 = vperm.slane %v8033, 0
    %v8069 = vunpack.c.l.b16 %v8001
    %v8070 = vunpack.c.l.b16 %v8002
    %v8071 = vunpack.c.l.b16 %v8003
    %v8072 = vunpack.c.l.b16 %v8004
    %v8073 = vunpack.c.l.b16 %v8005
    %v8074 = vunpack.c.l.b16 %v8006
    %v8075 = vunpack.c.l.b16 %v8007
    %v8076 = vunpack.c.l.b16 %v8008
    %v8077 = vunpack.c.l.b16 %v8009
    %v8078 = vunpack.c.l.b16 %v8010
    %v8079 = vunpack.c.l.b16 %v8011
    %v8080 = vunpack.c.l.b16 %v8012
    %v8081 = vunpack.c.l.b16 %v8013
    %v8082 = vunpack.c.l.b16 %v8014
    %v8083 = vunpack.c.l.b16 %v8015
    %v8084 = vunpack.c.l.b16 %v8016
    %v8085 = vunpack.c.l.b16 %v8017
    %v8086 = vunpack.c.l.b16 %v8018
    %v8087 = vunpack.c.l.b16 %v8019
    %v8088 = vunpack.c.l.b16 %v8020
    %v8089 = vunpack.c.l.b16 %v8021
    %v8090 = vunpack.c.l.b16 %v8022
    %v8091 = vunpack.c.l.b16 %v8023
    %v8092 = vunpack.c.l.b16 %v8024
    %v8093 = vunpack.c.l.b16 %v8025
    %v8094 = vunpack.c.l.b16 %v8026
    %v8095 = vunpack.c.l.b16 %v8027
    %v8096 = vunpack.c.l.b16 %v8028
    %v8097 = vunpack.c.l.b16 %v8029
    %v8098 = vunpack.c.l.b16 %v8030
    %v8099 = vunpack.c.l.b16 %v8031
    %v8100 = vunpack.c.l.b16 %v8032
    %v8101 = vpack.c.b16 %v8070, %v8069
    %v8102 = vpack.c.b16 %v8072, %v8071
    %v8103 = vpack.c.b16 %v8074, %v8073
    %v8104 = vpack.c.b16 %v8076, %v8075
    %v8105 = vpack.c.b16 %v8078, %v8077
    %v8106 = vpack.c.b16 %v8080, %v8079
    %v8107 = vpack.c.b16 %v8082, %v8081
    %v8108 = vpack.c.b16 %v8084, %v8083
    %v8109 = vpack.c.b16 %v8086, %v8085
    %v8110 = vpack.c.b16 %v8088, %v8087
    %v8111 = vpack.c.b16 %v8090, %v8089
    %v8112 = vpack.c.b16 %v8092, %v8091
    %v8113 = vpack.c.b16 %v8094, %v8093
    %v8114 = vpack.c.b16 %v8096, %v8095
    %v8115 = vpack.c.b16 %v8098, %v8097
    %v8116 = vpack.c.b16 %v8100, %v8099
    %8133 = vmatpush.bf16.msra.mxu0 %v8108
    %8134 = vmatpush.bf16.msra.mxu0 %v8107
    %8135 = vmatpush.bf16.msra.mxu0 %v8106
    %8136 = vmatpush.bf16.msra.mxu0 %v8105
    %8137 = vmatpush.bf16.msra.mxu0 %v8104
    %8138 = vmatpush.bf16.msra.mxu0 %v8103
    %8139 = vmatpush.bf16.msra.mxu0 %v8102
    %8140 = vmatpush.bf16.msra.mxu0 %v8101
    %8141 = vmatmul.bf16.gmra.mxu0 %v7999
    %v8142 = vpop.f32.mrf.mxu0
    %v8143 = vadd.f32 %v8035, %v8142
    %v8144 = vpop.f32.mrf.mxu0
    %8145 = vdwg.mxu0
    %8146 = vmatpush.bf16.msra.mxu0 %v8116
    %8147 = vmatpush.bf16.msra.mxu0 %v8115
    %8148 = vmatpush.bf16.msra.mxu0 %v8114
    %8149 = vmatpush.bf16.msra.mxu0 %v8113
    %8150 = vmatpush.bf16.msra.mxu0 %v8112
    %8151 = vmatpush.bf16.msra.mxu0 %v8111
    %8152 = vmatpush.bf16.msra.mxu0 %v8110
    %8153 = vmatpush.bf16.msra.mxu0 %v8109
    %8154 = vmatmul.bf16.gmra.mxu0 %v8000
    %v8155 = vpop.f32.mrf.mxu0
    %v8156 = vadd.f32 %v8143, %v8155
    %v8157 = vpop.f32.mrf.mxu0
    %8158 = vdwg.mxu0
    %8159 = vst [vmem:[#allocation2] sm:$0x3] %v8156
    // Predicated region
    $region22: #{dlf_convnet3_forward.5} parent=1 // pred_check
      _
    $region23: #{dlf_convnet3_forward.5} parent=1 // pred_check_branch
      %8161 = sbr.rel (0) target = $region25
    $region24: #{dlf_convnet3_forward.5} parent=1 // pred_region
      %8163 = vsyncadd [#allocation3], 0
      %s8165 = sshll.u32 [#allocation2], 4
      %s8166 = int_to_ptr.vmem [resolvable:$true] %s8165
      %s8167 = sshll.u32 %s5, 4
      %s8168 = int_to_ptr.hbm [resolvable:$true] %s8167
      %8170 = dma.vmem_to_hbm [thread:$0]  %s8166, 32, %s8168, [#allocation3]
    $region25: #{dlf_convnet3_forward.5} parent=1 // pred_fallthru
      _
    // Predicated region
    $region26: #{dlf_convnet3_forward.5} parent=1 // pred_check
      _
    $region27: #{dlf_convnet3_forward.5} parent=1 // pred_check_branch
      %8172 = sbr.rel (0) target = $region29
    $region28: #{dlf_convnet3_forward.5} parent=1 // pred_region
      %8174 = vsyncadd [#allocation5], 0
      %s8176 = sshll.u32 [#allocation4], 4
      %s8177 = int_to_ptr.vmem [resolvable:$true] %s8176
      %s8178 = sshll.u32 %s6, 4
      %s8179 = int_to_ptr.hbm [resolvable:$true] %s8178
      %8181 = dma.vmem_to_hbm [thread:$0]  %s8177, 64, %s8179, [#allocation5]
    $region29: #{dlf_convnet3_forward.5} parent=1 // pred_fallthru
      _
    // Predicated region
    $region30: #{dlf_convnet3_forward.5} parent=1 // pred_check
      _
    $region31: #{dlf_convnet3_forward.5} parent=1 // pred_check_branch
      %8183 = sbr.rel (0) target = $region33
    $region32: #{dlf_convnet3_forward.5} parent=1 // pred_region
      %8185 = dma.done [#allocation3], 32
    $region33: #{dlf_convnet3_forward.5} parent=1 // pred_fallthru
      _
    // Predicated region
    $region34: #{dlf_convnet3_forward.5} parent=1 // pred_check
      _
    $region35: #{dlf_convnet3_forward.5} parent=1 // pred_check_branch
      %8187 = sbr.rel (0) target = $region37
    $region36: #{dlf_convnet3_forward.5} parent=1 // pred_region
      %8189 = dma.done [#allocation5], 64
    $region37: #{dlf_convnet3_forward.5} parent=1 // pred_fallthru
      _
    %8190 = vsyncpa [#allocation3], 1
    %8191 = vsyncpa [#allocation5], 1

</llo_original>
